<compile_context>
chip_gen: v7x
topology: tpu7x:2x2x1
jax: 0.10.0
libtpu: 0.0.40
codegen_flags: <defaults>
</compile_context>

<pallas_src>
import math
import functools

import numpy as np
import jax
import jax.numpy as jnp
from jax.experimental import pallas as pl
from jax.experimental.pallas import tpu as pltpu


def _csa_core_kernel(pooled_ref, vunf_ref, wattn_ref, battn_ref, gsum_ref,
                     gexp_ref, esel_ref, bdtile_ref, rproj_ref, out_ref, *, scale):
    """Fused CSA core for one row tile.

    pooled_ref : (TM, Cin)            bf16 pooled tokens
    vunf_ref   : (TM, KK*C)           bf16 unfolded values, column = q*C + c
    wattn_ref  : (Cin, NH*KK*KK)      bf16 attention Linear weight (pre-transposed)
    battn_ref  : (1, NH*KK*KK)        f32  attention Linear bias
    gsum_ref   : (NH*KK*KK, NH*KK)    bf16 group-sum matrix (segmented softmax)
    gexp_ref   : (NH*KK, NH*KK*KK)    bf16 group-expand matrix (gsum^T)
    esel_ref   : (NH*KK*KK, KK*KK*C)  bf16 head->channel expansion / column regroup
    bdtile_ref : (KK*C, KK*KK*C)      bf16 grouped conv weight, pre-tiled KK times
    rproj_ref  : (KK*KK*C, KK*C)      bf16 per-p summation with proj weight fused in
    out_ref    : (TM, KK*C)           f32  fold input, column = p*C + c_out
    """
    # attention logits: column index = head*KK*KK + p*KK + q
    z = jnp.dot(pooled_ref[...], wattn_ref[...], preferred_element_type=jnp.float32)
    z = (z + battn_ref[...]) * scale                               # (TM, NH*KK*KK)

    # softmax over q inside each (head, p) group of KK consecutive columns.
    # Row-global max subtraction is a per-group constant shift (exact); denominator is
    # guarded so a fully-underflowed group degrades to zero attention instead of NaN.
    m = jnp.max(z, axis=-1, keepdims=True)
    e = jnp.exp(z - m).astype(jnp.bfloat16)
    gs = jnp.dot(e, gsum_ref[...], preferred_element_type=jnp.float32)       # (TM, NH*KK)
    denom = jnp.dot(gs.astype(jnp.bfloat16), gexp_ref[...],
                    preferred_element_type=jnp.float32)                      # (TM, NH*KK*KK)
    denom = jnp.maximum(denom, jnp.finfo(jnp.float32).tiny)
    attn = (e.astype(jnp.float32) / denom).astype(jnp.bfloat16)

    # broadcast each head's attention to its channels, columns regrouped as r*C + c
    # with r = p*KK + q  (0/1 selection matrix, kept as a bf16 matmul).
    attn_full = jnp.dot(attn, esel_ref[...],
                        preferred_element_type=jnp.float32)                  # (TM, KK*KK*C)

    # grouped 1x1 conv, pre-tiled KK times along columns so it already has the
    # r*C + c layout of attn_full:  vw_tiled[:, p*KK*C + q*C + c] = vw[:, q*C + c].
    vw_tiled = jnp.dot(vunf_ref[...], bdtile_ref[...],
                       preferred_element_type=jnp.float32)                   # (TM, KK*KK*C)

    # out[l, p*C + c_out] = sum_{q,c} attn_full * vw * proj_w[c_out, c]
    # — single wide matmul; the proj Linear is fused into rproj.
    prod = (attn_full * vw_tiled).astype(jnp.bfloat16)
    out_ref[...] = jnp.dot(prod, rproj_ref[...],
                           preferred_element_type=jnp.float32).astype(out_ref.dtype)


def _round_up(a, b):
    return (a + b - 1) // b * b


def csa_forward(x, params, *, num_heads, kernel_size=3, padding=1, stride=2):
    B, H, W, Cin = x.shape
    C = Cin                                    # module requires in_dim == out_dim
    kk = kernel_size * kernel_size
    hd = C // num_heads
    scale = hd ** -0.5
    assert H % stride == 0 and W % stride == 0  # keeps AvgPool2d(ceil_mode) exact
    h, w = H // stride, W // stride
    L = h * w
    nhk4 = num_heads * kk * kk

    x = x.astype(jnp.float32)

    # ---- glue: average pool (AvgPool2d(kernel=stride, stride=stride)) ----
    pooled = x.reshape(B, h, stride, w, stride, C).mean(axis=(2, 4)).reshape(B * L, C)

    # ---- glue: unfold / im2col (kernel=3, pad=1, stride=2), column = q*C + c ----
    xp = jnp.pad(x, ((0, 0), (padding, padding), (padding, padding), (0, 0)))
    pat = []
    for ki in range(kernel_size):
        for kj in range(kernel_size):
            pat.append(xp[:, ki:ki + stride * (h - 1) + 1:stride,
                             kj:kj + stride * (w - 1) + 1:stride, :])
    vunf = jnp.stack(pat, axis=3).reshape(B * L, kk * C)

    # ---- row tiling: batch folded into the token axis ----
    M_total = B * L
    TM = min(512, _round_up(M_total, 8))
    Mp = _round_up(M_total, TM)
    if Mp != M_total:
        pooled = jnp.pad(pooled, ((0, Mp - M_total), (0, 0)))
        vunf = jnp.pad(vunf, ((0, Mp - M_total), (0, 0)))
    pooled = pooled.astype(jnp.bfloat16)
    vunf = vunf.astype(jnp.bfloat16)

    # ---- deterministic constant helper matrices (bf16 MXU operands) ----
    f = np.arange(nhk4)
    gsum = (f[:, None] // kk == np.arange(num_heads * kk)[None, :]).astype(np.float32)
    gexp = np.ascontiguousarray(gsum.T)
    esel = np.zeros((nhk4, kk * kk * C), np.float32)
    rr, cc = np.meshgrid(np.arange(kk * kk), np.arange(C), indexing="ij")
    esel[(cc // hd) * kk * kk + rr, rr * C + cc] = 1.0

    wc = params["conv_w"].reshape(kk, C, C)                        # [q, c_out, c_in]
    bdconv = jax.scipy.linalg.block_diag(*[wc[q].T for q in range(kk)])   # (KK*C, KK*C)
    bdtile = jnp.tile(bdconv, (1, kk)).astype(jnp.bfloat16)        # (KK*C, KK*KK*C)

    projw = params["proj_w"].T.astype(jnp.float32)                 # (C_in, C_out)
    pblock = jnp.tile(projw, (kk, 1))                              # (KK*C, C)
    rproj = jax.scipy.linalg.block_diag(*([pblock] * kk)).astype(jnp.bfloat16)

    wattn = params["attn_w"].T.astype(jnp.bfloat16)                # (Cin, nhk4)
    battn = params["attn_b"].reshape(1, nhk4).astype(jnp.float32)
    gsum_b = jnp.asarray(gsum, jnp.bfloat16)
    gexp_b = jnp.asarray(gexp, jnp.bfloat16)
    esel_b = jnp.asarray(esel, jnp.bfloat16)

    kern = functools.partial(_csa_core_kernel, scale=scale)
    core_out = pl.pallas_call(
        kern,
        out_shape=jax.ShapeDtypeStruct((Mp, kk * C), jnp.float32),
        grid=(Mp // TM,),
        in_specs=[
            pl.BlockSpec((TM, C), lambda i: (i, 0)),
            pl.BlockSpec((TM, kk * C), lambda i: (i, 0)),
            pl.BlockSpec((C, nhk4), lambda i: (0, 0)),
            pl.BlockSpec((1, nhk4), lambda i: (0, 0)),
            pl.BlockSpec((nhk4, num_heads * kk), lambda i: (0, 0)),
            pl.BlockSpec((num_heads * kk, nhk4), lambda i: (0, 0)),
            pl.BlockSpec((nhk4, kk * kk * C), lambda i: (0, 0)),
            pl.BlockSpec((kk * C, kk * kk * C), lambda i: (0, 0)),
            pl.BlockSpec((kk * kk * C, kk * C), lambda i: (0, 0)),
        ],
        out_specs=pl.BlockSpec((TM, kk * C), lambda i: (i, 0)),
        compiler_params=pltpu.CompilerParams(
            dimension_semantics=("parallel",),
            vmem_limit_bytes=64 * 1024 * 1024),
    )(pooled, vunf, wattn, battn, gsum_b, gexp_b, esel_b, bdtile, rproj)

    # ---- glue: fold / col2im (scatter-add of overlapping, already-projected patches) ----
    core = core_out[:M_total].reshape(B, L, kk * C)
    canvas = jnp.zeros((B, H + 2 * padding, W + 2 * padding, C), jnp.float32)
    for ki in range(kernel_size):
        for kj in range(kernel_size):
            p = ki * kernel_size + kj
            patch = core[:, :, p * C:(p + 1) * C].reshape(B, h, w, C)
            canvas = canvas.at[:, ki:ki + stride * (h - 1) + 1:stride,
                                  kj:kj + stride * (w - 1) + 1:stride, :].add(patch)
    folded = canvas[:, padding:padding + H, padding:padding + W, :]

    # projection weight already fused into the kernel; only the bias remains.
    return folded + params["proj_b"].reshape(1, 1, 1, C).astype(jnp.float32)


def csa_reference(x, params, *, num_heads, kernel_size=3, padding=1, stride=2):
    """Pure-JAX reference mirroring the PyTorch forward (for self-check)."""
    B, H, W, C = x.shape
    kk = kernel_size * kernel_size
    hd = C // num_heads
    scale = hd ** -0.5
    h, w = H // stride, W // stride
    L = h * w
    pooled = x.reshape(B, h, stride, w, stride, C).mean(axis=(2, 4)).reshape(B, L, C)
    z = pooled @ params["attn_w"].T + params["attn_b"]
    z = z.reshape(B, L, num_heads, kk, kk).transpose(0, 2, 1, 3, 4) * scale
    attn = jax.nn.softmax(z, axis=-1)                                    # (B,nh,L,kk,kk)
    xp = jnp.pad(x, ((0, 0), (padding, padding), (padding, padding), (0, 0)))
    pat = []
    for ki in range(kernel_size):
        for kj in range(kernel_size):
            pat.append(xp[:, ki:ki + stride * (h - 1) + 1:stride,
                             kj:kj + stride * (w - 1) + 1:stride, :])
    vunf = jnp.stack(pat, axis=3).reshape(B, L, kk, C)
    wc = params["conv_w"].reshape(kk, C, C)                              # [q, o, i]
    vw = jnp.einsum("blqi,qoi->blqo", vunf, wc)
    vwh = vw.reshape(B, L, kk, num_heads, hd).transpose(0, 3, 1, 2, 4)
    o = jnp.einsum("bnlpq,bnlqd->bnlpd", attn, vwh)
    o = o.transpose(0, 2, 3, 1, 4).reshape(B, L, kk, C)
    canvas = jnp.zeros((B, H + 2 * padding, W + 2 * padding, C), jnp.float32)
    for ki in range(kernel_size):
        for kj in range(kernel_size):
            p = ki * kernel_size + kj
            canvas = canvas.at[:, ki:ki + stride * (h - 1) + 1:stride,
                                  kj:kj + stride * (w - 1) + 1:stride, :].add(
                o[:, :, p, :].reshape(B, h, w, C))
    folded = canvas[:, padding:padding + H, padding:padding + W, :]
    return folded @ params["proj_w"].T + params["proj_b"]


if __name__ == "__main__":
    B, H, W = 2, 16, 16
    in_dim = out_dim = 16          # module implicitly requires in_dim == out_dim
    num_heads = 4
    kernel_size, padding, stride = 3, 1, 2
    kk = kernel_size * kernel_size

    key = jax.random.PRNGKey(0)
    kx, k1, k2, k3, k4, k5 = jax.random.split(key, 6)
    x = jax.random.normal(kx, (B, H, W, in_dim), jnp.float32)

    fan_out = kk * out_dim  # csa_group == 1
    params = {
        "attn_w": 0.1 * jax.random.normal(k1, (kk * kk * num_heads, in_dim), jnp.float32),
        "attn_b": 0.1 * jax.random.normal(k2, (kk * kk * num_heads,), jnp.float32),
        "conv_w": math.sqrt(2.0 / fan_out)
                  * jax.random.normal(k3, (kk * out_dim, out_dim), jnp.float32),
        "proj_w": 0.1 * jax.random.normal(k4, (out_dim, out_dim), jnp.float32),
        "proj_b": 0.1 * jax.random.normal(k5, (out_dim,), jnp.float32),
    }

    out = jax.block_until_ready(
        csa_forward(x, params, num_heads=num_heads,
                    kernel_size=kernel_size, padding=padding, stride=stride))
    ref = jax.block_until_ready(
        csa_reference(x, params, num_heads=num_heads,
                      kernel_size=kernel_size, padding=padding, stride=stride))

    assert out.shape == (B, H, W, out_dim), out.shape
    max_err = float(jnp.max(jnp.abs(out - ref)))
    assert max_err < 5e-2, f"kernel/reference mismatch: max abs err = {max_err}"
    print("KERNEL_OK")
</pallas_src>

<mosaic_0001>
module attributes {stable_mosaic.version = 11 : i64} {
  func.func @_csa_core_kernel(%arg0: i32, %arg1: memref<128x16xbf16, #tpu.memory_space<vmem>>, %arg2: memref<128x144xbf16, #tpu.memory_space<vmem>>, %arg3: memref<16x324xbf16, #tpu.memory_space<vmem>>, %arg4: memref<1x324xf32, #tpu.memory_space<vmem>>, %arg5: memref<324x36xbf16, #tpu.memory_space<vmem>>, %arg6: memref<36x324xbf16, #tpu.memory_space<vmem>>, %arg7: memref<324x1296xbf16, #tpu.memory_space<vmem>>, %arg8: memref<144x1296xbf16, #tpu.memory_space<vmem>>, %arg9: memref<1296x144xbf16, #tpu.memory_space<vmem>>, %arg10: memref<128x144xf32, #tpu.memory_space<vmem>>) attributes {dimension_semantics = [#tpu.dimension_semantics<parallel>], iteration_bounds = array<i64: 1>, scalar_prefetch = 0 : i64, scratch_operands = 0 : i64, tpu.core_type = #tpu.core_type<tc>, window_params = [{transform_indices = @transform_0, window_bounds = array<i64: 128, 16>}, {transform_indices = @transform_1, window_bounds = array<i64: 128, 144>}, {pipeline_mode = #tpu.pipeline_mode<synchronous>, transform_indices = @transform_2, window_bounds = array<i64: 16, 324>}, {pipeline_mode = #tpu.pipeline_mode<synchronous>, transform_indices = @transform_3, window_bounds = array<i64: 1, 324>}, {pipeline_mode = #tpu.pipeline_mode<synchronous>, transform_indices = @transform_4, window_bounds = array<i64: 324, 36>}, {pipeline_mode = #tpu.pipeline_mode<synchronous>, transform_indices = @transform_5, window_bounds = array<i64: 36, 324>}, {pipeline_mode = #tpu.pipeline_mode<synchronous>, transform_indices = @transform_6, window_bounds = array<i64: 324, 1296>}, {pipeline_mode = #tpu.pipeline_mode<synchronous>, transform_indices = @transform_7, window_bounds = array<i64: 144, 1296>}, {pipeline_mode = #tpu.pipeline_mode<synchronous>, transform_indices = @transform_8, window_bounds = array<i64: 1296, 144>}, {transform_indices = @transform_9, window_bounds = array<i64: 128, 144>}]} {
    %c0 = arith.constant 0 : index
    %c0_0 = arith.constant 0 : index
    %0 = vector.load %arg1[%c0, %c0_0] : memref<128x16xbf16, #tpu.memory_space<vmem>>, vector<128x16xbf16>
    %c0_1 = arith.constant 0 : index
    %c0_2 = arith.constant 0 : index
    %1 = vector.load %arg3[%c0_1, %c0_2] : memref<16x324xbf16, #tpu.memory_space<vmem>>, vector<16x324xbf16>
    %cst = arith.constant dense<0.000000e+00> : vector<128x324xf32>
    %2 = tpu.matmul %0, %1, %cst {dimension_numbers = #tpu.dot_dimension_numbers<[1], [0], [0], [1], [0, 0, 1, 1], [], []>} : vector<128x16xbf16>, vector<16x324xbf16>, vector<128x324xf32> -> vector<128x324xf32>
    %c0_3 = arith.constant 0 : index
    %c0_4 = arith.constant 0 : index
    %3 = vector.load %arg4[%c0_3, %c0_4] : memref<1x324xf32, #tpu.memory_space<vmem>>, vector<1x324xf32>
    %4 = vector.broadcast %3 : vector<1x324xf32> to vector<128x324xf32>
    %5 = arith.addf %2, %4 : vector<128x324xf32>
    %cst_5 = arith.constant 5.000000e-01 : f32
    %6 = vector.broadcast %cst_5 : f32 to vector<128x324xf32>
    %7 = arith.mulf %5, %6 : vector<128x324xf32>
    %cst_6 = arith.constant dense<0xFF800000> : vector<128xf32>
    %8 = vector.multi_reduction <maximumf>, %7, %cst_6 [1] : vector<128x324xf32> to vector<128xf32>
    %9 = vector.shape_cast %8 : vector<128xf32> to vector<128x1xf32>
    %10 = vector.broadcast %9 : vector<128x1xf32> to vector<128x324xf32>
    %11 = arith.subf %7, %10 : vector<128x324xf32>
    %12 = math.exp %11 : vector<128x324xf32>
    %13 = arith.truncf %12 : vector<128x324xf32> to vector<128x324xbf16>
    %c0_7 = arith.constant 0 : index
    %c0_8 = arith.constant 0 : index
    %14 = vector.load %arg5[%c0_7, %c0_8] : memref<324x36xbf16, #tpu.memory_space<vmem>>, vector<324x36xbf16>
    %cst_9 = arith.constant dense<0.000000e+00> : vector<128x36xf32>
    %15 = tpu.matmul %13, %14, %cst_9 {dimension_numbers = #tpu.dot_dimension_numbers<[1], [0], [0], [1], [0, 0, 1, 1], [], []>} : vector<128x324xbf16>, vector<324x36xbf16>, vector<128x36xf32> -> vector<128x36xf32>
    %16 = arith.truncf %15 : vector<128x36xf32> to vector<128x36xbf16>
    %c0_10 = arith.constant 0 : index
    %c0_11 = arith.constant 0 : index
    %17 = vector.load %arg6[%c0_10, %c0_11] : memref<36x324xbf16, #tpu.memory_space<vmem>>, vector<36x324xbf16>
    %cst_12 = arith.constant dense<0.000000e+00> : vector<128x324xf32>
    %18 = tpu.matmul %16, %17, %cst_12 {dimension_numbers = #tpu.dot_dimension_numbers<[1], [0], [0], [1], [0, 0, 1, 1], [], []>} : vector<128x36xbf16>, vector<36x324xbf16>, vector<128x324xf32> -> vector<128x324xf32>
    %cst_13 = arith.constant 1.17549435E-38 : f32
    %19 = vector.broadcast %cst_13 : f32 to vector<128x324xf32>
    %20 = arith.maximumf %18, %19 : vector<128x324xf32>
    %21 = arith.extf %13 : vector<128x324xbf16> to vector<128x324xf32>
    %22 = arith.divf %21, %20 : vector<128x324xf32>
    %23 = arith.truncf %22 : vector<128x324xf32> to vector<128x324xbf16>
    %c0_14 = arith.constant 0 : index
    %c0_15 = arith.constant 0 : index
    %24 = vector.load %arg7[%c0_14, %c0_15] : memref<324x1296xbf16, #tpu.memory_space<vmem>>, vector<324x1296xbf16>
    %cst_16 = arith.constant dense<0.000000e+00> : vector<128x1296xf32>
    %25 = tpu.matmul %23, %24, %cst_16 {dimension_numbers = #tpu.dot_dimension_numbers<[1], [0], [0], [1], [0, 0, 1, 1], [], []>} : vector<128x324xbf16>, vector<324x1296xbf16>, vector<128x1296xf32> -> vector<128x1296xf32>
    %c0_17 = arith.constant 0 : index
    %c0_18 = arith.constant 0 : index
    %26 = vector.load %arg2[%c0_17, %c0_18] : memref<128x144xbf16, #tpu.memory_space<vmem>>, vector<128x144xbf16>
    %c0_19 = arith.constant 0 : index
    %c0_20 = arith.constant 0 : index
    %27 = vector.load %arg8[%c0_19, %c0_20] : memref<144x1296xbf16, #tpu.memory_space<vmem>>, vector<144x1296xbf16>
    %cst_21 = arith.constant dense<0.000000e+00> : vector<128x1296xf32>
    %28 = tpu.matmul %26, %27, %cst_21 {dimension_numbers = #tpu.dot_dimension_numbers<[1], [0], [0], [1], [0, 0, 1, 1], [], []>} : vector<128x144xbf16>, vector<144x1296xbf16>, vector<128x1296xf32> -> vector<128x1296xf32>
    %29 = arith.mulf %25, %28 : vector<128x1296xf32>
    %30 = arith.truncf %29 : vector<128x1296xf32> to vector<128x1296xbf16>
    %c0_22 = arith.constant 0 : index
    %c0_23 = arith.constant 0 : index
    %31 = vector.load %arg9[%c0_22, %c0_23] : memref<1296x144xbf16, #tpu.memory_space<vmem>>, vector<1296x144xbf16>
    %cst_24 = arith.constant dense<0.000000e+00> : vector<128x144xf32>
    %32 = tpu.matmul %30, %31, %cst_24 {dimension_numbers = #tpu.dot_dimension_numbers<[1], [0], [0], [1], [0, 0, 1, 1], [], []>} : vector<128x1296xbf16>, vector<1296x144xbf16>, vector<128x144xf32> -> vector<128x144xf32>
    %c0_25 = arith.constant 0 : index
    %c0_26 = arith.constant 0 : index
    %33 = vector.load %arg10[%c0_25, %c0_26] : memref<128x144xf32, #tpu.memory_space<vmem>>, vector<128x144xf32>
    tpu.vector_store %arg10[%c0_25, %c0_26], %32 {strides = array<i32>} : memref<128x144xf32, #tpu.memory_space<vmem>>, vector<128x144xf32>,
    return
  }
  func.func @transform_0(%arg0: i32) -> (i32, i32) {
    %c0_i32 = arith.constant 0 : i32
    %c0_i32_0 = arith.constant 0 : i32
    return %arg0, %c0_i32 : i32, i32
  }
  func.func @transform_1(%arg0: i32) -> (i32, i32) {
    %c0_i32 = arith.constant 0 : i32
    %c0_i32_0 = arith.constant 0 : i32
    return %arg0, %c0_i32 : i32, i32
  }
  func.func @transform_2(%arg0: i32) -> (i32, i32) {
    %c0_i32 = arith.constant 0 : i32
    %c0_i32_0 = arith.constant 0 : i32
    %c0_i32_1 = arith.constant 0 : i32
    return %c0_i32, %c0_i32_0 : i32, i32
  }
  func.func @transform_3(%arg0: i32) -> (i32, i32) {
    %c0_i32 = arith.constant 0 : i32
    %c0_i32_0 = arith.constant 0 : i32
    %c0_i32_1 = arith.constant 0 : i32
    return %c0_i32, %c0_i32_0 : i32, i32
  }
  func.func @transform_4(%arg0: i32) -> (i32, i32) {
    %c0_i32 = arith.constant 0 : i32
    %c0_i32_0 = arith.constant 0 : i32
    %c0_i32_1 = arith.constant 0 : i32
    return %c0_i32, %c0_i32_0 : i32, i32
  }
  func.func @transform_5(%arg0: i32) -> (i32, i32) {
    %c0_i32 = arith.constant 0 : i32
    %c0_i32_0 = arith.constant 0 : i32
    %c0_i32_1 = arith.constant 0 : i32
    return %c0_i32, %c0_i32_0 : i32, i32
  }
  func.func @transform_6(%arg0: i32) -> (i32, i32) {
    %c0_i32 = arith.constant 0 : i32
    %c0_i32_0 = arith.constant 0 : i32
    %c0_i32_1 = arith.constant 0 : i32
    return %c0_i32, %c0_i32_0 : i32, i32
  }
  func.func @transform_7(%arg0: i32) -> (i32, i32) {
    %c0_i32 = arith.constant 0 : i32
    %c0_i32_0 = arith.constant 0 : i32
    %c0_i32_1 = arith.constant 0 : i32
    return %c0_i32, %c0_i32_0 : i32, i32
  }
  func.func @transform_8(%arg0: i32) -> (i32, i32) {
    %c0_i32 = arith.constant 0 : i32
    %c0_i32_0 = arith.constant 0 : i32
    %c0_i32_1 = arith.constant 0 : i32
    return %c0_i32, %c0_i32_0 : i32, i32
  }
  func.func @transform_9(%arg0: i32) -> (i32, i32) {
    %c0_i32 = arith.constant 0 : i32
    %c0_i32_0 = arith.constant 0 : i32
    return %arg0, %c0_i32 : i32, i32
  }
}

</mosaic_0001>

<llo_original>
// kernel: tpu_custom_call.1
$region0: #{tpu_custom_call.1}
  #allocation0 [shape = 'u32[]', space=smem, size = 0x4, offset = 0x4, fixed_abs, tag = 'smem constant byte address 0x4 - core index']
  #allocation1 [shape = 'u32[144,128]{1,0:T(1,128)}', space=vmem, size = 0x12000, scoped, tag = 'internal scratch']
  %s0 = inlined_call_operand.hbm [shape: bf16[128,16], index: 0, kind: input, shape index: {}]
  %s1 = inlined_call_operand.hbm [shape: bf16[128,144], index: 1, kind: input, shape index: {}]
  %s2 = inlined_call_operand.hbm [shape: bf16[16,324], index: 2, kind: input, shape index: {}]
  %s3 = inlined_call_operand.hbm [shape: f32[1,324], index: 3, kind: input, shape index: {}]
  %s4 = inlined_call_operand.hbm [shape: bf16[324,36], index: 4, kind: input, shape index: {}]
  %s5 = inlined_call_operand.hbm [shape: bf16[36,324], index: 5, kind: input, shape index: {}]
  %s6 = inlined_call_operand.hbm [shape: bf16[324,1296], index: 6, kind: input, shape index: {}]
  %s7 = inlined_call_operand.hbm [shape: bf16[144,1296], index: 7, kind: input, shape index: {}]
  %s8 = inlined_call_operand.hbm [shape: bf16[1296,144], index: 8, kind: input, shape index: {}]
  %s9 = inlined_call_operand.hbm [shape: f32[128,144], index: 9, kind: output, shape index: {}]
  %s10 = sld [smem:[#allocation0]]
  $region82: #{tpu_custom_call.1} parent=0
    _
  %s12 = ssub.s32 1, %s10
  %s13 = scalar_select 0, %s12, %s10
  $region1: #{tpu_custom_call.1} parent=0
    #allocation2 [shape = 'u8[32768]{0}', space=vmem, size = 0x8000, scoped, tag = 'input window, operand 0, single buffered']
    #allocation3 [shape = 's32[1]{0}', space=sflag, size = 0x4, scoped, tag = 'scoped memory for tpu_custom_call.1']
    #allocation4 [shape = 's32[1]{0}', space=sflag, size = 0x4, scoped, tag = 'scoped memory for tpu_custom_call.1']
    #allocation5 [shape = 'u8[65536]{0}', space=vmem, size = 0x10000, scoped, tag = 'input window, operand 1, single buffered']
    #allocation6 [shape = 's32[1]{0}', space=sflag, size = 0x4, scoped, tag = 'scoped memory for tpu_custom_call.1']
    #allocation7 [shape = 'u8[12288]{0}', space=vmem, size = 0x3000, scoped, tag = 'input window, operand 2, single buffered']
    #allocation8 [shape = 'u8[1536]{0}', space=vmem, size = 0x800, scoped, tag = 'input window, operand 3, single buffered']
    #allocation9 [shape = 's32[1]{0}', space=sflag, size = 0x4, scoped, tag = 'scoped memory for tpu_custom_call.1']
    #allocation10 [shape = 'u8[83968]{0}', space=vmem, size = 0x14800, scoped, tag = 'input window, operand 4, single buffered']
    #allocation11 [shape = 'u8[30720]{0}', space=vmem, size = 0x7800, scoped, tag = 'input window, operand 5, single buffered']
    #allocation12 [shape = 's32[1]{0}', space=sflag, size = 0x4, scoped, tag = 'scoped memory for tpu_custom_call.1']
    #allocation13 [shape = 'u8[923648]{0}', space=vmem, size = 0xe1800, scoped, tag = 'input window, operand 6, single buffered']
    #allocation14 [shape = 'u8[405504]{0}', space=vmem, size = 0x63000, scoped, tag = 'input window, operand 7, single buffered']
    #allocation15 [shape = 's32[1]{0}', space=sflag, size = 0x4, scoped, tag = 'scoped memory for tpu_custom_call.1']
    #allocation16 [shape = 'u8[663552]{0}', space=vmem, size = 0xa2000, scoped, tag = 'input window, operand 8, single buffered']
    #allocation17 [shape = 'u8[131072]{0}', space=vmem, size = 0x20000, scoped, tag = 'output window, operand 0, single buffered']
    %14 = vsyncpa [#allocation3], 0
    %15 = vsyncpa [#allocation6], 0
    %16 = vsyncpa [#allocation9], 0
    %17 = vsyncpa [#allocation12], 0
    %18 = vsyncpa [#allocation15], 0
    %19 = vsyncpa [#allocation4], 0
    // Predicated region
    $region2: #{tpu_custom_call.1} parent=1 // pred_check
      _
    $region3: #{tpu_custom_call.1} parent=1 // pred_check_branch
      %21 = sbr.rel (0) target = $region5
    $region4: #{tpu_custom_call.1} parent=1 // pred_region
      %s23 = ssub.s32 1024, 1024
      %24 = vsyncadd [#allocation3], %s23
      %s25 = sshll.u32 [#allocation2], 4
      %s26 = int_to_ptr.vmem [resolvable:$true] %s25
      %31 = dma.hbm_to_vmem [thread:$0]  %s0, 1024, %s26, [#allocation3], 64, 64, 4
    $region5: #{tpu_custom_call.1} parent=1 // pred_fallthru
      _
    // Predicated region
    $region6: #{tpu_custom_call.1} parent=1 // pred_check
      _
    $region7: #{tpu_custom_call.1} parent=1 // pred_check_branch
      %33 = sbr.rel (0) target = $region9
    $region8: #{tpu_custom_call.1} parent=1 // pred_region
      %s35 = ssub.s32 2048, 2048
      %36 = vsyncadd [#allocation6], %s35
      %s37 = sshll.u32 [#allocation5], 4
      %s38 = int_to_ptr.vmem [resolvable:$true] %s37
      %43 = dma.hbm_to_vmem [thread:$0]  %s1, 2048, %s38, [#allocation6], 128, 128, 8
    $region9: #{tpu_custom_call.1} parent=1 // pred_fallthru
      _
    // Predicated region
    $region10: #{tpu_custom_call.1} parent=1 // pred_check
      _
    $region11: #{tpu_custom_call.1} parent=1 // pred_check_branch
      %45 = sbr.rel (0) target = $region13
    $region12: #{tpu_custom_call.1} parent=1 // pred_region
      %s47 = ssub.s32 384, 384
      %48 = vsyncadd [#allocation6], %s47
      %s49 = sshll.u32 [#allocation7], 4
      %s50 = int_to_ptr.vmem [resolvable:$true] %s49
      %55 = dma.hbm_to_vmem [thread:$0]  %s2, 384, %s50, [#allocation6], 192, 192, 12
    $region13: #{tpu_custom_call.1} parent=1 // pred_fallthru
      _
    // Predicated region
    $region14: #{tpu_custom_call.1} parent=1 // pred_check
      _
    $region15: #{tpu_custom_call.1} parent=1 // pred_check_branch
      %57 = sbr.rel (0) target = $region17
    $region16: #{tpu_custom_call.1} parent=1 // pred_region
      %s59 = ssub.s32 48, 48
      %60 = vsyncadd [#allocation9], %s59
      %s62 = sshll.u32 [#allocation8], 4
      %s63 = int_to_ptr.vmem [resolvable:$true] %s62
      %65 = dma.hbm_to_vmem [thread:$0]  %s3, 48, %s63, [#allocation9]
    $region17: #{tpu_custom_call.1} parent=1 // pred_fallthru
      _
    // Predicated region
    $region18: #{tpu_custom_call.1} parent=1 // pred_check
      _
    $region19: #{tpu_custom_call.1} parent=1 // pred_check_branch
      %67 = sbr.rel (0) target = $region21
    $region20: #{tpu_custom_call.1} parent=1 // pred_region
      %s69 = ssub.s32 2624, 2624
      %70 = vsyncadd [#allocation9], %s69
      %s71 = sshll.u32 [#allocation10], 4
      %s72 = int_to_ptr.vmem [resolvable:$true] %s71
      %77 = dma.hbm_to_vmem [thread:$0]  %s4, 2624, %s72, [#allocation9], 64, 64, 4
    $region21: #{tpu_custom_call.1} parent=1 // pred_fallthru
      _
    // Predicated region
    $region22: #{tpu_custom_call.1} parent=1 // pred_check
      _
    $region23: #{tpu_custom_call.1} parent=1 // pred_check_branch
      %79 = sbr.rel (0) target = $region25
    $region24: #{tpu_custom_call.1} parent=1 // pred_region
      %s81 = ssub.s32 960, 960
      %82 = vsyncadd [#allocation12], %s81
      %s83 = sshll.u32 [#allocation11], 4
      %s84 = int_to_ptr.vmem [resolvable:$true] %s83
      %89 = dma.hbm_to_vmem [thread:$0]  %s5, 960, %s84, [#allocation12], 192, 192, 12
    $region25: #{tpu_custom_call.1} parent=1 // pred_fallthru
      _
    // Predicated region
    $region26: #{tpu_custom_call.1} parent=1 // pred_check
      _
    $region27: #{tpu_custom_call.1} parent=1 // pred_check_branch
      %91 = sbr.rel (0) target = $region29
    $region28: #{tpu_custom_call.1} parent=1 // pred_region
      %s93 = ssub.s32 28864, 28864
      %94 = vsyncadd [#allocation12], %s93
      %s95 = sshll.u32 [#allocation13], 4
      %s96 = int_to_ptr.vmem [resolvable:$true] %s95
      %101 = dma.hbm_to_vmem [thread:$0]  %s6, 28864, %s96, [#allocation12], 704, 704, 44
    $region29: #{tpu_custom_call.1} parent=1 // pred_fallthru
      _
    // Predicated region
    $region30: #{tpu_custom_call.1} parent=1 // pred_check
      _
    $region31: #{tpu_custom_call.1} parent=1 // pred_check_branch
      %103 = sbr.rel (0) target = $region33
    $region32: #{tpu_custom_call.1} parent=1 // pred_region
      %s105 = ssub.s32 12672, 12672
      %106 = vsyncadd [#allocation15], %s105
      %s107 = sshll.u32 [#allocation14], 4
      %s108 = int_to_ptr.vmem [resolvable:$true] %s107
      %113 = dma.hbm_to_vmem [thread:$0]  %s7, 12672, %s108, [#allocation15], 704, 704, 44
    $region33: #{tpu_custom_call.1} parent=1 // pred_fallthru
      _
    // Predicated region
    $region34: #{tpu_custom_call.1} parent=1 // pred_check
      _
    $region35: #{tpu_custom_call.1} parent=1 // pred_check_branch
      %115 = sbr.rel (0) target = $region37
    $region36: #{tpu_custom_call.1} parent=1 // pred_region
      %s117 = ssub.s32 20736, 20736
      %118 = vsyncadd [#allocation15], %s117
      %s119 = sshll.u32 [#allocation16], 4
      %s120 = int_to_ptr.vmem [resolvable:$true] %s119
      %125 = dma.hbm_to_vmem [thread:$0]  %s8, 20736, %s120, [#allocation15], 128, 128, 8
    $region37: #{tpu_custom_call.1} parent=1 // pred_fallthru
      _
    // Predicated region
    $region38: #{tpu_custom_call.1} parent=1 // pred_check
      _
    $region39: #{tpu_custom_call.1} parent=1 // pred_check_branch
      %127 = sbr.rel (0) target = $region41
    $region40: #{tpu_custom_call.1} parent=1 // pred_region
      %128 = dma.done [#allocation3], 1024
    $region41: #{tpu_custom_call.1} parent=1 // pred_fallthru
      _
    // Predicated region
    $region42: #{tpu_custom_call.1} parent=1 // pred_check
      _
    $region43: #{tpu_custom_call.1} parent=1 // pred_check_branch
      %130 = sbr.rel (0) target = $region45
    $region44: #{tpu_custom_call.1} parent=1 // pred_region
      %131 = dma.done [#allocation6], 2048
    $region45: #{tpu_custom_call.1} parent=1 // pred_fallthru
      _
    // Predicated region
    $region46: #{tpu_custom_call.1} parent=1 // pred_check
      _
    $region47: #{tpu_custom_call.1} parent=1 // pred_check_branch
      %133 = sbr.rel (0) target = $region49
    $region48: #{tpu_custom_call.1} parent=1 // pred_region
      %134 = dma.done [#allocation6], 384
    $region49: #{tpu_custom_call.1} parent=1 // pred_fallthru
      _
    // Predicated region
    $region50: #{tpu_custom_call.1} parent=1 // pred_check
      _
    $region51: #{tpu_custom_call.1} parent=1 // pred_check_branch
      %136 = sbr.rel (0) target = $region53
    $region52: #{tpu_custom_call.1} parent=1 // pred_region
      %137 = dma.done [#allocation9], 48
    $region53: #{tpu_custom_call.1} parent=1 // pred_fallthru
      _
    // Predicated region
    $region54: #{tpu_custom_call.1} parent=1 // pred_check
      _
    $region55: #{tpu_custom_call.1} parent=1 // pred_check_branch
      %139 = sbr.rel (0) target = $region57
    $region56: #{tpu_custom_call.1} parent=1 // pred_region
      %140 = dma.done [#allocation9], 2624
    $region57: #{tpu_custom_call.1} parent=1 // pred_fallthru
      _
    // Predicated region
    $region58: #{tpu_custom_call.1} parent=1 // pred_check
      _
    $region59: #{tpu_custom_call.1} parent=1 // pred_check_branch
      %142 = sbr.rel (0) target = $region61
    $region60: #{tpu_custom_call.1} parent=1 // pred_region
      %143 = dma.done [#allocation12], 960
    $region61: #{tpu_custom_call.1} parent=1 // pred_fallthru
      _
    // Predicated region
    $region62: #{tpu_custom_call.1} parent=1 // pred_check
      _
    $region63: #{tpu_custom_call.1} parent=1 // pred_check_branch
      %145 = sbr.rel (0) target = $region65
    $region64: #{tpu_custom_call.1} parent=1 // pred_region
      %146 = dma.done [#allocation12], 28864
    $region65: #{tpu_custom_call.1} parent=1 // pred_fallthru
      _
    // Predicated region
    $region66: #{tpu_custom_call.1} parent=1 // pred_check
      _
    $region67: #{tpu_custom_call.1} parent=1 // pred_check_branch
      %148 = sbr.rel (0) target = $region69
    $region68: #{tpu_custom_call.1} parent=1 // pred_region
      %149 = dma.done [#allocation15], 12672
    $region69: #{tpu_custom_call.1} parent=1 // pred_fallthru
      _
    // Predicated region
    $region70: #{tpu_custom_call.1} parent=1 // pred_check
      _
    $region71: #{tpu_custom_call.1} parent=1 // pred_check_branch
      %151 = sbr.rel (0) target = $region73
    $region72: #{tpu_custom_call.1} parent=1 // pred_region
      %152 = dma.done [#allocation15], 20736
    $region73: #{tpu_custom_call.1} parent=1 // pred_fallthru
      _
    %v154 = vld [vmem:[#allocation2] sm:$0xf]
    %v155 = vld [vmem:[#allocation2 + $0x4] sm:$0xf]
    %v156 = vld [vmem:[#allocation2 + $0x8] sm:$0xf]
    %v157 = vld [vmem:[#allocation2 + $0xc] sm:$0xf]
    %v158 = vld [vmem:[#allocation2 + $0x10] sm:$0xf]
    %v159 = vld [vmem:[#allocation2 + $0x14] sm:$0xf]
    %v160 = vld [vmem:[#allocation2 + $0x18] sm:$0xf]
    %v161 = vld [vmem:[#allocation2 + $0x1c] sm:$0xf]
    %v162 = vld [vmem:[#allocation2 + $0x20] sm:$0xf]
    %v163 = vld [vmem:[#allocation2 + $0x24] sm:$0xf]
    %v164 = vld [vmem:[#allocation2 + $0x28] sm:$0xf]
    %v165 = vld [vmem:[#allocation2 + $0x2c] sm:$0xf]
    %v166 = vld [vmem:[#allocation2 + $0x30] sm:$0xf]
    %v167 = vld [vmem:[#allocation2 + $0x34] sm:$0xf]
    %v168 = vld [vmem:[#allocation2 + $0x38] sm:$0xf]
    %v169 = vld [vmem:[#allocation2 + $0x3c] sm:$0xf]
    %v170 = vld [vmem:[#allocation7] sm:$0xff]
    %v171 = vld [vmem:[#allocation7 + $0x8] sm:$0xf]
    %v172 = vld [vmem:[#allocation7 + $0xc] sm:$0xff]
    %v173 = vld [vmem:[#allocation7 + $0x14] sm:$0xf]
    %v174 = vld [vmem:[#allocation8] sm:$0x7]
    %v176 = vlaneseq
    %v177 = vshrl.u32 %v176, 7
    %v178 = vsub.s32 0, %v177
    %v179 = vrot.slane %v174, %v178
    %v180 = vlaneseq
    %v181 = vshrl.u32 %v180, 7
    %v182 = vsub.s32 1, %v181
    %v183 = vrot.slane %v174, %v182
    %v184 = vlaneseq
    %v185 = vshrl.u32 %v184, 7
    %v186 = vsub.s32 2, %v185
    %v187 = vrot.slane %v174, %v186
    %v207 = vunpack.c.l.b16 %v154
    %v208 = vunpack.c.l.b16 %v155
    %v209 = vunpack.c.l.b16 %v156
    %v210 = vunpack.c.l.b16 %v157
    %v211 = vunpack.c.l.b16 %v158
    %v212 = vunpack.c.l.b16 %v159
    %v213 = vunpack.c.l.b16 %v160
    %v214 = vunpack.c.l.b16 %v161
    %v215 = vunpack.c.l.b16 %v162
    %v216 = vunpack.c.l.b16 %v163
    %v217 = vunpack.c.l.b16 %v164
    %v218 = vunpack.c.l.b16 %v165
    %v219 = vunpack.c.l.b16 %v166
    %v220 = vunpack.c.l.b16 %v167
    %v221 = vunpack.c.l.b16 %v168
    %v222 = vunpack.c.l.b16 %v169
    %v223 = vpack.c.b16 %v208, %v207
    %v224 = vpack.c.b16 %v210, %v209
    %v225 = vpack.c.b16 %v212, %v211
    %v226 = vpack.c.b16 %v214, %v213
    %v227 = vpack.c.b16 %v216, %v215
    %v228 = vpack.c.b16 %v218, %v217
    %v229 = vpack.c.b16 %v220, %v219
    %v230 = vpack.c.b16 %v222, %v221
    %v235 = vunpack.c.l.b16 %v170
    %v236 = vunpack.c.h.b16 %v170
    %v237 = vunpack.c.l.b16 %v171
    %v238 = vunpack.c.l.b16 %v172
    %v239 = vunpack.c.h.b16 %v172
    %v240 = vunpack.c.l.b16 %v173
    %v241 = vpack.c.b16 %v238, %v235
    %v242 = vpack.c.b16 %v239, %v236
    %v243 = vpack.c.b16 %v240, %v237
    %vm247 = vcmask 130048
    %v249 = vsel %vm247, %v223, 0
    %v252 = vsel %vm247, %v224, 0
    %v255 = vsel %vm247, %v225, 0
    %v258 = vsel %vm247, %v226, 0
    %v261 = vsel %vm247, %v227, 0
    %v264 = vsel %vm247, %v228, 0
    %v267 = vsel %vm247, %v229, 0
    %v270 = vsel %vm247, %v230, 0
    %272 = vmatprep.subr.bf16.mxu0 %v242
    %273 = vmatpush1.bf16.msra.mxu0 %v241
    %274 = vmatprep.subr.bf16.mxu0 0
    %275 = vmatpush1.bf16.msra.mxu0 0
    %276 = vmatprep.subr.bf16.mxu0 0
    %277 = vmatpush1.bf16.msra.mxu0 0
    %278 = vmatprep.subr.bf16.mxu0 0
    %279 = vmatpush1.bf16.msra.mxu0 0
    %280 = vmatprep.subr.bf16.mxu0 0
    %281 = vmatpush1.bf16.msra.mxu0 0
    %282 = vmatprep.subr.bf16.mxu0 0
    %283 = vmatpush1.bf16.msra.mxu0 0
    %284 = vmatprep.subr.bf16.mxu0 0
    %285 = vmatpush1.bf16.msra.mxu0 0
    %286 = vmatprep.subr.bf16.mxu0 0
    %287 = vmatpush1.bf16.msra.mxu0 0
    %288 = vmatprep.subr.bf16.mxu0 0
    %289 = vmatpush1.bf16.msra.mxu0 0
    %290 = vmatprep.subr.bf16.mxu0 0
    %291 = vmatpush1.bf16.msra.mxu0 0
    %292 = vmatprep.subr.bf16.mxu0 0
    %293 = vmatpush1.bf16.msra.mxu0 0
    %294 = vmatprep.subr.bf16.mxu0 0
    %295 = vmatpush1.bf16.msra.mxu0 0
    %296 = vmatprep.subr.bf16.mxu0 0
    %297 = vmatpush1.bf16.msra.mxu0 0
    %298 = vmatprep.subr.bf16.mxu0 0
    %299 = vmatpush1.bf16.msra.mxu0 0
    %300 = vmatprep.subr.bf16.mxu0 0
    %301 = vmatpush1.bf16.msra.mxu0 0
    %302 = vmatprep.subr.bf16.mxu0 0
    %303 = vmatpush1.bf16.msra.mxu0 0
    %304 = vmatprep.mubr.bf16.mxu0 0
    %305 = vmatmul.mubr.bf16.gmra.mrb[0].mxu0 %v249
    %v306 = vpop.f32.mrb[0].mxu0
    %v307 = vadd.f32 %v179, %v306
    %v308 = vpop.f32.mrb[0].mxu0
    %v309 = vadd.f32 %v183, %v308
    %v310 = vpop.f32.mrb[0].mxu0
    %v311 = vadd.f32 %v179, %v310
    %v312 = vpop.f32.mrb[0].mxu0
    %v313 = vadd.f32 %v183, %v312
    %314 = vmatprep.mubr.bf16.mxu0 0
    %315 = vmatmul.mubr.bf16.gmra.mrb[0].mxu0 %v252
    %v316 = vpop.f32.mrb[0].mxu0
    %v317 = vadd.f32 %v179, %v316
    %v318 = vpop.f32.mrb[0].mxu0
    %v319 = vadd.f32 %v183, %v318
    %v320 = vpop.f32.mrb[0].mxu0
    %v321 = vadd.f32 %v179, %v320
    %v322 = vpop.f32.mrb[0].mxu0
    %v323 = vadd.f32 %v183, %v322
    %324 = vmatprep.mubr.bf16.mxu0 0
    %325 = vmatmul.mubr.bf16.gmra.mrb[0].mxu0 %v255
    %v326 = vpop.f32.mrb[0].mxu0
    %v327 = vadd.f32 %v179, %v326
    %v328 = vpop.f32.mrb[0].mxu0
    %v329 = vadd.f32 %v183, %v328
    %v330 = vpop.f32.mrb[0].mxu0
    %v331 = vadd.f32 %v179, %v330
    %v332 = vpop.f32.mrb[0].mxu0
    %v333 = vadd.f32 %v183, %v332
    %334 = vmatprep.mubr.bf16.mxu0 0
    %335 = vmatmul.mubr.bf16.gmra.mrb[0].mxu0 %v258
    %v336 = vpop.f32.mrb[0].mxu0
    %v337 = vadd.f32 %v179, %v336
    %v338 = vpop.f32.mrb[0].mxu0
    %v339 = vadd.f32 %v183, %v338
    %v340 = vpop.f32.mrb[0].mxu0
    %v341 = vadd.f32 %v179, %v340
    %v342 = vpop.f32.mrb[0].mxu0
    %v343 = vadd.f32 %v183, %v342
    %344 = vmatprep.mubr.bf16.mxu0 0
    %345 = vmatmul.mubr.bf16.gmra.mrb[0].mxu0 %v261
    %v346 = vpop.f32.mrb[0].mxu0
    %v347 = vadd.f32 %v179, %v346
    %v348 = vpop.f32.mrb[0].mxu0
    %v349 = vadd.f32 %v183, %v348
    %v350 = vpop.f32.mrb[0].mxu0
    %v351 = vadd.f32 %v179, %v350
    %v352 = vpop.f32.mrb[0].mxu0
    %v353 = vadd.f32 %v183, %v352
    %354 = vmatprep.mubr.bf16.mxu0 0
    %355 = vmatmul.mubr.bf16.gmra.mrb[0].mxu0 %v264
    %v356 = vpop.f32.mrb[0].mxu0
    %v357 = vadd.f32 %v179, %v356
    %v358 = vpop.f32.mrb[0].mxu0
    %v359 = vadd.f32 %v183, %v358
    %v360 = vpop.f32.mrb[0].mxu0
    %v361 = vadd.f32 %v179, %v360
    %v362 = vpop.f32.mrb[0].mxu0
    %v363 = vadd.f32 %v183, %v362
    %364 = vmatprep.mubr.bf16.mxu0 0
    %365 = vmatmul.mubr.bf16.gmra.mrb[0].mxu0 %v267
    %v366 = vpop.f32.mrb[0].mxu0
    %v367 = vadd.f32 %v179, %v366
    %v368 = vpop.f32.mrb[0].mxu0
    %v369 = vadd.f32 %v183, %v368
    %v370 = vpop.f32.mrb[0].mxu0
    %v371 = vadd.f32 %v179, %v370
    %v372 = vpop.f32.mrb[0].mxu0
    %v373 = vadd.f32 %v183, %v372
    %374 = vmatprep.mubr.bf16.mxu0 0
    %375 = vmatmul.mubr.bf16.gmra.mrb[0].mxu0 %v270
    %v376 = vpop.f32.mrb[0].mxu0
    %v377 = vadd.f32 %v179, %v376
    %v378 = vpop.f32.mrb[0].mxu0
    %v379 = vadd.f32 %v183, %v378
    %v380 = vpop.f32.mrb[0].mxu0
    %v381 = vadd.f32 %v179, %v380
    %v382 = vpop.f32.mrb[0].mxu0
    %v383 = vadd.f32 %v183, %v382
    %384 = vdwg.mxu0
    %385 = vmatprep.subr.bf16.mxu0 0
    %386 = vmatpush1.bf16.msra.mxu0 %v243
    %387 = vmatprep.subr.bf16.mxu0 0
    %388 = vmatpush1.bf16.msra.mxu0 0
    %389 = vmatprep.subr.bf16.mxu0 0
    %390 = vmatpush1.bf16.msra.mxu0 0
    %391 = vmatprep.subr.bf16.mxu0 0
    %392 = vmatpush1.bf16.msra.mxu0 0
    %393 = vmatprep.subr.bf16.mxu0 0
    %394 = vmatpush1.bf16.msra.mxu0 0
    %395 = vmatprep.subr.bf16.mxu0 0
    %396 = vmatpush1.bf16.msra.mxu0 0
    %397 = vmatprep.subr.bf16.mxu0 0
    %398 = vmatpush1.bf16.msra.mxu0 0
    %399 = vmatprep.subr.bf16.mxu0 0
    %400 = vmatpush1.bf16.msra.mxu0 0
    %401 = vmatprep.subr.bf16.mxu0 0
    %402 = vmatpush1.bf16.msra.mxu0 0
    %403 = vmatprep.subr.bf16.mxu0 0
    %404 = vmatpush1.bf16.msra.mxu0 0
    %405 = vmatprep.subr.bf16.mxu0 0
    %406 = vmatpush1.bf16.msra.mxu0 0
    %407 = vmatprep.subr.bf16.mxu0 0
    %408 = vmatpush1.bf16.msra.mxu0 0
    %409 = vmatprep.subr.bf16.mxu0 0
    %410 = vmatpush1.bf16.msra.mxu0 0
    %411 = vmatprep.subr.bf16.mxu0 0
    %412 = vmatpush1.bf16.msra.mxu0 0
    %413 = vmatprep.subr.bf16.mxu0 0
    %414 = vmatpush1.bf16.msra.mxu0 0
    %415 = vmatprep.subr.bf16.mxu0 0
    %416 = vmatpush1.bf16.msra.mxu0 0
    %417 = vmatprep.mubr.bf16.mxu0 0
    %418 = vmatmul.mubr.bf16.gmra.mrb[0].mxu0 %v249
    %v419 = vpop.f32.mrb[0].mxu0
    %v420 = vadd.f32 %v187, %v419
    %v421 = vpop.f32.mrb[0].mxu0
    %v422 = vpop.f32.mrb[0].mxu0
    %v423 = vadd.f32 %v187, %v422
    %v424 = vpop.f32.mrb[0].mxu0
    %425 = vmatprep.mubr.bf16.mxu0 0
    %426 = vmatmul.mubr.bf16.gmra.mrb[0].mxu0 %v252
    %v427 = vpop.f32.mrb[0].mxu0
    %v428 = vadd.f32 %v187, %v427
    %v429 = vpop.f32.mrb[0].mxu0
    %v430 = vpop.f32.mrb[0].mxu0
    %v431 = vadd.f32 %v187, %v430
    %v432 = vpop.f32.mrb[0].mxu0
    %433 = vmatprep.mubr.bf16.mxu0 0
    %434 = vmatmul.mubr.bf16.gmra.mrb[0].mxu0 %v255
    %v435 = vpop.f32.mrb[0].mxu0
    %v436 = vadd.f32 %v187, %v435
    %v437 = vpop.f32.mrb[0].mxu0
    %v438 = vpop.f32.mrb[0].mxu0
    %v439 = vadd.f32 %v187, %v438
    %v440 = vpop.f32.mrb[0].mxu0
    %441 = vmatprep.mubr.bf16.mxu0 0
    %442 = vmatmul.mubr.bf16.gmra.mrb[0].mxu0 %v258
    %v443 = vpop.f32.mrb[0].mxu0
    %v444 = vadd.f32 %v187, %v443
    %v445 = vpop.f32.mrb[0].mxu0
    %v446 = vpop.f32.mrb[0].mxu0
    %v447 = vadd.f32 %v187, %v446
    %v448 = vpop.f32.mrb[0].mxu0
    %449 = vmatprep.mubr.bf16.mxu0 0
    %450 = vmatmul.mubr.bf16.gmra.mrb[0].mxu0 %v261
    %v451 = vpop.f32.mrb[0].mxu0
    %v452 = vadd.f32 %v187, %v451
    %v453 = vpop.f32.mrb[0].mxu0
    %v454 = vpop.f32.mrb[0].mxu0
    %v455 = vadd.f32 %v187, %v454
    %v456 = vpop.f32.mrb[0].mxu0
    %457 = vmatprep.mubr.bf16.mxu0 0
    %458 = vmatmul.mubr.bf16.gmra.mrb[0].mxu0 %v264
    %v459 = vpop.f32.mrb[0].mxu0
    %v460 = vadd.f32 %v187, %v459
    %v461 = vpop.f32.mrb[0].mxu0
    %v462 = vpop.f32.mrb[0].mxu0
    %v463 = vadd.f32 %v187, %v462
    %v464 = vpop.f32.mrb[0].mxu0
    %465 = vmatprep.mubr.bf16.mxu0 0
    %466 = vmatmul.mubr.bf16.gmra.mrb[0].mxu0 %v267
    %v467 = vpop.f32.mrb[0].mxu0
    %v468 = vadd.f32 %v187, %v467
    %v469 = vpop.f32.mrb[0].mxu0
    %v470 = vpop.f32.mrb[0].mxu0
    %v471 = vadd.f32 %v187, %v470
    %v472 = vpop.f32.mrb[0].mxu0
    %473 = vmatprep.mubr.bf16.mxu0 0
    %474 = vmatmul.mubr.bf16.gmra.mrb[0].mxu0 %v270
    %v475 = vpop.f32.mrb[0].mxu0
    %v476 = vadd.f32 %v187, %v475
    %v477 = vpop.f32.mrb[0].mxu0
    %v478 = vpop.f32.mrb[0].mxu0
    %v479 = vadd.f32 %v187, %v478
    %v480 = vpop.f32.mrb[0].mxu0
    %481 = vdwg.mxu0
    %v482 = vmul.f32 %v307, 0.5
    %v483 = vmul.f32 %v309, 0.5
    %v484 = vmul.f32 %v420, 0.5
    %v485 = vmul.f32 %v311, 0.5
    %v486 = vmul.f32 %v313, 0.5
    %v487 = vmul.f32 %v423, 0.5
    %v488 = vmul.f32 %v317, 0.5
    %v489 = vmul.f32 %v319, 0.5
    %v490 = vmul.f32 %v428, 0.5
    %v491 = vmul.f32 %v321, 0.5
    %v492 = vmul.f32 %v323, 0.5
    %v493 = vmul.f32 %v431, 0.5
    %v494 = vmul.f32 %v327, 0.5
    %v495 = vmul.f32 %v329, 0.5
    %v496 = vmul.f32 %v436, 0.5
    %v497 = vmul.f32 %v331, 0.5
    %v498 = vmul.f32 %v333, 0.5
    %v499 = vmul.f32 %v439, 0.5
    %v500 = vmul.f32 %v337, 0.5
    %v501 = vmul.f32 %v339, 0.5
    %v502 = vmul.f32 %v444, 0.5
    %v503 = vmul.f32 %v341, 0.5
    %v504 = vmul.f32 %v343, 0.5
    %v505 = vmul.f32 %v447, 0.5
    %v506 = vmul.f32 %v347, 0.5
    %v507 = vmul.f32 %v349, 0.5
    %v508 = vmul.f32 %v452, 0.5
    %v509 = vmul.f32 %v351, 0.5
    %v510 = vmul.f32 %v353, 0.5
    %v511 = vmul.f32 %v455, 0.5
    %v512 = vmul.f32 %v357, 0.5
    %v513 = vmul.f32 %v359, 0.5
    %v514 = vmul.f32 %v460, 0.5
    %v515 = vmul.f32 %v361, 0.5
    %v516 = vmul.f32 %v363, 0.5
    %v517 = vmul.f32 %v463, 0.5
    %v518 = vmul.f32 %v367, 0.5
    %v519 = vmul.f32 %v369, 0.5
    %v520 = vmul.f32 %v468, 0.5
    %v521 = vmul.f32 %v371, 0.5
    %v522 = vmul.f32 %v373, 0.5
    %v523 = vmul.f32 %v471, 0.5
    %v524 = vmul.f32 %v377, 0.5
    %v525 = vmul.f32 %v379, 0.5
    %v526 = vmul.f32 %v476, 0.5
    %v527 = vmul.f32 %v381, 0.5
    %v528 = vmul.f32 %v383, 0.5
    %v529 = vmul.f32 %v479, 0.5
    %v530 = vmax.f32 %v482, %v483
    %vm531 = vcmask 556032
    %v532 = vsel %vm531, %v484, -inf
    %v533 = vmax.f32 %v530, %v532
    %534 = vmax.xlane.f32.xlu0 %v533
    %v535 = vpop.xlane.xlu0 %534
    %v536 = vmax.f32 %v485, %v486
    %v537 = vsel %vm531, %v487, -inf
    %v538 = vmax.f32 %v536, %v537
    %539 = vmax.xlane.f32.xlu0 %v538
    %v540 = vpop.xlane.xlu0 %539
    %v541 = vmax.f32 %v488, %v489
    %v542 = vsel %vm531, %v490, -inf
    %v543 = vmax.f32 %v541, %v542
    %544 = vmax.xlane.f32.xlu0 %v543
    %v545 = vpop.xlane.xlu0 %544
    %v546 = vmax.f32 %v491, %v492
    %v547 = vsel %vm531, %v493, -inf
    %v548 = vmax.f32 %v546, %v547
    %549 = vmax.xlane.f32.xlu0 %v548
    %v550 = vpop.xlane.xlu0 %549
    %v551 = vmax.f32 %v494, %v495
    %v552 = vsel %vm531, %v496, -inf
    %v553 = vmax.f32 %v551, %v552
    %554 = vmax.xlane.f32.xlu0 %v553
    %v555 = vpop.xlane.xlu0 %554
    %v556 = vmax.f32 %v497, %v498
    %v557 = vsel %vm531, %v499, -inf
    %v558 = vmax.f32 %v556, %v557
    %559 = vmax.xlane.f32.xlu0 %v558
    %v560 = vpop.xlane.xlu0 %559
    %v561 = vmax.f32 %v500, %v501
    %v562 = vsel %vm531, %v502, -inf
    %v563 = vmax.f32 %v561, %v562
    %564 = vmax.xlane.f32.xlu0 %v563
    %v565 = vpop.xlane.xlu0 %564
    %v566 = vmax.f32 %v503, %v504
    %v567 = vsel %vm531, %v505, -inf
    %v568 = vmax.f32 %v566, %v567
    %569 = vmax.xlane.f32.xlu0 %v568
    %v570 = vpop.xlane.xlu0 %569
    %v571 = vmax.f32 %v506, %v507
    %v572 = vsel %vm531, %v508, -inf
    %v573 = vmax.f32 %v571, %v572
    %574 = vmax.xlane.f32.xlu0 %v573
    %v575 = vpop.xlane.xlu0 %574
    %v576 = vmax.f32 %v509, %v510
    %v577 = vsel %vm531, %v511, -inf
    %v578 = vmax.f32 %v576, %v577
    %579 = vmax.xlane.f32.xlu0 %v578
    %v580 = vpop.xlane.xlu0 %579
    %v581 = vmax.f32 %v512, %v513
    %v582 = vsel %vm531, %v514, -inf
    %v583 = vmax.f32 %v581, %v582
    %584 = vmax.xlane.f32.xlu0 %v583
    %v585 = vpop.xlane.xlu0 %584
    %v586 = vmax.f32 %v515, %v516
    %v587 = vsel %vm531, %v517, -inf
    %v588 = vmax.f32 %v586, %v587
    %589 = vmax.xlane.f32.xlu0 %v588
    %v590 = vpop.xlane.xlu0 %589
    %v591 = vmax.f32 %v518, %v519
    %v592 = vsel %vm531, %v520, -inf
    %v593 = vmax.f32 %v591, %v592
    %594 = vmax.xlane.f32.xlu0 %v593
    %v595 = vpop.xlane.xlu0 %594
    %v596 = vmax.f32 %v521, %v522
    %v597 = vsel %vm531, %v523, -inf
    %v598 = vmax.f32 %v596, %v597
    %599 = vmax.xlane.f32.xlu0 %v598
    %v600 = vpop.xlane.xlu0 %599
    %v601 = vmax.f32 %v524, %v525
    %v602 = vsel %vm531, %v526, -inf
    %v603 = vmax.f32 %v601, %v602
    %604 = vmax.xlane.f32.xlu0 %v603
    %v605 = vpop.xlane.xlu0 %604
    %v606 = vmax.f32 %v527, %v528
    %v607 = vsel %vm531, %v529, -inf
    %v608 = vmax.f32 %v606, %v607
    %609 = vmax.xlane.f32.xlu0 %v608
    %v610 = vpop.xlane.xlu0 %609
    %v611 = vsub.f32 %v482, %v535
    %v612 = vsub.f32 %v483, %v535
    %v613 = vsub.f32 %v484, %v535
    %v614 = vsub.f32 %v485, %v540
    %v615 = vsub.f32 %v486, %v540
    %v616 = vsub.f32 %v487, %v540
    %v617 = vsub.f32 %v488, %v545
    %v618 = vsub.f32 %v489, %v545
    %v619 = vsub.f32 %v490, %v545
    %v620 = vsub.f32 %v491, %v550
    %v621 = vsub.f32 %v492, %v550
    %v622 = vsub.f32 %v493, %v550
    %v623 = vsub.f32 %v494, %v555
    %v624 = vsub.f32 %v495, %v555
    %v625 = vsub.f32 %v496, %v555
    %v626 = vsub.f32 %v497, %v560
    %v627 = vsub.f32 %v498, %v560
    %v628 = vsub.f32 %v499, %v560
    %v629 = vsub.f32 %v500, %v565
    %v630 = vsub.f32 %v501, %v565
    %v631 = vsub.f32 %v502, %v565
    %v632 = vsub.f32 %v503, %v570
    %v633 = vsub.f32 %v504, %v570
    %v634 = vsub.f32 %v505, %v570
    %v635 = vsub.f32 %v506, %v575
    %v636 = vsub.f32 %v507, %v575
    %v637 = vsub.f32 %v508, %v575
    %v638 = vsub.f32 %v509, %v580
    %v639 = vsub.f32 %v510, %v580
    %v640 = vsub.f32 %v511, %v580
    %v641 = vsub.f32 %v512, %v585
    %v642 = vsub.f32 %v513, %v585
    %v643 = vsub.f32 %v514, %v585
    %v644 = vsub.f32 %v515, %v590
    %v645 = vsub.f32 %v516, %v590
    %v646 = vsub.f32 %v517, %v590
    %v647 = vsub.f32 %v518, %v595
    %v648 = vsub.f32 %v519, %v595
    %v649 = vsub.f32 %v520, %v595
    %v650 = vsub.f32 %v521, %v600
    %v651 = vsub.f32 %v522, %v600
    %v652 = vsub.f32 %v523, %v600
    %v653 = vsub.f32 %v524, %v605
    %v654 = vsub.f32 %v525, %v605
    %v655 = vsub.f32 %v526, %v605
    %v656 = vsub.f32 %v527, %v610
    %v657 = vsub.f32 %v528, %v610
    %v658 = vsub.f32 %v529, %v610
    %v659 = vmul.f32 %v611, 1.442695
    %v660 = vpow.pop %v659
    %v661 = vmul.f32 %v612, 1.442695
    %v662 = vpow.pop %v661
    %v663 = vmul.f32 %v613, 1.442695
    %v664 = vpow.pop %v663
    %v665 = vmul.f32 %v614, 1.442695
    %v666 = vpow.pop %v665
    %v667 = vmul.f32 %v615, 1.442695
    %v668 = vpow.pop %v667
    %v669 = vmul.f32 %v616, 1.442695
    %v670 = vpow.pop %v669
    %v671 = vmul.f32 %v617, 1.442695
    %v672 = vpow.pop %v671
    %v673 = vmul.f32 %v618, 1.442695
    %v674 = vpow.pop %v673
    %v675 = vmul.f32 %v619, 1.442695
    %v676 = vpow.pop %v675
    %v677 = vmul.f32 %v620, 1.442695
    %v678 = vpow.pop %v677
    %v679 = vmul.f32 %v621, 1.442695
    %v680 = vpow.pop %v679
    %v681 = vmul.f32 %v622, 1.442695
    %v682 = vpow.pop %v681
    %v683 = vmul.f32 %v623, 1.442695
    %v684 = vpow.pop %v683
    %v685 = vmul.f32 %v624, 1.442695
    %v686 = vpow.pop %v685
    %v687 = vmul.f32 %v625, 1.442695
    %v688 = vpow.pop %v687
    %v689 = vmul.f32 %v626, 1.442695
    %v690 = vpow.pop %v689
    %v691 = vmul.f32 %v627, 1.442695
    %v692 = vpow.pop %v691
    %v693 = vmul.f32 %v628, 1.442695
    %v694 = vpow.pop %v693
    %v695 = vmul.f32 %v629, 1.442695
    %v696 = vpow.pop %v695
    %v697 = vmul.f32 %v630, 1.442695
    %v698 = vpow.pop %v697
    %v699 = vmul.f32 %v631, 1.442695
    %v700 = vpow.pop %v699
    %v701 = vmul.f32 %v632, 1.442695
    %v702 = vpow.pop %v701
    %v703 = vmul.f32 %v633, 1.442695
    %v704 = vpow.pop %v703
    %v705 = vmul.f32 %v634, 1.442695
    %v706 = vpow.pop %v705
    %v707 = vmul.f32 %v635, 1.442695
    %v708 = vpow.pop %v707
    %v709 = vmul.f32 %v636, 1.442695
    %v710 = vpow.pop %v709
    %v711 = vmul.f32 %v637, 1.442695
    %v712 = vpow.pop %v711
    %v713 = vmul.f32 %v638, 1.442695
    %v714 = vpow.pop %v713
    %v715 = vmul.f32 %v639, 1.442695
    %v716 = vpow.pop %v715
    %v717 = vmul.f32 %v640, 1.442695
    %v718 = vpow.pop %v717
    %v719 = vmul.f32 %v641, 1.442695
    %v720 = vpow.pop %v719
    %v721 = vmul.f32 %v642, 1.442695
    %v722 = vpow.pop %v721
    %v723 = vmul.f32 %v643, 1.442695
    %v724 = vpow.pop %v723
    %v725 = vmul.f32 %v644, 1.442695
    %v726 = vpow.pop %v725
    %v727 = vmul.f32 %v645, 1.442695
    %v728 = vpow.pop %v727
    %v729 = vmul.f32 %v646, 1.442695
    %v730 = vpow.pop %v729
    %v731 = vmul.f32 %v647, 1.442695
    %v732 = vpow.pop %v731
    %v733 = vmul.f32 %v648, 1.442695
    %v734 = vpow.pop %v733
    %v735 = vmul.f32 %v649, 1.442695
    %v736 = vpow.pop %v735
    %v737 = vmul.f32 %v650, 1.442695
    %v738 = vpow.pop %v737
    %v739 = vmul.f32 %v651, 1.442695
    %v740 = vpow.pop %v739
    %v741 = vmul.f32 %v652, 1.442695
    %v742 = vpow.pop %v741
    %v743 = vmul.f32 %v653, 1.442695
    %v744 = vpow.pop %v743
    %v745 = vmul.f32 %v654, 1.442695
    %v746 = vpow.pop %v745
    %v747 = vmul.f32 %v655, 1.442695
    %v748 = vpow.pop %v747
    %v749 = vmul.f32 %v656, 1.442695
    %v750 = vpow.pop %v749
    %v751 = vmul.f32 %v657, 1.442695
    %v752 = vpow.pop %v751
    %v753 = vmul.f32 %v658, 1.442695
    %v754 = vpow.pop %v753
    %v755 = vpack.c.bf16 %v666, %v660
    %v756 = vpack.c.bf16 %v668, %v662
    %v757 = vpack.c.bf16 %v670, %v664
    %v758 = vpack.c.bf16 %v678, %v672
    %v759 = vpack.c.bf16 %v680, %v674
    %v760 = vpack.c.bf16 %v682, %v676
    %v761 = vpack.c.bf16 %v690, %v684
    %v762 = vpack.c.bf16 %v692, %v686
    %v763 = vpack.c.bf16 %v694, %v688
    %v764 = vpack.c.bf16 %v702, %v696
    %v765 = vpack.c.bf16 %v704, %v698
    %v766 = vpack.c.bf16 %v706, %v700
    %v767 = vpack.c.bf16 %v714, %v708
    %v768 = vpack.c.bf16 %v716, %v710
    %v769 = vpack.c.bf16 %v718, %v712
    %v770 = vpack.c.bf16 %v726, %v720
    %v771 = vpack.c.bf16 %v728, %v722
    %v772 = vpack.c.bf16 %v730, %v724
    %v773 = vpack.c.bf16 %v738, %v732
    %v774 = vpack.c.bf16 %v740, %v734
    %v775 = vpack.c.bf16 %v742, %v736
    %v776 = vpack.c.bf16 %v750, %v744
    %v777 = vpack.c.bf16 %v752, %v746
    %v778 = vpack.c.bf16 %v754, %v748
    %v779 = vld [vmem:[#allocation10] sm:$0xf]
    %v780 = vld [vmem:[#allocation10 + $0x4] sm:$0xf]
    %v781 = vld [vmem:[#allocation10 + $0x8] sm:$0xf]
    %v782 = vld [vmem:[#allocation10 + $0xc] sm:$0xf]
    %v783 = vld [vmem:[#allocation10 + $0x10] sm:$0xf]
    %v784 = vld [vmem:[#allocation10 + $0x14] sm:$0xf]
    %v785 = vld [vmem:[#allocation10 + $0x18] sm:$0xf]
    %v786 = vld [vmem:[#allocation10 + $0x1c] sm:$0xf]
    %v787 = vld [vmem:[#allocation10 + $0x20] sm:$0xf]
    %v788 = vld [vmem:[#allocation10 + $0x24] sm:$0xf]
    %v789 = vld [vmem:[#allocation10 + $0x28] sm:$0xf]
    %v790 = vld [vmem:[#allocation10 + $0x2c] sm:$0xf]
    %v791 = vld [vmem:[#allocation10 + $0x30] sm:$0xf]
    %v792 = vld [vmem:[#allocation10 + $0x34] sm:$0xf]
    %v793 = vld [vmem:[#allocation10 + $0x38] sm:$0xf]
    %v794 = vld [vmem:[#allocation10 + $0x3c] sm:$0xf]
    %v795 = vld [vmem:[#allocation10 + $0x40] sm:$0xf]
    %v796 = vld [vmem:[#allocation10 + $0x44] sm:$0xf]
    %v797 = vld [vmem:[#allocation10 + $0x48] sm:$0xf]
    %v798 = vld [vmem:[#allocation10 + $0x4c] sm:$0xf]
    %v799 = vld [vmem:[#allocation10 + $0x50] sm:$0xf]
    %v800 = vld [vmem:[#allocation10 + $0x54] sm:$0xf]
    %v801 = vld [vmem:[#allocation10 + $0x58] sm:$0xf]
    %v802 = vld [vmem:[#allocation10 + $0x5c] sm:$0xf]
    %v803 = vld [vmem:[#allocation10 + $0x60] sm:$0xf]
    %v804 = vld [vmem:[#allocation10 + $0x64] sm:$0xf]
    %v805 = vld [vmem:[#allocation10 + $0x68] sm:$0xf]
    %v806 = vld [vmem:[#allocation10 + $0x6c] sm:$0xf]
    %v807 = vld [vmem:[#allocation10 + $0x70] sm:$0xf]
    %v808 = vld [vmem:[#allocation10 + $0x74] sm:$0xf]
    %v809 = vld [vmem:[#allocation10 + $0x78] sm:$0xf]
    %v810 = vld [vmem:[#allocation10 + $0x7c] sm:$0xf]
    %v811 = vld [vmem:[#allocation10 + $0x80] sm:$0xf]
    %v812 = vld [vmem:[#allocation10 + $0x84] sm:$0xf]
    %v813 = vld [vmem:[#allocation10 + $0x88] sm:$0xf]
    %v814 = vld [vmem:[#allocation10 + $0x8c] sm:$0xf]
    %v815 = vld [vmem:[#allocation10 + $0x90] sm:$0xf]
    %v816 = vld [vmem:[#allocation10 + $0x94] sm:$0xf]
    %v817 = vld [vmem:[#allocation10 + $0x98] sm:$0xf]
    %v818 = vld [vmem:[#allocation10 + $0x9c] sm:$0xf]
    %v819 = vld [vmem:[#allocation10 + $0xa0] sm:$0x3]
    %v861 = vunpack.c.l.b16 %v779
    %v862 = vunpack.c.l.b16 %v780
    %v863 = vunpack.c.l.b16 %v781
    %v864 = vunpack.c.l.b16 %v782
    %v865 = vunpack.c.l.b16 %v783
    %v866 = vunpack.c.l.b16 %v784
    %v867 = vunpack.c.l.b16 %v785
    %v868 = vunpack.c.l.b16 %v786
    %v869 = vunpack.c.l.b16 %v787
    %v870 = vunpack.c.l.b16 %v788
    %v871 = vunpack.c.l.b16 %v789
    %v872 = vunpack.c.l.b16 %v790
    %v873 = vunpack.c.l.b16 %v791
    %v874 = vunpack.c.l.b16 %v792
    %v875 = vunpack.c.l.b16 %v793
    %v876 = vunpack.c.l.b16 %v794
    %v877 = vunpack.c.l.b16 %v795
    %v878 = vunpack.c.l.b16 %v796
    %v879 = vunpack.c.l.b16 %v797
    %v880 = vunpack.c.l.b16 %v798
    %v881 = vunpack.c.l.b16 %v799
    %v882 = vunpack.c.l.b16 %v800
    %v883 = vunpack.c.l.b16 %v801
    %v884 = vunpack.c.l.b16 %v802
    %v885 = vunpack.c.l.b16 %v803
    %v886 = vunpack.c.l.b16 %v804
    %v887 = vunpack.c.l.b16 %v805
    %v888 = vunpack.c.l.b16 %v806
    %v889 = vunpack.c.l.b16 %v807
    %v890 = vunpack.c.l.b16 %v808
    %v891 = vunpack.c.l.b16 %v809
    %v892 = vunpack.c.l.b16 %v810
    %v893 = vunpack.c.l.b16 %v811
    %v894 = vunpack.c.l.b16 %v812
    %v895 = vunpack.c.l.b16 %v813
    %v896 = vunpack.c.l.b16 %v814
    %v897 = vunpack.c.l.b16 %v815
    %v898 = vunpack.c.l.b16 %v816
    %v899 = vunpack.c.l.b16 %v817
    %v900 = vunpack.c.l.b16 %v818
    %v901 = vunpack.c.l.b16 %v819
    %v902 = vpack.c.b16 %v862, %v861
    %v903 = vpack.c.b16 %v864, %v863
    %v904 = vpack.c.b16 %v866, %v865
    %v905 = vpack.c.b16 %v868, %v867
    %v906 = vpack.c.b16 %v870, %v869
    %v907 = vpack.c.b16 %v872, %v871
    %v908 = vpack.c.b16 %v874, %v873
    %v909 = vpack.c.b16 %v876, %v875
    %v910 = vpack.c.b16 %v878, %v877
    %v911 = vpack.c.b16 %v880, %v879
    %v912 = vpack.c.b16 %v882, %v881
    %v913 = vpack.c.b16 %v884, %v883
    %v914 = vpack.c.b16 %v886, %v885
    %v915 = vpack.c.b16 %v888, %v887
    %v916 = vpack.c.b16 %v890, %v889
    %v917 = vpack.c.b16 %v892, %v891
    %v918 = vpack.c.b16 %v894, %v893
    %v919 = vpack.c.b16 %v896, %v895
    %v920 = vpack.c.b16 %v898, %v897
    %v921 = vpack.c.b16 %v900, %v899
    %v922 = vpack.c.b16 %v901, %v901
    %v944 = vsel %vm531, %v757, 0
    %v947 = vsel %vm531, %v760, 0
    %v950 = vsel %vm531, %v763, 0
    %v953 = vsel %vm531, %v766, 0
    %v956 = vsel %vm531, %v769, 0
    %v959 = vsel %vm531, %v772, 0
    %v962 = vsel %vm531, %v775, 0
    %v965 = vsel %vm531, %v778, 0
    %vm967 = vcmask 1041408
    %v969 = vsel %vm967, %v922, 0
    %971 = vmatprep.subr.bf16.mxu0 0
    %972 = vmatpush1.bf16.msra.mxu0 %v902
    %973 = vmatprep.subr.bf16.mxu0 0
    %974 = vmatpush1.bf16.msra.mxu0 %v903
    %975 = vmatprep.subr.bf16.mxu0 0
    %976 = vmatpush1.bf16.msra.mxu0 %v904
    %977 = vmatprep.subr.bf16.mxu0 0
    %978 = vmatpush1.bf16.msra.mxu0 %v905
    %979 = vmatprep.subr.bf16.mxu0 0
    %980 = vmatpush1.bf16.msra.mxu0 %v906
    %981 = vmatprep.subr.bf16.mxu0 0
    %982 = vmatpush1.bf16.msra.mxu0 %v907
    %983 = vmatprep.subr.bf16.mxu0 0
    %984 = vmatpush1.bf16.msra.mxu0 %v908
    %985 = vmatprep.subr.bf16.mxu0 0
    %986 = vmatpush1.bf16.msra.mxu0 %v909
    %987 = vmatprep.subr.bf16.mxu0 0
    %988 = vmatpush1.bf16.msra.mxu0 %v910
    %989 = vmatprep.subr.bf16.mxu0 0
    %990 = vmatpush1.bf16.msra.mxu0 %v911
    %991 = vmatprep.subr.bf16.mxu0 0
    %992 = vmatpush1.bf16.msra.mxu0 %v912
    %993 = vmatprep.subr.bf16.mxu0 0
    %994 = vmatpush1.bf16.msra.mxu0 %v913
    %995 = vmatprep.subr.bf16.mxu0 0
    %996 = vmatpush1.bf16.msra.mxu0 %v914
    %997 = vmatprep.subr.bf16.mxu0 0
    %998 = vmatpush1.bf16.msra.mxu0 %v915
    %999 = vmatprep.subr.bf16.mxu0 0
    %1000 = vmatpush1.bf16.msra.mxu0 %v916
    %1001 = vmatprep.subr.bf16.mxu0 0
    %1002 = vmatpush1.bf16.msra.mxu0 %v917
    %1003 = vmatprep.mubr.bf16.mxu0 %v756
    %1004 = vmatmul.mubr.bf16.gmra.mrb[0].mxu0 %v755
    %v1005 = vpop.f32.mrb[0].mxu0
    %v1006 = vadd.f32 0.0, %v1005
    %v1007 = vpop.f32.mrb[0].mxu0
    %v1008 = vpop.f32.mrb[0].mxu0
    %v1009 = vadd.f32 0.0, %v1008
    %v1010 = vpop.f32.mrb[0].mxu0
    %1011 = vmatprep.mubr.bf16.mxu0 %v759
    %1012 = vmatmul.mubr.bf16.gmra.mrb[0].mxu0 %v758
    %v1013 = vpop.f32.mrb[0].mxu0
    %v1014 = vadd.f32 0.0, %v1013
    %v1015 = vpop.f32.mrb[0].mxu0
    %v1016 = vpop.f32.mrb[0].mxu0
    %v1017 = vadd.f32 0.0, %v1016
    %v1018 = vpop.f32.mrb[0].mxu0
    %1019 = vmatprep.mubr.bf16.mxu0 %v762
    %1020 = vmatmul.mubr.bf16.gmra.mrb[0].mxu0 %v761
    %v1021 = vpop.f32.mrb[0].mxu0
    %v1022 = vadd.f32 0.0, %v1021
    %v1023 = vpop.f32.mrb[0].mxu0
    %v1024 = vpop.f32.mrb[0].mxu0
    %v1025 = vadd.f32 0.0, %v1024
    %v1026 = vpop.f32.mrb[0].mxu0
    %1027 = vmatprep.mubr.bf16.mxu0 %v765
    %1028 = vmatmul.mubr.bf16.gmra.mrb[0].mxu0 %v764
    %v1029 = vpop.f32.mrb[0].mxu0
    %v1030 = vadd.f32 0.0, %v1029
    %v1031 = vpop.f32.mrb[0].mxu0
    %v1032 = vpop.f32.mrb[0].mxu0
    %v1033 = vadd.f32 0.0, %v1032
    %v1034 = vpop.f32.mrb[0].mxu0
    %1035 = vmatprep.mubr.bf16.mxu0 %v768
    %1036 = vmatmul.mubr.bf16.gmra.mrb[0].mxu0 %v767
    %v1037 = vpop.f32.mrb[0].mxu0
    %v1038 = vadd.f32 0.0, %v1037
    %v1039 = vpop.f32.mrb[0].mxu0
    %v1040 = vpop.f32.mrb[0].mxu0
    %v1041 = vadd.f32 0.0, %v1040
    %v1042 = vpop.f32.mrb[0].mxu0
    %1043 = vmatprep.mubr.bf16.mxu0 %v771
    %1044 = vmatmul.mubr.bf16.gmra.mrb[0].mxu0 %v770
    %v1045 = vpop.f32.mrb[0].mxu0
    %v1046 = vadd.f32 0.0, %v1045
    %v1047 = vpop.f32.mrb[0].mxu0
    %v1048 = vpop.f32.mrb[0].mxu0
    %v1049 = vadd.f32 0.0, %v1048
    %v1050 = vpop.f32.mrb[0].mxu0
    %1051 = vmatprep.mubr.bf16.mxu0 %v774
    %1052 = vmatmul.mubr.bf16.gmra.mrb[0].mxu0 %v773
    %v1053 = vpop.f32.mrb[0].mxu0
    %v1054 = vadd.f32 0.0, %v1053
    %v1055 = vpop.f32.mrb[0].mxu0
    %v1056 = vpop.f32.mrb[0].mxu0
    %v1057 = vadd.f32 0.0, %v1056
    %v1058 = vpop.f32.mrb[0].mxu0
    %1059 = vmatprep.mubr.bf16.mxu0 %v777
    %1060 = vmatmul.mubr.bf16.gmra.mrb[0].mxu0 %v776
    %v1061 = vpop.f32.mrb[0].mxu0
    %v1062 = vadd.f32 0.0, %v1061
    %v1063 = vpop.f32.mrb[0].mxu0
    %v1064 = vpop.f32.mrb[0].mxu0
    %v1065 = vadd.f32 0.0, %v1064
    %v1066 = vpop.f32.mrb[0].mxu0
    %1067 = vdwg.mxu0
    %1068 = vmatprep.subr.bf16.mxu0 0
    %1069 = vmatpush1.bf16.msra.mxu0 %v918
    %1070 = vmatprep.subr.bf16.mxu0 0
    %1071 = vmatpush1.bf16.msra.mxu0 %v919
    %1072 = vmatprep.subr.bf16.mxu0 0
    %1073 = vmatpush1.bf16.msra.mxu0 %v920
    %1074 = vmatprep.subr.bf16.mxu0 0
    %1075 = vmatpush1.bf16.msra.mxu0 %v921
    %1076 = vmatprep.subr.bf16.mxu0 0
    %1077 = vmatpush1.bf16.msra.mxu0 %v969
    %1078 = vmatprep.subr.bf16.mxu0 0
    %1079 = vmatpush1.bf16.msra.mxu0 0
    %1080 = vmatprep.subr.bf16.mxu0 0
    %1081 = vmatpush1.bf16.msra.mxu0 0
    %1082 = vmatprep.subr.bf16.mxu0 0
    %1083 = vmatpush1.bf16.msra.mxu0 0
    %1084 = vmatprep.subr.bf16.mxu0 0
    %1085 = vmatpush1.bf16.msra.mxu0 0
    %1086 = vmatprep.subr.bf16.mxu0 0
    %1087 = vmatpush1.bf16.msra.mxu0 0
    %1088 = vmatprep.subr.bf16.mxu0 0
    %1089 = vmatpush1.bf16.msra.mxu0 0
    %1090 = vmatprep.subr.bf16.mxu0 0
    %1091 = vmatpush1.bf16.msra.mxu0 0
    %1092 = vmatprep.subr.bf16.mxu0 0
    %1093 = vmatpush1.bf16.msra.mxu0 0
    %1094 = vmatprep.subr.bf16.mxu0 0
    %1095 = vmatpush1.bf16.msra.mxu0 0
    %1096 = vmatprep.subr.bf16.mxu0 0
    %1097 = vmatpush1.bf16.msra.mxu0 0
    %1098 = vmatprep.subr.bf16.mxu0 0
    %1099 = vmatpush1.bf16.msra.mxu0 0
    %1100 = vmatprep.mubr.bf16.mxu0 0
    %1101 = vmatmul.mubr.bf16.gmra.mrb[0].mxu0 %v944
    %v1102 = vpop.f32.mrb[0].mxu0
    %v1103 = vadd.f32 %v1006, %v1102
    %v1104 = vpop.f32.mrb[0].mxu0
    %v1105 = vpop.f32.mrb[0].mxu0
    %v1106 = vadd.f32 %v1009, %v1105
    %v1107 = vpop.f32.mrb[0].mxu0
    %1108 = vmatprep.mubr.bf16.mxu0 0
    %1109 = vmatmul.mubr.bf16.gmra.mrb[0].mxu0 %v947
    %v1110 = vpop.f32.mrb[0].mxu0
    %v1111 = vadd.f32 %v1014, %v1110
    %v1112 = vpop.f32.mrb[0].mxu0
    %v1113 = vpop.f32.mrb[0].mxu0
    %v1114 = vadd.f32 %v1017, %v1113
    %v1115 = vpop.f32.mrb[0].mxu0
    %1116 = vmatprep.mubr.bf16.mxu0 0
    %1117 = vmatmul.mubr.bf16.gmra.mrb[0].mxu0 %v950
    %v1118 = vpop.f32.mrb[0].mxu0
    %v1119 = vadd.f32 %v1022, %v1118
    %v1120 = vpop.f32.mrb[0].mxu0
    %v1121 = vpop.f32.mrb[0].mxu0
    %v1122 = vadd.f32 %v1025, %v1121
    %v1123 = vpop.f32.mrb[0].mxu0
    %1124 = vmatprep.mubr.bf16.mxu0 0
    %1125 = vmatmul.mubr.bf16.gmra.mrb[0].mxu0 %v953
    %v1126 = vpop.f32.mrb[0].mxu0
    %v1127 = vadd.f32 %v1030, %v1126
    %v1128 = vpop.f32.mrb[0].mxu0
    %v1129 = vpop.f32.mrb[0].mxu0
    %v1130 = vadd.f32 %v1033, %v1129
    %v1131 = vpop.f32.mrb[0].mxu0
    %1132 = vmatprep.mubr.bf16.mxu0 0
    %1133 = vmatmul.mubr.bf16.gmra.mrb[0].mxu0 %v956
    %v1134 = vpop.f32.mrb[0].mxu0
    %v1135 = vadd.f32 %v1038, %v1134
    %v1136 = vpop.f32.mrb[0].mxu0
    %v1137 = vpop.f32.mrb[0].mxu0
    %v1138 = vadd.f32 %v1041, %v1137
    %v1139 = vpop.f32.mrb[0].mxu0
    %1140 = vmatprep.mubr.bf16.mxu0 0
    %1141 = vmatmul.mubr.bf16.gmra.mrb[0].mxu0 %v959
    %v1142 = vpop.f32.mrb[0].mxu0
    %v1143 = vadd.f32 %v1046, %v1142
    %v1144 = vpop.f32.mrb[0].mxu0
    %v1145 = vpop.f32.mrb[0].mxu0
    %v1146 = vadd.f32 %v1049, %v1145
    %v1147 = vpop.f32.mrb[0].mxu0
    %1148 = vmatprep.mubr.bf16.mxu0 0
    %1149 = vmatmul.mubr.bf16.gmra.mrb[0].mxu0 %v962
    %v1150 = vpop.f32.mrb[0].mxu0
    %v1151 = vadd.f32 %v1054, %v1150
    %v1152 = vpop.f32.mrb[0].mxu0
    %v1153 = vpop.f32.mrb[0].mxu0
    %v1154 = vadd.f32 %v1057, %v1153
    %v1155 = vpop.f32.mrb[0].mxu0
    %1156 = vmatprep.mubr.bf16.mxu0 0
    %1157 = vmatmul.mubr.bf16.gmra.mrb[0].mxu0 %v965
    %v1158 = vpop.f32.mrb[0].mxu0
    %v1159 = vadd.f32 %v1062, %v1158
    %v1160 = vpop.f32.mrb[0].mxu0
    %v1161 = vpop.f32.mrb[0].mxu0
    %v1162 = vadd.f32 %v1065, %v1161
    %v1163 = vpop.f32.mrb[0].mxu0
    %1164 = vdwg.mxu0
    %v1165 = vpack.c.bf16 %v1106, %v1103
    %v1166 = vpack.c.bf16 %v1114, %v1111
    %v1167 = vpack.c.bf16 %v1122, %v1119
    %v1168 = vpack.c.bf16 %v1130, %v1127
    %v1169 = vpack.c.bf16 %v1138, %v1135
    %v1170 = vpack.c.bf16 %v1146, %v1143
    %v1171 = vpack.c.bf16 %v1154, %v1151
    %v1172 = vpack.c.bf16 %v1162, %v1159
    %v1173 = vld [vmem:[#allocation11] sm:$0xff]
    %v1174 = vld [vmem:[#allocation11 + $0x8] sm:$0xf]
    %v1175 = vld [vmem:[#allocation11 + $0xc] sm:$0xff]
    %v1176 = vld [vmem:[#allocation11 + $0x14] sm:$0xf]
    %v1177 = vld [vmem:[#allocation11 + $0x18] sm:$0xff]
    %v1178 = vld [vmem:[#allocation11 + $0x20] sm:$0xf]
    %v1179 = vld [vmem:[#allocation11 + $0x24] sm:$0xff]
    %v1180 = vld [vmem:[#allocation11 + $0x2c] sm:$0xf]
    %v1181 = vld [vmem:[#allocation11 + $0x30] sm:$0x33]
    %v1182 = vld [vmem:[#allocation11 + $0x38] sm:$0x3]
    %v1193 = vunpack.c.l.b16 %v1173
    %v1194 = vunpack.c.h.b16 %v1173
    %v1195 = vunpack.c.l.b16 %v1174
    %v1196 = vunpack.c.l.b16 %v1175
    %v1197 = vunpack.c.h.b16 %v1175
    %v1198 = vunpack.c.l.b16 %v1176
    %v1199 = vunpack.c.l.b16 %v1177
    %v1200 = vunpack.c.h.b16 %v1177
    %v1201 = vunpack.c.l.b16 %v1178
    %v1202 = vunpack.c.l.b16 %v1179
    %v1203 = vunpack.c.h.b16 %v1179
    %v1204 = vunpack.c.l.b16 %v1180
    %v1205 = vunpack.c.l.b16 %v1181
    %v1206 = vunpack.c.h.b16 %v1181
    %v1207 = vunpack.c.l.b16 %v1182
    %v1208 = vpack.c.b16 %v1196, %v1193
    %v1209 = vpack.c.b16 %v1197, %v1194
    %v1210 = vpack.c.b16 %v1198, %v1195
    %v1211 = vpack.c.b16 %v1202, %v1199
    %v1212 = vpack.c.b16 %v1203, %v1200
    %v1213 = vpack.c.b16 %v1204, %v1201
    %v1214 = vpack.c.b16 %v1205, %v1205
    %v1215 = vpack.c.b16 %v1206, %v1206
    %v1216 = vpack.c.b16 %v1207, %v1207
    %vm1223 = vcmask 293888
    %v1225 = vsel %vm1223, %v1165, 0
    %v1228 = vsel %vm1223, %v1166, 0
    %v1231 = vsel %vm1223, %v1167, 0
    %v1234 = vsel %vm1223, %v1168, 0
    %v1237 = vsel %vm1223, %v1169, 0
    %v1240 = vsel %vm1223, %v1170, 0
    %v1243 = vsel %vm1223, %v1171, 0
    %v1246 = vsel %vm1223, %v1172, 0
    %v1249 = vsel %vm967, %v1214, 0
    %v1252 = vsel %vm967, %v1215, 0
    %v1255 = vsel %vm967, %v1216, 0
    %1257 = vmatprep.subr.bf16.mxu0 %v1209
    %1258 = vmatpush1.bf16.msra.mxu0 %v1208
    %1259 = vmatprep.subr.bf16.mxu0 %v1212
    %1260 = vmatpush1.bf16.msra.mxu0 %v1211
    %1261 = vmatprep.subr.bf16.mxu0 %v1252
    %1262 = vmatpush1.bf16.msra.mxu0 %v1249
    %1263 = vmatprep.subr.bf16.mxu0 0
    %1264 = vmatpush1.bf16.msra.mxu0 0
    %1265 = vmatprep.subr.bf16.mxu0 0
    %1266 = vmatpush1.bf16.msra.mxu0 0
    %1267 = vmatprep.subr.bf16.mxu0 0
    %1268 = vmatpush1.bf16.msra.mxu0 0
    %1269 = vmatprep.subr.bf16.mxu0 0
    %1270 = vmatpush1.bf16.msra.mxu0 0
    %1271 = vmatprep.subr.bf16.mxu0 0
    %1272 = vmatpush1.bf16.msra.mxu0 0
    %1273 = vmatprep.subr.bf16.mxu0 0
    %1274 = vmatpush1.bf16.msra.mxu0 0
    %1275 = vmatprep.subr.bf16.mxu0 0
    %1276 = vmatpush1.bf16.msra.mxu0 0
    %1277 = vmatprep.subr.bf16.mxu0 0
    %1278 = vmatpush1.bf16.msra.mxu0 0
    %1279 = vmatprep.subr.bf16.mxu0 0
    %1280 = vmatpush1.bf16.msra.mxu0 0
    %1281 = vmatprep.subr.bf16.mxu0 0
    %1282 = vmatpush1.bf16.msra.mxu0 0
    %1283 = vmatprep.subr.bf16.mxu0 0
    %1284 = vmatpush1.bf16.msra.mxu0 0
    %1285 = vmatprep.subr.bf16.mxu0 0
    %1286 = vmatpush1.bf16.msra.mxu0 0
    %1287 = vmatprep.subr.bf16.mxu0 0
    %1288 = vmatpush1.bf16.msra.mxu0 0
    %1289 = vmatprep.mubr.bf16.mxu0 0
    %1290 = vmatmul.mubr.bf16.gmra.mrb[0].mxu0 %v1225
    %v1291 = vpop.f32.mrb[0].mxu0
    %v1292 = vadd.f32 0.0, %v1291
    %v1293 = vpop.f32.mrb[0].mxu0
    %v1294 = vadd.f32 0.0, %v1293
    %v1295 = vpop.f32.mrb[0].mxu0
    %v1296 = vadd.f32 0.0, %v1295
    %v1297 = vpop.f32.mrb[0].mxu0
    %v1298 = vadd.f32 0.0, %v1297
    %1299 = vmatprep.mubr.bf16.mxu0 0
    %1300 = vmatmul.mubr.bf16.gmra.mrb[0].mxu0 %v1228
    %v1301 = vpop.f32.mrb[0].mxu0
    %v1302 = vadd.f32 0.0, %v1301
    %v1303 = vpop.f32.mrb[0].mxu0
    %v1304 = vadd.f32 0.0, %v1303
    %v1305 = vpop.f32.mrb[0].mxu0
    %v1306 = vadd.f32 0.0, %v1305
    %v1307 = vpop.f32.mrb[0].mxu0
    %v1308 = vadd.f32 0.0, %v1307
    %1309 = vmatprep.mubr.bf16.mxu0 0
    %1310 = vmatmul.mubr.bf16.gmra.mrb[0].mxu0 %v1231
    %v1311 = vpop.f32.mrb[0].mxu0
    %v1312 = vadd.f32 0.0, %v1311
    %v1313 = vpop.f32.mrb[0].mxu0
    %v1314 = vadd.f32 0.0, %v1313
    %v1315 = vpop.f32.mrb[0].mxu0
    %v1316 = vadd.f32 0.0, %v1315
    %v1317 = vpop.f32.mrb[0].mxu0
    %v1318 = vadd.f32 0.0, %v1317
    %1319 = vmatprep.mubr.bf16.mxu0 0
    %1320 = vmatmul.mubr.bf16.gmra.mrb[0].mxu0 %v1234
    %v1321 = vpop.f32.mrb[0].mxu0
    %v1322 = vadd.f32 0.0, %v1321
    %v1323 = vpop.f32.mrb[0].mxu0
    %v1324 = vadd.f32 0.0, %v1323
    %v1325 = vpop.f32.mrb[0].mxu0
    %v1326 = vadd.f32 0.0, %v1325
    %v1327 = vpop.f32.mrb[0].mxu0
    %v1328 = vadd.f32 0.0, %v1327
    %1329 = vmatprep.mubr.bf16.mxu0 0
    %1330 = vmatmul.mubr.bf16.gmra.mrb[0].mxu0 %v1237
    %v1331 = vpop.f32.mrb[0].mxu0
    %v1332 = vadd.f32 0.0, %v1331
    %v1333 = vpop.f32.mrb[0].mxu0
    %v1334 = vadd.f32 0.0, %v1333
    %v1335 = vpop.f32.mrb[0].mxu0
    %v1336 = vadd.f32 0.0, %v1335
    %v1337 = vpop.f32.mrb[0].mxu0
    %v1338 = vadd.f32 0.0, %v1337
    %1339 = vmatprep.mubr.bf16.mxu0 0
    %1340 = vmatmul.mubr.bf16.gmra.mrb[0].mxu0 %v1240
    %v1341 = vpop.f32.mrb[0].mxu0
    %v1342 = vadd.f32 0.0, %v1341
    %v1343 = vpop.f32.mrb[0].mxu0
    %v1344 = vadd.f32 0.0, %v1343
    %v1345 = vpop.f32.mrb[0].mxu0
    %v1346 = vadd.f32 0.0, %v1345
    %v1347 = vpop.f32.mrb[0].mxu0
    %v1348 = vadd.f32 0.0, %v1347
    %1349 = vmatprep.mubr.bf16.mxu0 0
    %1350 = vmatmul.mubr.bf16.gmra.mrb[0].mxu0 %v1243
    %v1351 = vpop.f32.mrb[0].mxu0
    %v1352 = vadd.f32 0.0, %v1351
    %v1353 = vpop.f32.mrb[0].mxu0
    %v1354 = vadd.f32 0.0, %v1353
    %v1355 = vpop.f32.mrb[0].mxu0
    %v1356 = vadd.f32 0.0, %v1355
    %v1357 = vpop.f32.mrb[0].mxu0
    %v1358 = vadd.f32 0.0, %v1357
    %1359 = vmatprep.mubr.bf16.mxu0 0
    %1360 = vmatmul.mubr.bf16.gmra.mrb[0].mxu0 %v1246
    %v1361 = vpop.f32.mrb[0].mxu0
    %v1362 = vadd.f32 0.0, %v1361
    %v1363 = vpop.f32.mrb[0].mxu0
    %v1364 = vadd.f32 0.0, %v1363
    %v1365 = vpop.f32.mrb[0].mxu0
    %v1366 = vadd.f32 0.0, %v1365
    %v1367 = vpop.f32.mrb[0].mxu0
    %v1368 = vadd.f32 0.0, %v1367
    %1369 = vdwg.mxu0
    %1370 = vmatprep.subr.bf16.mxu0 0
    %1371 = vmatpush1.bf16.msra.mxu0 %v1210
    %1372 = vmatprep.subr.bf16.mxu0 0
    %1373 = vmatpush1.bf16.msra.mxu0 %v1213
    %1374 = vmatprep.subr.bf16.mxu0 0
    %1375 = vmatpush1.bf16.msra.mxu0 %v1255
    %1376 = vmatprep.subr.bf16.mxu0 0
    %1377 = vmatpush1.bf16.msra.mxu0 0
    %1378 = vmatprep.subr.bf16.mxu0 0
    %1379 = vmatpush1.bf16.msra.mxu0 0
    %1380 = vmatprep.subr.bf16.mxu0 0
    %1381 = vmatpush1.bf16.msra.mxu0 0
    %1382 = vmatprep.subr.bf16.mxu0 0
    %1383 = vmatpush1.bf16.msra.mxu0 0
    %1384 = vmatprep.subr.bf16.mxu0 0
    %1385 = vmatpush1.bf16.msra.mxu0 0
    %1386 = vmatprep.subr.bf16.mxu0 0
    %1387 = vmatpush1.bf16.msra.mxu0 0
    %1388 = vmatprep.subr.bf16.mxu0 0
    %1389 = vmatpush1.bf16.msra.mxu0 0
    %1390 = vmatprep.subr.bf16.mxu0 0
    %1391 = vmatpush1.bf16.msra.mxu0 0
    %1392 = vmatprep.subr.bf16.mxu0 0
    %1393 = vmatpush1.bf16.msra.mxu0 0
    %1394 = vmatprep.subr.bf16.mxu0 0
    %1395 = vmatpush1.bf16.msra.mxu0 0
    %1396 = vmatprep.subr.bf16.mxu0 0
    %1397 = vmatpush1.bf16.msra.mxu0 0
    %1398 = vmatprep.subr.bf16.mxu0 0
    %1399 = vmatpush1.bf16.msra.mxu0 0
    %1400 = vmatprep.subr.bf16.mxu0 0
    %1401 = vmatpush1.bf16.msra.mxu0 0
    %1402 = vmatprep.mubr.bf16.mxu0 0
    %1403 = vmatmul.mubr.bf16.gmra.mrb[0].mxu0 %v1225
    %v1404 = vpop.f32.mrb[0].mxu0
    %v1405 = vadd.f32 0.0, %v1404
    %v1406 = vpop.f32.mrb[0].mxu0
    %v1407 = vpop.f32.mrb[0].mxu0
    %v1408 = vadd.f32 0.0, %v1407
    %v1409 = vpop.f32.mrb[0].mxu0
    %1410 = vmatprep.mubr.bf16.mxu0 0
    %1411 = vmatmul.mubr.bf16.gmra.mrb[0].mxu0 %v1228
    %v1412 = vpop.f32.mrb[0].mxu0
    %v1413 = vadd.f32 0.0, %v1412
    %v1414 = vpop.f32.mrb[0].mxu0
    %v1415 = vpop.f32.mrb[0].mxu0
    %v1416 = vadd.f32 0.0, %v1415
    %v1417 = vpop.f32.mrb[0].mxu0
    %1418 = vmatprep.mubr.bf16.mxu0 0
    %1419 = vmatmul.mubr.bf16.gmra.mrb[0].mxu0 %v1231
    %v1420 = vpop.f32.mrb[0].mxu0
    %v1421 = vadd.f32 0.0, %v1420
    %v1422 = vpop.f32.mrb[0].mxu0
    %v1423 = vpop.f32.mrb[0].mxu0
    %v1424 = vadd.f32 0.0, %v1423
    %v1425 = vpop.f32.mrb[0].mxu0
    %1426 = vmatprep.mubr.bf16.mxu0 0
    %1427 = vmatmul.mubr.bf16.gmra.mrb[0].mxu0 %v1234
    %v1428 = vpop.f32.mrb[0].mxu0
    %v1429 = vadd.f32 0.0, %v1428
    %v1430 = vpop.f32.mrb[0].mxu0
    %v1431 = vpop.f32.mrb[0].mxu0
    %v1432 = vadd.f32 0.0, %v1431
    %v1433 = vpop.f32.mrb[0].mxu0
    %1434 = vmatprep.mubr.bf16.mxu0 0
    %1435 = vmatmul.mubr.bf16.gmra.mrb[0].mxu0 %v1237
    %v1436 = vpop.f32.mrb[0].mxu0
    %v1437 = vadd.f32 0.0, %v1436
    %v1438 = vpop.f32.mrb[0].mxu0
    %v1439 = vpop.f32.mrb[0].mxu0
    %v1440 = vadd.f32 0.0, %v1439
    %v1441 = vpop.f32.mrb[0].mxu0
    %1442 = vmatprep.mubr.bf16.mxu0 0
    %1443 = vmatmul.mubr.bf16.gmra.mrb[0].mxu0 %v1240
    %v1444 = vpop.f32.mrb[0].mxu0
    %v1445 = vadd.f32 0.0, %v1444
    %v1446 = vpop.f32.mrb[0].mxu0
    %v1447 = vpop.f32.mrb[0].mxu0
    %v1448 = vadd.f32 0.0, %v1447
    %v1449 = vpop.f32.mrb[0].mxu0
    %1450 = vmatprep.mubr.bf16.mxu0 0
    %1451 = vmatmul.mubr.bf16.gmra.mrb[0].mxu0 %v1243
    %v1452 = vpop.f32.mrb[0].mxu0
    %v1453 = vadd.f32 0.0, %v1452
    %v1454 = vpop.f32.mrb[0].mxu0
    %v1455 = vpop.f32.mrb[0].mxu0
    %v1456 = vadd.f32 0.0, %v1455
    %v1457 = vpop.f32.mrb[0].mxu0
    %1458 = vmatprep.mubr.bf16.mxu0 0
    %1459 = vmatmul.mubr.bf16.gmra.mrb[0].mxu0 %v1246
    %v1460 = vpop.f32.mrb[0].mxu0
    %v1461 = vadd.f32 0.0, %v1460
    %v1462 = vpop.f32.mrb[0].mxu0
    %v1463 = vpop.f32.mrb[0].mxu0
    %v1464 = vadd.f32 0.0, %v1463
    %v1465 = vpop.f32.mrb[0].mxu0
    %1466 = vdwg.mxu0
    %v1467 = vmax.f32 %v1292, 1.1754944e-38
    %v1468 = vmax.f32 %v1294, 1.1754944e-38
    %v1469 = vmax.f32 %v1405, 1.1754944e-38
    %v1470 = vmax.f32 %v1296, 1.1754944e-38
    %v1471 = vmax.f32 %v1298, 1.1754944e-38
    %v1472 = vmax.f32 %v1408, 1.1754944e-38
    %v1473 = vmax.f32 %v1302, 1.1754944e-38
    %v1474 = vmax.f32 %v1304, 1.1754944e-38
    %v1475 = vmax.f32 %v1413, 1.1754944e-38
    %v1476 = vmax.f32 %v1306, 1.1754944e-38
    %v1477 = vmax.f32 %v1308, 1.1754944e-38
    %v1478 = vmax.f32 %v1416, 1.1754944e-38
    %v1479 = vmax.f32 %v1312, 1.1754944e-38
    %v1480 = vmax.f32 %v1314, 1.1754944e-38
    %v1481 = vmax.f32 %v1421, 1.1754944e-38
    %v1482 = vmax.f32 %v1316, 1.1754944e-38
    %v1483 = vmax.f32 %v1318, 1.1754944e-38
    %v1484 = vmax.f32 %v1424, 1.1754944e-38
    %v1485 = vmax.f32 %v1322, 1.1754944e-38
    %v1486 = vmax.f32 %v1324, 1.1754944e-38
    %v1487 = vmax.f32 %v1429, 1.1754944e-38
    %v1488 = vmax.f32 %v1326, 1.1754944e-38
    %v1489 = vmax.f32 %v1328, 1.1754944e-38
    %v1490 = vmax.f32 %v1432, 1.1754944e-38
    %v1491 = vmax.f32 %v1332, 1.1754944e-38
    %v1492 = vmax.f32 %v1334, 1.1754944e-38
    %v1493 = vmax.f32 %v1437, 1.1754944e-38
    %v1494 = vmax.f32 %v1336, 1.1754944e-38
    %v1495 = vmax.f32 %v1338, 1.1754944e-38
    %v1496 = vmax.f32 %v1440, 1.1754944e-38
    %v1497 = vmax.f32 %v1342, 1.1754944e-38
    %v1498 = vmax.f32 %v1344, 1.1754944e-38
    %v1499 = vmax.f32 %v1445, 1.1754944e-38
    %v1500 = vmax.f32 %v1346, 1.1754944e-38
    %v1501 = vmax.f32 %v1348, 1.1754944e-38
    %v1502 = vmax.f32 %v1448, 1.1754944e-38
    %v1503 = vmax.f32 %v1352, 1.1754944e-38
    %v1504 = vmax.f32 %v1354, 1.1754944e-38
    %v1505 = vmax.f32 %v1453, 1.1754944e-38
    %v1506 = vmax.f32 %v1356, 1.1754944e-38
    %v1507 = vmax.f32 %v1358, 1.1754944e-38
    %v1508 = vmax.f32 %v1456, 1.1754944e-38
    %v1509 = vmax.f32 %v1362, 1.1754944e-38
    %v1510 = vmax.f32 %v1364, 1.1754944e-38
    %v1511 = vmax.f32 %v1461, 1.1754944e-38
    %v1512 = vmax.f32 %v1366, 1.1754944e-38
    %v1513 = vmax.f32 %v1368, 1.1754944e-38
    %v1514 = vmax.f32 %v1464, 1.1754944e-38
    %v1515 = vunpack.c.l.bf16 %v755
    %v1516 = vunpack.c.l.bf16 %v756
    %v1517 = vunpack.c.l.bf16 %v757
    %v1518 = vunpack.c.h.bf16 %v755
    %v1519 = vunpack.c.h.bf16 %v756
    %v1520 = vunpack.c.h.bf16 %v757
    %v1521 = vunpack.c.l.bf16 %v758
    %v1522 = vunpack.c.l.bf16 %v759
    %v1523 = vunpack.c.l.bf16 %v760
    %v1524 = vunpack.c.h.bf16 %v758
    %v1525 = vunpack.c.h.bf16 %v759
    %v1526 = vunpack.c.h.bf16 %v760
    %v1527 = vunpack.c.l.bf16 %v761
    %v1528 = vunpack.c.l.bf16 %v762
    %v1529 = vunpack.c.l.bf16 %v763
    %v1530 = vunpack.c.h.bf16 %v761
    %v1531 = vunpack.c.h.bf16 %v762
    %v1532 = vunpack.c.h.bf16 %v763
    %v1533 = vunpack.c.l.bf16 %v764
    %v1534 = vunpack.c.l.bf16 %v765
    %v1535 = vunpack.c.l.bf16 %v766
    %v1536 = vunpack.c.h.bf16 %v764
    %v1537 = vunpack.c.h.bf16 %v765
    %v1538 = vunpack.c.h.bf16 %v766
    %v1539 = vunpack.c.l.bf16 %v767
    %v1540 = vunpack.c.l.bf16 %v768
    %v1541 = vunpack.c.l.bf16 %v769
    %v1542 = vunpack.c.h.bf16 %v767
    %v1543 = vunpack.c.h.bf16 %v768
    %v1544 = vunpack.c.h.bf16 %v769
    %v1545 = vunpack.c.l.bf16 %v770
    %v1546 = vunpack.c.l.bf16 %v771
    %v1547 = vunpack.c.l.bf16 %v772
    %v1548 = vunpack.c.h.bf16 %v770
    %v1549 = vunpack.c.h.bf16 %v771
    %v1550 = vunpack.c.h.bf16 %v772
    %v1551 = vunpack.c.l.bf16 %v773
    %v1552 = vunpack.c.l.bf16 %v774
    %v1553 = vunpack.c.l.bf16 %v775
    %v1554 = vunpack.c.h.bf16 %v773
    %v1555 = vunpack.c.h.bf16 %v774
    %v1556 = vunpack.c.h.bf16 %v775
    %v1557 = vunpack.c.l.bf16 %v776
    %v1558 = vunpack.c.l.bf16 %v777
    %v1559 = vunpack.c.l.bf16 %v778
    %v1560 = vunpack.c.h.bf16 %v776
    %v1561 = vunpack.c.h.bf16 %v777
    %v1562 = vunpack.c.h.bf16 %v778
    %v1563 = vrcp.pop %v1467
    %v1564 = vmul.f32 %v1515, %v1563
    %v1565 = vrcp.pop %v1468
    %v1566 = vmul.f32 %v1516, %v1565
    %v1567 = vrcp.pop %v1469
    %v1568 = vmul.f32 %v1517, %v1567
    %v1569 = vrcp.pop %v1470
    %v1570 = vmul.f32 %v1518, %v1569
    %v1571 = vrcp.pop %v1471
    %v1572 = vmul.f32 %v1519, %v1571
    %v1573 = vrcp.pop %v1472
    %v1574 = vmul.f32 %v1520, %v1573
    %v1575 = vrcp.pop %v1473
    %v1576 = vmul.f32 %v1521, %v1575
    %v1577 = vrcp.pop %v1474
    %v1578 = vmul.f32 %v1522, %v1577
    %v1579 = vrcp.pop %v1475
    %v1580 = vmul.f32 %v1523, %v1579
    %v1581 = vrcp.pop %v1476
    %v1582 = vmul.f32 %v1524, %v1581
    %v1583 = vrcp.pop %v1477
    %v1584 = vmul.f32 %v1525, %v1583
    %v1585 = vrcp.pop %v1478
    %v1586 = vmul.f32 %v1526, %v1585
    %v1587 = vrcp.pop %v1479
    %v1588 = vmul.f32 %v1527, %v1587
    %v1589 = vrcp.pop %v1480
    %v1590 = vmul.f32 %v1528, %v1589
    %v1591 = vrcp.pop %v1481
    %v1592 = vmul.f32 %v1529, %v1591
    %v1593 = vrcp.pop %v1482
    %v1594 = vmul.f32 %v1530, %v1593
    %v1595 = vrcp.pop %v1483
    %v1596 = vmul.f32 %v1531, %v1595
    %v1597 = vrcp.pop %v1484
    %v1598 = vmul.f32 %v1532, %v1597
    %v1599 = vrcp.pop %v1485
    %v1600 = vmul.f32 %v1533, %v1599
    %v1601 = vrcp.pop %v1486
    %v1602 = vmul.f32 %v1534, %v1601
    %v1603 = vrcp.pop %v1487
    %v1604 = vmul.f32 %v1535, %v1603
    %v1605 = vrcp.pop %v1488
    %v1606 = vmul.f32 %v1536, %v1605
    %v1607 = vrcp.pop %v1489
    %v1608 = vmul.f32 %v1537, %v1607
    %v1609 = vrcp.pop %v1490
    %v1610 = vmul.f32 %v1538, %v1609
    %v1611 = vrcp.pop %v1491
    %v1612 = vmul.f32 %v1539, %v1611
    %v1613 = vrcp.pop %v1492
    %v1614 = vmul.f32 %v1540, %v1613
    %v1615 = vrcp.pop %v1493
    %v1616 = vmul.f32 %v1541, %v1615
    %v1617 = vrcp.pop %v1494
    %v1618 = vmul.f32 %v1542, %v1617
    %v1619 = vrcp.pop %v1495
    %v1620 = vmul.f32 %v1543, %v1619
    %v1621 = vrcp.pop %v1496
    %v1622 = vmul.f32 %v1544, %v1621
    %v1623 = vrcp.pop %v1497
    %v1624 = vmul.f32 %v1545, %v1623
    %v1625 = vrcp.pop %v1498
    %v1626 = vmul.f32 %v1546, %v1625
    %v1627 = vrcp.pop %v1499
    %v1628 = vmul.f32 %v1547, %v1627
    %v1629 = vrcp.pop %v1500
    %v1630 = vmul.f32 %v1548, %v1629
    %v1631 = vrcp.pop %v1501
    %v1632 = vmul.f32 %v1549, %v1631
    %v1633 = vrcp.pop %v1502
    %v1634 = vmul.f32 %v1550, %v1633
    %v1635 = vrcp.pop %v1503
    %v1636 = vmul.f32 %v1551, %v1635
    %v1637 = vrcp.pop %v1504
    %v1638 = vmul.f32 %v1552, %v1637
    %v1639 = vrcp.pop %v1505
    %v1640 = vmul.f32 %v1553, %v1639
    %v1641 = vrcp.pop %v1506
    %v1642 = vmul.f32 %v1554, %v1641
    %v1643 = vrcp.pop %v1507
    %v1644 = vmul.f32 %v1555, %v1643
    %v1645 = vrcp.pop %v1508
    %v1646 = vmul.f32 %v1556, %v1645
    %v1647 = vrcp.pop %v1509
    %v1648 = vmul.f32 %v1557, %v1647
    %v1649 = vrcp.pop %v1510
    %v1650 = vmul.f32 %v1558, %v1649
    %v1651 = vrcp.pop %v1511
    %v1652 = vmul.f32 %v1559, %v1651
    %v1653 = vrcp.pop %v1512
    %v1654 = vmul.f32 %v1560, %v1653
    %v1655 = vrcp.pop %v1513
    %v1656 = vmul.f32 %v1561, %v1655
    %v1657 = vrcp.pop %v1514
    %v1658 = vmul.f32 %v1562, %v1657
    %v1659 = vpack.c.bf16 %v1570, %v1564
    %v1660 = vpack.c.bf16 %v1572, %v1566
    %v1661 = vpack.c.bf16 %v1574, %v1568
    %v1662 = vpack.c.bf16 %v1582, %v1576
    %v1663 = vpack.c.bf16 %v1584, %v1578
    %v1664 = vpack.c.bf16 %v1586, %v1580
    %v1665 = vpack.c.bf16 %v1594, %v1588
    %v1666 = vpack.c.bf16 %v1596, %v1590
    %v1667 = vpack.c.bf16 %v1598, %v1592
    %v1668 = vpack.c.bf16 %v1606, %v1600
    %v1669 = vpack.c.bf16 %v1608, %v1602
    %v1670 = vpack.c.bf16 %v1610, %v1604
    %v1671 = vpack.c.bf16 %v1618, %v1612
    %v1672 = vpack.c.bf16 %v1620, %v1614
    %v1673 = vpack.c.bf16 %v1622, %v1616
    %v1674 = vpack.c.bf16 %v1630, %v1624
    %v1675 = vpack.c.bf16 %v1632, %v1626
    %v1676 = vpack.c.bf16 %v1634, %v1628
    %v1677 = vpack.c.bf16 %v1642, %v1636
    %v1678 = vpack.c.bf16 %v1644, %v1638
    %v1679 = vpack.c.bf16 %v1646, %v1640
    %v1680 = vpack.c.bf16 %v1654, %v1648
    %v1681 = vpack.c.bf16 %v1656, %v1650
    %v1682 = vpack.c.bf16 %v1658, %v1652
    %v1683 = vld [vmem:[#allocation13] sm:$0xff]
    %v1684 = vld [vmem:[#allocation13 + $0x8] sm:$0xff]
    %v1685 = vld [vmem:[#allocation13 + $0x10] sm:$0xff]
    %v1686 = vld [vmem:[#allocation13 + $0x18] sm:$0xff]
    %v1687 = vld [vmem:[#allocation13 + $0x20] sm:$0xff]
    %v1688 = vld [vmem:[#allocation13 + $0x28] sm:$0xf]
    %v1689 = vld [vmem:[#allocation13 + $0x2c] sm:$0xff]
    %v1690 = vld [vmem:[#allocation13 + $0x34] sm:$0xff]
    %v1691 = vld [vmem:[#allocation13 + $0x3c] sm:$0xff]
    %v1692 = vld [vmem:[#allocation13 + $0x44] sm:$0xff]
    %v1693 = vld [vmem:[#allocation13 + $0x4c] sm:$0xff]
    %v1694 = vld [vmem:[#allocation13 + $0x54] sm:$0xf]
    %v1695 = vld [vmem:[#allocation13 + $0x58] sm:$0xff]
    %v1696 = vld [vmem:[#allocation13 + $0x60] sm:$0xff]
    %v1697 = vld [vmem:[#allocation13 + $0x68] sm:$0xff]
    %v1698 = vld [vmem:[#allocation13 + $0x70] sm:$0xff]
    %v1699 = vld [vmem:[#allocation13 + $0x78] sm:$0xff]
    %v1700 = vld [vmem:[#allocation13 + $0x80] sm:$0xf]
    %v1701 = vld [vmem:[#allocation13 + $0x84] sm:$0xff]
    %v1702 = vld [vmem:[#allocation13 + $0x8c] sm:$0xff]
    %v1703 = vld [vmem:[#allocation13 + $0x94] sm:$0xff]
    %v1704 = vld [vmem:[#allocation13 + $0x9c] sm:$0xff]
    %v1705 = vld [vmem:[#allocation13 + $0xa4] sm:$0xff]
    %v1706 = vld [vmem:[#allocation13 + $0xac] sm:$0xf]
    %v1707 = vld [vmem:[#allocation13 + $0xb0] sm:$0xff]
    %v1708 = vld [vmem:[#allocation13 + $0xb8] sm:$0xff]
    %v1709 = vld [vmem:[#allocation13 + $0xc0] sm:$0xff]
    %v1710 = vld [vmem:[#allocation13 + $0xc8] sm:$0xff]
    %v1711 = vld [vmem:[#allocation13 + $0xd0] sm:$0xff]
    %v1712 = vld [vmem:[#allocation13 + $0xd8] sm:$0xf]
    %v1713 = vld [vmem:[#allocation13 + $0xdc] sm:$0xff]
    %v1714 = vld [vmem:[#allocation13 + $0xe4] sm:$0xff]
    %v1715 = vld [vmem:[#allocation13 + $0xec] sm:$0xff]
    %v1716 = vld [vmem:[#allocation13 + $0xf4] sm:$0xff]
    %v1717 = vld [vmem:[#allocation13 + $0xfc] sm:$0xff]
    %v1718 = vld [vmem:[#allocation13 + $0x104] sm:$0xf]
    %v1719 = vld [vmem:[#allocation13 + $0x108] sm:$0xff]
    %v1720 = vld [vmem:[#allocation13 + $0x110] sm:$0xff]
    %v1721 = vld [vmem:[#allocation13 + $0x118] sm:$0xff]
    %v1722 = vld [vmem:[#allocation13 + $0x120] sm:$0xff]
    %v1723 = vld [vmem:[#allocation13 + $0x128] sm:$0xff]
    %v1724 = vld [vmem:[#allocation13 + $0x130] sm:$0xf]
    %v1725 = vld [vmem:[#allocation13 + $0x134] sm:$0xff]
    %v1726 = vld [vmem:[#allocation13 + $0x13c] sm:$0xff]
    %v1727 = vld [vmem:[#allocation13 + $0x144] sm:$0xff]
    %v1728 = vld [vmem:[#allocation13 + $0x14c] sm:$0xff]
    %v1729 = vld [vmem:[#allocation13 + $0x154] sm:$0xff]
    %v1730 = vld [vmem:[#allocation13 + $0x15c] sm:$0xf]
    %v1731 = vld [vmem:[#allocation13 + $0x160] sm:$0xff]
    %v1732 = vld [vmem:[#allocation13 + $0x168] sm:$0xff]
    %v1733 = vld [vmem:[#allocation13 + $0x170] sm:$0xff]
    %v1734 = vld [vmem:[#allocation13 + $0x178] sm:$0xff]
    %v1735 = vld [vmem:[#allocation13 + $0x180] sm:$0xff]
    %v1736 = vld [vmem:[#allocation13 + $0x188] sm:$0xf]
    %v1737 = vld [vmem:[#allocation13 + $0x18c] sm:$0xff]
    %v1738 = vld [vmem:[#allocation13 + $0x194] sm:$0xff]
    %v1739 = vld [vmem:[#allocation13 + $0x19c] sm:$0xff]
    %v1740 = vld [vmem:[#allocation13 + $0x1a4] sm:$0xff]
    %v1741 = vld [vmem:[#allocation13 + $0x1ac] sm:$0xff]
    %v1742 = vld [vmem:[#allocation13 + $0x1b4] sm:$0xf]
    %v1743 = vld [vmem:[#allocation13 + $0x1b8] sm:$0xff]
    %v1744 = vld [vmem:[#allocation13 + $0x1c0] sm:$0xff]
    %v1745 = vld [vmem:[#allocation13 + $0x1c8] sm:$0xff]
    %v1746 = vld [vmem:[#allocation13 + $0x1d0] sm:$0xff]
    %v1747 = vld [vmem:[#allocation13 + $0x1d8] sm:$0xff]
    %v1748 = vld [vmem:[#allocation13 + $0x1e0] sm:$0xf]
    %v1749 = vld [vmem:[#allocation13 + $0x1e4] sm:$0xff]
    %v1750 = vld [vmem:[#allocation13 + $0x1ec] sm:$0xff]
    %v1751 = vld [vmem:[#allocation13 + $0x1f4] sm:$0xff]
    %v1752 = vld [vmem:[#allocation13 + $0x1fc] sm:$0xff]
    %v1753 = vld [vmem:[#allocation13 + $0x204] sm:$0xff]
    %v1754 = vld [vmem:[#allocation13 + $0x20c] sm:$0xf]
    %v1755 = vld [vmem:[#allocation13 + $0x210] sm:$0xff]
    %v1756 = vld [vmem:[#allocation13 + $0x218] sm:$0xff]
    %v1757 = vld [vmem:[#allocation13 + $0x220] sm:$0xff]
    %v1758 = vld [vmem:[#allocation13 + $0x228] sm:$0xff]
    %v1759 = vld [vmem:[#allocation13 + $0x230] sm:$0xff]
    %v1760 = vld [vmem:[#allocation13 + $0x238] sm:$0xf]
    %v1761 = vld [vmem:[#allocation13 + $0x23c] sm:$0xff]
    %v1762 = vld [vmem:[#allocation13 + $0x244] sm:$0xff]
    %v1763 = vld [vmem:[#allocation13 + $0x24c] sm:$0xff]
    %v1764 = vld [vmem:[#allocation13 + $0x254] sm:$0xff]
    %v1765 = vld [vmem:[#allocation13 + $0x25c] sm:$0xff]
    %v1766 = vld [vmem:[#allocation13 + $0x264] sm:$0xf]
    %v1767 = vld [vmem:[#allocation13 + $0x268] sm:$0xff]
    %v1768 = vld [vmem:[#allocation13 + $0x270] sm:$0xff]
    %v1769 = vld [vmem:[#allocation13 + $0x278] sm:$0xff]
    %v1770 = vld [vmem:[#allocation13 + $0x280] sm:$0xff]
    %v1771 = vld [vmem:[#allocation13 + $0x288] sm:$0xff]
    %v1772 = vld [vmem:[#allocation13 + $0x290] sm:$0xf]
    %v1773 = vld [vmem:[#allocation13 + $0x294] sm:$0xff]
    %v1774 = vld [vmem:[#allocation13 + $0x29c] sm:$0xff]
    %v1775 = vld [vmem:[#allocation13 + $0x2a4] sm:$0xff]
    %v1776 = vld [vmem:[#allocation13 + $0x2ac] sm:$0xff]
    %v1777 = vld [vmem:[#allocation13 + $0x2b4] sm:$0xff]
    %v1778 = vld [vmem:[#allocation13 + $0x2bc] sm:$0xf]
    %v1779 = vld [vmem:[#allocation13 + $0x2c0] sm:$0xff]
    %v1780 = vld [vmem:[#allocation13 + $0x2c8] sm:$0xff]
    %v1781 = vld [vmem:[#allocation13 + $0x2d0] sm:$0xff]
    %v1782 = vld [vmem:[#allocation13 + $0x2d8] sm:$0xff]
    %v1783 = vld [vmem:[#allocation13 + $0x2e0] sm:$0xff]
    %v1784 = vld [vmem:[#allocation13 + $0x2e8] sm:$0xf]
    %v1785 = vld [vmem:[#allocation13 + $0x2ec] sm:$0xff]
    %v1786 = vld [vmem:[#allocation13 + $0x2f4] sm:$0xff]
    %v1787 = vld [vmem:[#allocation13 + $0x2fc] sm:$0xff]
    %v1788 = vld [vmem:[#allocation13 + $0x304] sm:$0xff]
    %v1789 = vld [vmem:[#allocation13 + $0x30c] sm:$0xff]
    %v1790 = vld [vmem:[#allocation13 + $0x314] sm:$0xf]
    %v1791 = vld [vmem:[#allocation13 + $0x318] sm:$0xff]
    %v1792 = vld [vmem:[#allocation13 + $0x320] sm:$0xff]
    %v1793 = vld [vmem:[#allocation13 + $0x328] sm:$0xff]
    %v1794 = vld [vmem:[#allocation13 + $0x330] sm:$0xff]
    %v1795 = vld [vmem:[#allocation13 + $0x338] sm:$0xff]
    %v1796 = vld [vmem:[#allocation13 + $0x340] sm:$0xf]
    %v1797 = vld [vmem:[#allocation13 + $0x344] sm:$0xff]
    %v1798 = vld [vmem:[#allocation13 + $0x34c] sm:$0xff]
    %v1799 = vld [vmem:[#allocation13 + $0x354] sm:$0xff]
    %v1800 = vld [vmem:[#allocation13 + $0x35c] sm:$0xff]
    %v1801 = vld [vmem:[#allocation13 + $0x364] sm:$0xff]
    %v1802 = vld [vmem:[#allocation13 + $0x36c] sm:$0xf]
    %v1803 = vld [vmem:[#allocation13 + $0x370] sm:$0xff]
    %v1804 = vld [vmem:[#allocation13 + $0x378] sm:$0xff]
    %v1805 = vld [vmem:[#allocation13 + $0x380] sm:$0xff]
    %v1806 = vld [vmem:[#allocation13 + $0x388] sm:$0xff]
    %v1807 = vld [vmem:[#allocation13 + $0x390] sm:$0xff]
    %v1808 = vld [vmem:[#allocation13 + $0x398] sm:$0xf]
    %v1809 = vld [vmem:[#allocation13 + $0x39c] sm:$0xff]
    %v1810 = vld [vmem:[#allocation13 + $0x3a4] sm:$0xff]
    %v1811 = vld [vmem:[#allocation13 + $0x3ac] sm:$0xff]
    %v1812 = vld [vmem:[#allocation13 + $0x3b4] sm:$0xff]
    %v1813 = vld [vmem:[#allocation13 + $0x3bc] sm:$0xff]
    %v1814 = vld [vmem:[#allocation13 + $0x3c4] sm:$0xf]
    %v1815 = vld [vmem:[#allocation13 + $0x3c8] sm:$0xff]
    %v1816 = vld [vmem:[#allocation13 + $0x3d0] sm:$0xff]
    %v1817 = vld [vmem:[#allocation13 + $0x3d8] sm:$0xff]
    %v1818 = vld [vmem:[#allocation13 + $0x3e0] sm:$0xff]
    %v1819 = vld [vmem:[#allocation13 + $0x3e8] sm:$0xff]
    %v1820 = vld [vmem:[#allocation13 + $0x3f0] sm:$0xf]
    %v1821 = vld [vmem:[#allocation13 + $0x3f4] sm:$0xff]
    %v1822 = vld [vmem:[#allocation13 + $0x3fc] sm:$0xff]
    %v1823 = vld [vmem:[#allocation13 + $0x404] sm:$0xff]
    %v1824 = vld [vmem:[#allocation13 + $0x40c] sm:$0xff]
    %v1825 = vld [vmem:[#allocation13 + $0x414] sm:$0xff]
    %v1826 = vld [vmem:[#allocation13 + $0x41c] sm:$0xf]
    %v1827 = vld [vmem:[#allocation13 + $0x420] sm:$0xff]
    %v1828 = vld [vmem:[#allocation13 + $0x428] sm:$0xff]
    %v1829 = vld [vmem:[#allocation13 + $0x430] sm:$0xff]
    %v1830 = vld [vmem:[#allocation13 + $0x438] sm:$0xff]
    %v1831 = vld [vmem:[#allocation13 + $0x440] sm:$0xff]
    %v1832 = vld [vmem:[#allocation13 + $0x448] sm:$0xf]
    %v1833 = vld [vmem:[#allocation13 + $0x44c] sm:$0xff]
    %v1834 = vld [vmem:[#allocation13 + $0x454] sm:$0xff]
    %v1835 = vld [vmem:[#allocation13 + $0x45c] sm:$0xff]
    %v1836 = vld [vmem:[#allocation13 + $0x464] sm:$0xff]
    %v1837 = vld [vmem:[#allocation13 + $0x46c] sm:$0xff]
    %v1838 = vld [vmem:[#allocation13 + $0x474] sm:$0xf]
    %v1839 = vld [vmem:[#allocation13 + $0x478] sm:$0xff]
    %v1840 = vld [vmem:[#allocation13 + $0x480] sm:$0xff]
    %v1841 = vld [vmem:[#allocation13 + $0x488] sm:$0xff]
    %v1842 = vld [vmem:[#allocation13 + $0x490] sm:$0xff]
    %v1843 = vld [vmem:[#allocation13 + $0x498] sm:$0xff]
    %v1844 = vld [vmem:[#allocation13 + $0x4a0] sm:$0xf]
    %v1845 = vld [vmem:[#allocation13 + $0x4a4] sm:$0xff]
    %v1846 = vld [vmem:[#allocation13 + $0x4ac] sm:$0xff]
    %v1847 = vld [vmem:[#allocation13 + $0x4b4] sm:$0xff]
    %v1848 = vld [vmem:[#allocation13 + $0x4bc] sm:$0xff]
    %v1849 = vld [vmem:[#allocation13 + $0x4c4] sm:$0xff]
    %v1850 = vld [vmem:[#allocation13 + $0x4cc] sm:$0xf]
    %v1851 = vld [vmem:[#allocation13 + $0x4d0] sm:$0xff]
    %v1852 = vld [vmem:[#allocation13 + $0x4d8] sm:$0xff]
    %v1853 = vld [vmem:[#allocation13 + $0x4e0] sm:$0xff]
    %v1854 = vld [vmem:[#allocation13 + $0x4e8] sm:$0xff]
    %v1855 = vld [vmem:[#allocation13 + $0x4f0] sm:$0xff]
    %v1856 = vld [vmem:[#allocation13 + $0x4f8] sm:$0xf]
    %v1857 = vld [vmem:[#allocation13 + $0x4fc] sm:$0xff]
    %v1858 = vld [vmem:[#allocation13 + $0x504] sm:$0xff]
    %v1859 = vld [vmem:[#allocation13 + $0x50c] sm:$0xff]
    %v1860 = vld [vmem:[#allocation13 + $0x514] sm:$0xff]
    %v1861 = vld [vmem:[#allocation13 + $0x51c] sm:$0xff]
    %v1862 = vld [vmem:[#allocation13 + $0x524] sm:$0xf]
    %v1863 = vld [vmem:[#allocation13 + $0x528] sm:$0xff]
    %v1864 = vld [vmem:[#allocation13 + $0x530] sm:$0xff]
    %v1865 = vld [vmem:[#allocation13 + $0x538] sm:$0xff]
    %v1866 = vld [vmem:[#allocation13 + $0x540] sm:$0xff]
    %v1867 = vld [vmem:[#allocation13 + $0x548] sm:$0xff]
    %v1868 = vld [vmem:[#allocation13 + $0x550] sm:$0xf]
    %v1869 = vld [vmem:[#allocation13 + $0x554] sm:$0xff]
    %v1870 = vld [vmem:[#allocation13 + $0x55c] sm:$0xff]
    %v1871 = vld [vmem:[#allocation13 + $0x564] sm:$0xff]
    %v1872 = vld [vmem:[#allocation13 + $0x56c] sm:$0xff]
    %v1873 = vld [vmem:[#allocation13 + $0x574] sm:$0xff]
    %v1874 = vld [vmem:[#allocation13 + $0x57c] sm:$0xf]
    %v1875 = vld [vmem:[#allocation13 + $0x580] sm:$0xff]
    %v1876 = vld [vmem:[#allocation13 + $0x588] sm:$0xff]
    %v1877 = vld [vmem:[#allocation13 + $0x590] sm:$0xff]
    %v1878 = vld [vmem:[#allocation13 + $0x598] sm:$0xff]
    %v1879 = vld [vmem:[#allocation13 + $0x5a0] sm:$0xff]
    %v1880 = vld [vmem:[#allocation13 + $0x5a8] sm:$0xf]
    %v1881 = vld [vmem:[#allocation13 + $0x5ac] sm:$0xff]
    %v1882 = vld [vmem:[#allocation13 + $0x5b4] sm:$0xff]
    %v1883 = vld [vmem:[#allocation13 + $0x5bc] sm:$0xff]
    %v1884 = vld [vmem:[#allocation13 + $0x5c4] sm:$0xff]
    %v1885 = vld [vmem:[#allocation13 + $0x5cc] sm:$0xff]
    %v1886 = vld [vmem:[#allocation13 + $0x5d4] sm:$0xf]
    %v1887 = vld [vmem:[#allocation13 + $0x5d8] sm:$0xff]
    %v1888 = vld [vmem:[#allocation13 + $0x5e0] sm:$0xff]
    %v1889 = vld [vmem:[#allocation13 + $0x5e8] sm:$0xff]
    %v1890 = vld [vmem:[#allocation13 + $0x5f0] sm:$0xff]
    %v1891 = vld [vmem:[#allocation13 + $0x5f8] sm:$0xff]
    %v1892 = vld [vmem:[#allocation13 + $0x600] sm:$0xf]
    %v1893 = vld [vmem:[#allocation13 + $0x604] sm:$0xff]
    %v1894 = vld [vmem:[#allocation13 + $0x60c] sm:$0xff]
    %v1895 = vld [vmem:[#allocation13 + $0x614] sm:$0xff]
    %v1896 = vld [vmem:[#allocation13 + $0x61c] sm:$0xff]
    %v1897 = vld [vmem:[#allocation13 + $0x624] sm:$0xff]
    %v1898 = vld [vmem:[#allocation13 + $0x62c] sm:$0xf]
    %v1899 = vld [vmem:[#allocation13 + $0x630] sm:$0xff]
    %v1900 = vld [vmem:[#allocation13 + $0x638] sm:$0xff]
    %v1901 = vld [vmem:[#allocation13 + $0x640] sm:$0xff]
    %v1902 = vld [vmem:[#allocation13 + $0x648] sm:$0xff]
    %v1903 = vld [vmem:[#allocation13 + $0x650] sm:$0xff]
    %v1904 = vld [vmem:[#allocation13 + $0x658] sm:$0xf]
    %v1905 = vld [vmem:[#allocation13 + $0x65c] sm:$0xff]
    %v1906 = vld [vmem:[#allocation13 + $0x664] sm:$0xff]
    %v1907 = vld [vmem:[#allocation13 + $0x66c] sm:$0xff]
    %v1908 = vld [vmem:[#allocation13 + $0x674] sm:$0xff]
    %v1909 = vld [vmem:[#allocation13 + $0x67c] sm:$0xff]
    %v1910 = vld [vmem:[#allocation13 + $0x684] sm:$0xf]
    %v1911 = vld [vmem:[#allocation13 + $0x688] sm:$0xff]
    %v1912 = vld [vmem:[#allocation13 + $0x690] sm:$0xff]
    %v1913 = vld [vmem:[#allocation13 + $0x698] sm:$0xff]
    %v1914 = vld [vmem:[#allocation13 + $0x6a0] sm:$0xff]
    %v1915 = vld [vmem:[#allocation13 + $0x6a8] sm:$0xff]
    %v1916 = vld [vmem:[#allocation13 + $0x6b0] sm:$0xf]
    %v1917 = vld [vmem:[#allocation13 + $0x6b4] sm:$0xff]
    %v1918 = vld [vmem:[#allocation13 + $0x6bc] sm:$0xff]
    %v1919 = vld [vmem:[#allocation13 + $0x6c4] sm:$0xff]
    %v1920 = vld [vmem:[#allocation13 + $0x6cc] sm:$0xff]
    %v1921 = vld [vmem:[#allocation13 + $0x6d4] sm:$0xff]
    %v1922 = vld [vmem:[#allocation13 + $0x6dc] sm:$0xf]
    %v1923 = vld [vmem:[#allocation13 + $0x6e0] sm:$0x33]
    %v1924 = vld [vmem:[#allocation13 + $0x6e8] sm:$0x33]
    %v1925 = vld [vmem:[#allocation13 + $0x6f0] sm:$0x33]
    %v1926 = vld [vmem:[#allocation13 + $0x6f8] sm:$0x33]
    %v1927 = vld [vmem:[#allocation13 + $0x700] sm:$0x33]
    %v1928 = vld [vmem:[#allocation13 + $0x708] sm:$0x3]
    %v2175 = vunpack.c.l.b16 %v1683
    %v2176 = vunpack.c.h.b16 %v1683
    %v2177 = vunpack.c.l.b16 %v1684
    %v2178 = vunpack.c.h.b16 %v1684
    %v2179 = vunpack.c.l.b16 %v1685
    %v2180 = vunpack.c.h.b16 %v1685
    %v2181 = vunpack.c.l.b16 %v1686
    %v2182 = vunpack.c.h.b16 %v1686
    %v2183 = vunpack.c.l.b16 %v1687
    %v2184 = vunpack.c.h.b16 %v1687
    %v2185 = vunpack.c.l.b16 %v1688
    %v2186 = vunpack.c.l.b16 %v1689
    %v2187 = vunpack.c.h.b16 %v1689
    %v2188 = vunpack.c.l.b16 %v1690
    %v2189 = vunpack.c.h.b16 %v1690
    %v2190 = vunpack.c.l.b16 %v1691
    %v2191 = vunpack.c.h.b16 %v1691
    %v2192 = vunpack.c.l.b16 %v1692
    %v2193 = vunpack.c.h.b16 %v1692
    %v2194 = vunpack.c.l.b16 %v1693
    %v2195 = vunpack.c.h.b16 %v1693
    %v2196 = vunpack.c.l.b16 %v1694
    %v2197 = vunpack.c.l.b16 %v1695
    %v2198 = vunpack.c.h.b16 %v1695
    %v2199 = vunpack.c.l.b16 %v1696
    %v2200 = vunpack.c.h.b16 %v1696
    %v2201 = vunpack.c.l.b16 %v1697
    %v2202 = vunpack.c.h.b16 %v1697
    %v2203 = vunpack.c.l.b16 %v1698
    %v2204 = vunpack.c.h.b16 %v1698
    %v2205 = vunpack.c.l.b16 %v1699
    %v2206 = vunpack.c.h.b16 %v1699
    %v2207 = vunpack.c.l.b16 %v1700
    %v2208 = vunpack.c.l.b16 %v1701
    %v2209 = vunpack.c.h.b16 %v1701
    %v2210 = vunpack.c.l.b16 %v1702
    %v2211 = vunpack.c.h.b16 %v1702
    %v2212 = vunpack.c.l.b16 %v1703
    %v2213 = vunpack.c.h.b16 %v1703
    %v2214 = vunpack.c.l.b16 %v1704
    %v2215 = vunpack.c.h.b16 %v1704
    %v2216 = vunpack.c.l.b16 %v1705
    %v2217 = vunpack.c.h.b16 %v1705
    %v2218 = vunpack.c.l.b16 %v1706
    %v2219 = vunpack.c.l.b16 %v1707
    %v2220 = vunpack.c.h.b16 %v1707
    %v2221 = vunpack.c.l.b16 %v1708
    %v2222 = vunpack.c.h.b16 %v1708
    %v2223 = vunpack.c.l.b16 %v1709
    %v2224 = vunpack.c.h.b16 %v1709
    %v2225 = vunpack.c.l.b16 %v1710
    %v2226 = vunpack.c.h.b16 %v1710
    %v2227 = vunpack.c.l.b16 %v1711
    %v2228 = vunpack.c.h.b16 %v1711
    %v2229 = vunpack.c.l.b16 %v1712
    %v2230 = vunpack.c.l.b16 %v1713
    %v2231 = vunpack.c.h.b16 %v1713
    %v2232 = vunpack.c.l.b16 %v1714
    %v2233 = vunpack.c.h.b16 %v1714
    %v2234 = vunpack.c.l.b16 %v1715
    %v2235 = vunpack.c.h.b16 %v1715
    %v2236 = vunpack.c.l.b16 %v1716
    %v2237 = vunpack.c.h.b16 %v1716
    %v2238 = vunpack.c.l.b16 %v1717
    %v2239 = vunpack.c.h.b16 %v1717
    %v2240 = vunpack.c.l.b16 %v1718
    %v2241 = vunpack.c.l.b16 %v1719
    %v2242 = vunpack.c.h.b16 %v1719
    %v2243 = vunpack.c.l.b16 %v1720
    %v2244 = vunpack.c.h.b16 %v1720
    %v2245 = vunpack.c.l.b16 %v1721
    %v2246 = vunpack.c.h.b16 %v1721
    %v2247 = vunpack.c.l.b16 %v1722
    %v2248 = vunpack.c.h.b16 %v1722
    %v2249 = vunpack.c.l.b16 %v1723
    %v2250 = vunpack.c.h.b16 %v1723
    %v2251 = vunpack.c.l.b16 %v1724
    %v2252 = vunpack.c.l.b16 %v1725
    %v2253 = vunpack.c.h.b16 %v1725
    %v2254 = vunpack.c.l.b16 %v1726
    %v2255 = vunpack.c.h.b16 %v1726
    %v2256 = vunpack.c.l.b16 %v1727
    %v2257 = vunpack.c.h.b16 %v1727
    %v2258 = vunpack.c.l.b16 %v1728
    %v2259 = vunpack.c.h.b16 %v1728
    %v2260 = vunpack.c.l.b16 %v1729
    %v2261 = vunpack.c.h.b16 %v1729
    %v2262 = vunpack.c.l.b16 %v1730
    %v2263 = vunpack.c.l.b16 %v1731
    %v2264 = vunpack.c.h.b16 %v1731
    %v2265 = vunpack.c.l.b16 %v1732
    %v2266 = vunpack.c.h.b16 %v1732
    %v2267 = vunpack.c.l.b16 %v1733
    %v2268 = vunpack.c.h.b16 %v1733
    %v2269 = vunpack.c.l.b16 %v1734
    %v2270 = vunpack.c.h.b16 %v1734
    %v2271 = vunpack.c.l.b16 %v1735
    %v2272 = vunpack.c.h.b16 %v1735
    %v2273 = vunpack.c.l.b16 %v1736
    %v2274 = vunpack.c.l.b16 %v1737
    %v2275 = vunpack.c.h.b16 %v1737
    %v2276 = vunpack.c.l.b16 %v1738
    %v2277 = vunpack.c.h.b16 %v1738
    %v2278 = vunpack.c.l.b16 %v1739
    %v2279 = vunpack.c.h.b16 %v1739
    %v2280 = vunpack.c.l.b16 %v1740
    %v2281 = vunpack.c.h.b16 %v1740
    %v2282 = vunpack.c.l.b16 %v1741
    %v2283 = vunpack.c.h.b16 %v1741
    %v2284 = vunpack.c.l.b16 %v1742
    %v2285 = vunpack.c.l.b16 %v1743
    %v2286 = vunpack.c.h.b16 %v1743
    %v2287 = vunpack.c.l.b16 %v1744
    %v2288 = vunpack.c.h.b16 %v1744
    %v2289 = vunpack.c.l.b16 %v1745
    %v2290 = vunpack.c.h.b16 %v1745
    %v2291 = vunpack.c.l.b16 %v1746
    %v2292 = vunpack.c.h.b16 %v1746
    %v2293 = vunpack.c.l.b16 %v1747
    %v2294 = vunpack.c.h.b16 %v1747
    %v2295 = vunpack.c.l.b16 %v1748
    %v2296 = vunpack.c.l.b16 %v1749
    %v2297 = vunpack.c.h.b16 %v1749
    %v2298 = vunpack.c.l.b16 %v1750
    %v2299 = vunpack.c.h.b16 %v1750
    %v2300 = vunpack.c.l.b16 %v1751
    %v2301 = vunpack.c.h.b16 %v1751
    %v2302 = vunpack.c.l.b16 %v1752
    %v2303 = vunpack.c.h.b16 %v1752
    %v2304 = vunpack.c.l.b16 %v1753
    %v2305 = vunpack.c.h.b16 %v1753
    %v2306 = vunpack.c.l.b16 %v1754
    %v2307 = vunpack.c.l.b16 %v1755
    %v2308 = vunpack.c.h.b16 %v1755
    %v2309 = vunpack.c.l.b16 %v1756
    %v2310 = vunpack.c.h.b16 %v1756
    %v2311 = vunpack.c.l.b16 %v1757
    %v2312 = vunpack.c.h.b16 %v1757
    %v2313 = vunpack.c.l.b16 %v1758
    %v2314 = vunpack.c.h.b16 %v1758
    %v2315 = vunpack.c.l.b16 %v1759
    %v2316 = vunpack.c.h.b16 %v1759
    %v2317 = vunpack.c.l.b16 %v1760
    %v2318 = vunpack.c.l.b16 %v1761
    %v2319 = vunpack.c.h.b16 %v1761
    %v2320 = vunpack.c.l.b16 %v1762
    %v2321 = vunpack.c.h.b16 %v1762
    %v2322 = vunpack.c.l.b16 %v1763
    %v2323 = vunpack.c.h.b16 %v1763
    %v2324 = vunpack.c.l.b16 %v1764
    %v2325 = vunpack.c.h.b16 %v1764
    %v2326 = vunpack.c.l.b16 %v1765
    %v2327 = vunpack.c.h.b16 %v1765
    %v2328 = vunpack.c.l.b16 %v1766
    %v2329 = vunpack.c.l.b16 %v1767
    %v2330 = vunpack.c.h.b16 %v1767
    %v2331 = vunpack.c.l.b16 %v1768
    %v2332 = vunpack.c.h.b16 %v1768
    %v2333 = vunpack.c.l.b16 %v1769
    %v2334 = vunpack.c.h.b16 %v1769
    %v2335 = vunpack.c.l.b16 %v1770
    %v2336 = vunpack.c.h.b16 %v1770
    %v2337 = vunpack.c.l.b16 %v1771
    %v2338 = vunpack.c.h.b16 %v1771
    %v2339 = vunpack.c.l.b16 %v1772
    %v2340 = vunpack.c.l.b16 %v1773
    %v2341 = vunpack.c.h.b16 %v1773
    %v2342 = vunpack.c.l.b16 %v1774
    %v2343 = vunpack.c.h.b16 %v1774
    %v2344 = vunpack.c.l.b16 %v1775
    %v2345 = vunpack.c.h.b16 %v1775
    %v2346 = vunpack.c.l.b16 %v1776
    %v2347 = vunpack.c.h.b16 %v1776
    %v2348 = vunpack.c.l.b16 %v1777
    %v2349 = vunpack.c.h.b16 %v1777
    %v2350 = vunpack.c.l.b16 %v1778
    %v2351 = vunpack.c.l.b16 %v1779
    %v2352 = vunpack.c.h.b16 %v1779
    %v2353 = vunpack.c.l.b16 %v1780
    %v2354 = vunpack.c.h.b16 %v1780
    %v2355 = vunpack.c.l.b16 %v1781
    %v2356 = vunpack.c.h.b16 %v1781
    %v2357 = vunpack.c.l.b16 %v1782
    %v2358 = vunpack.c.h.b16 %v1782
    %v2359 = vunpack.c.l.b16 %v1783
    %v2360 = vunpack.c.h.b16 %v1783
    %v2361 = vunpack.c.l.b16 %v1784
    %v2362 = vunpack.c.l.b16 %v1785
    %v2363 = vunpack.c.h.b16 %v1785
    %v2364 = vunpack.c.l.b16 %v1786
    %v2365 = vunpack.c.h.b16 %v1786
    %v2366 = vunpack.c.l.b16 %v1787
    %v2367 = vunpack.c.h.b16 %v1787
    %v2368 = vunpack.c.l.b16 %v1788
    %v2369 = vunpack.c.h.b16 %v1788
    %v2370 = vunpack.c.l.b16 %v1789
    %v2371 = vunpack.c.h.b16 %v1789
    %v2372 = vunpack.c.l.b16 %v1790
    %v2373 = vunpack.c.l.b16 %v1791
    %v2374 = vunpack.c.h.b16 %v1791
    %v2375 = vunpack.c.l.b16 %v1792
    %v2376 = vunpack.c.h.b16 %v1792
    %v2377 = vunpack.c.l.b16 %v1793
    %v2378 = vunpack.c.h.b16 %v1793
    %v2379 = vunpack.c.l.b16 %v1794
    %v2380 = vunpack.c.h.b16 %v1794
    %v2381 = vunpack.c.l.b16 %v1795
    %v2382 = vunpack.c.h.b16 %v1795
    %v2383 = vunpack.c.l.b16 %v1796
    %v2384 = vunpack.c.l.b16 %v1797
    %v2385 = vunpack.c.h.b16 %v1797
    %v2386 = vunpack.c.l.b16 %v1798
    %v2387 = vunpack.c.h.b16 %v1798
    %v2388 = vunpack.c.l.b16 %v1799
    %v2389 = vunpack.c.h.b16 %v1799
    %v2390 = vunpack.c.l.b16 %v1800
    %v2391 = vunpack.c.h.b16 %v1800
    %v2392 = vunpack.c.l.b16 %v1801
    %v2393 = vunpack.c.h.b16 %v1801
    %v2394 = vunpack.c.l.b16 %v1802
    %v2395 = vunpack.c.l.b16 %v1803
    %v2396 = vunpack.c.h.b16 %v1803
    %v2397 = vunpack.c.l.b16 %v1804
    %v2398 = vunpack.c.h.b16 %v1804
    %v2399 = vunpack.c.l.b16 %v1805
    %v2400 = vunpack.c.h.b16 %v1805
    %v2401 = vunpack.c.l.b16 %v1806
    %v2402 = vunpack.c.h.b16 %v1806
    %v2403 = vunpack.c.l.b16 %v1807
    %v2404 = vunpack.c.h.b16 %v1807
    %v2405 = vunpack.c.l.b16 %v1808
    %v2406 = vunpack.c.l.b16 %v1809
    %v2407 = vunpack.c.h.b16 %v1809
    %v2408 = vunpack.c.l.b16 %v1810
    %v2409 = vunpack.c.h.b16 %v1810
    %v2410 = vunpack.c.l.b16 %v1811
    %v2411 = vunpack.c.h.b16 %v1811
    %v2412 = vunpack.c.l.b16 %v1812
    %v2413 = vunpack.c.h.b16 %v1812
    %v2414 = vunpack.c.l.b16 %v1813
    %v2415 = vunpack.c.h.b16 %v1813
    %v2416 = vunpack.c.l.b16 %v1814
    %v2417 = vunpack.c.l.b16 %v1815
    %v2418 = vunpack.c.h.b16 %v1815
    %v2419 = vunpack.c.l.b16 %v1816
    %v2420 = vunpack.c.h.b16 %v1816
    %v2421 = vunpack.c.l.b16 %v1817
    %v2422 = vunpack.c.h.b16 %v1817
    %v2423 = vunpack.c.l.b16 %v1818
    %v2424 = vunpack.c.h.b16 %v1818
    %v2425 = vunpack.c.l.b16 %v1819
    %v2426 = vunpack.c.h.b16 %v1819
    %v2427 = vunpack.c.l.b16 %v1820
    %v2428 = vunpack.c.l.b16 %v1821
    %v2429 = vunpack.c.h.b16 %v1821
    %v2430 = vunpack.c.l.b16 %v1822
    %v2431 = vunpack.c.h.b16 %v1822
    %v2432 = vunpack.c.l.b16 %v1823
    %v2433 = vunpack.c.h.b16 %v1823
    %v2434 = vunpack.c.l.b16 %v1824
    %v2435 = vunpack.c.h.b16 %v1824
    %v2436 = vunpack.c.l.b16 %v1825
    %v2437 = vunpack.c.h.b16 %v1825
    %v2438 = vunpack.c.l.b16 %v1826
    %v2439 = vunpack.c.l.b16 %v1827
    %v2440 = vunpack.c.h.b16 %v1827
    %v2441 = vunpack.c.l.b16 %v1828
    %v2442 = vunpack.c.h.b16 %v1828
    %v2443 = vunpack.c.l.b16 %v1829
    %v2444 = vunpack.c.h.b16 %v1829
    %v2445 = vunpack.c.l.b16 %v1830
    %v2446 = vunpack.c.h.b16 %v1830
    %v2447 = vunpack.c.l.b16 %v1831
    %v2448 = vunpack.c.h.b16 %v1831
    %v2449 = vunpack.c.l.b16 %v1832
    %v2450 = vunpack.c.l.b16 %v1833
    %v2451 = vunpack.c.h.b16 %v1833
    %v2452 = vunpack.c.l.b16 %v1834
    %v2453 = vunpack.c.h.b16 %v1834
    %v2454 = vunpack.c.l.b16 %v1835
    %v2455 = vunpack.c.h.b16 %v1835
    %v2456 = vunpack.c.l.b16 %v1836
    %v2457 = vunpack.c.h.b16 %v1836
    %v2458 = vunpack.c.l.b16 %v1837
    %v2459 = vunpack.c.h.b16 %v1837
    %v2460 = vunpack.c.l.b16 %v1838
    %v2461 = vunpack.c.l.b16 %v1839
    %v2462 = vunpack.c.h.b16 %v1839
    %v2463 = vunpack.c.l.b16 %v1840
    %v2464 = vunpack.c.h.b16 %v1840
    %v2465 = vunpack.c.l.b16 %v1841
    %v2466 = vunpack.c.h.b16 %v1841
    %v2467 = vunpack.c.l.b16 %v1842
    %v2468 = vunpack.c.h.b16 %v1842
    %v2469 = vunpack.c.l.b16 %v1843
    %v2470 = vunpack.c.h.b16 %v1843
    %v2471 = vunpack.c.l.b16 %v1844
    %v2472 = vunpack.c.l.b16 %v1845
    %v2473 = vunpack.c.h.b16 %v1845
    %v2474 = vunpack.c.l.b16 %v1846
    %v2475 = vunpack.c.h.b16 %v1846
    %v2476 = vunpack.c.l.b16 %v1847
    %v2477 = vunpack.c.h.b16 %v1847
    %v2478 = vunpack.c.l.b16 %v1848
    %v2479 = vunpack.c.h.b16 %v1848
    %v2480 = vunpack.c.l.b16 %v1849
    %v2481 = vunpack.c.h.b16 %v1849
    %v2482 = vunpack.c.l.b16 %v1850
    %v2483 = vunpack.c.l.b16 %v1851
    %v2484 = vunpack.c.h.b16 %v1851
    %v2485 = vunpack.c.l.b16 %v1852
    %v2486 = vunpack.c.h.b16 %v1852
    %v2487 = vunpack.c.l.b16 %v1853
    %v2488 = vunpack.c.h.b16 %v1853
    %v2489 = vunpack.c.l.b16 %v1854
    %v2490 = vunpack.c.h.b16 %v1854
    %v2491 = vunpack.c.l.b16 %v1855
    %v2492 = vunpack.c.h.b16 %v1855
    %v2493 = vunpack.c.l.b16 %v1856
    %v2494 = vunpack.c.l.b16 %v1857
    %v2495 = vunpack.c.h.b16 %v1857
    %v2496 = vunpack.c.l.b16 %v1858
    %v2497 = vunpack.c.h.b16 %v1858
    %v2498 = vunpack.c.l.b16 %v1859
    %v2499 = vunpack.c.h.b16 %v1859
    %v2500 = vunpack.c.l.b16 %v1860
    %v2501 = vunpack.c.h.b16 %v1860
    %v2502 = vunpack.c.l.b16 %v1861
    %v2503 = vunpack.c.h.b16 %v1861
    %v2504 = vunpack.c.l.b16 %v1862
    %v2505 = vunpack.c.l.b16 %v1863
    %v2506 = vunpack.c.h.b16 %v1863
    %v2507 = vunpack.c.l.b16 %v1864
    %v2508 = vunpack.c.h.b16 %v1864
    %v2509 = vunpack.c.l.b16 %v1865
    %v2510 = vunpack.c.h.b16 %v1865
    %v2511 = vunpack.c.l.b16 %v1866
    %v2512 = vunpack.c.h.b16 %v1866
    %v2513 = vunpack.c.l.b16 %v1867
    %v2514 = vunpack.c.h.b16 %v1867
    %v2515 = vunpack.c.l.b16 %v1868
    %v2516 = vunpack.c.l.b16 %v1869
    %v2517 = vunpack.c.h.b16 %v1869
    %v2518 = vunpack.c.l.b16 %v1870
    %v2519 = vunpack.c.h.b16 %v1870
    %v2520 = vunpack.c.l.b16 %v1871
    %v2521 = vunpack.c.h.b16 %v1871
    %v2522 = vunpack.c.l.b16 %v1872
    %v2523 = vunpack.c.h.b16 %v1872
    %v2524 = vunpack.c.l.b16 %v1873
    %v2525 = vunpack.c.h.b16 %v1873
    %v2526 = vunpack.c.l.b16 %v1874
    %v2527 = vunpack.c.l.b16 %v1875
    %v2528 = vunpack.c.h.b16 %v1875
    %v2529 = vunpack.c.l.b16 %v1876
    %v2530 = vunpack.c.h.b16 %v1876
    %v2531 = vunpack.c.l.b16 %v1877
    %v2532 = vunpack.c.h.b16 %v1877
    %v2533 = vunpack.c.l.b16 %v1878
    %v2534 = vunpack.c.h.b16 %v1878
    %v2535 = vunpack.c.l.b16 %v1879
    %v2536 = vunpack.c.h.b16 %v1879
    %v2537 = vunpack.c.l.b16 %v1880
    %v2538 = vunpack.c.l.b16 %v1881
    %v2539 = vunpack.c.h.b16 %v1881
    %v2540 = vunpack.c.l.b16 %v1882
    %v2541 = vunpack.c.h.b16 %v1882
    %v2542 = vunpack.c.l.b16 %v1883
    %v2543 = vunpack.c.h.b16 %v1883
    %v2544 = vunpack.c.l.b16 %v1884
    %v2545 = vunpack.c.h.b16 %v1884
    %v2546 = vunpack.c.l.b16 %v1885
    %v2547 = vunpack.c.h.b16 %v1885
    %v2548 = vunpack.c.l.b16 %v1886
    %v2549 = vunpack.c.l.b16 %v1887
    %v2550 = vunpack.c.h.b16 %v1887
    %v2551 = vunpack.c.l.b16 %v1888
    %v2552 = vunpack.c.h.b16 %v1888
    %v2553 = vunpack.c.l.b16 %v1889
    %v2554 = vunpack.c.h.b16 %v1889
    %v2555 = vunpack.c.l.b16 %v1890
    %v2556 = vunpack.c.h.b16 %v1890
    %v2557 = vunpack.c.l.b16 %v1891
    %v2558 = vunpack.c.h.b16 %v1891
    %v2559 = vunpack.c.l.b16 %v1892
    %v2560 = vunpack.c.l.b16 %v1893
    %v2561 = vunpack.c.h.b16 %v1893
    %v2562 = vunpack.c.l.b16 %v1894
    %v2563 = vunpack.c.h.b16 %v1894
    %v2564 = vunpack.c.l.b16 %v1895
    %v2565 = vunpack.c.h.b16 %v1895
    %v2566 = vunpack.c.l.b16 %v1896
    %v2567 = vunpack.c.h.b16 %v1896
    %v2568 = vunpack.c.l.b16 %v1897
    %v2569 = vunpack.c.h.b16 %v1897
    %v2570 = vunpack.c.l.b16 %v1898
    %v2571 = vunpack.c.l.b16 %v1899
    %v2572 = vunpack.c.h.b16 %v1899
    %v2573 = vunpack.c.l.b16 %v1900
    %v2574 = vunpack.c.h.b16 %v1900
    %v2575 = vunpack.c.l.b16 %v1901
    %v2576 = vunpack.c.h.b16 %v1901
    %v2577 = vunpack.c.l.b16 %v1902
    %v2578 = vunpack.c.h.b16 %v1902
    %v2579 = vunpack.c.l.b16 %v1903
    %v2580 = vunpack.c.h.b16 %v1903
    %v2581 = vunpack.c.l.b16 %v1904
    %v2582 = vunpack.c.l.b16 %v1905
    %v2583 = vunpack.c.h.b16 %v1905
    %v2584 = vunpack.c.l.b16 %v1906
    %v2585 = vunpack.c.h.b16 %v1906
    %v2586 = vunpack.c.l.b16 %v1907
    %v2587 = vunpack.c.h.b16 %v1907
    %v2588 = vunpack.c.l.b16 %v1908
    %v2589 = vunpack.c.h.b16 %v1908
    %v2590 = vunpack.c.l.b16 %v1909
    %v2591 = vunpack.c.h.b16 %v1909
    %v2592 = vunpack.c.l.b16 %v1910
    %v2593 = vunpack.c.l.b16 %v1911
    %v2594 = vunpack.c.h.b16 %v1911
    %v2595 = vunpack.c.l.b16 %v1912
    %v2596 = vunpack.c.h.b16 %v1912
    %v2597 = vunpack.c.l.b16 %v1913
    %v2598 = vunpack.c.h.b16 %v1913
    %v2599 = vunpack.c.l.b16 %v1914
    %v2600 = vunpack.c.h.b16 %v1914
    %v2601 = vunpack.c.l.b16 %v1915
    %v2602 = vunpack.c.h.b16 %v1915
    %v2603 = vunpack.c.l.b16 %v1916
    %v2604 = vunpack.c.l.b16 %v1917
    %v2605 = vunpack.c.h.b16 %v1917
    %v2606 = vunpack.c.l.b16 %v1918
    %v2607 = vunpack.c.h.b16 %v1918
    %v2608 = vunpack.c.l.b16 %v1919
    %v2609 = vunpack.c.h.b16 %v1919
    %v2610 = vunpack.c.l.b16 %v1920
    %v2611 = vunpack.c.h.b16 %v1920
    %v2612 = vunpack.c.l.b16 %v1921
    %v2613 = vunpack.c.h.b16 %v1921
    %v2614 = vunpack.c.l.b16 %v1922
    %v2615 = vunpack.c.l.b16 %v1923
    %v2616 = vunpack.c.h.b16 %v1923
    %v2617 = vunpack.c.l.b16 %v1924
    %v2618 = vunpack.c.h.b16 %v1924
    %v2619 = vunpack.c.l.b16 %v1925
    %v2620 = vunpack.c.h.b16 %v1925
    %v2621 = vunpack.c.l.b16 %v1926
    %v2622 = vunpack.c.h.b16 %v1926
    %v2623 = vunpack.c.l.b16 %v1927
    %v2624 = vunpack.c.h.b16 %v1927
    %v2625 = vunpack.c.l.b16 %v1928
    %v2626 = vpack.c.b16 %v2186, %v2175
    %v2627 = vpack.c.b16 %v2187, %v2176
    %v2628 = vpack.c.b16 %v2188, %v2177
    %v2629 = vpack.c.b16 %v2189, %v2178
    %v2630 = vpack.c.b16 %v2190, %v2179
    %v2631 = vpack.c.b16 %v2191, %v2180
    %v2632 = vpack.c.b16 %v2192, %v2181
    %v2633 = vpack.c.b16 %v2193, %v2182
    %v2634 = vpack.c.b16 %v2194, %v2183
    %v2635 = vpack.c.b16 %v2195, %v2184
    %v2636 = vpack.c.b16 %v2196, %v2185
    %v2637 = vpack.c.b16 %v2208, %v2197
    %v2638 = vpack.c.b16 %v2209, %v2198
    %v2639 = vpack.c.b16 %v2210, %v2199
    %v2640 = vpack.c.b16 %v2211, %v2200
    %v2641 = vpack.c.b16 %v2212, %v2201
    %v2642 = vpack.c.b16 %v2213, %v2202
    %v2643 = vpack.c.b16 %v2214, %v2203
    %v2644 = vpack.c.b16 %v2215, %v2204
    %v2645 = vpack.c.b16 %v2216, %v2205
    %v2646 = vpack.c.b16 %v2217, %v2206
    %v2647 = vpack.c.b16 %v2218, %v2207
    %v2648 = vpack.c.b16 %v2230, %v2219
    %v2649 = vpack.c.b16 %v2231, %v2220
    %v2650 = vpack.c.b16 %v2232, %v2221
    %v2651 = vpack.c.b16 %v2233, %v2222
    %v2652 = vpack.c.b16 %v2234, %v2223
    %v2653 = vpack.c.b16 %v2235, %v2224
    %v2654 = vpack.c.b16 %v2236, %v2225
    %v2655 = vpack.c.b16 %v2237, %v2226
    %v2656 = vpack.c.b16 %v2238, %v2227
    %v2657 = vpack.c.b16 %v2239, %v2228
    %v2658 = vpack.c.b16 %v2240, %v2229
    %v2659 = vpack.c.b16 %v2252, %v2241
    %v2660 = vpack.c.b16 %v2253, %v2242
    %v2661 = vpack.c.b16 %v2254, %v2243
    %v2662 = vpack.c.b16 %v2255, %v2244
    %v2663 = vpack.c.b16 %v2256, %v2245
    %v2664 = vpack.c.b16 %v2257, %v2246
    %v2665 = vpack.c.b16 %v2258, %v2247
    %v2666 = vpack.c.b16 %v2259, %v2248
    %v2667 = vpack.c.b16 %v2260, %v2249
    %v2668 = vpack.c.b16 %v2261, %v2250
    %v2669 = vpack.c.b16 %v2262, %v2251
    %v2670 = vpack.c.b16 %v2274, %v2263
    %v2671 = vpack.c.b16 %v2275, %v2264
    %v2672 = vpack.c.b16 %v2276, %v2265
    %v2673 = vpack.c.b16 %v2277, %v2266
    %v2674 = vpack.c.b16 %v2278, %v2267
    %v2675 = vpack.c.b16 %v2279, %v2268
    %v2676 = vpack.c.b16 %v2280, %v2269
    %v2677 = vpack.c.b16 %v2281, %v2270
    %v2678 = vpack.c.b16 %v2282, %v2271
    %v2679 = vpack.c.b16 %v2283, %v2272
    %v2680 = vpack.c.b16 %v2284, %v2273
    %v2681 = vpack.c.b16 %v2296, %v2285
    %v2682 = vpack.c.b16 %v2297, %v2286
    %v2683 = vpack.c.b16 %v2298, %v2287
    %v2684 = vpack.c.b16 %v2299, %v2288
    %v2685 = vpack.c.b16 %v2300, %v2289
    %v2686 = vpack.c.b16 %v2301, %v2290
    %v2687 = vpack.c.b16 %v2302, %v2291
    %v2688 = vpack.c.b16 %v2303, %v2292
    %v2689 = vpack.c.b16 %v2304, %v2293
    %v2690 = vpack.c.b16 %v2305, %v2294
    %v2691 = vpack.c.b16 %v2306, %v2295
    %v2692 = vpack.c.b16 %v2318, %v2307
    %v2693 = vpack.c.b16 %v2319, %v2308
    %v2694 = vpack.c.b16 %v2320, %v2309
    %v2695 = vpack.c.b16 %v2321, %v2310
    %v2696 = vpack.c.b16 %v2322, %v2311
    %v2697 = vpack.c.b16 %v2323, %v2312
    %v2698 = vpack.c.b16 %v2324, %v2313
    %v2699 = vpack.c.b16 %v2325, %v2314
    %v2700 = vpack.c.b16 %v2326, %v2315
    %v2701 = vpack.c.b16 %v2327, %v2316
    %v2702 = vpack.c.b16 %v2328, %v2317
    %v2703 = vpack.c.b16 %v2340, %v2329
    %v2704 = vpack.c.b16 %v2341, %v2330
    %v2705 = vpack.c.b16 %v2342, %v2331
    %v2706 = vpack.c.b16 %v2343, %v2332
    %v2707 = vpack.c.b16 %v2344, %v2333
    %v2708 = vpack.c.b16 %v2345, %v2334
    %v2709 = vpack.c.b16 %v2346, %v2335
    %v2710 = vpack.c.b16 %v2347, %v2336
    %v2711 = vpack.c.b16 %v2348, %v2337
    %v2712 = vpack.c.b16 %v2349, %v2338
    %v2713 = vpack.c.b16 %v2350, %v2339
    %v2714 = vpack.c.b16 %v2362, %v2351
    %v2715 = vpack.c.b16 %v2363, %v2352
    %v2716 = vpack.c.b16 %v2364, %v2353
    %v2717 = vpack.c.b16 %v2365, %v2354
    %v2718 = vpack.c.b16 %v2366, %v2355
    %v2719 = vpack.c.b16 %v2367, %v2356
    %v2720 = vpack.c.b16 %v2368, %v2357
    %v2721 = vpack.c.b16 %v2369, %v2358
    %v2722 = vpack.c.b16 %v2370, %v2359
    %v2723 = vpack.c.b16 %v2371, %v2360
    %v2724 = vpack.c.b16 %v2372, %v2361
    %v2725 = vpack.c.b16 %v2384, %v2373
    %v2726 = vpack.c.b16 %v2385, %v2374
    %v2727 = vpack.c.b16 %v2386, %v2375
    %v2728 = vpack.c.b16 %v2387, %v2376
    %v2729 = vpack.c.b16 %v2388, %v2377
    %v2730 = vpack.c.b16 %v2389, %v2378
    %v2731 = vpack.c.b16 %v2390, %v2379
    %v2732 = vpack.c.b16 %v2391, %v2380
    %v2733 = vpack.c.b16 %v2392, %v2381
    %v2734 = vpack.c.b16 %v2393, %v2382
    %v2735 = vpack.c.b16 %v2394, %v2383
    %v2736 = vpack.c.b16 %v2406, %v2395
    %v2737 = vpack.c.b16 %v2407, %v2396
    %v2738 = vpack.c.b16 %v2408, %v2397
    %v2739 = vpack.c.b16 %v2409, %v2398
    %v2740 = vpack.c.b16 %v2410, %v2399
    %v2741 = vpack.c.b16 %v2411, %v2400
    %v2742 = vpack.c.b16 %v2412, %v2401
    %v2743 = vpack.c.b16 %v2413, %v2402
    %v2744 = vpack.c.b16 %v2414, %v2403
    %v2745 = vpack.c.b16 %v2415, %v2404
    %v2746 = vpack.c.b16 %v2416, %v2405
    %v2747 = vpack.c.b16 %v2428, %v2417
    %v2748 = vpack.c.b16 %v2429, %v2418
    %v2749 = vpack.c.b16 %v2430, %v2419
    %v2750 = vpack.c.b16 %v2431, %v2420
    %v2751 = vpack.c.b16 %v2432, %v2421
    %v2752 = vpack.c.b16 %v2433, %v2422
    %v2753 = vpack.c.b16 %v2434, %v2423
    %v2754 = vpack.c.b16 %v2435, %v2424
    %v2755 = vpack.c.b16 %v2436, %v2425
    %v2756 = vpack.c.b16 %v2437, %v2426
    %v2757 = vpack.c.b16 %v2438, %v2427
    %v2758 = vpack.c.b16 %v2450, %v2439
    %v2759 = vpack.c.b16 %v2451, %v2440
    %v2760 = vpack.c.b16 %v2452, %v2441
    %v2761 = vpack.c.b16 %v2453, %v2442
    %v2762 = vpack.c.b16 %v2454, %v2443
    %v2763 = vpack.c.b16 %v2455, %v2444
    %v2764 = vpack.c.b16 %v2456, %v2445
    %v2765 = vpack.c.b16 %v2457, %v2446
    %v2766 = vpack.c.b16 %v2458, %v2447
    %v2767 = vpack.c.b16 %v2459, %v2448
    %v2768 = vpack.c.b16 %v2460, %v2449
    %v2769 = vpack.c.b16 %v2472, %v2461
    %v2770 = vpack.c.b16 %v2473, %v2462
    %v2771 = vpack.c.b16 %v2474, %v2463
    %v2772 = vpack.c.b16 %v2475, %v2464
    %v2773 = vpack.c.b16 %v2476, %v2465
    %v2774 = vpack.c.b16 %v2477, %v2466
    %v2775 = vpack.c.b16 %v2478, %v2467
    %v2776 = vpack.c.b16 %v2479, %v2468
    %v2777 = vpack.c.b16 %v2480, %v2469
    %v2778 = vpack.c.b16 %v2481, %v2470
    %v2779 = vpack.c.b16 %v2482, %v2471
    %v2780 = vpack.c.b16 %v2494, %v2483
    %v2781 = vpack.c.b16 %v2495, %v2484
    %v2782 = vpack.c.b16 %v2496, %v2485
    %v2783 = vpack.c.b16 %v2497, %v2486
    %v2784 = vpack.c.b16 %v2498, %v2487
    %v2785 = vpack.c.b16 %v2499, %v2488
    %v2786 = vpack.c.b16 %v2500, %v2489
    %v2787 = vpack.c.b16 %v2501, %v2490
    %v2788 = vpack.c.b16 %v2502, %v2491
    %v2789 = vpack.c.b16 %v2503, %v2492
    %v2790 = vpack.c.b16 %v2504, %v2493
    %v2791 = vpack.c.b16 %v2516, %v2505
    %v2792 = vpack.c.b16 %v2517, %v2506
    %v2793 = vpack.c.b16 %v2518, %v2507
    %v2794 = vpack.c.b16 %v2519, %v2508
    %v2795 = vpack.c.b16 %v2520, %v2509
    %v2796 = vpack.c.b16 %v2521, %v2510
    %v2797 = vpack.c.b16 %v2522, %v2511
    %v2798 = vpack.c.b16 %v2523, %v2512
    %v2799 = vpack.c.b16 %v2524, %v2513
    %v2800 = vpack.c.b16 %v2525, %v2514
    %v2801 = vpack.c.b16 %v2526, %v2515
    %v2802 = vpack.c.b16 %v2538, %v2527
    %v2803 = vpack.c.b16 %v2539, %v2528
    %v2804 = vpack.c.b16 %v2540, %v2529
    %v2805 = vpack.c.b16 %v2541, %v2530
    %v2806 = vpack.c.b16 %v2542, %v2531
    %v2807 = vpack.c.b16 %v2543, %v2532
    %v2808 = vpack.c.b16 %v2544, %v2533
    %v2809 = vpack.c.b16 %v2545, %v2534
    %v2810 = vpack.c.b16 %v2546, %v2535
    %v2811 = vpack.c.b16 %v2547, %v2536
    %v2812 = vpack.c.b16 %v2548, %v2537
    %v2813 = vpack.c.b16 %v2560, %v2549
    %v2814 = vpack.c.b16 %v2561, %v2550
    %v2815 = vpack.c.b16 %v2562, %v2551
    %v2816 = vpack.c.b16 %v2563, %v2552
    %v2817 = vpack.c.b16 %v2564, %v2553
    %v2818 = vpack.c.b16 %v2565, %v2554
    %v2819 = vpack.c.b16 %v2566, %v2555
    %v2820 = vpack.c.b16 %v2567, %v2556
    %v2821 = vpack.c.b16 %v2568, %v2557
    %v2822 = vpack.c.b16 %v2569, %v2558
    %v2823 = vpack.c.b16 %v2570, %v2559
    %v2824 = vpack.c.b16 %v2582, %v2571
    %v2825 = vpack.c.b16 %v2583, %v2572
    %v2826 = vpack.c.b16 %v2584, %v2573
    %v2827 = vpack.c.b16 %v2585, %v2574
    %v2828 = vpack.c.b16 %v2586, %v2575
    %v2829 = vpack.c.b16 %v2587, %v2576
    %v2830 = vpack.c.b16 %v2588, %v2577
    %v2831 = vpack.c.b16 %v2589, %v2578
    %v2832 = vpack.c.b16 %v2590, %v2579
    %v2833 = vpack.c.b16 %v2591, %v2580
    %v2834 = vpack.c.b16 %v2592, %v2581
    %v2835 = vpack.c.b16 %v2604, %v2593
    %v2836 = vpack.c.b16 %v2605, %v2594
    %v2837 = vpack.c.b16 %v2606, %v2595
    %v2838 = vpack.c.b16 %v2607, %v2596
    %v2839 = vpack.c.b16 %v2608, %v2597
    %v2840 = vpack.c.b16 %v2609, %v2598
    %v2841 = vpack.c.b16 %v2610, %v2599
    %v2842 = vpack.c.b16 %v2611, %v2600
    %v2843 = vpack.c.b16 %v2612, %v2601
    %v2844 = vpack.c.b16 %v2613, %v2602
    %v2845 = vpack.c.b16 %v2614, %v2603
    %v2846 = vpack.c.b16 %v2615, %v2615
    %v2847 = vpack.c.b16 %v2616, %v2616
    %v2848 = vpack.c.b16 %v2617, %v2617
    %v2849 = vpack.c.b16 %v2618, %v2618
    %v2850 = vpack.c.b16 %v2619, %v2619
    %v2851 = vpack.c.b16 %v2620, %v2620
    %v2852 = vpack.c.b16 %v2621, %v2621
    %v2853 = vpack.c.b16 %v2622, %v2622
    %v2854 = vpack.c.b16 %v2623, %v2623
    %v2855 = vpack.c.b16 %v2624, %v2624
    %v2856 = vpack.c.b16 %v2625, %v2625
    %v3078 = vsel %vm531, %v1661, 0
    %v3081 = vsel %vm531, %v1664, 0
    %v3084 = vsel %vm531, %v1667, 0
    %v3087 = vsel %vm531, %v1670, 0
    %v3090 = vsel %vm531, %v1673, 0
    %v3093 = vsel %vm531, %v1676, 0
    %v3096 = vsel %vm531, %v1679, 0
    %v3099 = vsel %vm531, %v1682, 0
    %v3102 = vsel %vm967, %v2846, 0
    %v3105 = vsel %vm967, %v2847, 0
    %v3108 = vsel %vm967, %v2848, 0
    %v3111 = vsel %vm967, %v2849, 0
    %v3114 = vsel %vm967, %v2850, 0
    %v3117 = vsel %vm967, %v2851, 0
    %v3120 = vsel %vm967, %v2852, 0
    %v3123 = vsel %vm967, %v2853, 0
    %v3126 = vsel %vm967, %v2854, 0
    %v3129 = vsel %vm967, %v2855, 0
    %v3132 = vsel %vm967, %v2856, 0
    %3134 = vmatprep.subr.bf16.mxu0 %v2627
    %3135 = vmatpush1.bf16.msra.mxu0 %v2626
    %3136 = vmatprep.subr.bf16.mxu0 %v2638
    %3137 = vmatpush1.bf16.msra.mxu0 %v2637
    %3138 = vmatprep.subr.bf16.mxu0 %v2649
    %3139 = vmatpush1.bf16.msra.mxu0 %v2648
    %3140 = vmatprep.subr.bf16.mxu0 %v2660
    %3141 = vmatpush1.bf16.msra.mxu0 %v2659
    %3142 = vmatprep.subr.bf16.mxu0 %v2671
    %3143 = vmatpush1.bf16.msra.mxu0 %v2670
    %3144 = vmatprep.subr.bf16.mxu0 %v2682
    %3145 = vmatpush1.bf16.msra.mxu0 %v2681
    %3146 = vmatprep.subr.bf16.mxu0 %v2693
    %3147 = vmatpush1.bf16.msra.mxu0 %v2692
    %3148 = vmatprep.subr.bf16.mxu0 %v2704
    %3149 = vmatpush1.bf16.msra.mxu0 %v2703
    %3150 = vmatprep.subr.bf16.mxu0 %v2715
    %3151 = vmatpush1.bf16.msra.mxu0 %v2714
    %3152 = vmatprep.subr.bf16.mxu0 %v2726
    %3153 = vmatpush1.bf16.msra.mxu0 %v2725
    %3154 = vmatprep.subr.bf16.mxu0 %v2737
    %3155 = vmatpush1.bf16.msra.mxu0 %v2736
    %3156 = vmatprep.subr.bf16.mxu0 %v2748
    %3157 = vmatpush1.bf16.msra.mxu0 %v2747
    %3158 = vmatprep.subr.bf16.mxu0 %v2759
    %3159 = vmatpush1.bf16.msra.mxu0 %v2758
    %3160 = vmatprep.subr.bf16.mxu0 %v2770
    %3161 = vmatpush1.bf16.msra.mxu0 %v2769
    %3162 = vmatprep.subr.bf16.mxu0 %v2781
    %3163 = vmatpush1.bf16.msra.mxu0 %v2780
    %3164 = vmatprep.subr.bf16.mxu0 %v2792
    %3165 = vmatpush1.bf16.msra.mxu0 %v2791
    %3166 = vmatprep.mubr.bf16.mxu0 %v1660
    %3167 = vmatmul.mubr.bf16.gmra.mrb[0].mxu0 %v1659
    %v3168 = vpop.f32.mrb[0].mxu0
    %v3169 = vadd.f32 0.0, %v3168
    %v3170 = vpop.f32.mrb[0].mxu0
    %v3171 = vadd.f32 0.0, %v3170
    %v3172 = vpop.f32.mrb[0].mxu0
    %v3173 = vadd.f32 0.0, %v3172
    %v3174 = vpop.f32.mrb[0].mxu0
    %v3175 = vadd.f32 0.0, %v3174
    %3176 = vmatprep.mubr.bf16.mxu0 %v1663
    %3177 = vmatmul.mubr.bf16.gmra.mrb[0].mxu0 %v1662
    %v3178 = vpop.f32.mrb[0].mxu0
    %v3179 = vadd.f32 0.0, %v3178
    %v3180 = vpop.f32.mrb[0].mxu0
    %v3181 = vadd.f32 0.0, %v3180
    %v3182 = vpop.f32.mrb[0].mxu0
    %v3183 = vadd.f32 0.0, %v3182
    %v3184 = vpop.f32.mrb[0].mxu0
    %v3185 = vadd.f32 0.0, %v3184
    %3186 = vmatprep.mubr.bf16.mxu0 %v1666
    %3187 = vmatmul.mubr.bf16.gmra.mrb[0].mxu0 %v1665
    %v3188 = vpop.f32.mrb[0].mxu0
    %v3189 = vadd.f32 0.0, %v3188
    %v3190 = vpop.f32.mrb[0].mxu0
    %v3191 = vadd.f32 0.0, %v3190
    %v3192 = vpop.f32.mrb[0].mxu0
    %v3193 = vadd.f32 0.0, %v3192
    %v3194 = vpop.f32.mrb[0].mxu0
    %v3195 = vadd.f32 0.0, %v3194
    %3196 = vmatprep.mubr.bf16.mxu0 %v1669
    %3197 = vmatmul.mubr.bf16.gmra.mrb[0].mxu0 %v1668
    %v3198 = vpop.f32.mrb[0].mxu0
    %v3199 = vadd.f32 0.0, %v3198
    %v3200 = vpop.f32.mrb[0].mxu0
    %v3201 = vadd.f32 0.0, %v3200
    %v3202 = vpop.f32.mrb[0].mxu0
    %v3203 = vadd.f32 0.0, %v3202
    %v3204 = vpop.f32.mrb[0].mxu0
    %v3205 = vadd.f32 0.0, %v3204
    %3206 = vmatprep.mubr.bf16.mxu0 %v1672
    %3207 = vmatmul.mubr.bf16.gmra.mrb[0].mxu0 %v1671
    %v3208 = vpop.f32.mrb[0].mxu0
    %v3209 = vadd.f32 0.0, %v3208
    %v3210 = vpop.f32.mrb[0].mxu0
    %v3211 = vadd.f32 0.0, %v3210
    %v3212 = vpop.f32.mrb[0].mxu0
    %v3213 = vadd.f32 0.0, %v3212
    %v3214 = vpop.f32.mrb[0].mxu0
    %v3215 = vadd.f32 0.0, %v3214
    %3216 = vmatprep.mubr.bf16.mxu0 %v1675
    %3217 = vmatmul.mubr.bf16.gmra.mrb[0].mxu0 %v1674
    %v3218 = vpop.f32.mrb[0].mxu0
    %v3219 = vadd.f32 0.0, %v3218
    %v3220 = vpop.f32.mrb[0].mxu0
    %v3221 = vadd.f32 0.0, %v3220
    %v3222 = vpop.f32.mrb[0].mxu0
    %v3223 = vadd.f32 0.0, %v3222
    %v3224 = vpop.f32.mrb[0].mxu0
    %v3225 = vadd.f32 0.0, %v3224
    %3226 = vmatprep.mubr.bf16.mxu0 %v1678
    %3227 = vmatmul.mubr.bf16.gmra.mrb[0].mxu0 %v1677
    %v3228 = vpop.f32.mrb[0].mxu0
    %v3229 = vadd.f32 0.0, %v3228
    %v3230 = vpop.f32.mrb[0].mxu0
    %v3231 = vadd.f32 0.0, %v3230
    %v3232 = vpop.f32.mrb[0].mxu0
    %v3233 = vadd.f32 0.0, %v3232
    %v3234 = vpop.f32.mrb[0].mxu0
    %v3235 = vadd.f32 0.0, %v3234
    %3236 = vmatprep.mubr.bf16.mxu0 %v1681
    %3237 = vmatmul.mubr.bf16.gmra.mrb[0].mxu0 %v1680
    %v3238 = vpop.f32.mrb[0].mxu0
    %v3239 = vadd.f32 0.0, %v3238
    %v3240 = vpop.f32.mrb[0].mxu0
    %v3241 = vadd.f32 0.0, %v3240
    %v3242 = vpop.f32.mrb[0].mxu0
    %v3243 = vadd.f32 0.0, %v3242
    %v3244 = vpop.f32.mrb[0].mxu0
    %v3245 = vadd.f32 0.0, %v3244
    %3246 = vdwg.mxu0
    %3247 = vmatprep.subr.bf16.mxu0 %v2803
    %3248 = vmatpush1.bf16.msra.mxu0 %v2802
    %3249 = vmatprep.subr.bf16.mxu0 %v2814
    %3250 = vmatpush1.bf16.msra.mxu0 %v2813
    %3251 = vmatprep.subr.bf16.mxu0 %v2825
    %3252 = vmatpush1.bf16.msra.mxu0 %v2824
    %3253 = vmatprep.subr.bf16.mxu0 %v2836
    %3254 = vmatpush1.bf16.msra.mxu0 %v2835
    %3255 = vmatprep.subr.bf16.mxu0 %v3105
    %3256 = vmatpush1.bf16.msra.mxu0 %v3102
    %3257 = vmatprep.subr.bf16.mxu0 0
    %3258 = vmatpush1.bf16.msra.mxu0 0
    %3259 = vmatprep.subr.bf16.mxu0 0
    %3260 = vmatpush1.bf16.msra.mxu0 0
    %3261 = vmatprep.subr.bf16.mxu0 0
    %3262 = vmatpush1.bf16.msra.mxu0 0
    %3263 = vmatprep.subr.bf16.mxu0 0
    %3264 = vmatpush1.bf16.msra.mxu0 0
    %3265 = vmatprep.subr.bf16.mxu0 0
    %3266 = vmatpush1.bf16.msra.mxu0 0
    %3267 = vmatprep.subr.bf16.mxu0 0
    %3268 = vmatpush1.bf16.msra.mxu0 0
    %3269 = vmatprep.subr.bf16.mxu0 0
    %3270 = vmatpush1.bf16.msra.mxu0 0
    %3271 = vmatprep.subr.bf16.mxu0 0
    %3272 = vmatpush1.bf16.msra.mxu0 0
    %3273 = vmatprep.subr.bf16.mxu0 0
    %3274 = vmatpush1.bf16.msra.mxu0 0
    %3275 = vmatprep.subr.bf16.mxu0 0
    %3276 = vmatpush1.bf16.msra.mxu0 0
    %3277 = vmatprep.subr.bf16.mxu0 0
    %3278 = vmatpush1.bf16.msra.mxu0 0
    %3279 = vmatprep.mubr.bf16.mxu0 0
    %3280 = vmatmul.mubr.bf16.gmra.mrb[0].mxu0 %v3078
    %v3281 = vpop.f32.mrb[0].mxu0
    %v3282 = vadd.f32 %v3169, %v3281
    %v3283 = vpop.f32.mrb[0].mxu0
    %v3284 = vadd.f32 %v3171, %v3283
    %v3285 = vpop.f32.mrb[0].mxu0
    %v3286 = vadd.f32 %v3173, %v3285
    %v3287 = vpop.f32.mrb[0].mxu0
    %v3288 = vadd.f32 %v3175, %v3287
    %3289 = vmatprep.mubr.bf16.mxu0 0
    %3290 = vmatmul.mubr.bf16.gmra.mrb[0].mxu0 %v3081
    %v3291 = vpop.f32.mrb[0].mxu0
    %v3292 = vadd.f32 %v3179, %v3291
    %v3293 = vpop.f32.mrb[0].mxu0
    %v3294 = vadd.f32 %v3181, %v3293
    %v3295 = vpop.f32.mrb[0].mxu0
    %v3296 = vadd.f32 %v3183, %v3295
    %v3297 = vpop.f32.mrb[0].mxu0
    %v3298 = vadd.f32 %v3185, %v3297
    %3299 = vmatprep.mubr.bf16.mxu0 0
    %3300 = vmatmul.mubr.bf16.gmra.mrb[0].mxu0 %v3084
    %v3301 = vpop.f32.mrb[0].mxu0
    %v3302 = vadd.f32 %v3189, %v3301
    %v3303 = vpop.f32.mrb[0].mxu0
    %v3304 = vadd.f32 %v3191, %v3303
    %v3305 = vpop.f32.mrb[0].mxu0
    %v3306 = vadd.f32 %v3193, %v3305
    %v3307 = vpop.f32.mrb[0].mxu0
    %v3308 = vadd.f32 %v3195, %v3307
    %3309 = vmatprep.mubr.bf16.mxu0 0
    %3310 = vmatmul.mubr.bf16.gmra.mrb[0].mxu0 %v3087
    %v3311 = vpop.f32.mrb[0].mxu0
    %v3312 = vadd.f32 %v3199, %v3311
    %v3313 = vpop.f32.mrb[0].mxu0
    %v3314 = vadd.f32 %v3201, %v3313
    %v3315 = vpop.f32.mrb[0].mxu0
    %v3316 = vadd.f32 %v3203, %v3315
    %v3317 = vpop.f32.mrb[0].mxu0
    %v3318 = vadd.f32 %v3205, %v3317
    %3319 = vmatprep.mubr.bf16.mxu0 0
    %3320 = vmatmul.mubr.bf16.gmra.mrb[0].mxu0 %v3090
    %v3321 = vpop.f32.mrb[0].mxu0
    %v3322 = vadd.f32 %v3209, %v3321
    %v3323 = vpop.f32.mrb[0].mxu0
    %v3324 = vadd.f32 %v3211, %v3323
    %v3325 = vpop.f32.mrb[0].mxu0
    %v3326 = vadd.f32 %v3213, %v3325
    %v3327 = vpop.f32.mrb[0].mxu0
    %v3328 = vadd.f32 %v3215, %v3327
    %3329 = vmatprep.mubr.bf16.mxu0 0
    %3330 = vmatmul.mubr.bf16.gmra.mrb[0].mxu0 %v3093
    %v3331 = vpop.f32.mrb[0].mxu0
    %v3332 = vadd.f32 %v3219, %v3331
    %v3333 = vpop.f32.mrb[0].mxu0
    %v3334 = vadd.f32 %v3221, %v3333
    %v3335 = vpop.f32.mrb[0].mxu0
    %v3336 = vadd.f32 %v3223, %v3335
    %v3337 = vpop.f32.mrb[0].mxu0
    %v3338 = vadd.f32 %v3225, %v3337
    %3339 = vmatprep.mubr.bf16.mxu0 0
    %3340 = vmatmul.mubr.bf16.gmra.mrb[0].mxu0 %v3096
    %v3341 = vpop.f32.mrb[0].mxu0
    %v3342 = vadd.f32 %v3229, %v3341
    %v3343 = vpop.f32.mrb[0].mxu0
    %v3344 = vadd.f32 %v3231, %v3343
    %v3345 = vpop.f32.mrb[0].mxu0
    %v3346 = vadd.f32 %v3233, %v3345
    %v3347 = vpop.f32.mrb[0].mxu0
    %v3348 = vadd.f32 %v3235, %v3347
    %3349 = vmatprep.mubr.bf16.mxu0 0
    %3350 = vmatmul.mubr.bf16.gmra.mrb[0].mxu0 %v3099
    %v3351 = vpop.f32.mrb[0].mxu0
    %v3352 = vadd.f32 %v3239, %v3351
    %v3353 = vpop.f32.mrb[0].mxu0
    %v3354 = vadd.f32 %v3241, %v3353
    %v3355 = vpop.f32.mrb[0].mxu0
    %v3356 = vadd.f32 %v3243, %v3355
    %v3357 = vpop.f32.mrb[0].mxu0
    %v3358 = vadd.f32 %v3245, %v3357
    %3359 = vdwg.mxu0
    %3360 = vmatprep.subr.bf16.mxu0 %v2629
    %3361 = vmatpush1.bf16.msra.mxu0 %v2628
    %3362 = vmatprep.subr.bf16.mxu0 %v2640
    %3363 = vmatpush1.bf16.msra.mxu0 %v2639
    %3364 = vmatprep.subr.bf16.mxu0 %v2651
    %3365 = vmatpush1.bf16.msra.mxu0 %v2650
    %3366 = vmatprep.subr.bf16.mxu0 %v2662
    %3367 = vmatpush1.bf16.msra.mxu0 %v2661
    %3368 = vmatprep.subr.bf16.mxu0 %v2673
    %3369 = vmatpush1.bf16.msra.mxu0 %v2672
    %3370 = vmatprep.subr.bf16.mxu0 %v2684
    %3371 = vmatpush1.bf16.msra.mxu0 %v2683
    %3372 = vmatprep.subr.bf16.mxu0 %v2695
    %3373 = vmatpush1.bf16.msra.mxu0 %v2694
    %3374 = vmatprep.subr.bf16.mxu0 %v2706
    %3375 = vmatpush1.bf16.msra.mxu0 %v2705
    %3376 = vmatprep.subr.bf16.mxu0 %v2717
    %3377 = vmatpush1.bf16.msra.mxu0 %v2716
    %3378 = vmatprep.subr.bf16.mxu0 %v2728
    %3379 = vmatpush1.bf16.msra.mxu0 %v2727
    %3380 = vmatprep.subr.bf16.mxu0 %v2739
    %3381 = vmatpush1.bf16.msra.mxu0 %v2738
    %3382 = vmatprep.subr.bf16.mxu0 %v2750
    %3383 = vmatpush1.bf16.msra.mxu0 %v2749
    %3384 = vmatprep.subr.bf16.mxu0 %v2761
    %3385 = vmatpush1.bf16.msra.mxu0 %v2760
    %3386 = vmatprep.subr.bf16.mxu0 %v2772
    %3387 = vmatpush1.bf16.msra.mxu0 %v2771
    %3388 = vmatprep.subr.bf16.mxu0 %v2783
    %3389 = vmatpush1.bf16.msra.mxu0 %v2782
    %3390 = vmatprep.subr.bf16.mxu0 %v2794
    %3391 = vmatpush1.bf16.msra.mxu0 %v2793
    %3392 = vmatprep.mubr.bf16.mxu0 %v1660
    %3393 = vmatmul.mubr.bf16.gmra.mrb[0].mxu0 %v1659
    %v3394 = vpop.f32.mrb[0].mxu0
    %v3395 = vadd.f32 0.0, %v3394
    %v3396 = vpop.f32.mrb[0].mxu0
    %v3397 = vadd.f32 0.0, %v3396
    %v3398 = vpop.f32.mrb[0].mxu0
    %v3399 = vadd.f32 0.0, %v3398
    %v3400 = vpop.f32.mrb[0].mxu0
    %v3401 = vadd.f32 0.0, %v3400
    %3402 = vmatprep.mubr.bf16.mxu0 %v1663
    %3403 = vmatmul.mubr.bf16.gmra.mrb[0].mxu0 %v1662
    %v3404 = vpop.f32.mrb[0].mxu0
    %v3405 = vadd.f32 0.0, %v3404
    %v3406 = vpop.f32.mrb[0].mxu0
    %v3407 = vadd.f32 0.0, %v3406
    %v3408 = vpop.f32.mrb[0].mxu0
    %v3409 = vadd.f32 0.0, %v3408
    %v3410 = vpop.f32.mrb[0].mxu0
    %v3411 = vadd.f32 0.0, %v3410
    %3412 = vmatprep.mubr.bf16.mxu0 %v1666
    %3413 = vmatmul.mubr.bf16.gmra.mrb[0].mxu0 %v1665
    %v3414 = vpop.f32.mrb[0].mxu0
    %v3415 = vadd.f32 0.0, %v3414
    %v3416 = vpop.f32.mrb[0].mxu0
    %v3417 = vadd.f32 0.0, %v3416
    %v3418 = vpop.f32.mrb[0].mxu0
    %v3419 = vadd.f32 0.0, %v3418
    %v3420 = vpop.f32.mrb[0].mxu0
    %v3421 = vadd.f32 0.0, %v3420
    %3422 = vmatprep.mubr.bf16.mxu0 %v1669
    %3423 = vmatmul.mubr.bf16.gmra.mrb[0].mxu0 %v1668
    %v3424 = vpop.f32.mrb[0].mxu0
    %v3425 = vadd.f32 0.0, %v3424
    %v3426 = vpop.f32.mrb[0].mxu0
    %v3427 = vadd.f32 0.0, %v3426
    %v3428 = vpop.f32.mrb[0].mxu0
    %v3429 = vadd.f32 0.0, %v3428
    %v3430 = vpop.f32.mrb[0].mxu0
    %v3431 = vadd.f32 0.0, %v3430
    %3432 = vmatprep.mubr.bf16.mxu0 %v1672
    %3433 = vmatmul.mubr.bf16.gmra.mrb[0].mxu0 %v1671
    %v3434 = vpop.f32.mrb[0].mxu0
    %v3435 = vadd.f32 0.0, %v3434
    %v3436 = vpop.f32.mrb[0].mxu0
    %v3437 = vadd.f32 0.0, %v3436
    %v3438 = vpop.f32.mrb[0].mxu0
    %v3439 = vadd.f32 0.0, %v3438
    %v3440 = vpop.f32.mrb[0].mxu0
    %v3441 = vadd.f32 0.0, %v3440
    %3442 = vmatprep.mubr.bf16.mxu0 %v1675
    %3443 = vmatmul.mubr.bf16.gmra.mrb[0].mxu0 %v1674
    %v3444 = vpop.f32.mrb[0].mxu0
    %v3445 = vadd.f32 0.0, %v3444
    %v3446 = vpop.f32.mrb[0].mxu0
    %v3447 = vadd.f32 0.0, %v3446
    %v3448 = vpop.f32.mrb[0].mxu0
    %v3449 = vadd.f32 0.0, %v3448
    %v3450 = vpop.f32.mrb[0].mxu0
    %v3451 = vadd.f32 0.0, %v3450
    %3452 = vmatprep.mubr.bf16.mxu0 %v1678
    %3453 = vmatmul.mubr.bf16.gmra.mrb[0].mxu0 %v1677
    %v3454 = vpop.f32.mrb[0].mxu0
    %v3455 = vadd.f32 0.0, %v3454
    %v3456 = vpop.f32.mrb[0].mxu0
    %v3457 = vadd.f32 0.0, %v3456
    %v3458 = vpop.f32.mrb[0].mxu0
    %v3459 = vadd.f32 0.0, %v3458
    %v3460 = vpop.f32.mrb[0].mxu0
    %v3461 = vadd.f32 0.0, %v3460
    %3462 = vmatprep.mubr.bf16.mxu0 %v1681
    %3463 = vmatmul.mubr.bf16.gmra.mrb[0].mxu0 %v1680
    %v3464 = vpop.f32.mrb[0].mxu0
    %v3465 = vadd.f32 0.0, %v3464
    %v3466 = vpop.f32.mrb[0].mxu0
    %v3467 = vadd.f32 0.0, %v3466
    %v3468 = vpop.f32.mrb[0].mxu0
    %v3469 = vadd.f32 0.0, %v3468
    %v3470 = vpop.f32.mrb[0].mxu0
    %v3471 = vadd.f32 0.0, %v3470
    %3472 = vdwg.mxu0
    %3473 = vmatprep.subr.bf16.mxu0 %v2805
    %3474 = vmatpush1.bf16.msra.mxu0 %v2804
    %3475 = vmatprep.subr.bf16.mxu0 %v2816
    %3476 = vmatpush1.bf16.msra.mxu0 %v2815
    %3477 = vmatprep.subr.bf16.mxu0 %v2827
    %3478 = vmatpush1.bf16.msra.mxu0 %v2826
    %3479 = vmatprep.subr.bf16.mxu0 %v2838
    %3480 = vmatpush1.bf16.msra.mxu0 %v2837
    %3481 = vmatprep.subr.bf16.mxu0 %v3111
    %3482 = vmatpush1.bf16.msra.mxu0 %v3108
    %3483 = vmatprep.subr.bf16.mxu0 0
    %3484 = vmatpush1.bf16.msra.mxu0 0
    %3485 = vmatprep.subr.bf16.mxu0 0
    %3486 = vmatpush1.bf16.msra.mxu0 0
    %3487 = vmatprep.subr.bf16.mxu0 0
    %3488 = vmatpush1.bf16.msra.mxu0 0
    %3489 = vmatprep.subr.bf16.mxu0 0
    %3490 = vmatpush1.bf16.msra.mxu0 0
    %3491 = vmatprep.subr.bf16.mxu0 0
    %3492 = vmatpush1.bf16.msra.mxu0 0
    %3493 = vmatprep.subr.bf16.mxu0 0
    %3494 = vmatpush1.bf16.msra.mxu0 0
    %3495 = vmatprep.subr.bf16.mxu0 0
    %3496 = vmatpush1.bf16.msra.mxu0 0
    %3497 = vmatprep.subr.bf16.mxu0 0
    %3498 = vmatpush1.bf16.msra.mxu0 0
    %3499 = vmatprep.subr.bf16.mxu0 0
    %3500 = vmatpush1.bf16.msra.mxu0 0
    %3501 = vmatprep.subr.bf16.mxu0 0
    %3502 = vmatpush1.bf16.msra.mxu0 0
    %3503 = vmatprep.subr.bf16.mxu0 0
    %3504 = vmatpush1.bf16.msra.mxu0 0
    %3505 = vmatprep.mubr.bf16.mxu0 0
    %3506 = vmatmul.mubr.bf16.gmra.mrb[0].mxu0 %v3078
    %v3507 = vpop.f32.mrb[0].mxu0
    %v3508 = vadd.f32 %v3395, %v3507
    %v3509 = vpop.f32.mrb[0].mxu0
    %v3510 = vadd.f32 %v3397, %v3509
    %v3511 = vpop.f32.mrb[0].mxu0
    %v3512 = vadd.f32 %v3399, %v3511
    %v3513 = vpop.f32.mrb[0].mxu0
    %v3514 = vadd.f32 %v3401, %v3513
    %3515 = vmatprep.mubr.bf16.mxu0 0
    %3516 = vmatmul.mubr.bf16.gmra.mrb[0].mxu0 %v3081
    %v3517 = vpop.f32.mrb[0].mxu0
    %v3518 = vadd.f32 %v3405, %v3517
    %v3519 = vpop.f32.mrb[0].mxu0
    %v3520 = vadd.f32 %v3407, %v3519
    %v3521 = vpop.f32.mrb[0].mxu0
    %v3522 = vadd.f32 %v3409, %v3521
    %v3523 = vpop.f32.mrb[0].mxu0
    %v3524 = vadd.f32 %v3411, %v3523
    %3525 = vmatprep.mubr.bf16.mxu0 0
    %3526 = vmatmul.mubr.bf16.gmra.mrb[0].mxu0 %v3084
    %v3527 = vpop.f32.mrb[0].mxu0
    %v3528 = vadd.f32 %v3415, %v3527
    %v3529 = vpop.f32.mrb[0].mxu0
    %v3530 = vadd.f32 %v3417, %v3529
    %v3531 = vpop.f32.mrb[0].mxu0
    %v3532 = vadd.f32 %v3419, %v3531
    %v3533 = vpop.f32.mrb[0].mxu0
    %v3534 = vadd.f32 %v3421, %v3533
    %3535 = vmatprep.mubr.bf16.mxu0 0
    %3536 = vmatmul.mubr.bf16.gmra.mrb[0].mxu0 %v3087
    %v3537 = vpop.f32.mrb[0].mxu0
    %v3538 = vadd.f32 %v3425, %v3537
    %v3539 = vpop.f32.mrb[0].mxu0
    %v3540 = vadd.f32 %v3427, %v3539
    %v3541 = vpop.f32.mrb[0].mxu0
    %v3542 = vadd.f32 %v3429, %v3541
    %v3543 = vpop.f32.mrb[0].mxu0
    %v3544 = vadd.f32 %v3431, %v3543
    %3545 = vmatprep.mubr.bf16.mxu0 0
    %3546 = vmatmul.mubr.bf16.gmra.mrb[0].mxu0 %v3090
    %v3547 = vpop.f32.mrb[0].mxu0
    %v3548 = vadd.f32 %v3435, %v3547
    %v3549 = vpop.f32.mrb[0].mxu0
    %v3550 = vadd.f32 %v3437, %v3549
    %v3551 = vpop.f32.mrb[0].mxu0
    %v3552 = vadd.f32 %v3439, %v3551
    %v3553 = vpop.f32.mrb[0].mxu0
    %v3554 = vadd.f32 %v3441, %v3553
    %3555 = vmatprep.mubr.bf16.mxu0 0
    %3556 = vmatmul.mubr.bf16.gmra.mrb[0].mxu0 %v3093
    %v3557 = vpop.f32.mrb[0].mxu0
    %v3558 = vadd.f32 %v3445, %v3557
    %v3559 = vpop.f32.mrb[0].mxu0
    %v3560 = vadd.f32 %v3447, %v3559
    %v3561 = vpop.f32.mrb[0].mxu0
    %v3562 = vadd.f32 %v3449, %v3561
    %v3563 = vpop.f32.mrb[0].mxu0
    %v3564 = vadd.f32 %v3451, %v3563
    %3565 = vmatprep.mubr.bf16.mxu0 0
    %3566 = vmatmul.mubr.bf16.gmra.mrb[0].mxu0 %v3096
    %v3567 = vpop.f32.mrb[0].mxu0
    %v3568 = vadd.f32 %v3455, %v3567
    %v3569 = vpop.f32.mrb[0].mxu0
    %v3570 = vadd.f32 %v3457, %v3569
    %v3571 = vpop.f32.mrb[0].mxu0
    %v3572 = vadd.f32 %v3459, %v3571
    %v3573 = vpop.f32.mrb[0].mxu0
    %v3574 = vadd.f32 %v3461, %v3573
    %3575 = vmatprep.mubr.bf16.mxu0 0
    %3576 = vmatmul.mubr.bf16.gmra.mrb[0].mxu0 %v3099
    %v3577 = vpop.f32.mrb[0].mxu0
    %v3578 = vadd.f32 %v3465, %v3577
    %v3579 = vpop.f32.mrb[0].mxu0
    %v3580 = vadd.f32 %v3467, %v3579
    %v3581 = vpop.f32.mrb[0].mxu0
    %v3582 = vadd.f32 %v3469, %v3581
    %v3583 = vpop.f32.mrb[0].mxu0
    %v3584 = vadd.f32 %v3471, %v3583
    %3585 = vdwg.mxu0
    %3586 = vmatprep.subr.bf16.mxu0 %v2631
    %3587 = vmatpush1.bf16.msra.mxu0 %v2630
    %3588 = vmatprep.subr.bf16.mxu0 %v2642
    %3589 = vmatpush1.bf16.msra.mxu0 %v2641
    %3590 = vmatprep.subr.bf16.mxu0 %v2653
    %3591 = vmatpush1.bf16.msra.mxu0 %v2652
    %3592 = vmatprep.subr.bf16.mxu0 %v2664
    %3593 = vmatpush1.bf16.msra.mxu0 %v2663
    %3594 = vmatprep.subr.bf16.mxu0 %v2675
    %3595 = vmatpush1.bf16.msra.mxu0 %v2674
    %3596 = vmatprep.subr.bf16.mxu0 %v2686
    %3597 = vmatpush1.bf16.msra.mxu0 %v2685
    %3598 = vmatprep.subr.bf16.mxu0 %v2697
    %3599 = vmatpush1.bf16.msra.mxu0 %v2696
    %3600 = vmatprep.subr.bf16.mxu0 %v2708
    %3601 = vmatpush1.bf16.msra.mxu0 %v2707
    %3602 = vmatprep.subr.bf16.mxu0 %v2719
    %3603 = vmatpush1.bf16.msra.mxu0 %v2718
    %3604 = vmatprep.subr.bf16.mxu0 %v2730
    %3605 = vmatpush1.bf16.msra.mxu0 %v2729
    %3606 = vmatprep.subr.bf16.mxu0 %v2741
    %3607 = vmatpush1.bf16.msra.mxu0 %v2740
    %3608 = vmatprep.subr.bf16.mxu0 %v2752
    %3609 = vmatpush1.bf16.msra.mxu0 %v2751
    %3610 = vmatprep.subr.bf16.mxu0 %v2763
    %3611 = vmatpush1.bf16.msra.mxu0 %v2762
    %3612 = vmatprep.subr.bf16.mxu0 %v2774
    %3613 = vmatpush1.bf16.msra.mxu0 %v2773
    %3614 = vmatprep.subr.bf16.mxu0 %v2785
    %3615 = vmatpush1.bf16.msra.mxu0 %v2784
    %3616 = vmatprep.subr.bf16.mxu0 %v2796
    %3617 = vmatpush1.bf16.msra.mxu0 %v2795
    %3618 = vmatprep.mubr.bf16.mxu0 %v1660
    %3619 = vmatmul.mubr.bf16.gmra.mrb[0].mxu0 %v1659
    %v3620 = vpop.f32.mrb[0].mxu0
    %v3621 = vadd.f32 0.0, %v3620
    %v3622 = vpop.f32.mrb[0].mxu0
    %v3623 = vadd.f32 0.0, %v3622
    %v3624 = vpop.f32.mrb[0].mxu0
    %v3625 = vadd.f32 0.0, %v3624
    %v3626 = vpop.f32.mrb[0].mxu0
    %v3627 = vadd.f32 0.0, %v3626
    %3628 = vmatprep.mubr.bf16.mxu0 %v1663
    %3629 = vmatmul.mubr.bf16.gmra.mrb[0].mxu0 %v1662
    %v3630 = vpop.f32.mrb[0].mxu0
    %v3631 = vadd.f32 0.0, %v3630
    %v3632 = vpop.f32.mrb[0].mxu0
    %v3633 = vadd.f32 0.0, %v3632
    %v3634 = vpop.f32.mrb[0].mxu0
    %v3635 = vadd.f32 0.0, %v3634
    %v3636 = vpop.f32.mrb[0].mxu0
    %v3637 = vadd.f32 0.0, %v3636
    %3638 = vmatprep.mubr.bf16.mxu0 %v1666
    %3639 = vmatmul.mubr.bf16.gmra.mrb[0].mxu0 %v1665
    %v3640 = vpop.f32.mrb[0].mxu0
    %v3641 = vadd.f32 0.0, %v3640
    %v3642 = vpop.f32.mrb[0].mxu0
    %v3643 = vadd.f32 0.0, %v3642
    %v3644 = vpop.f32.mrb[0].mxu0
    %v3645 = vadd.f32 0.0, %v3644
    %v3646 = vpop.f32.mrb[0].mxu0
    %v3647 = vadd.f32 0.0, %v3646
    %3648 = vmatprep.mubr.bf16.mxu0 %v1669
    %3649 = vmatmul.mubr.bf16.gmra.mrb[0].mxu0 %v1668
    %v3650 = vpop.f32.mrb[0].mxu0
    %v3651 = vadd.f32 0.0, %v3650
    %v3652 = vpop.f32.mrb[0].mxu0
    %v3653 = vadd.f32 0.0, %v3652
    %v3654 = vpop.f32.mrb[0].mxu0
    %v3655 = vadd.f32 0.0, %v3654
    %v3656 = vpop.f32.mrb[0].mxu0
    %v3657 = vadd.f32 0.0, %v3656
    %3658 = vmatprep.mubr.bf16.mxu0 %v1672
    %3659 = vmatmul.mubr.bf16.gmra.mrb[0].mxu0 %v1671
    %v3660 = vpop.f32.mrb[0].mxu0
    %v3661 = vadd.f32 0.0, %v3660
    %v3662 = vpop.f32.mrb[0].mxu0
    %v3663 = vadd.f32 0.0, %v3662
    %v3664 = vpop.f32.mrb[0].mxu0
    %v3665 = vadd.f32 0.0, %v3664
    %v3666 = vpop.f32.mrb[0].mxu0
    %v3667 = vadd.f32 0.0, %v3666
    %3668 = vmatprep.mubr.bf16.mxu0 %v1675
    %3669 = vmatmul.mubr.bf16.gmra.mrb[0].mxu0 %v1674
    %v3670 = vpop.f32.mrb[0].mxu0
    %v3671 = vadd.f32 0.0, %v3670
    %v3672 = vpop.f32.mrb[0].mxu0
    %v3673 = vadd.f32 0.0, %v3672
    %v3674 = vpop.f32.mrb[0].mxu0
    %v3675 = vadd.f32 0.0, %v3674
    %v3676 = vpop.f32.mrb[0].mxu0
    %v3677 = vadd.f32 0.0, %v3676
    %3678 = vmatprep.mubr.bf16.mxu0 %v1678
    %3679 = vmatmul.mubr.bf16.gmra.mrb[0].mxu0 %v1677
    %v3680 = vpop.f32.mrb[0].mxu0
    %v3681 = vadd.f32 0.0, %v3680
    %v3682 = vpop.f32.mrb[0].mxu0
    %v3683 = vadd.f32 0.0, %v3682
    %v3684 = vpop.f32.mrb[0].mxu0
    %v3685 = vadd.f32 0.0, %v3684
    %v3686 = vpop.f32.mrb[0].mxu0
    %v3687 = vadd.f32 0.0, %v3686
    %3688 = vmatprep.mubr.bf16.mxu0 %v1681
    %3689 = vmatmul.mubr.bf16.gmra.mrb[0].mxu0 %v1680
    %v3690 = vpop.f32.mrb[0].mxu0
    %v3691 = vadd.f32 0.0, %v3690
    %v3692 = vpop.f32.mrb[0].mxu0
    %v3693 = vadd.f32 0.0, %v3692
    %v3694 = vpop.f32.mrb[0].mxu0
    %v3695 = vadd.f32 0.0, %v3694
    %v3696 = vpop.f32.mrb[0].mxu0
    %v3697 = vadd.f32 0.0, %v3696
    %3698 = vdwg.mxu0
    %3699 = vmatprep.subr.bf16.mxu0 %v2807
    %3700 = vmatpush1.bf16.msra.mxu0 %v2806
    %3701 = vmatprep.subr.bf16.mxu0 %v2818
    %3702 = vmatpush1.bf16.msra.mxu0 %v2817
    %3703 = vmatprep.subr.bf16.mxu0 %v2829
    %3704 = vmatpush1.bf16.msra.mxu0 %v2828
    %3705 = vmatprep.subr.bf16.mxu0 %v2840
    %3706 = vmatpush1.bf16.msra.mxu0 %v2839
    %3707 = vmatprep.subr.bf16.mxu0 %v3117
    %3708 = vmatpush1.bf16.msra.mxu0 %v3114
    %3709 = vmatprep.subr.bf16.mxu0 0
    %3710 = vmatpush1.bf16.msra.mxu0 0
    %3711 = vmatprep.subr.bf16.mxu0 0
    %3712 = vmatpush1.bf16.msra.mxu0 0
    %3713 = vmatprep.subr.bf16.mxu0 0
    %3714 = vmatpush1.bf16.msra.mxu0 0
    %3715 = vmatprep.subr.bf16.mxu0 0
    %3716 = vmatpush1.bf16.msra.mxu0 0
    %3717 = vmatprep.subr.bf16.mxu0 0
    %3718 = vmatpush1.bf16.msra.mxu0 0
    %3719 = vmatprep.subr.bf16.mxu0 0
    %3720 = vmatpush1.bf16.msra.mxu0 0
    %3721 = vmatprep.subr.bf16.mxu0 0
    %3722 = vmatpush1.bf16.msra.mxu0 0
    %3723 = vmatprep.subr.bf16.mxu0 0
    %3724 = vmatpush1.bf16.msra.mxu0 0
    %3725 = vmatprep.subr.bf16.mxu0 0
    %3726 = vmatpush1.bf16.msra.mxu0 0
    %3727 = vmatprep.subr.bf16.mxu0 0
    %3728 = vmatpush1.bf16.msra.mxu0 0
    %3729 = vmatprep.subr.bf16.mxu0 0
    %3730 = vmatpush1.bf16.msra.mxu0 0
    %3731 = vmatprep.mubr.bf16.mxu0 0
    %3732 = vmatmul.mubr.bf16.gmra.mrb[0].mxu0 %v3078
    %v3733 = vpop.f32.mrb[0].mxu0
    %v3734 = vadd.f32 %v3621, %v3733
    %v3735 = vpop.f32.mrb[0].mxu0
    %v3736 = vadd.f32 %v3623, %v3735
    %v3737 = vpop.f32.mrb[0].mxu0
    %v3738 = vadd.f32 %v3625, %v3737
    %v3739 = vpop.f32.mrb[0].mxu0
    %v3740 = vadd.f32 %v3627, %v3739
    %3741 = vmatprep.mubr.bf16.mxu0 0
    %3742 = vmatmul.mubr.bf16.gmra.mrb[0].mxu0 %v3081
    %v3743 = vpop.f32.mrb[0].mxu0
    %v3744 = vadd.f32 %v3631, %v3743
    %v3745 = vpop.f32.mrb[0].mxu0
    %v3746 = vadd.f32 %v3633, %v3745
    %v3747 = vpop.f32.mrb[0].mxu0
    %v3748 = vadd.f32 %v3635, %v3747
    %v3749 = vpop.f32.mrb[0].mxu0
    %v3750 = vadd.f32 %v3637, %v3749
    %3751 = vmatprep.mubr.bf16.mxu0 0
    %3752 = vmatmul.mubr.bf16.gmra.mrb[0].mxu0 %v3084
    %v3753 = vpop.f32.mrb[0].mxu0
    %v3754 = vadd.f32 %v3641, %v3753
    %v3755 = vpop.f32.mrb[0].mxu0
    %v3756 = vadd.f32 %v3643, %v3755
    %v3757 = vpop.f32.mrb[0].mxu0
    %v3758 = vadd.f32 %v3645, %v3757
    %v3759 = vpop.f32.mrb[0].mxu0
    %v3760 = vadd.f32 %v3647, %v3759
    %3761 = vmatprep.mubr.bf16.mxu0 0
    %3762 = vmatmul.mubr.bf16.gmra.mrb[0].mxu0 %v3087
    %v3763 = vpop.f32.mrb[0].mxu0
    %v3764 = vadd.f32 %v3651, %v3763
    %v3765 = vpop.f32.mrb[0].mxu0
    %v3766 = vadd.f32 %v3653, %v3765
    %v3767 = vpop.f32.mrb[0].mxu0
    %v3768 = vadd.f32 %v3655, %v3767
    %v3769 = vpop.f32.mrb[0].mxu0
    %v3770 = vadd.f32 %v3657, %v3769
    %3771 = vmatprep.mubr.bf16.mxu0 0
    %3772 = vmatmul.mubr.bf16.gmra.mrb[0].mxu0 %v3090
    %v3773 = vpop.f32.mrb[0].mxu0
    %v3774 = vadd.f32 %v3661, %v3773
    %v3775 = vpop.f32.mrb[0].mxu0
    %v3776 = vadd.f32 %v3663, %v3775
    %v3777 = vpop.f32.mrb[0].mxu0
    %v3778 = vadd.f32 %v3665, %v3777
    %v3779 = vpop.f32.mrb[0].mxu0
    %v3780 = vadd.f32 %v3667, %v3779
    %3781 = vmatprep.mubr.bf16.mxu0 0
    %3782 = vmatmul.mubr.bf16.gmra.mrb[0].mxu0 %v3093
    %v3783 = vpop.f32.mrb[0].mxu0
    %v3784 = vadd.f32 %v3671, %v3783
    %v3785 = vpop.f32.mrb[0].mxu0
    %v3786 = vadd.f32 %v3673, %v3785
    %v3787 = vpop.f32.mrb[0].mxu0
    %v3788 = vadd.f32 %v3675, %v3787
    %v3789 = vpop.f32.mrb[0].mxu0
    %v3790 = vadd.f32 %v3677, %v3789
    %3791 = vmatprep.mubr.bf16.mxu0 0
    %3792 = vmatmul.mubr.bf16.gmra.mrb[0].mxu0 %v3096
    %v3793 = vpop.f32.mrb[0].mxu0
    %v3794 = vadd.f32 %v3681, %v3793
    %v3795 = vpop.f32.mrb[0].mxu0
    %v3796 = vadd.f32 %v3683, %v3795
    %v3797 = vpop.f32.mrb[0].mxu0
    %v3798 = vadd.f32 %v3685, %v3797
    %v3799 = vpop.f32.mrb[0].mxu0
    %v3800 = vadd.f32 %v3687, %v3799
    %3801 = vmatprep.mubr.bf16.mxu0 0
    %3802 = vmatmul.mubr.bf16.gmra.mrb[0].mxu0 %v3099
    %v3803 = vpop.f32.mrb[0].mxu0
    %v3804 = vadd.f32 %v3691, %v3803
    %v3805 = vpop.f32.mrb[0].mxu0
    %v3806 = vadd.f32 %v3693, %v3805
    %v3807 = vpop.f32.mrb[0].mxu0
    %v3808 = vadd.f32 %v3695, %v3807
    %v3809 = vpop.f32.mrb[0].mxu0
    %v3810 = vadd.f32 %v3697, %v3809
    %3811 = vdwg.mxu0
    %3812 = vmatprep.subr.bf16.mxu0 %v2633
    %3813 = vmatpush1.bf16.msra.mxu0 %v2632
    %3814 = vmatprep.subr.bf16.mxu0 %v2644
    %3815 = vmatpush1.bf16.msra.mxu0 %v2643
    %3816 = vmatprep.subr.bf16.mxu0 %v2655
    %3817 = vmatpush1.bf16.msra.mxu0 %v2654
    %3818 = vmatprep.subr.bf16.mxu0 %v2666
    %3819 = vmatpush1.bf16.msra.mxu0 %v2665
    %3820 = vmatprep.subr.bf16.mxu0 %v2677
    %3821 = vmatpush1.bf16.msra.mxu0 %v2676
    %3822 = vmatprep.subr.bf16.mxu0 %v2688
    %3823 = vmatpush1.bf16.msra.mxu0 %v2687
    %3824 = vmatprep.subr.bf16.mxu0 %v2699
    %3825 = vmatpush1.bf16.msra.mxu0 %v2698
    %3826 = vmatprep.subr.bf16.mxu0 %v2710
    %3827 = vmatpush1.bf16.msra.mxu0 %v2709
    %3828 = vmatprep.subr.bf16.mxu0 %v2721
    %3829 = vmatpush1.bf16.msra.mxu0 %v2720
    %3830 = vmatprep.subr.bf16.mxu0 %v2732
    %3831 = vmatpush1.bf16.msra.mxu0 %v2731
    %3832 = vmatprep.subr.bf16.mxu0 %v2743
    %3833 = vmatpush1.bf16.msra.mxu0 %v2742
    %3834 = vmatprep.subr.bf16.mxu0 %v2754
    %3835 = vmatpush1.bf16.msra.mxu0 %v2753
    %3836 = vmatprep.subr.bf16.mxu0 %v2765
    %3837 = vmatpush1.bf16.msra.mxu0 %v2764
    %3838 = vmatprep.subr.bf16.mxu0 %v2776
    %3839 = vmatpush1.bf16.msra.mxu0 %v2775
    %3840 = vmatprep.subr.bf16.mxu0 %v2787
    %3841 = vmatpush1.bf16.msra.mxu0 %v2786
    %3842 = vmatprep.subr.bf16.mxu0 %v2798
    %3843 = vmatpush1.bf16.msra.mxu0 %v2797
    %3844 = vmatprep.mubr.bf16.mxu0 %v1660
    %3845 = vmatmul.mubr.bf16.gmra.mrb[0].mxu0 %v1659
    %v3846 = vpop.f32.mrb[0].mxu0
    %v3847 = vadd.f32 0.0, %v3846
    %v3848 = vpop.f32.mrb[0].mxu0
    %v3849 = vadd.f32 0.0, %v3848
    %v3850 = vpop.f32.mrb[0].mxu0
    %v3851 = vadd.f32 0.0, %v3850
    %v3852 = vpop.f32.mrb[0].mxu0
    %v3853 = vadd.f32 0.0, %v3852
    %3854 = vmatprep.mubr.bf16.mxu0 %v1663
    %3855 = vmatmul.mubr.bf16.gmra.mrb[0].mxu0 %v1662
    %v3856 = vpop.f32.mrb[0].mxu0
    %v3857 = vadd.f32 0.0, %v3856
    %v3858 = vpop.f32.mrb[0].mxu0
    %v3859 = vadd.f32 0.0, %v3858
    %v3860 = vpop.f32.mrb[0].mxu0
    %v3861 = vadd.f32 0.0, %v3860
    %v3862 = vpop.f32.mrb[0].mxu0
    %v3863 = vadd.f32 0.0, %v3862
    %3864 = vmatprep.mubr.bf16.mxu0 %v1666
    %3865 = vmatmul.mubr.bf16.gmra.mrb[0].mxu0 %v1665
    %v3866 = vpop.f32.mrb[0].mxu0
    %v3867 = vadd.f32 0.0, %v3866
    %v3868 = vpop.f32.mrb[0].mxu0
    %v3869 = vadd.f32 0.0, %v3868
    %v3870 = vpop.f32.mrb[0].mxu0
    %v3871 = vadd.f32 0.0, %v3870
    %v3872 = vpop.f32.mrb[0].mxu0
    %v3873 = vadd.f32 0.0, %v3872
    %3874 = vmatprep.mubr.bf16.mxu0 %v1669
    %3875 = vmatmul.mubr.bf16.gmra.mrb[0].mxu0 %v1668
    %v3876 = vpop.f32.mrb[0].mxu0
    %v3877 = vadd.f32 0.0, %v3876
    %v3878 = vpop.f32.mrb[0].mxu0
    %v3879 = vadd.f32 0.0, %v3878
    %v3880 = vpop.f32.mrb[0].mxu0
    %v3881 = vadd.f32 0.0, %v3880
    %v3882 = vpop.f32.mrb[0].mxu0
    %v3883 = vadd.f32 0.0, %v3882
    %3884 = vmatprep.mubr.bf16.mxu0 %v1672
    %3885 = vmatmul.mubr.bf16.gmra.mrb[0].mxu0 %v1671
    %v3886 = vpop.f32.mrb[0].mxu0
    %v3887 = vadd.f32 0.0, %v3886
    %v3888 = vpop.f32.mrb[0].mxu0
    %v3889 = vadd.f32 0.0, %v3888
    %v3890 = vpop.f32.mrb[0].mxu0
    %v3891 = vadd.f32 0.0, %v3890
    %v3892 = vpop.f32.mrb[0].mxu0
    %v3893 = vadd.f32 0.0, %v3892
    %3894 = vmatprep.mubr.bf16.mxu0 %v1675
    %3895 = vmatmul.mubr.bf16.gmra.mrb[0].mxu0 %v1674
    %v3896 = vpop.f32.mrb[0].mxu0
    %v3897 = vadd.f32 0.0, %v3896
    %v3898 = vpop.f32.mrb[0].mxu0
    %v3899 = vadd.f32 0.0, %v3898
    %v3900 = vpop.f32.mrb[0].mxu0
    %v3901 = vadd.f32 0.0, %v3900
    %v3902 = vpop.f32.mrb[0].mxu0
    %v3903 = vadd.f32 0.0, %v3902
    %3904 = vmatprep.mubr.bf16.mxu0 %v1678
    %3905 = vmatmul.mubr.bf16.gmra.mrb[0].mxu0 %v1677
    %v3906 = vpop.f32.mrb[0].mxu0
    %v3907 = vadd.f32 0.0, %v3906
    %v3908 = vpop.f32.mrb[0].mxu0
    %v3909 = vadd.f32 0.0, %v3908
    %v3910 = vpop.f32.mrb[0].mxu0
    %v3911 = vadd.f32 0.0, %v3910
    %v3912 = vpop.f32.mrb[0].mxu0
    %v3913 = vadd.f32 0.0, %v3912
    %3914 = vmatprep.mubr.bf16.mxu0 %v1681
    %3915 = vmatmul.mubr.bf16.gmra.mrb[0].mxu0 %v1680
    %v3916 = vpop.f32.mrb[0].mxu0
    %v3917 = vadd.f32 0.0, %v3916
    %v3918 = vpop.f32.mrb[0].mxu0
    %v3919 = vadd.f32 0.0, %v3918
    %v3920 = vpop.f32.mrb[0].mxu0
    %v3921 = vadd.f32 0.0, %v3920
    %v3922 = vpop.f32.mrb[0].mxu0
    %v3923 = vadd.f32 0.0, %v3922
    %3924 = vdwg.mxu0
    %3925 = vmatprep.subr.bf16.mxu0 %v2809
    %3926 = vmatpush1.bf16.msra.mxu0 %v2808
    %3927 = vmatprep.subr.bf16.mxu0 %v2820
    %3928 = vmatpush1.bf16.msra.mxu0 %v2819
    %3929 = vmatprep.subr.bf16.mxu0 %v2831
    %3930 = vmatpush1.bf16.msra.mxu0 %v2830
    %3931 = vmatprep.subr.bf16.mxu0 %v2842
    %3932 = vmatpush1.bf16.msra.mxu0 %v2841
    %3933 = vmatprep.subr.bf16.mxu0 %v3123
    %3934 = vmatpush1.bf16.msra.mxu0 %v3120
    %3935 = vmatprep.subr.bf16.mxu0 0
    %3936 = vmatpush1.bf16.msra.mxu0 0
    %3937 = vmatprep.subr.bf16.mxu0 0
    %3938 = vmatpush1.bf16.msra.mxu0 0
    %3939 = vmatprep.subr.bf16.mxu0 0
    %3940 = vmatpush1.bf16.msra.mxu0 0
    %3941 = vmatprep.subr.bf16.mxu0 0
    %3942 = vmatpush1.bf16.msra.mxu0 0
    %3943 = vmatprep.subr.bf16.mxu0 0
    %3944 = vmatpush1.bf16.msra.mxu0 0
    %3945 = vmatprep.subr.bf16.mxu0 0
    %3946 = vmatpush1.bf16.msra.mxu0 0
    %3947 = vmatprep.subr.bf16.mxu0 0
    %3948 = vmatpush1.bf16.msra.mxu0 0
    %3949 = vmatprep.subr.bf16.mxu0 0
    %3950 = vmatpush1.bf16.msra.mxu0 0
    %3951 = vmatprep.subr.bf16.mxu0 0
    %3952 = vmatpush1.bf16.msra.mxu0 0
    %3953 = vmatprep.subr.bf16.mxu0 0
    %3954 = vmatpush1.bf16.msra.mxu0 0
    %3955 = vmatprep.subr.bf16.mxu0 0
    %3956 = vmatpush1.bf16.msra.mxu0 0
    %3957 = vmatprep.mubr.bf16.mxu0 0
    %3958 = vmatmul.mubr.bf16.gmra.mrb[0].mxu0 %v3078
    %v3959 = vpop.f32.mrb[0].mxu0
    %v3960 = vadd.f32 %v3847, %v3959
    %v3961 = vpop.f32.mrb[0].mxu0
    %v3962 = vadd.f32 %v3849, %v3961
    %v3963 = vpop.f32.mrb[0].mxu0
    %v3964 = vadd.f32 %v3851, %v3963
    %v3965 = vpop.f32.mrb[0].mxu0
    %v3966 = vadd.f32 %v3853, %v3965
    %3967 = vmatprep.mubr.bf16.mxu0 0
    %3968 = vmatmul.mubr.bf16.gmra.mrb[0].mxu0 %v3081
    %v3969 = vpop.f32.mrb[0].mxu0
    %v3970 = vadd.f32 %v3857, %v3969
    %v3971 = vpop.f32.mrb[0].mxu0
    %v3972 = vadd.f32 %v3859, %v3971
    %v3973 = vpop.f32.mrb[0].mxu0
    %v3974 = vadd.f32 %v3861, %v3973
    %v3975 = vpop.f32.mrb[0].mxu0
    %v3976 = vadd.f32 %v3863, %v3975
    %3977 = vmatprep.mubr.bf16.mxu0 0
    %3978 = vmatmul.mubr.bf16.gmra.mrb[0].mxu0 %v3084
    %v3979 = vpop.f32.mrb[0].mxu0
    %v3980 = vadd.f32 %v3867, %v3979
    %v3981 = vpop.f32.mrb[0].mxu0
    %v3982 = vadd.f32 %v3869, %v3981
    %v3983 = vpop.f32.mrb[0].mxu0
    %v3984 = vadd.f32 %v3871, %v3983
    %v3985 = vpop.f32.mrb[0].mxu0
    %v3986 = vadd.f32 %v3873, %v3985
    %3987 = vmatprep.mubr.bf16.mxu0 0
    %3988 = vmatmul.mubr.bf16.gmra.mrb[0].mxu0 %v3087
    %v3989 = vpop.f32.mrb[0].mxu0
    %v3990 = vadd.f32 %v3877, %v3989
    %v3991 = vpop.f32.mrb[0].mxu0
    %v3992 = vadd.f32 %v3879, %v3991
    %v3993 = vpop.f32.mrb[0].mxu0
    %v3994 = vadd.f32 %v3881, %v3993
    %v3995 = vpop.f32.mrb[0].mxu0
    %v3996 = vadd.f32 %v3883, %v3995
    %3997 = vmatprep.mubr.bf16.mxu0 0
    %3998 = vmatmul.mubr.bf16.gmra.mrb[0].mxu0 %v3090
    %v3999 = vpop.f32.mrb[0].mxu0
    %v4000 = vadd.f32 %v3887, %v3999
    %v4001 = vpop.f32.mrb[0].mxu0
    %v4002 = vadd.f32 %v3889, %v4001
    %v4003 = vpop.f32.mrb[0].mxu0
    %v4004 = vadd.f32 %v3891, %v4003
    %v4005 = vpop.f32.mrb[0].mxu0
    %v4006 = vadd.f32 %v3893, %v4005
    %4007 = vmatprep.mubr.bf16.mxu0 0
    %4008 = vmatmul.mubr.bf16.gmra.mrb[0].mxu0 %v3093
    %v4009 = vpop.f32.mrb[0].mxu0
    %v4010 = vadd.f32 %v3897, %v4009
    %v4011 = vpop.f32.mrb[0].mxu0
    %v4012 = vadd.f32 %v3899, %v4011
    %v4013 = vpop.f32.mrb[0].mxu0
    %v4014 = vadd.f32 %v3901, %v4013
    %v4015 = vpop.f32.mrb[0].mxu0
    %v4016 = vadd.f32 %v3903, %v4015
    %4017 = vmatprep.mubr.bf16.mxu0 0
    %4018 = vmatmul.mubr.bf16.gmra.mrb[0].mxu0 %v3096
    %v4019 = vpop.f32.mrb[0].mxu0
    %v4020 = vadd.f32 %v3907, %v4019
    %v4021 = vpop.f32.mrb[0].mxu0
    %v4022 = vadd.f32 %v3909, %v4021
    %v4023 = vpop.f32.mrb[0].mxu0
    %v4024 = vadd.f32 %v3911, %v4023
    %v4025 = vpop.f32.mrb[0].mxu0
    %v4026 = vadd.f32 %v3913, %v4025
    %4027 = vmatprep.mubr.bf16.mxu0 0
    %4028 = vmatmul.mubr.bf16.gmra.mrb[0].mxu0 %v3099
    %v4029 = vpop.f32.mrb[0].mxu0
    %v4030 = vadd.f32 %v3917, %v4029
    %v4031 = vpop.f32.mrb[0].mxu0
    %v4032 = vadd.f32 %v3919, %v4031
    %v4033 = vpop.f32.mrb[0].mxu0
    %v4034 = vadd.f32 %v3921, %v4033
    %v4035 = vpop.f32.mrb[0].mxu0
    %v4036 = vadd.f32 %v3923, %v4035
    %4037 = vdwg.mxu0
    %4038 = vmatprep.subr.bf16.mxu0 %v2635
    %4039 = vmatpush1.bf16.msra.mxu0 %v2634
    %4040 = vmatprep.subr.bf16.mxu0 %v2646
    %4041 = vmatpush1.bf16.msra.mxu0 %v2645
    %4042 = vmatprep.subr.bf16.mxu0 %v2657
    %4043 = vmatpush1.bf16.msra.mxu0 %v2656
    %4044 = vmatprep.subr.bf16.mxu0 %v2668
    %4045 = vmatpush1.bf16.msra.mxu0 %v2667
    %4046 = vmatprep.subr.bf16.mxu0 %v2679
    %4047 = vmatpush1.bf16.msra.mxu0 %v2678
    %4048 = vmatprep.subr.bf16.mxu0 %v2690
    %4049 = vmatpush1.bf16.msra.mxu0 %v2689
    %4050 = vmatprep.subr.bf16.mxu0 %v2701
    %4051 = vmatpush1.bf16.msra.mxu0 %v2700
    %4052 = vmatprep.subr.bf16.mxu0 %v2712
    %4053 = vmatpush1.bf16.msra.mxu0 %v2711
    %4054 = vmatprep.subr.bf16.mxu0 %v2723
    %4055 = vmatpush1.bf16.msra.mxu0 %v2722
    %4056 = vmatprep.subr.bf16.mxu0 %v2734
    %4057 = vmatpush1.bf16.msra.mxu0 %v2733
    %4058 = vmatprep.subr.bf16.mxu0 %v2745
    %4059 = vmatpush1.bf16.msra.mxu0 %v2744
    %4060 = vmatprep.subr.bf16.mxu0 %v2756
    %4061 = vmatpush1.bf16.msra.mxu0 %v2755
    %4062 = vmatprep.subr.bf16.mxu0 %v2767
    %4063 = vmatpush1.bf16.msra.mxu0 %v2766
    %4064 = vmatprep.subr.bf16.mxu0 %v2778
    %4065 = vmatpush1.bf16.msra.mxu0 %v2777
    %4066 = vmatprep.subr.bf16.mxu0 %v2789
    %4067 = vmatpush1.bf16.msra.mxu0 %v2788
    %4068 = vmatprep.subr.bf16.mxu0 %v2800
    %4069 = vmatpush1.bf16.msra.mxu0 %v2799
    %4070 = vmatprep.mubr.bf16.mxu0 %v1660
    %4071 = vmatmul.mubr.bf16.gmra.mrb[0].mxu0 %v1659
    %v4072 = vpop.f32.mrb[0].mxu0
    %v4073 = vadd.f32 0.0, %v4072
    %v4074 = vpop.f32.mrb[0].mxu0
    %v4075 = vadd.f32 0.0, %v4074
    %v4076 = vpop.f32.mrb[0].mxu0
    %v4077 = vadd.f32 0.0, %v4076
    %v4078 = vpop.f32.mrb[0].mxu0
    %v4079 = vadd.f32 0.0, %v4078
    %4080 = vmatprep.mubr.bf16.mxu0 %v1663
    %4081 = vmatmul.mubr.bf16.gmra.mrb[0].mxu0 %v1662
    %v4082 = vpop.f32.mrb[0].mxu0
    %v4083 = vadd.f32 0.0, %v4082
    %v4084 = vpop.f32.mrb[0].mxu0
    %v4085 = vadd.f32 0.0, %v4084
    %v4086 = vpop.f32.mrb[0].mxu0
    %v4087 = vadd.f32 0.0, %v4086
    %v4088 = vpop.f32.mrb[0].mxu0
    %v4089 = vadd.f32 0.0, %v4088
    %4090 = vmatprep.mubr.bf16.mxu0 %v1666
    %4091 = vmatmul.mubr.bf16.gmra.mrb[0].mxu0 %v1665
    %v4092 = vpop.f32.mrb[0].mxu0
    %v4093 = vadd.f32 0.0, %v4092
    %v4094 = vpop.f32.mrb[0].mxu0
    %v4095 = vadd.f32 0.0, %v4094
    %v4096 = vpop.f32.mrb[0].mxu0
    %v4097 = vadd.f32 0.0, %v4096
    %v4098 = vpop.f32.mrb[0].mxu0
    %v4099 = vadd.f32 0.0, %v4098
    %4100 = vmatprep.mubr.bf16.mxu0 %v1669
    %4101 = vmatmul.mubr.bf16.gmra.mrb[0].mxu0 %v1668
    %v4102 = vpop.f32.mrb[0].mxu0
    %v4103 = vadd.f32 0.0, %v4102
    %v4104 = vpop.f32.mrb[0].mxu0
    %v4105 = vadd.f32 0.0, %v4104
    %v4106 = vpop.f32.mrb[0].mxu0
    %v4107 = vadd.f32 0.0, %v4106
    %v4108 = vpop.f32.mrb[0].mxu0
    %v4109 = vadd.f32 0.0, %v4108
    %4110 = vmatprep.mubr.bf16.mxu0 %v1672
    %4111 = vmatmul.mubr.bf16.gmra.mrb[0].mxu0 %v1671
    %v4112 = vpop.f32.mrb[0].mxu0
    %v4113 = vadd.f32 0.0, %v4112
    %v4114 = vpop.f32.mrb[0].mxu0
    %v4115 = vadd.f32 0.0, %v4114
    %v4116 = vpop.f32.mrb[0].mxu0
    %v4117 = vadd.f32 0.0, %v4116
    %v4118 = vpop.f32.mrb[0].mxu0
    %v4119 = vadd.f32 0.0, %v4118
    %4120 = vmatprep.mubr.bf16.mxu0 %v1675
    %4121 = vmatmul.mubr.bf16.gmra.mrb[0].mxu0 %v1674
    %v4122 = vpop.f32.mrb[0].mxu0
    %v4123 = vadd.f32 0.0, %v4122
    %v4124 = vpop.f32.mrb[0].mxu0
    %v4125 = vadd.f32 0.0, %v4124
    %v4126 = vpop.f32.mrb[0].mxu0
    %v4127 = vadd.f32 0.0, %v4126
    %v4128 = vpop.f32.mrb[0].mxu0
    %v4129 = vadd.f32 0.0, %v4128
    %4130 = vmatprep.mubr.bf16.mxu0 %v1678
    %4131 = vmatmul.mubr.bf16.gmra.mrb[0].mxu0 %v1677
    %v4132 = vpop.f32.mrb[0].mxu0
    %v4133 = vadd.f32 0.0, %v4132
    %v4134 = vpop.f32.mrb[0].mxu0
    %v4135 = vadd.f32 0.0, %v4134
    %v4136 = vpop.f32.mrb[0].mxu0
    %v4137 = vadd.f32 0.0, %v4136
    %v4138 = vpop.f32.mrb[0].mxu0
    %v4139 = vadd.f32 0.0, %v4138
    %4140 = vmatprep.mubr.bf16.mxu0 %v1681
    %4141 = vmatmul.mubr.bf16.gmra.mrb[0].mxu0 %v1680
    %v4142 = vpop.f32.mrb[0].mxu0
    %v4143 = vadd.f32 0.0, %v4142
    %v4144 = vpop.f32.mrb[0].mxu0
    %v4145 = vadd.f32 0.0, %v4144
    %v4146 = vpop.f32.mrb[0].mxu0
    %v4147 = vadd.f32 0.0, %v4146
    %v4148 = vpop.f32.mrb[0].mxu0
    %v4149 = vadd.f32 0.0, %v4148
    %4150 = vdwg.mxu0
    %4151 = vmatprep.subr.bf16.mxu0 %v2811
    %4152 = vmatpush1.bf16.msra.mxu0 %v2810
    %4153 = vmatprep.subr.bf16.mxu0 %v2822
    %4154 = vmatpush1.bf16.msra.mxu0 %v2821
    %4155 = vmatprep.subr.bf16.mxu0 %v2833
    %4156 = vmatpush1.bf16.msra.mxu0 %v2832
    %4157 = vmatprep.subr.bf16.mxu0 %v2844
    %4158 = vmatpush1.bf16.msra.mxu0 %v2843
    %4159 = vmatprep.subr.bf16.mxu0 %v3129
    %4160 = vmatpush1.bf16.msra.mxu0 %v3126
    %4161 = vmatprep.subr.bf16.mxu0 0
    %4162 = vmatpush1.bf16.msra.mxu0 0
    %4163 = vmatprep.subr.bf16.mxu0 0
    %4164 = vmatpush1.bf16.msra.mxu0 0
    %4165 = vmatprep.subr.bf16.mxu0 0
    %4166 = vmatpush1.bf16.msra.mxu0 0
    %4167 = vmatprep.subr.bf16.mxu0 0
    %4168 = vmatpush1.bf16.msra.mxu0 0
    %4169 = vmatprep.subr.bf16.mxu0 0
    %4170 = vmatpush1.bf16.msra.mxu0 0
    %4171 = vmatprep.subr.bf16.mxu0 0
    %4172 = vmatpush1.bf16.msra.mxu0 0
    %4173 = vmatprep.subr.bf16.mxu0 0
    %4174 = vmatpush1.bf16.msra.mxu0 0
    %4175 = vmatprep.subr.bf16.mxu0 0
    %4176 = vmatpush1.bf16.msra.mxu0 0
    %4177 = vmatprep.subr.bf16.mxu0 0
    %4178 = vmatpush1.bf16.msra.mxu0 0
    %4179 = vmatprep.subr.bf16.mxu0 0
    %4180 = vmatpush1.bf16.msra.mxu0 0
    %4181 = vmatprep.subr.bf16.mxu0 0
    %4182 = vmatpush1.bf16.msra.mxu0 0
    %4183 = vmatprep.mubr.bf16.mxu0 0
    %4184 = vmatmul.mubr.bf16.gmra.mrb[0].mxu0 %v3078
    %v4185 = vpop.f32.mrb[0].mxu0
    %v4186 = vadd.f32 %v4073, %v4185
    %v4187 = vpop.f32.mrb[0].mxu0
    %v4188 = vadd.f32 %v4075, %v4187
    %v4189 = vpop.f32.mrb[0].mxu0
    %v4190 = vadd.f32 %v4077, %v4189
    %v4191 = vpop.f32.mrb[0].mxu0
    %v4192 = vadd.f32 %v4079, %v4191
    %4193 = vmatprep.mubr.bf16.mxu0 0
    %4194 = vmatmul.mubr.bf16.gmra.mrb[0].mxu0 %v3081
    %v4195 = vpop.f32.mrb[0].mxu0
    %v4196 = vadd.f32 %v4083, %v4195
    %v4197 = vpop.f32.mrb[0].mxu0
    %v4198 = vadd.f32 %v4085, %v4197
    %v4199 = vpop.f32.mrb[0].mxu0
    %v4200 = vadd.f32 %v4087, %v4199
    %v4201 = vpop.f32.mrb[0].mxu0
    %v4202 = vadd.f32 %v4089, %v4201
    %4203 = vmatprep.mubr.bf16.mxu0 0
    %4204 = vmatmul.mubr.bf16.gmra.mrb[0].mxu0 %v3084
    %v4205 = vpop.f32.mrb[0].mxu0
    %v4206 = vadd.f32 %v4093, %v4205
    %v4207 = vpop.f32.mrb[0].mxu0
    %v4208 = vadd.f32 %v4095, %v4207
    %v4209 = vpop.f32.mrb[0].mxu0
    %v4210 = vadd.f32 %v4097, %v4209
    %v4211 = vpop.f32.mrb[0].mxu0
    %v4212 = vadd.f32 %v4099, %v4211
    %4213 = vmatprep.mubr.bf16.mxu0 0
    %4214 = vmatmul.mubr.bf16.gmra.mrb[0].mxu0 %v3087
    %v4215 = vpop.f32.mrb[0].mxu0
    %v4216 = vadd.f32 %v4103, %v4215
    %v4217 = vpop.f32.mrb[0].mxu0
    %v4218 = vadd.f32 %v4105, %v4217
    %v4219 = vpop.f32.mrb[0].mxu0
    %v4220 = vadd.f32 %v4107, %v4219
    %v4221 = vpop.f32.mrb[0].mxu0
    %v4222 = vadd.f32 %v4109, %v4221
    %4223 = vmatprep.mubr.bf16.mxu0 0
    %4224 = vmatmul.mubr.bf16.gmra.mrb[0].mxu0 %v3090
    %v4225 = vpop.f32.mrb[0].mxu0
    %v4226 = vadd.f32 %v4113, %v4225
    %v4227 = vpop.f32.mrb[0].mxu0
    %v4228 = vadd.f32 %v4115, %v4227
    %v4229 = vpop.f32.mrb[0].mxu0
    %v4230 = vadd.f32 %v4117, %v4229
    %v4231 = vpop.f32.mrb[0].mxu0
    %v4232 = vadd.f32 %v4119, %v4231
    %4233 = vmatprep.mubr.bf16.mxu0 0
    %4234 = vmatmul.mubr.bf16.gmra.mrb[0].mxu0 %v3093
    %v4235 = vpop.f32.mrb[0].mxu0
    %v4236 = vadd.f32 %v4123, %v4235
    %v4237 = vpop.f32.mrb[0].mxu0
    %v4238 = vadd.f32 %v4125, %v4237
    %v4239 = vpop.f32.mrb[0].mxu0
    %v4240 = vadd.f32 %v4127, %v4239
    %v4241 = vpop.f32.mrb[0].mxu0
    %v4242 = vadd.f32 %v4129, %v4241
    %4243 = vmatprep.mubr.bf16.mxu0 0
    %4244 = vmatmul.mubr.bf16.gmra.mrb[0].mxu0 %v3096
    %v4245 = vpop.f32.mrb[0].mxu0
    %v4246 = vadd.f32 %v4133, %v4245
    %v4247 = vpop.f32.mrb[0].mxu0
    %v4248 = vadd.f32 %v4135, %v4247
    %v4249 = vpop.f32.mrb[0].mxu0
    %v4250 = vadd.f32 %v4137, %v4249
    %v4251 = vpop.f32.mrb[0].mxu0
    %v4252 = vadd.f32 %v4139, %v4251
    %4253 = vmatprep.mubr.bf16.mxu0 0
    %4254 = vmatmul.mubr.bf16.gmra.mrb[0].mxu0 %v3099
    %v4255 = vpop.f32.mrb[0].mxu0
    %v4256 = vadd.f32 %v4143, %v4255
    %v4257 = vpop.f32.mrb[0].mxu0
    %v4258 = vadd.f32 %v4145, %v4257
    %v4259 = vpop.f32.mrb[0].mxu0
    %v4260 = vadd.f32 %v4147, %v4259
    %v4261 = vpop.f32.mrb[0].mxu0
    %v4262 = vadd.f32 %v4149, %v4261
    %4263 = vdwg.mxu0
    %4264 = vmatprep.subr.bf16.mxu0 0
    %4265 = vmatpush1.bf16.msra.mxu0 %v2636
    %4266 = vmatprep.subr.bf16.mxu0 0
    %4267 = vmatpush1.bf16.msra.mxu0 %v2647
    %4268 = vmatprep.subr.bf16.mxu0 0
    %4269 = vmatpush1.bf16.msra.mxu0 %v2658
    %4270 = vmatprep.subr.bf16.mxu0 0
    %4271 = vmatpush1.bf16.msra.mxu0 %v2669
    %4272 = vmatprep.subr.bf16.mxu0 0
    %4273 = vmatpush1.bf16.msra.mxu0 %v2680
    %4274 = vmatprep.subr.bf16.mxu0 0
    %4275 = vmatpush1.bf16.msra.mxu0 %v2691
    %4276 = vmatprep.subr.bf16.mxu0 0
    %4277 = vmatpush1.bf16.msra.mxu0 %v2702
    %4278 = vmatprep.subr.bf16.mxu0 0
    %4279 = vmatpush1.bf16.msra.mxu0 %v2713
    %4280 = vmatprep.subr.bf16.mxu0 0
    %4281 = vmatpush1.bf16.msra.mxu0 %v2724
    %4282 = vmatprep.subr.bf16.mxu0 0
    %4283 = vmatpush1.bf16.msra.mxu0 %v2735
    %4284 = vmatprep.subr.bf16.mxu0 0
    %4285 = vmatpush1.bf16.msra.mxu0 %v2746
    %4286 = vmatprep.subr.bf16.mxu0 0
    %4287 = vmatpush1.bf16.msra.mxu0 %v2757
    %4288 = vmatprep.subr.bf16.mxu0 0
    %4289 = vmatpush1.bf16.msra.mxu0 %v2768
    %4290 = vmatprep.subr.bf16.mxu0 0
    %4291 = vmatpush1.bf16.msra.mxu0 %v2779
    %4292 = vmatprep.subr.bf16.mxu0 0
    %4293 = vmatpush1.bf16.msra.mxu0 %v2790
    %4294 = vmatprep.subr.bf16.mxu0 0
    %4295 = vmatpush1.bf16.msra.mxu0 %v2801
    %4296 = vmatprep.mubr.bf16.mxu0 %v1660
    %4297 = vmatmul.mubr.bf16.gmra.mrb[0].mxu0 %v1659
    %v4298 = vpop.f32.mrb[0].mxu0
    %v4299 = vadd.f32 0.0, %v4298
    %v4300 = vpop.f32.mrb[0].mxu0
    %v4301 = vpop.f32.mrb[0].mxu0
    %v4302 = vadd.f32 0.0, %v4301
    %v4303 = vpop.f32.mrb[0].mxu0
    %4304 = vmatprep.mubr.bf16.mxu0 %v1663
    %4305 = vmatmul.mubr.bf16.gmra.mrb[0].mxu0 %v1662
    %v4306 = vpop.f32.mrb[0].mxu0
    %v4307 = vadd.f32 0.0, %v4306
    %v4308 = vpop.f32.mrb[0].mxu0
    %v4309 = vpop.f32.mrb[0].mxu0
    %v4310 = vadd.f32 0.0, %v4309
    %v4311 = vpop.f32.mrb[0].mxu0
    %4312 = vmatprep.mubr.bf16.mxu0 %v1666
    %4313 = vmatmul.mubr.bf16.gmra.mrb[0].mxu0 %v1665
    %v4314 = vpop.f32.mrb[0].mxu0
    %v4315 = vadd.f32 0.0, %v4314
    %v4316 = vpop.f32.mrb[0].mxu0
    %v4317 = vpop.f32.mrb[0].mxu0
    %v4318 = vadd.f32 0.0, %v4317
    %v4319 = vpop.f32.mrb[0].mxu0
    %4320 = vmatprep.mubr.bf16.mxu0 %v1669
    %4321 = vmatmul.mubr.bf16.gmra.mrb[0].mxu0 %v1668
    %v4322 = vpop.f32.mrb[0].mxu0
    %v4323 = vadd.f32 0.0, %v4322
    %v4324 = vpop.f32.mrb[0].mxu0
    %v4325 = vpop.f32.mrb[0].mxu0
    %v4326 = vadd.f32 0.0, %v4325
    %v4327 = vpop.f32.mrb[0].mxu0
    %4328 = vmatprep.mubr.bf16.mxu0 %v1672
    %4329 = vmatmul.mubr.bf16.gmra.mrb[0].mxu0 %v1671
    %v4330 = vpop.f32.mrb[0].mxu0
    %v4331 = vadd.f32 0.0, %v4330
    %v4332 = vpop.f32.mrb[0].mxu0
    %v4333 = vpop.f32.mrb[0].mxu0
    %v4334 = vadd.f32 0.0, %v4333
    %v4335 = vpop.f32.mrb[0].mxu0
    %4336 = vmatprep.mubr.bf16.mxu0 %v1675
    %4337 = vmatmul.mubr.bf16.gmra.mrb[0].mxu0 %v1674
    %v4338 = vpop.f32.mrb[0].mxu0
    %v4339 = vadd.f32 0.0, %v4338
    %v4340 = vpop.f32.mrb[0].mxu0
    %v4341 = vpop.f32.mrb[0].mxu0
    %v4342 = vadd.f32 0.0, %v4341
    %v4343 = vpop.f32.mrb[0].mxu0
    %4344 = vmatprep.mubr.bf16.mxu0 %v1678
    %4345 = vmatmul.mubr.bf16.gmra.mrb[0].mxu0 %v1677
    %v4346 = vpop.f32.mrb[0].mxu0
    %v4347 = vadd.f32 0.0, %v4346
    %v4348 = vpop.f32.mrb[0].mxu0
    %v4349 = vpop.f32.mrb[0].mxu0
    %v4350 = vadd.f32 0.0, %v4349
    %v4351 = vpop.f32.mrb[0].mxu0
    %4352 = vmatprep.mubr.bf16.mxu0 %v1681
    %4353 = vmatmul.mubr.bf16.gmra.mrb[0].mxu0 %v1680
    %v4354 = vpop.f32.mrb[0].mxu0
    %v4355 = vadd.f32 0.0, %v4354
    %v4356 = vpop.f32.mrb[0].mxu0
    %v4357 = vpop.f32.mrb[0].mxu0
    %v4358 = vadd.f32 0.0, %v4357
    %v4359 = vpop.f32.mrb[0].mxu0
    %4360 = vdwg.mxu0
    %4361 = vmatprep.subr.bf16.mxu0 0
    %4362 = vmatpush1.bf16.msra.mxu0 %v2812
    %4363 = vmatprep.subr.bf16.mxu0 0
    %4364 = vmatpush1.bf16.msra.mxu0 %v2823
    %4365 = vmatprep.subr.bf16.mxu0 0
    %4366 = vmatpush1.bf16.msra.mxu0 %v2834
    %4367 = vmatprep.subr.bf16.mxu0 0
    %4368 = vmatpush1.bf16.msra.mxu0 %v2845
    %4369 = vmatprep.subr.bf16.mxu0 0
    %4370 = vmatpush1.bf16.msra.mxu0 %v3132
    %4371 = vmatprep.subr.bf16.mxu0 0
    %4372 = vmatpush1.bf16.msra.mxu0 0
    %4373 = vmatprep.subr.bf16.mxu0 0
    %4374 = vmatpush1.bf16.msra.mxu0 0
    %4375 = vmatprep.subr.bf16.mxu0 0
    %4376 = vmatpush1.bf16.msra.mxu0 0
    %4377 = vmatprep.subr.bf16.mxu0 0
    %4378 = vmatpush1.bf16.msra.mxu0 0
    %4379 = vmatprep.subr.bf16.mxu0 0
    %4380 = vmatpush1.bf16.msra.mxu0 0
    %4381 = vmatprep.subr.bf16.mxu0 0
    %4382 = vmatpush1.bf16.msra.mxu0 0
    %4383 = vmatprep.subr.bf16.mxu0 0
    %4384 = vmatpush1.bf16.msra.mxu0 0
    %4385 = vmatprep.subr.bf16.mxu0 0
    %4386 = vmatpush1.bf16.msra.mxu0 0
    %4387 = vmatprep.subr.bf16.mxu0 0
    %4388 = vmatpush1.bf16.msra.mxu0 0
    %4389 = vmatprep.subr.bf16.mxu0 0
    %4390 = vmatpush1.bf16.msra.mxu0 0
    %4391 = vmatprep.subr.bf16.mxu0 0
    %4392 = vmatpush1.bf16.msra.mxu0 0
    %4393 = vmatprep.mubr.bf16.mxu0 0
    %4394 = vmatmul.mubr.bf16.gmra.mrb[0].mxu0 %v3078
    %v4395 = vpop.f32.mrb[0].mxu0
    %v4396 = vadd.f32 %v4299, %v4395
    %v4397 = vpop.f32.mrb[0].mxu0
    %v4398 = vpop.f32.mrb[0].mxu0
    %v4399 = vadd.f32 %v4302, %v4398
    %v4400 = vpop.f32.mrb[0].mxu0
    %4401 = vmatprep.mubr.bf16.mxu0 0
    %4402 = vmatmul.mubr.bf16.gmra.mrb[0].mxu0 %v3081
    %v4403 = vpop.f32.mrb[0].mxu0
    %v4404 = vadd.f32 %v4307, %v4403
    %v4405 = vpop.f32.mrb[0].mxu0
    %v4406 = vpop.f32.mrb[0].mxu0
    %v4407 = vadd.f32 %v4310, %v4406
    %v4408 = vpop.f32.mrb[0].mxu0
    %4409 = vmatprep.mubr.bf16.mxu0 0
    %4410 = vmatmul.mubr.bf16.gmra.mrb[0].mxu0 %v3084
    %v4411 = vpop.f32.mrb[0].mxu0
    %v4412 = vadd.f32 %v4315, %v4411
    %v4413 = vpop.f32.mrb[0].mxu0
    %v4414 = vpop.f32.mrb[0].mxu0
    %v4415 = vadd.f32 %v4318, %v4414
    %v4416 = vpop.f32.mrb[0].mxu0
    %4417 = vmatprep.mubr.bf16.mxu0 0
    %4418 = vmatmul.mubr.bf16.gmra.mrb[0].mxu0 %v3087
    %v4419 = vpop.f32.mrb[0].mxu0
    %v4420 = vadd.f32 %v4323, %v4419
    %v4421 = vpop.f32.mrb[0].mxu0
    %v4422 = vpop.f32.mrb[0].mxu0
    %v4423 = vadd.f32 %v4326, %v4422
    %v4424 = vpop.f32.mrb[0].mxu0
    %4425 = vmatprep.mubr.bf16.mxu0 0
    %4426 = vmatmul.mubr.bf16.gmra.mrb[0].mxu0 %v3090
    %v4427 = vpop.f32.mrb[0].mxu0
    %v4428 = vadd.f32 %v4331, %v4427
    %v4429 = vpop.f32.mrb[0].mxu0
    %v4430 = vpop.f32.mrb[0].mxu0
    %v4431 = vadd.f32 %v4334, %v4430
    %v4432 = vpop.f32.mrb[0].mxu0
    %4433 = vmatprep.mubr.bf16.mxu0 0
    %4434 = vmatmul.mubr.bf16.gmra.mrb[0].mxu0 %v3093
    %v4435 = vpop.f32.mrb[0].mxu0
    %v4436 = vadd.f32 %v4339, %v4435
    %v4437 = vpop.f32.mrb[0].mxu0
    %v4438 = vpop.f32.mrb[0].mxu0
    %v4439 = vadd.f32 %v4342, %v4438
    %v4440 = vpop.f32.mrb[0].mxu0
    %4441 = vmatprep.mubr.bf16.mxu0 0
    %4442 = vmatmul.mubr.bf16.gmra.mrb[0].mxu0 %v3096
    %v4443 = vpop.f32.mrb[0].mxu0
    %v4444 = vadd.f32 %v4347, %v4443
    %v4445 = vpop.f32.mrb[0].mxu0
    %v4446 = vpop.f32.mrb[0].mxu0
    %v4447 = vadd.f32 %v4350, %v4446
    %v4448 = vpop.f32.mrb[0].mxu0
    %4449 = vmatprep.mubr.bf16.mxu0 0
    %4450 = vmatmul.mubr.bf16.gmra.mrb[0].mxu0 %v3099
    %v4451 = vpop.f32.mrb[0].mxu0
    %v4452 = vadd.f32 %v4355, %v4451
    %v4453 = vpop.f32.mrb[0].mxu0
    %v4454 = vpop.f32.mrb[0].mxu0
    %v4455 = vadd.f32 %v4358, %v4454
    %v4456 = vpop.f32.mrb[0].mxu0
    %4457 = vdwg.mxu0
    %v4458 = vld [vmem:[#allocation5] sm:$0xff]
    %v4459 = vld [vmem:[#allocation5 + $0x8] sm:$0xff]
    %v4460 = vld [vmem:[#allocation5 + $0x10] sm:$0xff]
    %v4461 = vld [vmem:[#allocation5 + $0x18] sm:$0xff]
    %v4462 = vld [vmem:[#allocation5 + $0x20] sm:$0xff]
    %v4463 = vld [vmem:[#allocation5 + $0x28] sm:$0xff]
    %v4464 = vld [vmem:[#allocation5 + $0x30] sm:$0xff]
    %v4465 = vld [vmem:[#allocation5 + $0x38] sm:$0xff]
    %v4466 = vld [vmem:[#allocation5 + $0x40] sm:$0xff]
    %v4467 = vld [vmem:[#allocation5 + $0x48] sm:$0xff]
    %v4468 = vld [vmem:[#allocation5 + $0x50] sm:$0xff]
    %v4469 = vld [vmem:[#allocation5 + $0x58] sm:$0xff]
    %v4470 = vld [vmem:[#allocation5 + $0x60] sm:$0xff]
    %v4471 = vld [vmem:[#allocation5 + $0x68] sm:$0xff]
    %v4472 = vld [vmem:[#allocation5 + $0x70] sm:$0xff]
    %v4473 = vld [vmem:[#allocation5 + $0x78] sm:$0xff]
    %v4474 = vld [vmem:[#allocation14] sm:$0xff]
    %v4475 = vld [vmem:[#allocation14 + $0x8] sm:$0xff]
    %v4476 = vld [vmem:[#allocation14 + $0x10] sm:$0xff]
    %v4477 = vld [vmem:[#allocation14 + $0x18] sm:$0xff]
    %v4478 = vld [vmem:[#allocation14 + $0x20] sm:$0xff]
    %v4479 = vld [vmem:[#allocation14 + $0x28] sm:$0xf]
    %v4480 = vld [vmem:[#allocation14 + $0x2c] sm:$0xff]
    %v4481 = vld [vmem:[#allocation14 + $0x34] sm:$0xff]
    %v4482 = vld [vmem:[#allocation14 + $0x3c] sm:$0xff]
    %v4483 = vld [vmem:[#allocation14 + $0x44] sm:$0xff]
    %v4484 = vld [vmem:[#allocation14 + $0x4c] sm:$0xff]
    %v4485 = vld [vmem:[#allocation14 + $0x54] sm:$0xf]
    %v4486 = vld [vmem:[#allocation14 + $0x58] sm:$0xff]
    %v4487 = vld [vmem:[#allocation14 + $0x60] sm:$0xff]
    %v4488 = vld [vmem:[#allocation14 + $0x68] sm:$0xff]
    %v4489 = vld [vmem:[#allocation14 + $0x70] sm:$0xff]
    %v4490 = vld [vmem:[#allocation14 + $0x78] sm:$0xff]
    %v4491 = vld [vmem:[#allocation14 + $0x80] sm:$0xf]
    %v4492 = vld [vmem:[#allocation14 + $0x84] sm:$0xff]
    %v4493 = vld [vmem:[#allocation14 + $0x8c] sm:$0xff]
    %v4494 = vld [vmem:[#allocation14 + $0x94] sm:$0xff]
    %v4495 = vld [vmem:[#allocation14 + $0x9c] sm:$0xff]
    %v4496 = vld [vmem:[#allocation14 + $0xa4] sm:$0xff]
    %v4497 = vld [vmem:[#allocation14 + $0xac] sm:$0xf]
    %v4498 = vld [vmem:[#allocation14 + $0xb0] sm:$0xff]
    %v4499 = vld [vmem:[#allocation14 + $0xb8] sm:$0xff]
    %v4500 = vld [vmem:[#allocation14 + $0xc0] sm:$0xff]
    %v4501 = vld [vmem:[#allocation14 + $0xc8] sm:$0xff]
    %v4502 = vld [vmem:[#allocation14 + $0xd0] sm:$0xff]
    %v4503 = vld [vmem:[#allocation14 + $0xd8] sm:$0xf]
    %v4504 = vld [vmem:[#allocation14 + $0xdc] sm:$0xff]
    %v4505 = vld [vmem:[#allocation14 + $0xe4] sm:$0xff]
    %v4506 = vld [vmem:[#allocation14 + $0xec] sm:$0xff]
    %v4507 = vld [vmem:[#allocation14 + $0xf4] sm:$0xff]
    %v4508 = vld [vmem:[#allocation14 + $0xfc] sm:$0xff]
    %v4509 = vld [vmem:[#allocation14 + $0x104] sm:$0xf]
    %v4510 = vld [vmem:[#allocation14 + $0x108] sm:$0xff]
    %v4511 = vld [vmem:[#allocation14 + $0x110] sm:$0xff]
    %v4512 = vld [vmem:[#allocation14 + $0x118] sm:$0xff]
    %v4513 = vld [vmem:[#allocation14 + $0x120] sm:$0xff]
    %v4514 = vld [vmem:[#allocation14 + $0x128] sm:$0xff]
    %v4515 = vld [vmem:[#allocation14 + $0x130] sm:$0xf]
    %v4516 = vld [vmem:[#allocation14 + $0x134] sm:$0xff]
    %v4517 = vld [vmem:[#allocation14 + $0x13c] sm:$0xff]
    %v4518 = vld [vmem:[#allocation14 + $0x144] sm:$0xff]
    %v4519 = vld [vmem:[#allocation14 + $0x14c] sm:$0xff]
    %v4520 = vld [vmem:[#allocation14 + $0x154] sm:$0xff]
    %v4521 = vld [vmem:[#allocation14 + $0x15c] sm:$0xf]
    %v4522 = vld [vmem:[#allocation14 + $0x160] sm:$0xff]
    %v4523 = vld [vmem:[#allocation14 + $0x168] sm:$0xff]
    %v4524 = vld [vmem:[#allocation14 + $0x170] sm:$0xff]
    %v4525 = vld [vmem:[#allocation14 + $0x178] sm:$0xff]
    %v4526 = vld [vmem:[#allocation14 + $0x180] sm:$0xff]
    %v4527 = vld [vmem:[#allocation14 + $0x188] sm:$0xf]
    %v4528 = vld [vmem:[#allocation14 + $0x18c] sm:$0xff]
    %v4529 = vld [vmem:[#allocation14 + $0x194] sm:$0xff]
    %v4530 = vld [vmem:[#allocation14 + $0x19c] sm:$0xff]
    %v4531 = vld [vmem:[#allocation14 + $0x1a4] sm:$0xff]
    %v4532 = vld [vmem:[#allocation14 + $0x1ac] sm:$0xff]
    %v4533 = vld [vmem:[#allocation14 + $0x1b4] sm:$0xf]
    %v4534 = vld [vmem:[#allocation14 + $0x1b8] sm:$0xff]
    %v4535 = vld [vmem:[#allocation14 + $0x1c0] sm:$0xff]
    %v4536 = vld [vmem:[#allocation14 + $0x1c8] sm:$0xff]
    %v4537 = vld [vmem:[#allocation14 + $0x1d0] sm:$0xff]
    %v4538 = vld [vmem:[#allocation14 + $0x1d8] sm:$0xff]
    %v4539 = vld [vmem:[#allocation14 + $0x1e0] sm:$0xf]
    %v4540 = vld [vmem:[#allocation14 + $0x1e4] sm:$0xff]
    %v4541 = vld [vmem:[#allocation14 + $0x1ec] sm:$0xff]
    %v4542 = vld [vmem:[#allocation14 + $0x1f4] sm:$0xff]
    %v4543 = vld [vmem:[#allocation14 + $0x1fc] sm:$0xff]
    %v4544 = vld [vmem:[#allocation14 + $0x204] sm:$0xff]
    %v4545 = vld [vmem:[#allocation14 + $0x20c] sm:$0xf]
    %v4546 = vld [vmem:[#allocation14 + $0x210] sm:$0xff]
    %v4547 = vld [vmem:[#allocation14 + $0x218] sm:$0xff]
    %v4548 = vld [vmem:[#allocation14 + $0x220] sm:$0xff]
    %v4549 = vld [vmem:[#allocation14 + $0x228] sm:$0xff]
    %v4550 = vld [vmem:[#allocation14 + $0x230] sm:$0xff]
    %v4551 = vld [vmem:[#allocation14 + $0x238] sm:$0xf]
    %v4552 = vld [vmem:[#allocation14 + $0x23c] sm:$0xff]
    %v4553 = vld [vmem:[#allocation14 + $0x244] sm:$0xff]
    %v4554 = vld [vmem:[#allocation14 + $0x24c] sm:$0xff]
    %v4555 = vld [vmem:[#allocation14 + $0x254] sm:$0xff]
    %v4556 = vld [vmem:[#allocation14 + $0x25c] sm:$0xff]
    %v4557 = vld [vmem:[#allocation14 + $0x264] sm:$0xf]
    %v4558 = vld [vmem:[#allocation14 + $0x268] sm:$0xff]
    %v4559 = vld [vmem:[#allocation14 + $0x270] sm:$0xff]
    %v4560 = vld [vmem:[#allocation14 + $0x278] sm:$0xff]
    %v4561 = vld [vmem:[#allocation14 + $0x280] sm:$0xff]
    %v4562 = vld [vmem:[#allocation14 + $0x288] sm:$0xff]
    %v4563 = vld [vmem:[#allocation14 + $0x290] sm:$0xf]
    %v4564 = vld [vmem:[#allocation14 + $0x294] sm:$0xff]
    %v4565 = vld [vmem:[#allocation14 + $0x29c] sm:$0xff]
    %v4566 = vld [vmem:[#allocation14 + $0x2a4] sm:$0xff]
    %v4567 = vld [vmem:[#allocation14 + $0x2ac] sm:$0xff]
    %v4568 = vld [vmem:[#allocation14 + $0x2b4] sm:$0xff]
    %v4569 = vld [vmem:[#allocation14 + $0x2bc] sm:$0xf]
    %v4570 = vld [vmem:[#allocation14 + $0x2c0] sm:$0xff]
    %v4571 = vld [vmem:[#allocation14 + $0x2c8] sm:$0xff]
    %v4572 = vld [vmem:[#allocation14 + $0x2d0] sm:$0xff]
    %v4573 = vld [vmem:[#allocation14 + $0x2d8] sm:$0xff]
    %v4574 = vld [vmem:[#allocation14 + $0x2e0] sm:$0xff]
    %v4575 = vld [vmem:[#allocation14 + $0x2e8] sm:$0xf]
    %v4576 = vld [vmem:[#allocation14 + $0x2ec] sm:$0xff]
    %v4577 = vld [vmem:[#allocation14 + $0x2f4] sm:$0xff]
    %v4578 = vld [vmem:[#allocation14 + $0x2fc] sm:$0xff]
    %v4579 = vld [vmem:[#allocation14 + $0x304] sm:$0xff]
    %v4580 = vld [vmem:[#allocation14 + $0x30c] sm:$0xff]
    %v4581 = vld [vmem:[#allocation14 + $0x314] sm:$0xf]
    %v4598 = vunpack.c.l.b16 %v4458
    %v4599 = vunpack.c.h.b16 %v4458
    %v4600 = vunpack.c.l.b16 %v4459
    %v4601 = vunpack.c.h.b16 %v4459
    %v4602 = vunpack.c.l.b16 %v4460
    %v4603 = vunpack.c.h.b16 %v4460
    %v4604 = vunpack.c.l.b16 %v4461
    %v4605 = vunpack.c.h.b16 %v4461
    %v4606 = vunpack.c.l.b16 %v4462
    %v4607 = vunpack.c.h.b16 %v4462
    %v4608 = vunpack.c.l.b16 %v4463
    %v4609 = vunpack.c.h.b16 %v4463
    %v4610 = vunpack.c.l.b16 %v4464
    %v4611 = vunpack.c.h.b16 %v4464
    %v4612 = vunpack.c.l.b16 %v4465
    %v4613 = vunpack.c.h.b16 %v4465
    %v4614 = vunpack.c.l.b16 %v4466
    %v4615 = vunpack.c.h.b16 %v4466
    %v4616 = vunpack.c.l.b16 %v4467
    %v4617 = vunpack.c.h.b16 %v4467
    %v4618 = vunpack.c.l.b16 %v4468
    %v4619 = vunpack.c.h.b16 %v4468
    %v4620 = vunpack.c.l.b16 %v4469
    %v4621 = vunpack.c.h.b16 %v4469
    %v4622 = vunpack.c.l.b16 %v4470
    %v4623 = vunpack.c.h.b16 %v4470
    %v4624 = vunpack.c.l.b16 %v4471
    %v4625 = vunpack.c.h.b16 %v4471
    %v4626 = vunpack.c.l.b16 %v4472
    %v4627 = vunpack.c.h.b16 %v4472
    %v4628 = vunpack.c.l.b16 %v4473
    %v4629 = vunpack.c.h.b16 %v4473
    %v4630 = vpack.c.b16 %v4600, %v4598
    %v4631 = vpack.c.b16 %v4601, %v4599
    %v4632 = vpack.c.b16 %v4604, %v4602
    %v4633 = vpack.c.b16 %v4605, %v4603
    %v4634 = vpack.c.b16 %v4608, %v4606
    %v4635 = vpack.c.b16 %v4609, %v4607
    %v4636 = vpack.c.b16 %v4612, %v4610
    %v4637 = vpack.c.b16 %v4613, %v4611
    %v4638 = vpack.c.b16 %v4616, %v4614
    %v4639 = vpack.c.b16 %v4617, %v4615
    %v4640 = vpack.c.b16 %v4620, %v4618
    %v4641 = vpack.c.b16 %v4621, %v4619
    %v4642 = vpack.c.b16 %v4624, %v4622
    %v4643 = vpack.c.b16 %v4625, %v4623
    %v4644 = vpack.c.b16 %v4628, %v4626
    %v4645 = vpack.c.b16 %v4629, %v4627
    %v4762 = vunpack.c.l.b16 %v4474
    %v4763 = vunpack.c.h.b16 %v4474
    %v4764 = vunpack.c.l.b16 %v4475
    %v4765 = vunpack.c.h.b16 %v4475
    %v4766 = vunpack.c.l.b16 %v4476
    %v4767 = vunpack.c.h.b16 %v4476
    %v4768 = vunpack.c.l.b16 %v4477
    %v4769 = vunpack.c.h.b16 %v4477
    %v4770 = vunpack.c.l.b16 %v4478
    %v4771 = vunpack.c.h.b16 %v4478
    %v4772 = vunpack.c.l.b16 %v4479
    %v4773 = vunpack.c.l.b16 %v4480
    %v4774 = vunpack.c.h.b16 %v4480
    %v4775 = vunpack.c.l.b16 %v4481
    %v4776 = vunpack.c.h.b16 %v4481
    %v4777 = vunpack.c.l.b16 %v4482
    %v4778 = vunpack.c.h.b16 %v4482
    %v4779 = vunpack.c.l.b16 %v4483
    %v4780 = vunpack.c.h.b16 %v4483
    %v4781 = vunpack.c.l.b16 %v4484
    %v4782 = vunpack.c.h.b16 %v4484
    %v4783 = vunpack.c.l.b16 %v4485
    %v4784 = vunpack.c.l.b16 %v4486
    %v4785 = vunpack.c.h.b16 %v4486
    %v4786 = vunpack.c.l.b16 %v4487
    %v4787 = vunpack.c.h.b16 %v4487
    %v4788 = vunpack.c.l.b16 %v4488
    %v4789 = vunpack.c.h.b16 %v4488
    %v4790 = vunpack.c.l.b16 %v4489
    %v4791 = vunpack.c.h.b16 %v4489
    %v4792 = vunpack.c.l.b16 %v4490
    %v4793 = vunpack.c.h.b16 %v4490
    %v4794 = vunpack.c.l.b16 %v4491
    %v4795 = vunpack.c.l.b16 %v4492
    %v4796 = vunpack.c.h.b16 %v4492
    %v4797 = vunpack.c.l.b16 %v4493
    %v4798 = vunpack.c.h.b16 %v4493
    %v4799 = vunpack.c.l.b16 %v4494
    %v4800 = vunpack.c.h.b16 %v4494
    %v4801 = vunpack.c.l.b16 %v4495
    %v4802 = vunpack.c.h.b16 %v4495
    %v4803 = vunpack.c.l.b16 %v4496
    %v4804 = vunpack.c.h.b16 %v4496
    %v4805 = vunpack.c.l.b16 %v4497
    %v4806 = vunpack.c.l.b16 %v4498
    %v4807 = vunpack.c.h.b16 %v4498
    %v4808 = vunpack.c.l.b16 %v4499
    %v4809 = vunpack.c.h.b16 %v4499
    %v4810 = vunpack.c.l.b16 %v4500
    %v4811 = vunpack.c.h.b16 %v4500
    %v4812 = vunpack.c.l.b16 %v4501
    %v4813 = vunpack.c.h.b16 %v4501
    %v4814 = vunpack.c.l.b16 %v4502
    %v4815 = vunpack.c.h.b16 %v4502
    %v4816 = vunpack.c.l.b16 %v4503
    %v4817 = vunpack.c.l.b16 %v4504
    %v4818 = vunpack.c.h.b16 %v4504
    %v4819 = vunpack.c.l.b16 %v4505
    %v4820 = vunpack.c.h.b16 %v4505
    %v4821 = vunpack.c.l.b16 %v4506
    %v4822 = vunpack.c.h.b16 %v4506
    %v4823 = vunpack.c.l.b16 %v4507
    %v4824 = vunpack.c.h.b16 %v4507
    %v4825 = vunpack.c.l.b16 %v4508
    %v4826 = vunpack.c.h.b16 %v4508
    %v4827 = vunpack.c.l.b16 %v4509
    %v4828 = vunpack.c.l.b16 %v4510
    %v4829 = vunpack.c.h.b16 %v4510
    %v4830 = vunpack.c.l.b16 %v4511
    %v4831 = vunpack.c.h.b16 %v4511
    %v4832 = vunpack.c.l.b16 %v4512
    %v4833 = vunpack.c.h.b16 %v4512
    %v4834 = vunpack.c.l.b16 %v4513
    %v4835 = vunpack.c.h.b16 %v4513
    %v4836 = vunpack.c.l.b16 %v4514
    %v4837 = vunpack.c.h.b16 %v4514
    %v4838 = vunpack.c.l.b16 %v4515
    %v4839 = vunpack.c.l.b16 %v4516
    %v4840 = vunpack.c.h.b16 %v4516
    %v4841 = vunpack.c.l.b16 %v4517
    %v4842 = vunpack.c.h.b16 %v4517
    %v4843 = vunpack.c.l.b16 %v4518
    %v4844 = vunpack.c.h.b16 %v4518
    %v4845 = vunpack.c.l.b16 %v4519
    %v4846 = vunpack.c.h.b16 %v4519
    %v4847 = vunpack.c.l.b16 %v4520
    %v4848 = vunpack.c.h.b16 %v4520
    %v4849 = vunpack.c.l.b16 %v4521
    %v4850 = vunpack.c.l.b16 %v4522
    %v4851 = vunpack.c.h.b16 %v4522
    %v4852 = vunpack.c.l.b16 %v4523
    %v4853 = vunpack.c.h.b16 %v4523
    %v4854 = vunpack.c.l.b16 %v4524
    %v4855 = vunpack.c.h.b16 %v4524
    %v4856 = vunpack.c.l.b16 %v4525
    %v4857 = vunpack.c.h.b16 %v4525
    %v4858 = vunpack.c.l.b16 %v4526
    %v4859 = vunpack.c.h.b16 %v4526
    %v4860 = vunpack.c.l.b16 %v4527
    %v4861 = vunpack.c.l.b16 %v4528
    %v4862 = vunpack.c.h.b16 %v4528
    %v4863 = vunpack.c.l.b16 %v4529
    %v4864 = vunpack.c.h.b16 %v4529
    %v4865 = vunpack.c.l.b16 %v4530
    %v4866 = vunpack.c.h.b16 %v4530
    %v4867 = vunpack.c.l.b16 %v4531
    %v4868 = vunpack.c.h.b16 %v4531
    %v4869 = vunpack.c.l.b16 %v4532
    %v4870 = vunpack.c.h.b16 %v4532
    %v4871 = vunpack.c.l.b16 %v4533
    %v4872 = vunpack.c.l.b16 %v4534
    %v4873 = vunpack.c.h.b16 %v4534
    %v4874 = vunpack.c.l.b16 %v4535
    %v4875 = vunpack.c.h.b16 %v4535
    %v4876 = vunpack.c.l.b16 %v4536
    %v4877 = vunpack.c.h.b16 %v4536
    %v4878 = vunpack.c.l.b16 %v4537
    %v4879 = vunpack.c.h.b16 %v4537
    %v4880 = vunpack.c.l.b16 %v4538
    %v4881 = vunpack.c.h.b16 %v4538
    %v4882 = vunpack.c.l.b16 %v4539
    %v4883 = vunpack.c.l.b16 %v4540
    %v4884 = vunpack.c.h.b16 %v4540
    %v4885 = vunpack.c.l.b16 %v4541
    %v4886 = vunpack.c.h.b16 %v4541
    %v4887 = vunpack.c.l.b16 %v4542
    %v4888 = vunpack.c.h.b16 %v4542
    %v4889 = vunpack.c.l.b16 %v4543
    %v4890 = vunpack.c.h.b16 %v4543
    %v4891 = vunpack.c.l.b16 %v4544
    %v4892 = vunpack.c.h.b16 %v4544
    %v4893 = vunpack.c.l.b16 %v4545
    %v4894 = vunpack.c.l.b16 %v4546
    %v4895 = vunpack.c.h.b16 %v4546
    %v4896 = vunpack.c.l.b16 %v4547
    %v4897 = vunpack.c.h.b16 %v4547
    %v4898 = vunpack.c.l.b16 %v4548
    %v4899 = vunpack.c.h.b16 %v4548
    %v4900 = vunpack.c.l.b16 %v4549
    %v4901 = vunpack.c.h.b16 %v4549
    %v4902 = vunpack.c.l.b16 %v4550
    %v4903 = vunpack.c.h.b16 %v4550
    %v4904 = vunpack.c.l.b16 %v4551
    %v4905 = vunpack.c.l.b16 %v4552
    %v4906 = vunpack.c.h.b16 %v4552
    %v4907 = vunpack.c.l.b16 %v4553
    %v4908 = vunpack.c.h.b16 %v4553
    %v4909 = vunpack.c.l.b16 %v4554
    %v4910 = vunpack.c.h.b16 %v4554
    %v4911 = vunpack.c.l.b16 %v4555
    %v4912 = vunpack.c.h.b16 %v4555
    %v4913 = vunpack.c.l.b16 %v4556
    %v4914 = vunpack.c.h.b16 %v4556
    %v4915 = vunpack.c.l.b16 %v4557
    %v4916 = vunpack.c.l.b16 %v4558
    %v4917 = vunpack.c.h.b16 %v4558
    %v4918 = vunpack.c.l.b16 %v4559
    %v4919 = vunpack.c.h.b16 %v4559
    %v4920 = vunpack.c.l.b16 %v4560
    %v4921 = vunpack.c.h.b16 %v4560
    %v4922 = vunpack.c.l.b16 %v4561
    %v4923 = vunpack.c.h.b16 %v4561
    %v4924 = vunpack.c.l.b16 %v4562
    %v4925 = vunpack.c.h.b16 %v4562
    %v4926 = vunpack.c.l.b16 %v4563
    %v4927 = vunpack.c.l.b16 %v4564
    %v4928 = vunpack.c.h.b16 %v4564
    %v4929 = vunpack.c.l.b16 %v4565
    %v4930 = vunpack.c.h.b16 %v4565
    %v4931 = vunpack.c.l.b16 %v4566
    %v4932 = vunpack.c.h.b16 %v4566
    %v4933 = vunpack.c.l.b16 %v4567
    %v4934 = vunpack.c.h.b16 %v4567
    %v4935 = vunpack.c.l.b16 %v4568
    %v4936 = vunpack.c.h.b16 %v4568
    %v4937 = vunpack.c.l.b16 %v4569
    %v4938 = vunpack.c.l.b16 %v4570
    %v4939 = vunpack.c.h.b16 %v4570
    %v4940 = vunpack.c.l.b16 %v4571
    %v4941 = vunpack.c.h.b16 %v4571
    %v4942 = vunpack.c.l.b16 %v4572
    %v4943 = vunpack.c.h.b16 %v4572
    %v4944 = vunpack.c.l.b16 %v4573
    %v4945 = vunpack.c.h.b16 %v4573
    %v4946 = vunpack.c.l.b16 %v4574
    %v4947 = vunpack.c.h.b16 %v4574
    %v4948 = vunpack.c.l.b16 %v4575
    %v4949 = vunpack.c.l.b16 %v4576
    %v4950 = vunpack.c.h.b16 %v4576
    %v4951 = vunpack.c.l.b16 %v4577
    %v4952 = vunpack.c.h.b16 %v4577
    %v4953 = vunpack.c.l.b16 %v4578
    %v4954 = vunpack.c.h.b16 %v4578
    %v4955 = vunpack.c.l.b16 %v4579
    %v4956 = vunpack.c.h.b16 %v4579
    %v4957 = vunpack.c.l.b16 %v4580
    %v4958 = vunpack.c.h.b16 %v4580
    %v4959 = vunpack.c.l.b16 %v4581
    %v4960 = vpack.c.b16 %v4773, %v4762
    %v4961 = vpack.c.b16 %v4774, %v4763
    %v4962 = vpack.c.b16 %v4775, %v4764
    %v4963 = vpack.c.b16 %v4776, %v4765
    %v4964 = vpack.c.b16 %v4777, %v4766
    %v4965 = vpack.c.b16 %v4778, %v4767
    %v4966 = vpack.c.b16 %v4779, %v4768
    %v4967 = vpack.c.b16 %v4780, %v4769
    %v4968 = vpack.c.b16 %v4781, %v4770
    %v4969 = vpack.c.b16 %v4782, %v4771
    %v4970 = vpack.c.b16 %v4783, %v4772
    %v4971 = vpack.c.b16 %v4795, %v4784
    %v4972 = vpack.c.b16 %v4796, %v4785
    %v4973 = vpack.c.b16 %v4797, %v4786
    %v4974 = vpack.c.b16 %v4798, %v4787
    %v4975 = vpack.c.b16 %v4799, %v4788
    %v4976 = vpack.c.b16 %v4800, %v4789
    %v4977 = vpack.c.b16 %v4801, %v4790
    %v4978 = vpack.c.b16 %v4802, %v4791
    %v4979 = vpack.c.b16 %v4803, %v4792
    %v4980 = vpack.c.b16 %v4804, %v4793
    %v4981 = vpack.c.b16 %v4805, %v4794
    %v4982 = vpack.c.b16 %v4817, %v4806
    %v4983 = vpack.c.b16 %v4818, %v4807
    %v4984 = vpack.c.b16 %v4819, %v4808
    %v4985 = vpack.c.b16 %v4820, %v4809
    %v4986 = vpack.c.b16 %v4821, %v4810
    %v4987 = vpack.c.b16 %v4822, %v4811
    %v4988 = vpack.c.b16 %v4823, %v4812
    %v4989 = vpack.c.b16 %v4824, %v4813
    %v4990 = vpack.c.b16 %v4825, %v4814
    %v4991 = vpack.c.b16 %v4826, %v4815
    %v4992 = vpack.c.b16 %v4827, %v4816
    %v4993 = vpack.c.b16 %v4839, %v4828
    %v4994 = vpack.c.b16 %v4840, %v4829
    %v4995 = vpack.c.b16 %v4841, %v4830
    %v4996 = vpack.c.b16 %v4842, %v4831
    %v4997 = vpack.c.b16 %v4843, %v4832
    %v4998 = vpack.c.b16 %v4844, %v4833
    %v4999 = vpack.c.b16 %v4845, %v4834
    %v5000 = vpack.c.b16 %v4846, %v4835
    %v5001 = vpack.c.b16 %v4847, %v4836
    %v5002 = vpack.c.b16 %v4848, %v4837
    %v5003 = vpack.c.b16 %v4849, %v4838
    %v5004 = vpack.c.b16 %v4861, %v4850
    %v5005 = vpack.c.b16 %v4862, %v4851
    %v5006 = vpack.c.b16 %v4863, %v4852
    %v5007 = vpack.c.b16 %v4864, %v4853
    %v5008 = vpack.c.b16 %v4865, %v4854
    %v5009 = vpack.c.b16 %v4866, %v4855
    %v5010 = vpack.c.b16 %v4867, %v4856
    %v5011 = vpack.c.b16 %v4868, %v4857
    %v5012 = vpack.c.b16 %v4869, %v4858
    %v5013 = vpack.c.b16 %v4870, %v4859
    %v5014 = vpack.c.b16 %v4871, %v4860
    %v5015 = vpack.c.b16 %v4883, %v4872
    %v5016 = vpack.c.b16 %v4884, %v4873
    %v5017 = vpack.c.b16 %v4885, %v4874
    %v5018 = vpack.c.b16 %v4886, %v4875
    %v5019 = vpack.c.b16 %v4887, %v4876
    %v5020 = vpack.c.b16 %v4888, %v4877
    %v5021 = vpack.c.b16 %v4889, %v4878
    %v5022 = vpack.c.b16 %v4890, %v4879
    %v5023 = vpack.c.b16 %v4891, %v4880
    %v5024 = vpack.c.b16 %v4892, %v4881
    %v5025 = vpack.c.b16 %v4893, %v4882
    %v5026 = vpack.c.b16 %v4905, %v4894
    %v5027 = vpack.c.b16 %v4906, %v4895
    %v5028 = vpack.c.b16 %v4907, %v4896
    %v5029 = vpack.c.b16 %v4908, %v4897
    %v5030 = vpack.c.b16 %v4909, %v4898
    %v5031 = vpack.c.b16 %v4910, %v4899
    %v5032 = vpack.c.b16 %v4911, %v4900
    %v5033 = vpack.c.b16 %v4912, %v4901
    %v5034 = vpack.c.b16 %v4913, %v4902
    %v5035 = vpack.c.b16 %v4914, %v4903
    %v5036 = vpack.c.b16 %v4915, %v4904
    %v5037 = vpack.c.b16 %v4927, %v4916
    %v5038 = vpack.c.b16 %v4928, %v4917
    %v5039 = vpack.c.b16 %v4929, %v4918
    %v5040 = vpack.c.b16 %v4930, %v4919
    %v5041 = vpack.c.b16 %v4931, %v4920
    %v5042 = vpack.c.b16 %v4932, %v4921
    %v5043 = vpack.c.b16 %v4933, %v4922
    %v5044 = vpack.c.b16 %v4934, %v4923
    %v5045 = vpack.c.b16 %v4935, %v4924
    %v5046 = vpack.c.b16 %v4936, %v4925
    %v5047 = vpack.c.b16 %v4937, %v4926
    %v5048 = vpack.c.b16 %v4949, %v4938
    %v5049 = vpack.c.b16 %v4950, %v4939
    %v5050 = vpack.c.b16 %v4951, %v4940
    %v5051 = vpack.c.b16 %v4952, %v4941
    %v5052 = vpack.c.b16 %v4953, %v4942
    %v5053 = vpack.c.b16 %v4954, %v4943
    %v5054 = vpack.c.b16 %v4955, %v4944
    %v5055 = vpack.c.b16 %v4956, %v4945
    %v5056 = vpack.c.b16 %v4957, %v4946
    %v5057 = vpack.c.b16 %v4958, %v4947
    %v5058 = vpack.c.b16 %v4959, %v4948
    %v5159 = vsel %vm247, %v4631, 0
    %v5162 = vsel %vm247, %v4633, 0
    %v5165 = vsel %vm247, %v4635, 0
    %v5168 = vsel %vm247, %v4637, 0
    %v5171 = vsel %vm247, %v4639, 0
    %v5174 = vsel %vm247, %v4641, 0
    %v5177 = vsel %vm247, %v4643, 0
    %v5180 = vsel %vm247, %v4645, 0
    %5182 = vmatprep.subr.bf16.mxu0 %v4961
    %5183 = vmatpush1.bf16.msra.mxu0 %v4960
    %5184 = vmatprep.subr.bf16.mxu0 %v4972
    %5185 = vmatpush1.bf16.msra.mxu0 %v4971
    %5186 = vmatprep.subr.bf16.mxu0 %v4983
    %5187 = vmatpush1.bf16.msra.mxu0 %v4982
    %5188 = vmatprep.subr.bf16.mxu0 %v4994
    %5189 = vmatpush1.bf16.msra.mxu0 %v4993
    %5190 = vmatprep.subr.bf16.mxu0 %v5005
    %5191 = vmatpush1.bf16.msra.mxu0 %v5004
    %5192 = vmatprep.subr.bf16.mxu0 %v5016
    %5193 = vmatpush1.bf16.msra.mxu0 %v5015
    %5194 = vmatprep.subr.bf16.mxu0 %v5027
    %5195 = vmatpush1.bf16.msra.mxu0 %v5026
    %5196 = vmatprep.subr.bf16.mxu0 %v5038
    %5197 = vmatpush1.bf16.msra.mxu0 %v5037
    %5198 = vmatprep.subr.bf16.mxu0 %v5049
    %5199 = vmatpush1.bf16.msra.mxu0 %v5048
    %5200 = vmatprep.subr.bf16.mxu0 0
    %5201 = vmatpush1.bf16.msra.mxu0 0
    %5202 = vmatprep.subr.bf16.mxu0 0
    %5203 = vmatpush1.bf16.msra.mxu0 0
    %5204 = vmatprep.subr.bf16.mxu0 0
    %5205 = vmatpush1.bf16.msra.mxu0 0
    %5206 = vmatprep.subr.bf16.mxu0 0
    %5207 = vmatpush1.bf16.msra.mxu0 0
    %5208 = vmatprep.subr.bf16.mxu0 0
    %5209 = vmatpush1.bf16.msra.mxu0 0
    %5210 = vmatprep.subr.bf16.mxu0 0
    %5211 = vmatpush1.bf16.msra.mxu0 0
    %5212 = vmatprep.subr.bf16.mxu0 0
    %5213 = vmatpush1.bf16.msra.mxu0 0
    %5214 = vmatprep.mubr.bf16.mxu0 %v5159
    %5215 = vmatmul.mubr.bf16.gmra.mrb[0].mxu0 %v4630
    %v5216 = vpop.f32.mrb[0].mxu0
    %v5217 = vadd.f32 0.0, %v5216
    %v5218 = vpop.f32.mrb[0].mxu0
    %v5219 = vadd.f32 0.0, %v5218
    %v5220 = vpop.f32.mrb[0].mxu0
    %v5221 = vadd.f32 0.0, %v5220
    %v5222 = vpop.f32.mrb[0].mxu0
    %v5223 = vadd.f32 0.0, %v5222
    %5224 = vmatprep.mubr.bf16.mxu0 %v5162
    %5225 = vmatmul.mubr.bf16.gmra.mrb[0].mxu0 %v4632
    %v5226 = vpop.f32.mrb[0].mxu0
    %v5227 = vadd.f32 0.0, %v5226
    %v5228 = vpop.f32.mrb[0].mxu0
    %v5229 = vadd.f32 0.0, %v5228
    %v5230 = vpop.f32.mrb[0].mxu0
    %v5231 = vadd.f32 0.0, %v5230
    %v5232 = vpop.f32.mrb[0].mxu0
    %v5233 = vadd.f32 0.0, %v5232
    %5234 = vmatprep.mubr.bf16.mxu0 %v5165
    %5235 = vmatmul.mubr.bf16.gmra.mrb[0].mxu0 %v4634
    %v5236 = vpop.f32.mrb[0].mxu0
    %v5237 = vadd.f32 0.0, %v5236
    %v5238 = vpop.f32.mrb[0].mxu0
    %v5239 = vadd.f32 0.0, %v5238
    %v5240 = vpop.f32.mrb[0].mxu0
    %v5241 = vadd.f32 0.0, %v5240
    %v5242 = vpop.f32.mrb[0].mxu0
    %v5243 = vadd.f32 0.0, %v5242
    %5244 = vmatprep.mubr.bf16.mxu0 %v5168
    %5245 = vmatmul.mubr.bf16.gmra.mrb[0].mxu0 %v4636
    %v5246 = vpop.f32.mrb[0].mxu0
    %v5247 = vadd.f32 0.0, %v5246
    %v5248 = vpop.f32.mrb[0].mxu0
    %v5249 = vadd.f32 0.0, %v5248
    %v5250 = vpop.f32.mrb[0].mxu0
    %v5251 = vadd.f32 0.0, %v5250
    %v5252 = vpop.f32.mrb[0].mxu0
    %v5253 = vadd.f32 0.0, %v5252
    %5254 = vmatprep.mubr.bf16.mxu0 %v5171
    %5255 = vmatmul.mubr.bf16.gmra.mrb[0].mxu0 %v4638
    %v5256 = vpop.f32.mrb[0].mxu0
    %v5257 = vadd.f32 0.0, %v5256
    %v5258 = vpop.f32.mrb[0].mxu0
    %v5259 = vadd.f32 0.0, %v5258
    %v5260 = vpop.f32.mrb[0].mxu0
    %v5261 = vadd.f32 0.0, %v5260
    %v5262 = vpop.f32.mrb[0].mxu0
    %v5263 = vadd.f32 0.0, %v5262
    %5264 = vmatprep.mubr.bf16.mxu0 %v5174
    %5265 = vmatmul.mubr.bf16.gmra.mrb[0].mxu0 %v4640
    %v5266 = vpop.f32.mrb[0].mxu0
    %v5267 = vadd.f32 0.0, %v5266
    %v5268 = vpop.f32.mrb[0].mxu0
    %v5269 = vadd.f32 0.0, %v5268
    %v5270 = vpop.f32.mrb[0].mxu0
    %v5271 = vadd.f32 0.0, %v5270
    %v5272 = vpop.f32.mrb[0].mxu0
    %v5273 = vadd.f32 0.0, %v5272
    %5274 = vmatprep.mubr.bf16.mxu0 %v5177
    %5275 = vmatmul.mubr.bf16.gmra.mrb[0].mxu0 %v4642
    %v5276 = vpop.f32.mrb[0].mxu0
    %v5277 = vadd.f32 0.0, %v5276
    %v5278 = vpop.f32.mrb[0].mxu0
    %v5279 = vadd.f32 0.0, %v5278
    %v5280 = vpop.f32.mrb[0].mxu0
    %v5281 = vadd.f32 0.0, %v5280
    %v5282 = vpop.f32.mrb[0].mxu0
    %v5283 = vadd.f32 0.0, %v5282
    %5284 = vmatprep.mubr.bf16.mxu0 %v5180
    %5285 = vmatmul.mubr.bf16.gmra.mrb[0].mxu0 %v4644
    %v5286 = vpop.f32.mrb[0].mxu0
    %v5287 = vadd.f32 0.0, %v5286
    %v5288 = vpop.f32.mrb[0].mxu0
    %v5289 = vadd.f32 0.0, %v5288
    %v5290 = vpop.f32.mrb[0].mxu0
    %v5291 = vadd.f32 0.0, %v5290
    %v5292 = vpop.f32.mrb[0].mxu0
    %v5293 = vadd.f32 0.0, %v5292
    %5294 = vdwg.mxu0
    %5295 = vmatprep.subr.bf16.mxu0 %v4963
    %5296 = vmatpush1.bf16.msra.mxu0 %v4962
    %5297 = vmatprep.subr.bf16.mxu0 %v4974
    %5298 = vmatpush1.bf16.msra.mxu0 %v4973
    %5299 = vmatprep.subr.bf16.mxu0 %v4985
    %5300 = vmatpush1.bf16.msra.mxu0 %v4984
    %5301 = vmatprep.subr.bf16.mxu0 %v4996
    %5302 = vmatpush1.bf16.msra.mxu0 %v4995
    %5303 = vmatprep.subr.bf16.mxu0 %v5007
    %5304 = vmatpush1.bf16.msra.mxu0 %v5006
    %5305 = vmatprep.subr.bf16.mxu0 %v5018
    %5306 = vmatpush1.bf16.msra.mxu0 %v5017
    %5307 = vmatprep.subr.bf16.mxu0 %v5029
    %5308 = vmatpush1.bf16.msra.mxu0 %v5028
    %5309 = vmatprep.subr.bf16.mxu0 %v5040
    %5310 = vmatpush1.bf16.msra.mxu0 %v5039
    %5311 = vmatprep.subr.bf16.mxu0 %v5051
    %5312 = vmatpush1.bf16.msra.mxu0 %v5050
    %5313 = vmatprep.subr.bf16.mxu0 0
    %5314 = vmatpush1.bf16.msra.mxu0 0
    %5315 = vmatprep.subr.bf16.mxu0 0
    %5316 = vmatpush1.bf16.msra.mxu0 0
    %5317 = vmatprep.subr.bf16.mxu0 0
    %5318 = vmatpush1.bf16.msra.mxu0 0
    %5319 = vmatprep.subr.bf16.mxu0 0
    %5320 = vmatpush1.bf16.msra.mxu0 0
    %5321 = vmatprep.subr.bf16.mxu0 0
    %5322 = vmatpush1.bf16.msra.mxu0 0
    %5323 = vmatprep.subr.bf16.mxu0 0
    %5324 = vmatpush1.bf16.msra.mxu0 0
    %5325 = vmatprep.subr.bf16.mxu0 0
    %5326 = vmatpush1.bf16.msra.mxu0 0
    %5327 = vmatprep.mubr.bf16.mxu0 %v5159
    %5328 = vmatmul.mubr.bf16.gmra.mrb[0].mxu0 %v4630
    %v5329 = vpop.f32.mrb[0].mxu0
    %v5330 = vadd.f32 0.0, %v5329
    %v5331 = vpop.f32.mrb[0].mxu0
    %v5332 = vadd.f32 0.0, %v5331
    %v5333 = vpop.f32.mrb[0].mxu0
    %v5334 = vadd.f32 0.0, %v5333
    %v5335 = vpop.f32.mrb[0].mxu0
    %v5336 = vadd.f32 0.0, %v5335
    %5337 = vmatprep.mubr.bf16.mxu0 %v5162
    %5338 = vmatmul.mubr.bf16.gmra.mrb[0].mxu0 %v4632
    %v5339 = vpop.f32.mrb[0].mxu0
    %v5340 = vadd.f32 0.0, %v5339
    %v5341 = vpop.f32.mrb[0].mxu0
    %v5342 = vadd.f32 0.0, %v5341
    %v5343 = vpop.f32.mrb[0].mxu0
    %v5344 = vadd.f32 0.0, %v5343
    %v5345 = vpop.f32.mrb[0].mxu0
    %v5346 = vadd.f32 0.0, %v5345
    %5347 = vmatprep.mubr.bf16.mxu0 %v5165
    %5348 = vmatmul.mubr.bf16.gmra.mrb[0].mxu0 %v4634
    %v5349 = vpop.f32.mrb[0].mxu0
    %v5350 = vadd.f32 0.0, %v5349
    %v5351 = vpop.f32.mrb[0].mxu0
    %v5352 = vadd.f32 0.0, %v5351
    %v5353 = vpop.f32.mrb[0].mxu0
    %v5354 = vadd.f32 0.0, %v5353
    %v5355 = vpop.f32.mrb[0].mxu0
    %v5356 = vadd.f32 0.0, %v5355
    %5357 = vmatprep.mubr.bf16.mxu0 %v5168
    %5358 = vmatmul.mubr.bf16.gmra.mrb[0].mxu0 %v4636
    %v5359 = vpop.f32.mrb[0].mxu0
    %v5360 = vadd.f32 0.0, %v5359
    %v5361 = vpop.f32.mrb[0].mxu0
    %v5362 = vadd.f32 0.0, %v5361
    %v5363 = vpop.f32.mrb[0].mxu0
    %v5364 = vadd.f32 0.0, %v5363
    %v5365 = vpop.f32.mrb[0].mxu0
    %v5366 = vadd.f32 0.0, %v5365
    %5367 = vmatprep.mubr.bf16.mxu0 %v5171
    %5368 = vmatmul.mubr.bf16.gmra.mrb[0].mxu0 %v4638
    %v5369 = vpop.f32.mrb[0].mxu0
    %v5370 = vadd.f32 0.0, %v5369
    %v5371 = vpop.f32.mrb[0].mxu0
    %v5372 = vadd.f32 0.0, %v5371
    %v5373 = vpop.f32.mrb[0].mxu0
    %v5374 = vadd.f32 0.0, %v5373
    %v5375 = vpop.f32.mrb[0].mxu0
    %v5376 = vadd.f32 0.0, %v5375
    %5377 = vmatprep.mubr.bf16.mxu0 %v5174
    %5378 = vmatmul.mubr.bf16.gmra.mrb[0].mxu0 %v4640
    %v5379 = vpop.f32.mrb[0].mxu0
    %v5380 = vadd.f32 0.0, %v5379
    %v5381 = vpop.f32.mrb[0].mxu0
    %v5382 = vadd.f32 0.0, %v5381
    %v5383 = vpop.f32.mrb[0].mxu0
    %v5384 = vadd.f32 0.0, %v5383
    %v5385 = vpop.f32.mrb[0].mxu0
    %v5386 = vadd.f32 0.0, %v5385
    %5387 = vmatprep.mubr.bf16.mxu0 %v5177
    %5388 = vmatmul.mubr.bf16.gmra.mrb[0].mxu0 %v4642
    %v5389 = vpop.f32.mrb[0].mxu0
    %v5390 = vadd.f32 0.0, %v5389
    %v5391 = vpop.f32.mrb[0].mxu0
    %v5392 = vadd.f32 0.0, %v5391
    %v5393 = vpop.f32.mrb[0].mxu0
    %v5394 = vadd.f32 0.0, %v5393
    %v5395 = vpop.f32.mrb[0].mxu0
    %v5396 = vadd.f32 0.0, %v5395
    %5397 = vmatprep.mubr.bf16.mxu0 %v5180
    %5398 = vmatmul.mubr.bf16.gmra.mrb[0].mxu0 %v4644
    %v5399 = vpop.f32.mrb[0].mxu0
    %v5400 = vadd.f32 0.0, %v5399
    %v5401 = vpop.f32.mrb[0].mxu0
    %v5402 = vadd.f32 0.0, %v5401
    %v5403 = vpop.f32.mrb[0].mxu0
    %v5404 = vadd.f32 0.0, %v5403
    %v5405 = vpop.f32.mrb[0].mxu0
    %v5406 = vadd.f32 0.0, %v5405
    %5407 = vdwg.mxu0
    %5408 = vmatprep.subr.bf16.mxu0 %v4965
    %5409 = vmatpush1.bf16.msra.mxu0 %v4964
    %5410 = vmatprep.subr.bf16.mxu0 %v4976
    %5411 = vmatpush1.bf16.msra.mxu0 %v4975
    %5412 = vmatprep.subr.bf16.mxu0 %v4987
    %5413 = vmatpush1.bf16.msra.mxu0 %v4986
    %5414 = vmatprep.subr.bf16.mxu0 %v4998
    %5415 = vmatpush1.bf16.msra.mxu0 %v4997
    %5416 = vmatprep.subr.bf16.mxu0 %v5009
    %5417 = vmatpush1.bf16.msra.mxu0 %v5008
    %5418 = vmatprep.subr.bf16.mxu0 %v5020
    %5419 = vmatpush1.bf16.msra.mxu0 %v5019
    %5420 = vmatprep.subr.bf16.mxu0 %v5031
    %5421 = vmatpush1.bf16.msra.mxu0 %v5030
    %5422 = vmatprep.subr.bf16.mxu0 %v5042
    %5423 = vmatpush1.bf16.msra.mxu0 %v5041
    %5424 = vmatprep.subr.bf16.mxu0 %v5053
    %5425 = vmatpush1.bf16.msra.mxu0 %v5052
    %5426 = vmatprep.subr.bf16.mxu0 0
    %5427 = vmatpush1.bf16.msra.mxu0 0
    %5428 = vmatprep.subr.bf16.mxu0 0
    %5429 = vmatpush1.bf16.msra.mxu0 0
    %5430 = vmatprep.subr.bf16.mxu0 0
    %5431 = vmatpush1.bf16.msra.mxu0 0
    %5432 = vmatprep.subr.bf16.mxu0 0
    %5433 = vmatpush1.bf16.msra.mxu0 0
    %5434 = vmatprep.subr.bf16.mxu0 0
    %5435 = vmatpush1.bf16.msra.mxu0 0
    %5436 = vmatprep.subr.bf16.mxu0 0
    %5437 = vmatpush1.bf16.msra.mxu0 0
    %5438 = vmatprep.subr.bf16.mxu0 0
    %5439 = vmatpush1.bf16.msra.mxu0 0
    %5440 = vmatprep.mubr.bf16.mxu0 %v5159
    %5441 = vmatmul.mubr.bf16.gmra.mrb[0].mxu0 %v4630
    %v5442 = vpop.f32.mrb[0].mxu0
    %v5443 = vadd.f32 0.0, %v5442
    %v5444 = vpop.f32.mrb[0].mxu0
    %v5445 = vadd.f32 0.0, %v5444
    %v5446 = vpop.f32.mrb[0].mxu0
    %v5447 = vadd.f32 0.0, %v5446
    %v5448 = vpop.f32.mrb[0].mxu0
    %v5449 = vadd.f32 0.0, %v5448
    %5450 = vmatprep.mubr.bf16.mxu0 %v5162
    %5451 = vmatmul.mubr.bf16.gmra.mrb[0].mxu0 %v4632
    %v5452 = vpop.f32.mrb[0].mxu0
    %v5453 = vadd.f32 0.0, %v5452
    %v5454 = vpop.f32.mrb[0].mxu0
    %v5455 = vadd.f32 0.0, %v5454
    %v5456 = vpop.f32.mrb[0].mxu0
    %v5457 = vadd.f32 0.0, %v5456
    %v5458 = vpop.f32.mrb[0].mxu0
    %v5459 = vadd.f32 0.0, %v5458
    %5460 = vmatprep.mubr.bf16.mxu0 %v5165
    %5461 = vmatmul.mubr.bf16.gmra.mrb[0].mxu0 %v4634
    %v5462 = vpop.f32.mrb[0].mxu0
    %v5463 = vadd.f32 0.0, %v5462
    %v5464 = vpop.f32.mrb[0].mxu0
    %v5465 = vadd.f32 0.0, %v5464
    %v5466 = vpop.f32.mrb[0].mxu0
    %v5467 = vadd.f32 0.0, %v5466
    %v5468 = vpop.f32.mrb[0].mxu0
    %v5469 = vadd.f32 0.0, %v5468
    %5470 = vmatprep.mubr.bf16.mxu0 %v5168
    %5471 = vmatmul.mubr.bf16.gmra.mrb[0].mxu0 %v4636
    %v5472 = vpop.f32.mrb[0].mxu0
    %v5473 = vadd.f32 0.0, %v5472
    %v5474 = vpop.f32.mrb[0].mxu0
    %v5475 = vadd.f32 0.0, %v5474
    %v5476 = vpop.f32.mrb[0].mxu0
    %v5477 = vadd.f32 0.0, %v5476
    %v5478 = vpop.f32.mrb[0].mxu0
    %v5479 = vadd.f32 0.0, %v5478
    %5480 = vmatprep.mubr.bf16.mxu0 %v5171
    %5481 = vmatmul.mubr.bf16.gmra.mrb[0].mxu0 %v4638
    %v5482 = vpop.f32.mrb[0].mxu0
    %v5483 = vadd.f32 0.0, %v5482
    %v5484 = vpop.f32.mrb[0].mxu0
    %v5485 = vadd.f32 0.0, %v5484
    %v5486 = vpop.f32.mrb[0].mxu0
    %v5487 = vadd.f32 0.0, %v5486
    %v5488 = vpop.f32.mrb[0].mxu0
    %v5489 = vadd.f32 0.0, %v5488
    %5490 = vmatprep.mubr.bf16.mxu0 %v5174
    %5491 = vmatmul.mubr.bf16.gmra.mrb[0].mxu0 %v4640
    %v5492 = vpop.f32.mrb[0].mxu0
    %v5493 = vadd.f32 0.0, %v5492
    %v5494 = vpop.f32.mrb[0].mxu0
    %v5495 = vadd.f32 0.0, %v5494
    %v5496 = vpop.f32.mrb[0].mxu0
    %v5497 = vadd.f32 0.0, %v5496
    %v5498 = vpop.f32.mrb[0].mxu0
    %v5499 = vadd.f32 0.0, %v5498
    %5500 = vmatprep.mubr.bf16.mxu0 %v5177
    %5501 = vmatmul.mubr.bf16.gmra.mrb[0].mxu0 %v4642
    %v5502 = vpop.f32.mrb[0].mxu0
    %v5503 = vadd.f32 0.0, %v5502
    %v5504 = vpop.f32.mrb[0].mxu0
    %v5505 = vadd.f32 0.0, %v5504
    %v5506 = vpop.f32.mrb[0].mxu0
    %v5507 = vadd.f32 0.0, %v5506
    %v5508 = vpop.f32.mrb[0].mxu0
    %v5509 = vadd.f32 0.0, %v5508
    %5510 = vmatprep.mubr.bf16.mxu0 %v5180
    %5511 = vmatmul.mubr.bf16.gmra.mrb[0].mxu0 %v4644
    %v5512 = vpop.f32.mrb[0].mxu0
    %v5513 = vadd.f32 0.0, %v5512
    %v5514 = vpop.f32.mrb[0].mxu0
    %v5515 = vadd.f32 0.0, %v5514
    %v5516 = vpop.f32.mrb[0].mxu0
    %v5517 = vadd.f32 0.0, %v5516
    %v5518 = vpop.f32.mrb[0].mxu0
    %v5519 = vadd.f32 0.0, %v5518
    %5520 = vdwg.mxu0
    %5521 = vmatprep.subr.bf16.mxu0 %v4967
    %5522 = vmatpush1.bf16.msra.mxu0 %v4966
    %5523 = vmatprep.subr.bf16.mxu0 %v4978
    %5524 = vmatpush1.bf16.msra.mxu0 %v4977
    %5525 = vmatprep.subr.bf16.mxu0 %v4989
    %5526 = vmatpush1.bf16.msra.mxu0 %v4988
    %5527 = vmatprep.subr.bf16.mxu0 %v5000
    %5528 = vmatpush1.bf16.msra.mxu0 %v4999
    %5529 = vmatprep.subr.bf16.mxu0 %v5011
    %5530 = vmatpush1.bf16.msra.mxu0 %v5010
    %5531 = vmatprep.subr.bf16.mxu0 %v5022
    %5532 = vmatpush1.bf16.msra.mxu0 %v5021
    %5533 = vmatprep.subr.bf16.mxu0 %v5033
    %5534 = vmatpush1.bf16.msra.mxu0 %v5032
    %5535 = vmatprep.subr.bf16.mxu0 %v5044
    %5536 = vmatpush1.bf16.msra.mxu0 %v5043
    %5537 = vmatprep.subr.bf16.mxu0 %v5055
    %5538 = vmatpush1.bf16.msra.mxu0 %v5054
    %5539 = vmatprep.subr.bf16.mxu0 0
    %5540 = vmatpush1.bf16.msra.mxu0 0
    %5541 = vmatprep.subr.bf16.mxu0 0
    %5542 = vmatpush1.bf16.msra.mxu0 0
    %5543 = vmatprep.subr.bf16.mxu0 0
    %5544 = vmatpush1.bf16.msra.mxu0 0
    %5545 = vmatprep.subr.bf16.mxu0 0
    %5546 = vmatpush1.bf16.msra.mxu0 0
    %5547 = vmatprep.subr.bf16.mxu0 0
    %5548 = vmatpush1.bf16.msra.mxu0 0
    %5549 = vmatprep.subr.bf16.mxu0 0
    %5550 = vmatpush1.bf16.msra.mxu0 0
    %5551 = vmatprep.subr.bf16.mxu0 0
    %5552 = vmatpush1.bf16.msra.mxu0 0
    %5553 = vmatprep.mubr.bf16.mxu0 %v5159
    %5554 = vmatmul.mubr.bf16.gmra.mrb[0].mxu0 %v4630
    %v5555 = vpop.f32.mrb[0].mxu0
    %v5556 = vadd.f32 0.0, %v5555
    %v5557 = vpop.f32.mrb[0].mxu0
    %v5558 = vadd.f32 0.0, %v5557
    %v5559 = vpop.f32.mrb[0].mxu0
    %v5560 = vadd.f32 0.0, %v5559
    %v5561 = vpop.f32.mrb[0].mxu0
    %v5562 = vadd.f32 0.0, %v5561
    %5563 = vmatprep.mubr.bf16.mxu0 %v5162
    %5564 = vmatmul.mubr.bf16.gmra.mrb[0].mxu0 %v4632
    %v5565 = vpop.f32.mrb[0].mxu0
    %v5566 = vadd.f32 0.0, %v5565
    %v5567 = vpop.f32.mrb[0].mxu0
    %v5568 = vadd.f32 0.0, %v5567
    %v5569 = vpop.f32.mrb[0].mxu0
    %v5570 = vadd.f32 0.0, %v5569
    %v5571 = vpop.f32.mrb[0].mxu0
    %v5572 = vadd.f32 0.0, %v5571
    %5573 = vmatprep.mubr.bf16.mxu0 %v5165
    %5574 = vmatmul.mubr.bf16.gmra.mrb[0].mxu0 %v4634
    %v5575 = vpop.f32.mrb[0].mxu0
    %v5576 = vadd.f32 0.0, %v5575
    %v5577 = vpop.f32.mrb[0].mxu0
    %v5578 = vadd.f32 0.0, %v5577
    %v5579 = vpop.f32.mrb[0].mxu0
    %v5580 = vadd.f32 0.0, %v5579
    %v5581 = vpop.f32.mrb[0].mxu0
    %v5582 = vadd.f32 0.0, %v5581
    %5583 = vmatprep.mubr.bf16.mxu0 %v5168
    %5584 = vmatmul.mubr.bf16.gmra.mrb[0].mxu0 %v4636
    %v5585 = vpop.f32.mrb[0].mxu0
    %v5586 = vadd.f32 0.0, %v5585
    %v5587 = vpop.f32.mrb[0].mxu0
    %v5588 = vadd.f32 0.0, %v5587
    %v5589 = vpop.f32.mrb[0].mxu0
    %v5590 = vadd.f32 0.0, %v5589
    %v5591 = vpop.f32.mrb[0].mxu0
    %v5592 = vadd.f32 0.0, %v5591
    %5593 = vmatprep.mubr.bf16.mxu0 %v5171
    %5594 = vmatmul.mubr.bf16.gmra.mrb[0].mxu0 %v4638
    %v5595 = vpop.f32.mrb[0].mxu0
    %v5596 = vadd.f32 0.0, %v5595
    %v5597 = vpop.f32.mrb[0].mxu0
    %v5598 = vadd.f32 0.0, %v5597
    %v5599 = vpop.f32.mrb[0].mxu0
    %v5600 = vadd.f32 0.0, %v5599
    %v5601 = vpop.f32.mrb[0].mxu0
    %v5602 = vadd.f32 0.0, %v5601
    %5603 = vmatprep.mubr.bf16.mxu0 %v5174
    %5604 = vmatmul.mubr.bf16.gmra.mrb[0].mxu0 %v4640
    %v5605 = vpop.f32.mrb[0].mxu0
    %v5606 = vadd.f32 0.0, %v5605
    %v5607 = vpop.f32.mrb[0].mxu0
    %v5608 = vadd.f32 0.0, %v5607
    %v5609 = vpop.f32.mrb[0].mxu0
    %v5610 = vadd.f32 0.0, %v5609
    %v5611 = vpop.f32.mrb[0].mxu0
    %v5612 = vadd.f32 0.0, %v5611
    %5613 = vmatprep.mubr.bf16.mxu0 %v5177
    %5614 = vmatmul.mubr.bf16.gmra.mrb[0].mxu0 %v4642
    %v5615 = vpop.f32.mrb[0].mxu0
    %v5616 = vadd.f32 0.0, %v5615
    %v5617 = vpop.f32.mrb[0].mxu0
    %v5618 = vadd.f32 0.0, %v5617
    %v5619 = vpop.f32.mrb[0].mxu0
    %v5620 = vadd.f32 0.0, %v5619
    %v5621 = vpop.f32.mrb[0].mxu0
    %v5622 = vadd.f32 0.0, %v5621
    %5623 = vmatprep.mubr.bf16.mxu0 %v5180
    %5624 = vmatmul.mubr.bf16.gmra.mrb[0].mxu0 %v4644
    %v5625 = vpop.f32.mrb[0].mxu0
    %v5626 = vadd.f32 0.0, %v5625
    %v5627 = vpop.f32.mrb[0].mxu0
    %v5628 = vadd.f32 0.0, %v5627
    %v5629 = vpop.f32.mrb[0].mxu0
    %v5630 = vadd.f32 0.0, %v5629
    %v5631 = vpop.f32.mrb[0].mxu0
    %v5632 = vadd.f32 0.0, %v5631
    %5633 = vdwg.mxu0
    %5634 = vmatprep.subr.bf16.mxu0 %v4969
    %5635 = vmatpush1.bf16.msra.mxu0 %v4968
    %5636 = vmatprep.subr.bf16.mxu0 %v4980
    %5637 = vmatpush1.bf16.msra.mxu0 %v4979
    %5638 = vmatprep.subr.bf16.mxu0 %v4991
    %5639 = vmatpush1.bf16.msra.mxu0 %v4990
    %5640 = vmatprep.subr.bf16.mxu0 %v5002
    %5641 = vmatpush1.bf16.msra.mxu0 %v5001
    %5642 = vmatprep.subr.bf16.mxu0 %v5013
    %5643 = vmatpush1.bf16.msra.mxu0 %v5012
    %5644 = vmatprep.subr.bf16.mxu0 %v5024
    %5645 = vmatpush1.bf16.msra.mxu0 %v5023
    %5646 = vmatprep.subr.bf16.mxu0 %v5035
    %5647 = vmatpush1.bf16.msra.mxu0 %v5034
    %5648 = vmatprep.subr.bf16.mxu0 %v5046
    %5649 = vmatpush1.bf16.msra.mxu0 %v5045
    %5650 = vmatprep.subr.bf16.mxu0 %v5057
    %5651 = vmatpush1.bf16.msra.mxu0 %v5056
    %5652 = vmatprep.subr.bf16.mxu0 0
    %5653 = vmatpush1.bf16.msra.mxu0 0
    %5654 = vmatprep.subr.bf16.mxu0 0
    %5655 = vmatpush1.bf16.msra.mxu0 0
    %5656 = vmatprep.subr.bf16.mxu0 0
    %5657 = vmatpush1.bf16.msra.mxu0 0
    %5658 = vmatprep.subr.bf16.mxu0 0
    %5659 = vmatpush1.bf16.msra.mxu0 0
    %5660 = vmatprep.subr.bf16.mxu0 0
    %5661 = vmatpush1.bf16.msra.mxu0 0
    %5662 = vmatprep.subr.bf16.mxu0 0
    %5663 = vmatpush1.bf16.msra.mxu0 0
    %5664 = vmatprep.subr.bf16.mxu0 0
    %5665 = vmatpush1.bf16.msra.mxu0 0
    %5666 = vmatprep.mubr.bf16.mxu0 %v5159
    %5667 = vmatmul.mubr.bf16.gmra.mrb[0].mxu0 %v4630
    %v5668 = vpop.f32.mrb[0].mxu0
    %v5669 = vadd.f32 0.0, %v5668
    %v5670 = vpop.f32.mrb[0].mxu0
    %v5671 = vadd.f32 0.0, %v5670
    %v5672 = vpop.f32.mrb[0].mxu0
    %v5673 = vadd.f32 0.0, %v5672
    %v5674 = vpop.f32.mrb[0].mxu0
    %v5675 = vadd.f32 0.0, %v5674
    %5676 = vmatprep.mubr.bf16.mxu0 %v5162
    %5677 = vmatmul.mubr.bf16.gmra.mrb[0].mxu0 %v4632
    %v5678 = vpop.f32.mrb[0].mxu0
    %v5679 = vadd.f32 0.0, %v5678
    %v5680 = vpop.f32.mrb[0].mxu0
    %v5681 = vadd.f32 0.0, %v5680
    %v5682 = vpop.f32.mrb[0].mxu0
    %v5683 = vadd.f32 0.0, %v5682
    %v5684 = vpop.f32.mrb[0].mxu0
    %v5685 = vadd.f32 0.0, %v5684
    %5686 = vmatprep.mubr.bf16.mxu0 %v5165
    %5687 = vmatmul.mubr.bf16.gmra.mrb[0].mxu0 %v4634
    %v5688 = vpop.f32.mrb[0].mxu0
    %v5689 = vadd.f32 0.0, %v5688
    %v5690 = vpop.f32.mrb[0].mxu0
    %v5691 = vadd.f32 0.0, %v5690
    %v5692 = vpop.f32.mrb[0].mxu0
    %v5693 = vadd.f32 0.0, %v5692
    %v5694 = vpop.f32.mrb[0].mxu0
    %v5695 = vadd.f32 0.0, %v5694
    %5696 = vmatprep.mubr.bf16.mxu0 %v5168
    %5697 = vmatmul.mubr.bf16.gmra.mrb[0].mxu0 %v4636
    %v5698 = vpop.f32.mrb[0].mxu0
    %v5699 = vadd.f32 0.0, %v5698
    %v5700 = vpop.f32.mrb[0].mxu0
    %v5701 = vadd.f32 0.0, %v5700
    %v5702 = vpop.f32.mrb[0].mxu0
    %v5703 = vadd.f32 0.0, %v5702
    %v5704 = vpop.f32.mrb[0].mxu0
    %v5705 = vadd.f32 0.0, %v5704
    %5706 = vmatprep.mubr.bf16.mxu0 %v5171
    %5707 = vmatmul.mubr.bf16.gmra.mrb[0].mxu0 %v4638
    %v5708 = vpop.f32.mrb[0].mxu0
    %v5709 = vadd.f32 0.0, %v5708
    %v5710 = vpop.f32.mrb[0].mxu0
    %v5711 = vadd.f32 0.0, %v5710
    %v5712 = vpop.f32.mrb[0].mxu0
    %v5713 = vadd.f32 0.0, %v5712
    %v5714 = vpop.f32.mrb[0].mxu0
    %v5715 = vadd.f32 0.0, %v5714
    %5716 = vmatprep.mubr.bf16.mxu0 %v5174
    %5717 = vmatmul.mubr.bf16.gmra.mrb[0].mxu0 %v4640
    %v5718 = vpop.f32.mrb[0].mxu0
    %v5719 = vadd.f32 0.0, %v5718
    %v5720 = vpop.f32.mrb[0].mxu0
    %v5721 = vadd.f32 0.0, %v5720
    %v5722 = vpop.f32.mrb[0].mxu0
    %v5723 = vadd.f32 0.0, %v5722
    %v5724 = vpop.f32.mrb[0].mxu0
    %v5725 = vadd.f32 0.0, %v5724
    %5726 = vmatprep.mubr.bf16.mxu0 %v5177
    %5727 = vmatmul.mubr.bf16.gmra.mrb[0].mxu0 %v4642
    %v5728 = vpop.f32.mrb[0].mxu0
    %v5729 = vadd.f32 0.0, %v5728
    %v5730 = vpop.f32.mrb[0].mxu0
    %v5731 = vadd.f32 0.0, %v5730
    %v5732 = vpop.f32.mrb[0].mxu0
    %v5733 = vadd.f32 0.0, %v5732
    %v5734 = vpop.f32.mrb[0].mxu0
    %v5735 = vadd.f32 0.0, %v5734
    %5736 = vmatprep.mubr.bf16.mxu0 %v5180
    %5737 = vmatmul.mubr.bf16.gmra.mrb[0].mxu0 %v4644
    %v5738 = vpop.f32.mrb[0].mxu0
    %v5739 = vadd.f32 0.0, %v5738
    %v5740 = vpop.f32.mrb[0].mxu0
    %v5741 = vadd.f32 0.0, %v5740
    %v5742 = vpop.f32.mrb[0].mxu0
    %v5743 = vadd.f32 0.0, %v5742
    %v5744 = vpop.f32.mrb[0].mxu0
    %v5745 = vadd.f32 0.0, %v5744
    %5746 = vdwg.mxu0
    %5747 = vmatprep.subr.bf16.mxu0 0
    %5748 = vmatpush1.bf16.msra.mxu0 %v4970
    %5749 = vmatprep.subr.bf16.mxu0 0
    %5750 = vmatpush1.bf16.msra.mxu0 %v4981
    %5751 = vmatprep.subr.bf16.mxu0 0
    %5752 = vmatpush1.bf16.msra.mxu0 %v4992
    %5753 = vmatprep.subr.bf16.mxu0 0
    %5754 = vmatpush1.bf16.msra.mxu0 %v5003
    %5755 = vmatprep.subr.bf16.mxu0 0
    %5756 = vmatpush1.bf16.msra.mxu0 %v5014
    %5757 = vmatprep.subr.bf16.mxu0 0
    %5758 = vmatpush1.bf16.msra.mxu0 %v5025
    %5759 = vmatprep.subr.bf16.mxu0 0
    %5760 = vmatpush1.bf16.msra.mxu0 %v5036
    %5761 = vmatprep.subr.bf16.mxu0 0
    %5762 = vmatpush1.bf16.msra.mxu0 %v5047
    %5763 = vmatprep.subr.bf16.mxu0 0
    %5764 = vmatpush1.bf16.msra.mxu0 %v5058
    %5765 = vmatprep.subr.bf16.mxu0 0
    %5766 = vmatpush1.bf16.msra.mxu0 0
    %5767 = vmatprep.subr.bf16.mxu0 0
    %5768 = vmatpush1.bf16.msra.mxu0 0
    %5769 = vmatprep.subr.bf16.mxu0 0
    %5770 = vmatpush1.bf16.msra.mxu0 0
    %5771 = vmatprep.subr.bf16.mxu0 0
    %5772 = vmatpush1.bf16.msra.mxu0 0
    %5773 = vmatprep.subr.bf16.mxu0 0
    %5774 = vmatpush1.bf16.msra.mxu0 0
    %5775 = vmatprep.subr.bf16.mxu0 0
    %5776 = vmatpush1.bf16.msra.mxu0 0
    %5777 = vmatprep.subr.bf16.mxu0 0
    %5778 = vmatpush1.bf16.msra.mxu0 0
    %5779 = vmatprep.mubr.bf16.mxu0 %v5159
    %5780 = vmatmul.mubr.bf16.gmra.mrb[0].mxu0 %v4630
    %v5781 = vpop.f32.mrb[0].mxu0
    %v5782 = vadd.f32 0.0, %v5781
    %v5783 = vpop.f32.mrb[0].mxu0
    %v5784 = vpop.f32.mrb[0].mxu0
    %v5785 = vadd.f32 0.0, %v5784
    %v5786 = vpop.f32.mrb[0].mxu0
    %5787 = vmatprep.mubr.bf16.mxu0 %v5162
    %5788 = vmatmul.mubr.bf16.gmra.mrb[0].mxu0 %v4632
    %v5789 = vpop.f32.mrb[0].mxu0
    %v5790 = vadd.f32 0.0, %v5789
    %v5791 = vpop.f32.mrb[0].mxu0
    %v5792 = vpop.f32.mrb[0].mxu0
    %v5793 = vadd.f32 0.0, %v5792
    %v5794 = vpop.f32.mrb[0].mxu0
    %5795 = vmatprep.mubr.bf16.mxu0 %v5165
    %5796 = vmatmul.mubr.bf16.gmra.mrb[0].mxu0 %v4634
    %v5797 = vpop.f32.mrb[0].mxu0
    %v5798 = vadd.f32 0.0, %v5797
    %v5799 = vpop.f32.mrb[0].mxu0
    %v5800 = vpop.f32.mrb[0].mxu0
    %v5801 = vadd.f32 0.0, %v5800
    %v5802 = vpop.f32.mrb[0].mxu0
    %5803 = vmatprep.mubr.bf16.mxu0 %v5168
    %5804 = vmatmul.mubr.bf16.gmra.mrb[0].mxu0 %v4636
    %v5805 = vpop.f32.mrb[0].mxu0
    %v5806 = vadd.f32 0.0, %v5805
    %v5807 = vpop.f32.mrb[0].mxu0
    %v5808 = vpop.f32.mrb[0].mxu0
    %v5809 = vadd.f32 0.0, %v5808
    %v5810 = vpop.f32.mrb[0].mxu0
    %5811 = vmatprep.mubr.bf16.mxu0 %v5171
    %5812 = vmatmul.mubr.bf16.gmra.mrb[0].mxu0 %v4638
    %v5813 = vpop.f32.mrb[0].mxu0
    %v5814 = vadd.f32 0.0, %v5813
    %v5815 = vpop.f32.mrb[0].mxu0
    %v5816 = vpop.f32.mrb[0].mxu0
    %v5817 = vadd.f32 0.0, %v5816
    %v5818 = vpop.f32.mrb[0].mxu0
    %5819 = vmatprep.mubr.bf16.mxu0 %v5174
    %5820 = vmatmul.mubr.bf16.gmra.mrb[0].mxu0 %v4640
    %v5821 = vpop.f32.mrb[0].mxu0
    %v5822 = vadd.f32 0.0, %v5821
    %v5823 = vpop.f32.mrb[0].mxu0
    %v5824 = vpop.f32.mrb[0].mxu0
    %v5825 = vadd.f32 0.0, %v5824
    %v5826 = vpop.f32.mrb[0].mxu0
    %5827 = vmatprep.mubr.bf16.mxu0 %v5177
    %5828 = vmatmul.mubr.bf16.gmra.mrb[0].mxu0 %v4642
    %v5829 = vpop.f32.mrb[0].mxu0
    %v5830 = vadd.f32 0.0, %v5829
    %v5831 = vpop.f32.mrb[0].mxu0
    %v5832 = vpop.f32.mrb[0].mxu0
    %v5833 = vadd.f32 0.0, %v5832
    %v5834 = vpop.f32.mrb[0].mxu0
    %5835 = vmatprep.mubr.bf16.mxu0 %v5180
    %5836 = vmatmul.mubr.bf16.gmra.mrb[0].mxu0 %v4644
    %v5837 = vpop.f32.mrb[0].mxu0
    %v5838 = vadd.f32 0.0, %v5837
    %v5839 = vpop.f32.mrb[0].mxu0
    %v5840 = vpop.f32.mrb[0].mxu0
    %v5841 = vadd.f32 0.0, %v5840
    %v5842 = vpop.f32.mrb[0].mxu0
    %5843 = vdwg.mxu0
    %v5844 = vmul.f32 %v3282, %v5217
    %v5845 = vmul.f32 %v3284, %v5219
    %v5846 = vmul.f32 %v3508, %v5330
    %v5847 = vmul.f32 %v3510, %v5332
    %v5848 = vmul.f32 %v3734, %v5443
    %v5849 = vmul.f32 %v3736, %v5445
    %v5850 = vmul.f32 %v3960, %v5556
    %v5851 = vmul.f32 %v3962, %v5558
    %v5852 = vmul.f32 %v4186, %v5669
    %v5853 = vmul.f32 %v4188, %v5671
    %v5854 = vmul.f32 %v4396, %v5782
    %v5855 = vmul.f32 %v3286, %v5221
    %v5856 = vmul.f32 %v3288, %v5223
    %v5857 = vmul.f32 %v3512, %v5334
    %v5858 = vmul.f32 %v3514, %v5336
    %v5859 = vmul.f32 %v3738, %v5447
    %v5860 = vmul.f32 %v3740, %v5449
    %v5861 = vmul.f32 %v3964, %v5560
    %v5862 = vmul.f32 %v3966, %v5562
    %v5863 = vmul.f32 %v4190, %v5673
    %v5864 = vmul.f32 %v4192, %v5675
    %v5865 = vmul.f32 %v4399, %v5785
    %v5866 = vmul.f32 %v3292, %v5227
    %v5867 = vmul.f32 %v3294, %v5229
    %v5868 = vmul.f32 %v3518, %v5340
    %v5869 = vmul.f32 %v3520, %v5342
    %v5870 = vmul.f32 %v3744, %v5453
    %v5871 = vmul.f32 %v3746, %v5455
    %v5872 = vmul.f32 %v3970, %v5566
    %v5873 = vmul.f32 %v3972, %v5568
    %v5874 = vmul.f32 %v4196, %v5679
    %v5875 = vmul.f32 %v4198, %v5681
    %v5876 = vmul.f32 %v4404, %v5790
    %v5877 = vmul.f32 %v3296, %v5231
    %v5878 = vmul.f32 %v3298, %v5233
    %v5879 = vmul.f32 %v3522, %v5344
    %v5880 = vmul.f32 %v3524, %v5346
    %v5881 = vmul.f32 %v3748, %v5457
    %v5882 = vmul.f32 %v3750, %v5459
    %v5883 = vmul.f32 %v3974, %v5570
    %v5884 = vmul.f32 %v3976, %v5572
    %v5885 = vmul.f32 %v4200, %v5683
    %v5886 = vmul.f32 %v4202, %v5685
    %v5887 = vmul.f32 %v4407, %v5793
    %v5888 = vmul.f32 %v3302, %v5237
    %v5889 = vmul.f32 %v3304, %v5239
    %v5890 = vmul.f32 %v3528, %v5350
    %v5891 = vmul.f32 %v3530, %v5352
    %v5892 = vmul.f32 %v3754, %v5463
    %v5893 = vmul.f32 %v3756, %v5465
    %v5894 = vmul.f32 %v3980, %v5576
    %v5895 = vmul.f32 %v3982, %v5578
    %v5896 = vmul.f32 %v4206, %v5689
    %v5897 = vmul.f32 %v4208, %v5691
    %v5898 = vmul.f32 %v4412, %v5798
    %v5899 = vmul.f32 %v3306, %v5241
    %v5900 = vmul.f32 %v3308, %v5243
    %v5901 = vmul.f32 %v3532, %v5354
    %v5902 = vmul.f32 %v3534, %v5356
    %v5903 = vmul.f32 %v3758, %v5467
    %v5904 = vmul.f32 %v3760, %v5469
    %v5905 = vmul.f32 %v3984, %v5580
    %v5906 = vmul.f32 %v3986, %v5582
    %v5907 = vmul.f32 %v4210, %v5693
    %v5908 = vmul.f32 %v4212, %v5695
    %v5909 = vmul.f32 %v4415, %v5801
    %v5910 = vmul.f32 %v3312, %v5247
    %v5911 = vmul.f32 %v3314, %v5249
    %v5912 = vmul.f32 %v3538, %v5360
    %v5913 = vmul.f32 %v3540, %v5362
    %v5914 = vmul.f32 %v3764, %v5473
    %v5915 = vmul.f32 %v3766, %v5475
    %v5916 = vmul.f32 %v3990, %v5586
    %v5917 = vmul.f32 %v3992, %v5588
    %v5918 = vmul.f32 %v4216, %v5699
    %v5919 = vmul.f32 %v4218, %v5701
    %v5920 = vmul.f32 %v4420, %v5806
    %v5921 = vmul.f32 %v3316, %v5251
    %v5922 = vmul.f32 %v3318, %v5253
    %v5923 = vmul.f32 %v3542, %v5364
    %v5924 = vmul.f32 %v3544, %v5366
    %v5925 = vmul.f32 %v3768, %v5477
    %v5926 = vmul.f32 %v3770, %v5479
    %v5927 = vmul.f32 %v3994, %v5590
    %v5928 = vmul.f32 %v3996, %v5592
    %v5929 = vmul.f32 %v4220, %v5703
    %v5930 = vmul.f32 %v4222, %v5705
    %v5931 = vmul.f32 %v4423, %v5809
    %v5932 = vmul.f32 %v3322, %v5257
    %v5933 = vmul.f32 %v3324, %v5259
    %v5934 = vmul.f32 %v3548, %v5370
    %v5935 = vmul.f32 %v3550, %v5372
    %v5936 = vmul.f32 %v3774, %v5483
    %v5937 = vmul.f32 %v3776, %v5485
    %v5938 = vmul.f32 %v4000, %v5596
    %v5939 = vmul.f32 %v4002, %v5598
    %v5940 = vmul.f32 %v4226, %v5709
    %v5941 = vmul.f32 %v4228, %v5711
    %v5942 = vmul.f32 %v4428, %v5814
    %v5943 = vmul.f32 %v3326, %v5261
    %v5944 = vmul.f32 %v3328, %v5263
    %v5945 = vmul.f32 %v3552, %v5374
    %v5946 = vmul.f32 %v3554, %v5376
    %v5947 = vmul.f32 %v3778, %v5487
    %v5948 = vmul.f32 %v3780, %v5489
    %v5949 = vmul.f32 %v4004, %v5600
    %v5950 = vmul.f32 %v4006, %v5602
    %v5951 = vmul.f32 %v4230, %v5713
    %v5952 = vmul.f32 %v4232, %v5715
    %v5953 = vmul.f32 %v4431, %v5817
    %v5954 = vmul.f32 %v3332, %v5267
    %v5955 = vmul.f32 %v3334, %v5269
    %v5956 = vmul.f32 %v3558, %v5380
    %v5957 = vmul.f32 %v3560, %v5382
    %v5958 = vmul.f32 %v3784, %v5493
    %v5959 = vmul.f32 %v3786, %v5495
    %v5960 = vmul.f32 %v4010, %v5606
    %v5961 = vmul.f32 %v4012, %v5608
    %v5962 = vmul.f32 %v4236, %v5719
    %v5963 = vmul.f32 %v4238, %v5721
    %v5964 = vmul.f32 %v4436, %v5822
    %v5965 = vmul.f32 %v3336, %v5271
    %v5966 = vmul.f32 %v3338, %v5273
    %v5967 = vmul.f32 %v3562, %v5384
    %v5968 = vmul.f32 %v3564, %v5386
    %v5969 = vmul.f32 %v3788, %v5497
    %v5970 = vmul.f32 %v3790, %v5499
    %v5971 = vmul.f32 %v4014, %v5610
    %v5972 = vmul.f32 %v4016, %v5612
    %v5973 = vmul.f32 %v4240, %v5723
    %v5974 = vmul.f32 %v4242, %v5725
    %v5975 = vmul.f32 %v4439, %v5825
    %v5976 = vmul.f32 %v3342, %v5277
    %v5977 = vmul.f32 %v3344, %v5279
    %v5978 = vmul.f32 %v3568, %v5390
    %v5979 = vmul.f32 %v3570, %v5392
    %v5980 = vmul.f32 %v3794, %v5503
    %v5981 = vmul.f32 %v3796, %v5505
    %v5982 = vmul.f32 %v4020, %v5616
    %v5983 = vmul.f32 %v4022, %v5618
    %v5984 = vmul.f32 %v4246, %v5729
    %v5985 = vmul.f32 %v4248, %v5731
    %v5986 = vmul.f32 %v4444, %v5830
    %v5987 = vmul.f32 %v3346, %v5281
    %v5988 = vmul.f32 %v3348, %v5283
    %v5989 = vmul.f32 %v3572, %v5394
    %v5990 = vmul.f32 %v3574, %v5396
    %v5991 = vmul.f32 %v3798, %v5507
    %v5992 = vmul.f32 %v3800, %v5509
    %v5993 = vmul.f32 %v4024, %v5620
    %v5994 = vmul.f32 %v4026, %v5622
    %v5995 = vmul.f32 %v4250, %v5733
    %v5996 = vmul.f32 %v4252, %v5735
    %v5997 = vmul.f32 %v4447, %v5833
    %v5998 = vmul.f32 %v3352, %v5287
    %v5999 = vmul.f32 %v3354, %v5289
    %v6000 = vmul.f32 %v3578, %v5400
    %v6001 = vmul.f32 %v3580, %v5402
    %v6002 = vmul.f32 %v3804, %v5513
    %v6003 = vmul.f32 %v3806, %v5515
    %v6004 = vmul.f32 %v4030, %v5626
    %v6005 = vmul.f32 %v4032, %v5628
    %v6006 = vmul.f32 %v4256, %v5739
    %v6007 = vmul.f32 %v4258, %v5741
    %v6008 = vmul.f32 %v4452, %v5838
    %v6009 = vmul.f32 %v3356, %v5291
    %v6010 = vmul.f32 %v3358, %v5293
    %v6011 = vmul.f32 %v3582, %v5404
    %v6012 = vmul.f32 %v3584, %v5406
    %v6013 = vmul.f32 %v3808, %v5517
    %v6014 = vmul.f32 %v3810, %v5519
    %v6015 = vmul.f32 %v4034, %v5630
    %v6016 = vmul.f32 %v4036, %v5632
    %v6017 = vmul.f32 %v4260, %v5743
    %v6018 = vmul.f32 %v4262, %v5745
    %v6019 = vmul.f32 %v4455, %v5841
    %v6020 = vpack.c.bf16 %v5855, %v5844
    %v6021 = vpack.c.bf16 %v5856, %v5845
    %v6022 = vpack.c.bf16 %v5857, %v5846
    %v6023 = vpack.c.bf16 %v5858, %v5847
    %v6024 = vpack.c.bf16 %v5859, %v5848
    %v6025 = vpack.c.bf16 %v5860, %v5849
    %v6026 = vpack.c.bf16 %v5861, %v5850
    %v6027 = vpack.c.bf16 %v5862, %v5851
    %v6028 = vpack.c.bf16 %v5863, %v5852
    %v6029 = vpack.c.bf16 %v5864, %v5853
    %v6030 = vpack.c.bf16 %v5865, %v5854
    %v6031 = vpack.c.bf16 %v5877, %v5866
    %v6032 = vpack.c.bf16 %v5878, %v5867
    %v6033 = vpack.c.bf16 %v5879, %v5868
    %v6034 = vpack.c.bf16 %v5880, %v5869
    %v6035 = vpack.c.bf16 %v5881, %v5870
    %v6036 = vpack.c.bf16 %v5882, %v5871
    %v6037 = vpack.c.bf16 %v5883, %v5872
    %v6038 = vpack.c.bf16 %v5884, %v5873
    %v6039 = vpack.c.bf16 %v5885, %v5874
    %v6040 = vpack.c.bf16 %v5886, %v5875
    %v6041 = vpack.c.bf16 %v5887, %v5876
    %v6042 = vpack.c.bf16 %v5899, %v5888
    %v6043 = vpack.c.bf16 %v5900, %v5889
    %v6044 = vpack.c.bf16 %v5901, %v5890
    %v6045 = vpack.c.bf16 %v5902, %v5891
    %v6046 = vpack.c.bf16 %v5903, %v5892
    %v6047 = vpack.c.bf16 %v5904, %v5893
    %v6048 = vpack.c.bf16 %v5905, %v5894
    %v6049 = vpack.c.bf16 %v5906, %v5895
    %v6050 = vpack.c.bf16 %v5907, %v5896
    %v6051 = vpack.c.bf16 %v5908, %v5897
    %v6052 = vpack.c.bf16 %v5909, %v5898
    %v6053 = vpack.c.bf16 %v5921, %v5910
    %v6054 = vpack.c.bf16 %v5922, %v5911
    %v6055 = vpack.c.bf16 %v5923, %v5912
    %v6056 = vpack.c.bf16 %v5924, %v5913
    %v6057 = vpack.c.bf16 %v5925, %v5914
    %v6058 = vpack.c.bf16 %v5926, %v5915
    %v6059 = vpack.c.bf16 %v5927, %v5916
    %v6060 = vpack.c.bf16 %v5928, %v5917
    %v6061 = vpack.c.bf16 %v5929, %v5918
    %v6062 = vpack.c.bf16 %v5930, %v5919
    %v6063 = vpack.c.bf16 %v5931, %v5920
    %v6064 = vpack.c.bf16 %v5943, %v5932
    %v6065 = vpack.c.bf16 %v5944, %v5933
    %v6066 = vpack.c.bf16 %v5945, %v5934
    %v6067 = vpack.c.bf16 %v5946, %v5935
    %v6068 = vpack.c.bf16 %v5947, %v5936
    %v6069 = vpack.c.bf16 %v5948, %v5937
    %v6070 = vpack.c.bf16 %v5949, %v5938
    %v6071 = vpack.c.bf16 %v5950, %v5939
    %v6072 = vpack.c.bf16 %v5951, %v5940
    %v6073 = vpack.c.bf16 %v5952, %v5941
    %v6074 = vpack.c.bf16 %v5953, %v5942
    %v6075 = vpack.c.bf16 %v5965, %v5954
    %v6076 = vpack.c.bf16 %v5966, %v5955
    %v6077 = vpack.c.bf16 %v5967, %v5956
    %v6078 = vpack.c.bf16 %v5968, %v5957
    %v6079 = vpack.c.bf16 %v5969, %v5958
    %v6080 = vpack.c.bf16 %v5970, %v5959
    %v6081 = vpack.c.bf16 %v5971, %v5960
    %v6082 = vpack.c.bf16 %v5972, %v5961
    %v6083 = vpack.c.bf16 %v5973, %v5962
    %v6084 = vpack.c.bf16 %v5974, %v5963
    %v6085 = vpack.c.bf16 %v5975, %v5964
    %v6086 = vpack.c.bf16 %v5987, %v5976
    %v6087 = vpack.c.bf16 %v5988, %v5977
    %v6088 = vpack.c.bf16 %v5989, %v5978
    %v6089 = vpack.c.bf16 %v5990, %v5979
    %v6090 = vpack.c.bf16 %v5991, %v5980
    %v6091 = vpack.c.bf16 %v5992, %v5981
    %v6092 = vpack.c.bf16 %v5993, %v5982
    %v6093 = vpack.c.bf16 %v5994, %v5983
    %v6094 = vpack.c.bf16 %v5995, %v5984
    %v6095 = vpack.c.bf16 %v5996, %v5985
    %v6096 = vpack.c.bf16 %v5997, %v5986
    %v6097 = vpack.c.bf16 %v6009, %v5998
    %v6098 = vpack.c.bf16 %v6010, %v5999
    %v6099 = vpack.c.bf16 %v6011, %v6000
    %v6100 = vpack.c.bf16 %v6012, %v6001
    %v6101 = vpack.c.bf16 %v6013, %v6002
    %v6102 = vpack.c.bf16 %v6014, %v6003
    %v6103 = vpack.c.bf16 %v6015, %v6004
    %v6104 = vpack.c.bf16 %v6016, %v6005
    %v6105 = vpack.c.bf16 %v6017, %v6006
    %v6106 = vpack.c.bf16 %v6018, %v6007
    %v6107 = vpack.c.bf16 %v6019, %v6008
    %v6108 = vld [vmem:[#allocation16] sm:$0xff]
    %v6109 = vld [vmem:[#allocation16 + $0x8] sm:$0xff]
    %v6110 = vld [vmem:[#allocation16 + $0x10] sm:$0xff]
    %v6111 = vld [vmem:[#allocation16 + $0x18] sm:$0xff]
    %v6112 = vld [vmem:[#allocation16 + $0x20] sm:$0xff]
    %v6113 = vld [vmem:[#allocation16 + $0x28] sm:$0xff]
    %v6114 = vld [vmem:[#allocation16 + $0x30] sm:$0xff]
    %v6115 = vld [vmem:[#allocation16 + $0x38] sm:$0xff]
    %v6116 = vld [vmem:[#allocation16 + $0x40] sm:$0xff]
    %v6117 = vld [vmem:[#allocation16 + $0x48] sm:$0xff]
    %v6118 = vld [vmem:[#allocation16 + $0x50] sm:$0xff]
    %v6119 = vld [vmem:[#allocation16 + $0x58] sm:$0xff]
    %v6120 = vld [vmem:[#allocation16 + $0x60] sm:$0xff]
    %v6121 = vld [vmem:[#allocation16 + $0x68] sm:$0xff]
    %v6122 = vld [vmem:[#allocation16 + $0x70] sm:$0xff]
    %v6123 = vld [vmem:[#allocation16 + $0x78] sm:$0xff]
    %v6124 = vld [vmem:[#allocation16 + $0x80] sm:$0xff]
    %v6125 = vld [vmem:[#allocation16 + $0x88] sm:$0xff]
    %v6126 = vld [vmem:[#allocation16 + $0x90] sm:$0xff]
    %v6127 = vld [vmem:[#allocation16 + $0x98] sm:$0xff]
    %v6128 = vld [vmem:[#allocation16 + $0xa0] sm:$0xff]
    %v6129 = vld [vmem:[#allocation16 + $0xa8] sm:$0xff]
    %v6130 = vld [vmem:[#allocation16 + $0xb0] sm:$0xff]
    %v6131 = vld [vmem:[#allocation16 + $0xb8] sm:$0xff]
    %v6132 = vld [vmem:[#allocation16 + $0xc0] sm:$0xff]
    %v6133 = vld [vmem:[#allocation16 + $0xc8] sm:$0xff]
    %v6134 = vld [vmem:[#allocation16 + $0xd0] sm:$0xff]
    %v6135 = vld [vmem:[#allocation16 + $0xd8] sm:$0xff]
    %v6136 = vld [vmem:[#allocation16 + $0xe0] sm:$0xff]
    %v6137 = vld [vmem:[#allocation16 + $0xe8] sm:$0xff]
    %v6138 = vld [vmem:[#allocation16 + $0xf0] sm:$0xff]
    %v6139 = vld [vmem:[#allocation16 + $0xf8] sm:$0xff]
    %v6140 = vld [vmem:[#allocation16 + $0x100] sm:$0xff]
    %v6141 = vld [vmem:[#allocation16 + $0x108] sm:$0xff]
    %v6142 = vld [vmem:[#allocation16 + $0x110] sm:$0xff]
    %v6143 = vld [vmem:[#allocation16 + $0x118] sm:$0xff]
    %v6144 = vld [vmem:[#allocation16 + $0x120] sm:$0xff]
    %v6145 = vld [vmem:[#allocation16 + $0x128] sm:$0xff]
    %v6146 = vld [vmem:[#allocation16 + $0x130] sm:$0xff]
    %v6147 = vld [vmem:[#allocation16 + $0x138] sm:$0xff]
    %v6148 = vld [vmem:[#allocation16 + $0x140] sm:$0xff]
    %v6149 = vld [vmem:[#allocation16 + $0x148] sm:$0xff]
    %v6150 = vld [vmem:[#allocation16 + $0x150] sm:$0xff]
    %v6151 = vld [vmem:[#allocation16 + $0x158] sm:$0xff]
    %v6152 = vld [vmem:[#allocation16 + $0x160] sm:$0xff]
    %v6153 = vld [vmem:[#allocation16 + $0x168] sm:$0xff]
    %v6154 = vld [vmem:[#allocation16 + $0x170] sm:$0xff]
    %v6155 = vld [vmem:[#allocation16 + $0x178] sm:$0xff]
    %v6156 = vld [vmem:[#allocation16 + $0x180] sm:$0xff]
    %v6157 = vld [vmem:[#allocation16 + $0x188] sm:$0xff]
    %v6158 = vld [vmem:[#allocation16 + $0x190] sm:$0xff]
    %v6159 = vld [vmem:[#allocation16 + $0x198] sm:$0xff]
    %v6160 = vld [vmem:[#allocation16 + $0x1a0] sm:$0xff]
    %v6161 = vld [vmem:[#allocation16 + $0x1a8] sm:$0xff]
    %v6162 = vld [vmem:[#allocation16 + $0x1b0] sm:$0xff]
    %v6163 = vld [vmem:[#allocation16 + $0x1b8] sm:$0xff]
    %v6164 = vld [vmem:[#allocation16 + $0x1c0] sm:$0xff]
    %v6165 = vld [vmem:[#allocation16 + $0x1c8] sm:$0xff]
    %v6166 = vld [vmem:[#allocation16 + $0x1d0] sm:$0xff]
    %v6167 = vld [vmem:[#allocation16 + $0x1d8] sm:$0xff]
    %v6168 = vld [vmem:[#allocation16 + $0x1e0] sm:$0xff]
    %v6169 = vld [vmem:[#allocation16 + $0x1e8] sm:$0xff]
    %v6170 = vld [vmem:[#allocation16 + $0x1f0] sm:$0xff]
    %v6171 = vld [vmem:[#allocation16 + $0x1f8] sm:$0xff]
    %v6172 = vld [vmem:[#allocation16 + $0x200] sm:$0xff]
    %v6173 = vld [vmem:[#allocation16 + $0x208] sm:$0xff]
    %v6174 = vld [vmem:[#allocation16 + $0x210] sm:$0xff]
    %v6175 = vld [vmem:[#allocation16 + $0x218] sm:$0xff]
    %v6176 = vld [vmem:[#allocation16 + $0x220] sm:$0xff]
    %v6177 = vld [vmem:[#allocation16 + $0x228] sm:$0xff]
    %v6178 = vld [vmem:[#allocation16 + $0x230] sm:$0xff]
    %v6179 = vld [vmem:[#allocation16 + $0x238] sm:$0xff]
    %v6180 = vld [vmem:[#allocation16 + $0x240] sm:$0xff]
    %v6181 = vld [vmem:[#allocation16 + $0x248] sm:$0xff]
    %v6182 = vld [vmem:[#allocation16 + $0x250] sm:$0xff]
    %v6183 = vld [vmem:[#allocation16 + $0x258] sm:$0xff]
    %v6184 = vld [vmem:[#allocation16 + $0x260] sm:$0xff]
    %v6185 = vld [vmem:[#allocation16 + $0x268] sm:$0xff]
    %v6186 = vld [vmem:[#allocation16 + $0x270] sm:$0xff]
    %v6187 = vld [vmem:[#allocation16 + $0x278] sm:$0xff]
    %v6188 = vld [vmem:[#allocation16 + $0x280] sm:$0xff]
    %v6189 = vld [vmem:[#allocation16 + $0x288] sm:$0xff]
    %v6190 = vld [vmem:[#allocation16 + $0x290] sm:$0xff]
    %v6191 = vld [vmem:[#allocation16 + $0x298] sm:$0xff]
    %v6192 = vld [vmem:[#allocation16 + $0x2a0] sm:$0xff]
    %v6193 = vld [vmem:[#allocation16 + $0x2a8] sm:$0xff]
    %v6194 = vld [vmem:[#allocation16 + $0x2b0] sm:$0xff]
    %v6195 = vld [vmem:[#allocation16 + $0x2b8] sm:$0xff]
    %v6196 = vld [vmem:[#allocation16 + $0x2c0] sm:$0xff]
    %v6197 = vld [vmem:[#allocation16 + $0x2c8] sm:$0xff]
    %v6198 = vld [vmem:[#allocation16 + $0x2d0] sm:$0xff]
    %v6199 = vld [vmem:[#allocation16 + $0x2d8] sm:$0xff]
    %v6200 = vld [vmem:[#allocation16 + $0x2e0] sm:$0xff]
    %v6201 = vld [vmem:[#allocation16 + $0x2e8] sm:$0xff]
    %v6202 = vld [vmem:[#allocation16 + $0x2f0] sm:$0xff]
    %v6203 = vld [vmem:[#allocation16 + $0x2f8] sm:$0xff]
    %v6204 = vld [vmem:[#allocation16 + $0x300] sm:$0xff]
    %v6205 = vld [vmem:[#allocation16 + $0x308] sm:$0xff]
    %v6206 = vld [vmem:[#allocation16 + $0x310] sm:$0xff]
    %v6207 = vld [vmem:[#allocation16 + $0x318] sm:$0xff]
    %v6208 = vld [vmem:[#allocation16 + $0x320] sm:$0xff]
    %v6209 = vld [vmem:[#allocation16 + $0x328] sm:$0xff]
    %v6210 = vld [vmem:[#allocation16 + $0x330] sm:$0xff]
    %v6211 = vld [vmem:[#allocation16 + $0x338] sm:$0xff]
    %v6212 = vld [vmem:[#allocation16 + $0x340] sm:$0xff]
    %v6213 = vld [vmem:[#allocation16 + $0x348] sm:$0xff]
    %v6214 = vld [vmem:[#allocation16 + $0x350] sm:$0xff]
    %v6215 = vld [vmem:[#allocation16 + $0x358] sm:$0xff]
    %v6216 = vld [vmem:[#allocation16 + $0x360] sm:$0xff]
    %v6217 = vld [vmem:[#allocation16 + $0x368] sm:$0xff]
    %v6218 = vld [vmem:[#allocation16 + $0x370] sm:$0xff]
    %v6219 = vld [vmem:[#allocation16 + $0x378] sm:$0xff]
    %v6220 = vld [vmem:[#allocation16 + $0x380] sm:$0xff]
    %v6221 = vld [vmem:[#allocation16 + $0x388] sm:$0xff]
    %v6222 = vld [vmem:[#allocation16 + $0x390] sm:$0xff]
    %v6223 = vld [vmem:[#allocation16 + $0x398] sm:$0xff]
    %v6224 = vld [vmem:[#allocation16 + $0x3a0] sm:$0xff]
    %v6225 = vld [vmem:[#allocation16 + $0x3a8] sm:$0xff]
    %v6226 = vld [vmem:[#allocation16 + $0x3b0] sm:$0xff]
    %v6227 = vld [vmem:[#allocation16 + $0x3b8] sm:$0xff]
    %v6228 = vld [vmem:[#allocation16 + $0x3c0] sm:$0xff]
    %v6229 = vld [vmem:[#allocation16 + $0x3c8] sm:$0xff]
    %v6230 = vld [vmem:[#allocation16 + $0x3d0] sm:$0xff]
    %v6231 = vld [vmem:[#allocation16 + $0x3d8] sm:$0xff]
    %v6232 = vld [vmem:[#allocation16 + $0x3e0] sm:$0xff]
    %v6233 = vld [vmem:[#allocation16 + $0x3e8] sm:$0xff]
    %v6234 = vld [vmem:[#allocation16 + $0x3f0] sm:$0xff]
    %v6235 = vld [vmem:[#allocation16 + $0x3f8] sm:$0xff]
    %v6236 = vld [vmem:[#allocation16 + $0x400] sm:$0xff]
    %v6237 = vld [vmem:[#allocation16 + $0x408] sm:$0xff]
    %v6238 = vld [vmem:[#allocation16 + $0x410] sm:$0xff]
    %v6239 = vld [vmem:[#allocation16 + $0x418] sm:$0xff]
    %v6240 = vld [vmem:[#allocation16 + $0x420] sm:$0xff]
    %v6241 = vld [vmem:[#allocation16 + $0x428] sm:$0xff]
    %v6242 = vld [vmem:[#allocation16 + $0x430] sm:$0xff]
    %v6243 = vld [vmem:[#allocation16 + $0x438] sm:$0xff]
    %v6244 = vld [vmem:[#allocation16 + $0x440] sm:$0xff]
    %v6245 = vld [vmem:[#allocation16 + $0x448] sm:$0xff]
    %v6246 = vld [vmem:[#allocation16 + $0x450] sm:$0xff]
    %v6247 = vld [vmem:[#allocation16 + $0x458] sm:$0xff]
    %v6248 = vld [vmem:[#allocation16 + $0x460] sm:$0xff]
    %v6249 = vld [vmem:[#allocation16 + $0x468] sm:$0xff]
    %v6250 = vld [vmem:[#allocation16 + $0x470] sm:$0xff]
    %v6251 = vld [vmem:[#allocation16 + $0x478] sm:$0xff]
    %v6252 = vld [vmem:[#allocation16 + $0x480] sm:$0xff]
    %v6253 = vld [vmem:[#allocation16 + $0x488] sm:$0xff]
    %v6254 = vld [vmem:[#allocation16 + $0x490] sm:$0xff]
    %v6255 = vld [vmem:[#allocation16 + $0x498] sm:$0xff]
    %v6256 = vld [vmem:[#allocation16 + $0x4a0] sm:$0xff]
    %v6257 = vld [vmem:[#allocation16 + $0x4a8] sm:$0xff]
    %v6258 = vld [vmem:[#allocation16 + $0x4b0] sm:$0xff]
    %v6259 = vld [vmem:[#allocation16 + $0x4b8] sm:$0xff]
    %v6260 = vld [vmem:[#allocation16 + $0x4c0] sm:$0xff]
    %v6261 = vld [vmem:[#allocation16 + $0x4c8] sm:$0xff]
    %v6262 = vld [vmem:[#allocation16 + $0x4d0] sm:$0xff]
    %v6263 = vld [vmem:[#allocation16 + $0x4d8] sm:$0xff]
    %v6264 = vld [vmem:[#allocation16 + $0x4e0] sm:$0xff]
    %v6265 = vld [vmem:[#allocation16 + $0x4e8] sm:$0xff]
    %v6266 = vld [vmem:[#allocation16 + $0x4f0] sm:$0xff]
    %v6267 = vld [vmem:[#allocation16 + $0x4f8] sm:$0xff]
    %v6268 = vld [vmem:[#allocation16 + $0x500] sm:$0xff]
    %v6269 = vld [vmem:[#allocation16 + $0x508] sm:$0xff]
    %v6432 = vunpack.c.l.b16 %v6108
    %v6433 = vunpack.c.h.b16 %v6108
    %v6434 = vunpack.c.l.b16 %v6109
    %v6435 = vunpack.c.h.b16 %v6109
    %v6436 = vunpack.c.l.b16 %v6110
    %v6437 = vunpack.c.h.b16 %v6110
    %v6438 = vunpack.c.l.b16 %v6111
    %v6439 = vunpack.c.h.b16 %v6111
    %v6440 = vunpack.c.l.b16 %v6112
    %v6441 = vunpack.c.h.b16 %v6112
    %v6442 = vunpack.c.l.b16 %v6113
    %v6443 = vunpack.c.h.b16 %v6113
    %v6444 = vunpack.c.l.b16 %v6114
    %v6445 = vunpack.c.h.b16 %v6114
    %v6446 = vunpack.c.l.b16 %v6115
    %v6447 = vunpack.c.h.b16 %v6115
    %v6448 = vunpack.c.l.b16 %v6116
    %v6449 = vunpack.c.h.b16 %v6116
    %v6450 = vunpack.c.l.b16 %v6117
    %v6451 = vunpack.c.h.b16 %v6117
    %v6452 = vunpack.c.l.b16 %v6118
    %v6453 = vunpack.c.h.b16 %v6118
    %v6454 = vunpack.c.l.b16 %v6119
    %v6455 = vunpack.c.h.b16 %v6119
    %v6456 = vunpack.c.l.b16 %v6120
    %v6457 = vunpack.c.h.b16 %v6120
    %v6458 = vunpack.c.l.b16 %v6121
    %v6459 = vunpack.c.h.b16 %v6121
    %v6460 = vunpack.c.l.b16 %v6122
    %v6461 = vunpack.c.h.b16 %v6122
    %v6462 = vunpack.c.l.b16 %v6123
    %v6463 = vunpack.c.h.b16 %v6123
    %v6464 = vunpack.c.l.b16 %v6124
    %v6465 = vunpack.c.h.b16 %v6124
    %v6466 = vunpack.c.l.b16 %v6125
    %v6467 = vunpack.c.h.b16 %v6125
    %v6468 = vunpack.c.l.b16 %v6126
    %v6469 = vunpack.c.h.b16 %v6126
    %v6470 = vunpack.c.l.b16 %v6127
    %v6471 = vunpack.c.h.b16 %v6127
    %v6472 = vunpack.c.l.b16 %v6128
    %v6473 = vunpack.c.h.b16 %v6128
    %v6474 = vunpack.c.l.b16 %v6129
    %v6475 = vunpack.c.h.b16 %v6129
    %v6476 = vunpack.c.l.b16 %v6130
    %v6477 = vunpack.c.h.b16 %v6130
    %v6478 = vunpack.c.l.b16 %v6131
    %v6479 = vunpack.c.h.b16 %v6131
    %v6480 = vunpack.c.l.b16 %v6132
    %v6481 = vunpack.c.h.b16 %v6132
    %v6482 = vunpack.c.l.b16 %v6133
    %v6483 = vunpack.c.h.b16 %v6133
    %v6484 = vunpack.c.l.b16 %v6134
    %v6485 = vunpack.c.h.b16 %v6134
    %v6486 = vunpack.c.l.b16 %v6135
    %v6487 = vunpack.c.h.b16 %v6135
    %v6488 = vunpack.c.l.b16 %v6136
    %v6489 = vunpack.c.h.b16 %v6136
    %v6490 = vunpack.c.l.b16 %v6137
    %v6491 = vunpack.c.h.b16 %v6137
    %v6492 = vunpack.c.l.b16 %v6138
    %v6493 = vunpack.c.h.b16 %v6138
    %v6494 = vunpack.c.l.b16 %v6139
    %v6495 = vunpack.c.h.b16 %v6139
    %v6496 = vunpack.c.l.b16 %v6140
    %v6497 = vunpack.c.h.b16 %v6140
    %v6498 = vunpack.c.l.b16 %v6141
    %v6499 = vunpack.c.h.b16 %v6141
    %v6500 = vunpack.c.l.b16 %v6142
    %v6501 = vunpack.c.h.b16 %v6142
    %v6502 = vunpack.c.l.b16 %v6143
    %v6503 = vunpack.c.h.b16 %v6143
    %v6504 = vunpack.c.l.b16 %v6144
    %v6505 = vunpack.c.h.b16 %v6144
    %v6506 = vunpack.c.l.b16 %v6145
    %v6507 = vunpack.c.h.b16 %v6145
    %v6508 = vunpack.c.l.b16 %v6146
    %v6509 = vunpack.c.h.b16 %v6146
    %v6510 = vunpack.c.l.b16 %v6147
    %v6511 = vunpack.c.h.b16 %v6147
    %v6512 = vunpack.c.l.b16 %v6148
    %v6513 = vunpack.c.h.b16 %v6148
    %v6514 = vunpack.c.l.b16 %v6149
    %v6515 = vunpack.c.h.b16 %v6149
    %v6516 = vunpack.c.l.b16 %v6150
    %v6517 = vunpack.c.h.b16 %v6150
    %v6518 = vunpack.c.l.b16 %v6151
    %v6519 = vunpack.c.h.b16 %v6151
    %v6520 = vunpack.c.l.b16 %v6152
    %v6521 = vunpack.c.h.b16 %v6152
    %v6522 = vunpack.c.l.b16 %v6153
    %v6523 = vunpack.c.h.b16 %v6153
    %v6524 = vunpack.c.l.b16 %v6154
    %v6525 = vunpack.c.h.b16 %v6154
    %v6526 = vunpack.c.l.b16 %v6155
    %v6527 = vunpack.c.h.b16 %v6155
    %v6528 = vunpack.c.l.b16 %v6156
    %v6529 = vunpack.c.h.b16 %v6156
    %v6530 = vunpack.c.l.b16 %v6157
    %v6531 = vunpack.c.h.b16 %v6157
    %v6532 = vunpack.c.l.b16 %v6158
    %v6533 = vunpack.c.h.b16 %v6158
    %v6534 = vunpack.c.l.b16 %v6159
    %v6535 = vunpack.c.h.b16 %v6159
    %v6536 = vunpack.c.l.b16 %v6160
    %v6537 = vunpack.c.h.b16 %v6160
    %v6538 = vunpack.c.l.b16 %v6161
    %v6539 = vunpack.c.h.b16 %v6161
    %v6540 = vunpack.c.l.b16 %v6162
    %v6541 = vunpack.c.h.b16 %v6162
    %v6542 = vunpack.c.l.b16 %v6163
    %v6543 = vunpack.c.h.b16 %v6163
    %v6544 = vunpack.c.l.b16 %v6164
    %v6545 = vunpack.c.h.b16 %v6164
    %v6546 = vunpack.c.l.b16 %v6165
    %v6547 = vunpack.c.h.b16 %v6165
    %v6548 = vunpack.c.l.b16 %v6166
    %v6549 = vunpack.c.h.b16 %v6166
    %v6550 = vunpack.c.l.b16 %v6167
    %v6551 = vunpack.c.h.b16 %v6167
    %v6552 = vunpack.c.l.b16 %v6168
    %v6553 = vunpack.c.h.b16 %v6168
    %v6554 = vunpack.c.l.b16 %v6169
    %v6555 = vunpack.c.h.b16 %v6169
    %v6556 = vunpack.c.l.b16 %v6170
    %v6557 = vunpack.c.h.b16 %v6170
    %v6558 = vunpack.c.l.b16 %v6171
    %v6559 = vunpack.c.h.b16 %v6171
    %v6560 = vunpack.c.l.b16 %v6172
    %v6561 = vunpack.c.h.b16 %v6172
    %v6562 = vunpack.c.l.b16 %v6173
    %v6563 = vunpack.c.h.b16 %v6173
    %v6564 = vunpack.c.l.b16 %v6174
    %v6565 = vunpack.c.h.b16 %v6174
    %v6566 = vunpack.c.l.b16 %v6175
    %v6567 = vunpack.c.h.b16 %v6175
    %v6568 = vunpack.c.l.b16 %v6176
    %v6569 = vunpack.c.h.b16 %v6176
    %v6570 = vunpack.c.l.b16 %v6177
    %v6571 = vunpack.c.h.b16 %v6177
    %v6572 = vunpack.c.l.b16 %v6178
    %v6573 = vunpack.c.h.b16 %v6178
    %v6574 = vunpack.c.l.b16 %v6179
    %v6575 = vunpack.c.h.b16 %v6179
    %v6576 = vunpack.c.l.b16 %v6180
    %v6577 = vunpack.c.h.b16 %v6180
    %v6578 = vunpack.c.l.b16 %v6181
    %v6579 = vunpack.c.h.b16 %v6181
    %v6580 = vunpack.c.l.b16 %v6182
    %v6581 = vunpack.c.h.b16 %v6182
    %v6582 = vunpack.c.l.b16 %v6183
    %v6583 = vunpack.c.h.b16 %v6183
    %v6584 = vunpack.c.l.b16 %v6184
    %v6585 = vunpack.c.h.b16 %v6184
    %v6586 = vunpack.c.l.b16 %v6185
    %v6587 = vunpack.c.h.b16 %v6185
    %v6588 = vunpack.c.l.b16 %v6186
    %v6589 = vunpack.c.h.b16 %v6186
    %v6590 = vunpack.c.l.b16 %v6187
    %v6591 = vunpack.c.h.b16 %v6187
    %v6592 = vunpack.c.l.b16 %v6188
    %v6593 = vunpack.c.h.b16 %v6188
    %v6594 = vunpack.c.l.b16 %v6189
    %v6595 = vunpack.c.h.b16 %v6189
    %v6596 = vunpack.c.l.b16 %v6190
    %v6597 = vunpack.c.h.b16 %v6190
    %v6598 = vunpack.c.l.b16 %v6191
    %v6599 = vunpack.c.h.b16 %v6191
    %v6600 = vunpack.c.l.b16 %v6192
    %v6601 = vunpack.c.h.b16 %v6192
    %v6602 = vunpack.c.l.b16 %v6193
    %v6603 = vunpack.c.h.b16 %v6193
    %v6604 = vunpack.c.l.b16 %v6194
    %v6605 = vunpack.c.h.b16 %v6194
    %v6606 = vunpack.c.l.b16 %v6195
    %v6607 = vunpack.c.h.b16 %v6195
    %v6608 = vunpack.c.l.b16 %v6196
    %v6609 = vunpack.c.h.b16 %v6196
    %v6610 = vunpack.c.l.b16 %v6197
    %v6611 = vunpack.c.h.b16 %v6197
    %v6612 = vunpack.c.l.b16 %v6198
    %v6613 = vunpack.c.h.b16 %v6198
    %v6614 = vunpack.c.l.b16 %v6199
    %v6615 = vunpack.c.h.b16 %v6199
    %v6616 = vunpack.c.l.b16 %v6200
    %v6617 = vunpack.c.h.b16 %v6200
    %v6618 = vunpack.c.l.b16 %v6201
    %v6619 = vunpack.c.h.b16 %v6201
    %v6620 = vunpack.c.l.b16 %v6202
    %v6621 = vunpack.c.h.b16 %v6202
    %v6622 = vunpack.c.l.b16 %v6203
    %v6623 = vunpack.c.h.b16 %v6203
    %v6624 = vunpack.c.l.b16 %v6204
    %v6625 = vunpack.c.h.b16 %v6204
    %v6626 = vunpack.c.l.b16 %v6205
    %v6627 = vunpack.c.h.b16 %v6205
    %v6628 = vunpack.c.l.b16 %v6206
    %v6629 = vunpack.c.h.b16 %v6206
    %v6630 = vunpack.c.l.b16 %v6207
    %v6631 = vunpack.c.h.b16 %v6207
    %v6632 = vunpack.c.l.b16 %v6208
    %v6633 = vunpack.c.h.b16 %v6208
    %v6634 = vunpack.c.l.b16 %v6209
    %v6635 = vunpack.c.h.b16 %v6209
    %v6636 = vunpack.c.l.b16 %v6210
    %v6637 = vunpack.c.h.b16 %v6210
    %v6638 = vunpack.c.l.b16 %v6211
    %v6639 = vunpack.c.h.b16 %v6211
    %v6640 = vunpack.c.l.b16 %v6212
    %v6641 = vunpack.c.h.b16 %v6212
    %v6642 = vunpack.c.l.b16 %v6213
    %v6643 = vunpack.c.h.b16 %v6213
    %v6644 = vunpack.c.l.b16 %v6214
    %v6645 = vunpack.c.h.b16 %v6214
    %v6646 = vunpack.c.l.b16 %v6215
    %v6647 = vunpack.c.h.b16 %v6215
    %v6648 = vunpack.c.l.b16 %v6216
    %v6649 = vunpack.c.h.b16 %v6216
    %v6650 = vunpack.c.l.b16 %v6217
    %v6651 = vunpack.c.h.b16 %v6217
    %v6652 = vunpack.c.l.b16 %v6218
    %v6653 = vunpack.c.h.b16 %v6218
    %v6654 = vunpack.c.l.b16 %v6219
    %v6655 = vunpack.c.h.b16 %v6219
    %v6656 = vunpack.c.l.b16 %v6220
    %v6657 = vunpack.c.h.b16 %v6220
    %v6658 = vunpack.c.l.b16 %v6221
    %v6659 = vunpack.c.h.b16 %v6221
    %v6660 = vunpack.c.l.b16 %v6222
    %v6661 = vunpack.c.h.b16 %v6222
    %v6662 = vunpack.c.l.b16 %v6223
    %v6663 = vunpack.c.h.b16 %v6223
    %v6664 = vunpack.c.l.b16 %v6224
    %v6665 = vunpack.c.h.b16 %v6224
    %v6666 = vunpack.c.l.b16 %v6225
    %v6667 = vunpack.c.h.b16 %v6225
    %v6668 = vunpack.c.l.b16 %v6226
    %v6669 = vunpack.c.h.b16 %v6226
    %v6670 = vunpack.c.l.b16 %v6227
    %v6671 = vunpack.c.h.b16 %v6227
    %v6672 = vunpack.c.l.b16 %v6228
    %v6673 = vunpack.c.h.b16 %v6228
    %v6674 = vunpack.c.l.b16 %v6229
    %v6675 = vunpack.c.h.b16 %v6229
    %v6676 = vunpack.c.l.b16 %v6230
    %v6677 = vunpack.c.h.b16 %v6230
    %v6678 = vunpack.c.l.b16 %v6231
    %v6679 = vunpack.c.h.b16 %v6231
    %v6680 = vunpack.c.l.b16 %v6232
    %v6681 = vunpack.c.h.b16 %v6232
    %v6682 = vunpack.c.l.b16 %v6233
    %v6683 = vunpack.c.h.b16 %v6233
    %v6684 = vunpack.c.l.b16 %v6234
    %v6685 = vunpack.c.h.b16 %v6234
    %v6686 = vunpack.c.l.b16 %v6235
    %v6687 = vunpack.c.h.b16 %v6235
    %v6688 = vunpack.c.l.b16 %v6236
    %v6689 = vunpack.c.h.b16 %v6236
    %v6690 = vunpack.c.l.b16 %v6237
    %v6691 = vunpack.c.h.b16 %v6237
    %v6692 = vunpack.c.l.b16 %v6238
    %v6693 = vunpack.c.h.b16 %v6238
    %v6694 = vunpack.c.l.b16 %v6239
    %v6695 = vunpack.c.h.b16 %v6239
    %v6696 = vunpack.c.l.b16 %v6240
    %v6697 = vunpack.c.h.b16 %v6240
    %v6698 = vunpack.c.l.b16 %v6241
    %v6699 = vunpack.c.h.b16 %v6241
    %v6700 = vunpack.c.l.b16 %v6242
    %v6701 = vunpack.c.h.b16 %v6242
    %v6702 = vunpack.c.l.b16 %v6243
    %v6703 = vunpack.c.h.b16 %v6243
    %v6704 = vunpack.c.l.b16 %v6244
    %v6705 = vunpack.c.h.b16 %v6244
    %v6706 = vunpack.c.l.b16 %v6245
    %v6707 = vunpack.c.h.b16 %v6245
    %v6708 = vunpack.c.l.b16 %v6246
    %v6709 = vunpack.c.h.b16 %v6246
    %v6710 = vunpack.c.l.b16 %v6247
    %v6711 = vunpack.c.h.b16 %v6247
    %v6712 = vunpack.c.l.b16 %v6248
    %v6713 = vunpack.c.h.b16 %v6248
    %v6714 = vunpack.c.l.b16 %v6249
    %v6715 = vunpack.c.h.b16 %v6249
    %v6716 = vunpack.c.l.b16 %v6250
    %v6717 = vunpack.c.h.b16 %v6250
    %v6718 = vunpack.c.l.b16 %v6251
    %v6719 = vunpack.c.h.b16 %v6251
    %v6720 = vunpack.c.l.b16 %v6252
    %v6721 = vunpack.c.h.b16 %v6252
    %v6722 = vunpack.c.l.b16 %v6253
    %v6723 = vunpack.c.h.b16 %v6253
    %v6724 = vunpack.c.l.b16 %v6254
    %v6725 = vunpack.c.h.b16 %v6254
    %v6726 = vunpack.c.l.b16 %v6255
    %v6727 = vunpack.c.h.b16 %v6255
    %v6728 = vunpack.c.l.b16 %v6256
    %v6729 = vunpack.c.h.b16 %v6256
    %v6730 = vunpack.c.l.b16 %v6257
    %v6731 = vunpack.c.h.b16 %v6257
    %v6732 = vunpack.c.l.b16 %v6258
    %v6733 = vunpack.c.h.b16 %v6258
    %v6734 = vunpack.c.l.b16 %v6259
    %v6735 = vunpack.c.h.b16 %v6259
    %v6736 = vunpack.c.l.b16 %v6260
    %v6737 = vunpack.c.h.b16 %v6260
    %v6738 = vunpack.c.l.b16 %v6261
    %v6739 = vunpack.c.h.b16 %v6261
    %v6740 = vunpack.c.l.b16 %v6262
    %v6741 = vunpack.c.h.b16 %v6262
    %v6742 = vunpack.c.l.b16 %v6263
    %v6743 = vunpack.c.h.b16 %v6263
    %v6744 = vunpack.c.l.b16 %v6264
    %v6745 = vunpack.c.h.b16 %v6264
    %v6746 = vunpack.c.l.b16 %v6265
    %v6747 = vunpack.c.h.b16 %v6265
    %v6748 = vunpack.c.l.b16 %v6266
    %v6749 = vunpack.c.h.b16 %v6266
    %v6750 = vunpack.c.l.b16 %v6267
    %v6751 = vunpack.c.h.b16 %v6267
    %v6752 = vunpack.c.l.b16 %v6268
    %v6753 = vunpack.c.h.b16 %v6268
    %v6754 = vunpack.c.l.b16 %v6269
    %v6755 = vunpack.c.h.b16 %v6269
    %v6756 = vpack.c.b16 %v6434, %v6432
    %v6757 = vpack.c.b16 %v6435, %v6433
    %v6758 = vpack.c.b16 %v6438, %v6436
    %v6759 = vpack.c.b16 %v6439, %v6437
    %v6760 = vpack.c.b16 %v6442, %v6440
    %v6761 = vpack.c.b16 %v6443, %v6441
    %v6762 = vpack.c.b16 %v6446, %v6444
    %v6763 = vpack.c.b16 %v6447, %v6445
    %v6764 = vpack.c.b16 %v6450, %v6448
    %v6765 = vpack.c.b16 %v6451, %v6449
    %v6766 = vpack.c.b16 %v6454, %v6452
    %v6767 = vpack.c.b16 %v6455, %v6453
    %v6768 = vpack.c.b16 %v6458, %v6456
    %v6769 = vpack.c.b16 %v6459, %v6457
    %v6770 = vpack.c.b16 %v6462, %v6460
    %v6771 = vpack.c.b16 %v6463, %v6461
    %v6772 = vpack.c.b16 %v6466, %v6464
    %v6773 = vpack.c.b16 %v6467, %v6465
    %v6774 = vpack.c.b16 %v6470, %v6468
    %v6775 = vpack.c.b16 %v6471, %v6469
    %v6776 = vpack.c.b16 %v6474, %v6472
    %v6777 = vpack.c.b16 %v6475, %v6473
    %v6778 = vpack.c.b16 %v6478, %v6476
    %v6779 = vpack.c.b16 %v6479, %v6477
    %v6780 = vpack.c.b16 %v6482, %v6480
    %v6781 = vpack.c.b16 %v6483, %v6481
    %v6782 = vpack.c.b16 %v6486, %v6484
    %v6783 = vpack.c.b16 %v6487, %v6485
    %v6784 = vpack.c.b16 %v6490, %v6488
    %v6785 = vpack.c.b16 %v6491, %v6489
    %v6786 = vpack.c.b16 %v6494, %v6492
    %v6787 = vpack.c.b16 %v6495, %v6493
    %v6788 = vpack.c.b16 %v6498, %v6496
    %v6789 = vpack.c.b16 %v6499, %v6497
    %v6790 = vpack.c.b16 %v6502, %v6500
    %v6791 = vpack.c.b16 %v6503, %v6501
    %v6792 = vpack.c.b16 %v6506, %v6504
    %v6793 = vpack.c.b16 %v6507, %v6505
    %v6794 = vpack.c.b16 %v6510, %v6508
    %v6795 = vpack.c.b16 %v6511, %v6509
    %v6796 = vpack.c.b16 %v6514, %v6512
    %v6797 = vpack.c.b16 %v6515, %v6513
    %v6798 = vpack.c.b16 %v6518, %v6516
    %v6799 = vpack.c.b16 %v6519, %v6517
    %v6800 = vpack.c.b16 %v6522, %v6520
    %v6801 = vpack.c.b16 %v6523, %v6521
    %v6802 = vpack.c.b16 %v6526, %v6524
    %v6803 = vpack.c.b16 %v6527, %v6525
    %v6804 = vpack.c.b16 %v6530, %v6528
    %v6805 = vpack.c.b16 %v6531, %v6529
    %v6806 = vpack.c.b16 %v6534, %v6532
    %v6807 = vpack.c.b16 %v6535, %v6533
    %v6808 = vpack.c.b16 %v6538, %v6536
    %v6809 = vpack.c.b16 %v6539, %v6537
    %v6810 = vpack.c.b16 %v6542, %v6540
    %v6811 = vpack.c.b16 %v6543, %v6541
    %v6812 = vpack.c.b16 %v6546, %v6544
    %v6813 = vpack.c.b16 %v6547, %v6545
    %v6814 = vpack.c.b16 %v6550, %v6548
    %v6815 = vpack.c.b16 %v6551, %v6549
    %v6816 = vpack.c.b16 %v6554, %v6552
    %v6817 = vpack.c.b16 %v6555, %v6553
    %v6818 = vpack.c.b16 %v6558, %v6556
    %v6819 = vpack.c.b16 %v6559, %v6557
    %v6820 = vpack.c.b16 %v6562, %v6560
    %v6821 = vpack.c.b16 %v6563, %v6561
    %v6822 = vpack.c.b16 %v6566, %v6564
    %v6823 = vpack.c.b16 %v6567, %v6565
    %v6824 = vpack.c.b16 %v6570, %v6568
    %v6825 = vpack.c.b16 %v6571, %v6569
    %v6826 = vpack.c.b16 %v6574, %v6572
    %v6827 = vpack.c.b16 %v6575, %v6573
    %v6828 = vpack.c.b16 %v6578, %v6576
    %v6829 = vpack.c.b16 %v6579, %v6577
    %v6830 = vpack.c.b16 %v6582, %v6580
    %v6831 = vpack.c.b16 %v6583, %v6581
    %v6832 = vpack.c.b16 %v6586, %v6584
    %v6833 = vpack.c.b16 %v6587, %v6585
    %v6834 = vpack.c.b16 %v6590, %v6588
    %v6835 = vpack.c.b16 %v6591, %v6589
    %v6836 = vpack.c.b16 %v6594, %v6592
    %v6837 = vpack.c.b16 %v6595, %v6593
    %v6838 = vpack.c.b16 %v6598, %v6596
    %v6839 = vpack.c.b16 %v6599, %v6597
    %v6840 = vpack.c.b16 %v6602, %v6600
    %v6841 = vpack.c.b16 %v6603, %v6601
    %v6842 = vpack.c.b16 %v6606, %v6604
    %v6843 = vpack.c.b16 %v6607, %v6605
    %v6844 = vpack.c.b16 %v6610, %v6608
    %v6845 = vpack.c.b16 %v6611, %v6609
    %v6846 = vpack.c.b16 %v6614, %v6612
    %v6847 = vpack.c.b16 %v6615, %v6613
    %v6848 = vpack.c.b16 %v6618, %v6616
    %v6849 = vpack.c.b16 %v6619, %v6617
    %v6850 = vpack.c.b16 %v6622, %v6620
    %v6851 = vpack.c.b16 %v6623, %v6621
    %v6852 = vpack.c.b16 %v6626, %v6624
    %v6853 = vpack.c.b16 %v6627, %v6625
    %v6854 = vpack.c.b16 %v6630, %v6628
    %v6855 = vpack.c.b16 %v6631, %v6629
    %v6856 = vpack.c.b16 %v6634, %v6632
    %v6857 = vpack.c.b16 %v6635, %v6633
    %v6858 = vpack.c.b16 %v6638, %v6636
    %v6859 = vpack.c.b16 %v6639, %v6637
    %v6860 = vpack.c.b16 %v6642, %v6640
    %v6861 = vpack.c.b16 %v6643, %v6641
    %v6862 = vpack.c.b16 %v6646, %v6644
    %v6863 = vpack.c.b16 %v6647, %v6645
    %v6864 = vpack.c.b16 %v6650, %v6648
    %v6865 = vpack.c.b16 %v6651, %v6649
    %v6866 = vpack.c.b16 %v6654, %v6652
    %v6867 = vpack.c.b16 %v6655, %v6653
    %v6868 = vpack.c.b16 %v6658, %v6656
    %v6869 = vpack.c.b16 %v6659, %v6657
    %v6870 = vpack.c.b16 %v6662, %v6660
    %v6871 = vpack.c.b16 %v6663, %v6661
    %v6872 = vpack.c.b16 %v6666, %v6664
    %v6873 = vpack.c.b16 %v6667, %v6665
    %v6874 = vpack.c.b16 %v6670, %v6668
    %v6875 = vpack.c.b16 %v6671, %v6669
    %v6876 = vpack.c.b16 %v6674, %v6672
    %v6877 = vpack.c.b16 %v6675, %v6673
    %v6878 = vpack.c.b16 %v6678, %v6676
    %v6879 = vpack.c.b16 %v6679, %v6677
    %v6880 = vpack.c.b16 %v6682, %v6680
    %v6881 = vpack.c.b16 %v6683, %v6681
    %v6882 = vpack.c.b16 %v6686, %v6684
    %v6883 = vpack.c.b16 %v6687, %v6685
    %v6884 = vpack.c.b16 %v6690, %v6688
    %v6885 = vpack.c.b16 %v6691, %v6689
    %v6886 = vpack.c.b16 %v6694, %v6692
    %v6887 = vpack.c.b16 %v6695, %v6693
    %v6888 = vpack.c.b16 %v6698, %v6696
    %v6889 = vpack.c.b16 %v6699, %v6697
    %v6890 = vpack.c.b16 %v6702, %v6700
    %v6891 = vpack.c.b16 %v6703, %v6701
    %v6892 = vpack.c.b16 %v6706, %v6704
    %v6893 = vpack.c.b16 %v6707, %v6705
    %v6894 = vpack.c.b16 %v6710, %v6708
    %v6895 = vpack.c.b16 %v6711, %v6709
    %v6896 = vpack.c.b16 %v6714, %v6712
    %v6897 = vpack.c.b16 %v6715, %v6713
    %v6898 = vpack.c.b16 %v6718, %v6716
    %v6899 = vpack.c.b16 %v6719, %v6717
    %v6900 = vpack.c.b16 %v6722, %v6720
    %v6901 = vpack.c.b16 %v6723, %v6721
    %v6902 = vpack.c.b16 %v6726, %v6724
    %v6903 = vpack.c.b16 %v6727, %v6725
    %v6904 = vpack.c.b16 %v6730, %v6728
    %v6905 = vpack.c.b16 %v6731, %v6729
    %v6906 = vpack.c.b16 %v6734, %v6732
    %v6907 = vpack.c.b16 %v6735, %v6733
    %v6908 = vpack.c.b16 %v6738, %v6736
    %v6909 = vpack.c.b16 %v6739, %v6737
    %v6910 = vpack.c.b16 %v6742, %v6740
    %v6911 = vpack.c.b16 %v6743, %v6741
    %v6912 = vpack.c.b16 %v6746, %v6744
    %v6913 = vpack.c.b16 %v6747, %v6745
    %v6914 = vpack.c.b16 %v6750, %v6748
    %v6915 = vpack.c.b16 %v6751, %v6749
    %v6916 = vpack.c.b16 %v6754, %v6752
    %v6917 = vpack.c.b16 %v6755, %v6753
    %v7081 = vsel %vm247, %v6030, 0
    %v7084 = vsel %vm247, %v6041, 0
    %v7087 = vsel %vm247, %v6052, 0
    %v7090 = vsel %vm247, %v6063, 0
    %v7093 = vsel %vm247, %v6074, 0
    %v7096 = vsel %vm247, %v6085, 0
    %v7099 = vsel %vm247, %v6096, 0
    %v7102 = vsel %vm247, %v6107, 0
    %7104 = vmatprep.subr.bf16.mxu0 %v6757
    %7105 = vmatpush1.bf16.msra.mxu0 %v6756
    %7106 = vmatprep.subr.bf16.mxu0 %v6759
    %7107 = vmatpush1.bf16.msra.mxu0 %v6758
    %7108 = vmatprep.subr.bf16.mxu0 %v6761
    %7109 = vmatpush1.bf16.msra.mxu0 %v6760
    %7110 = vmatprep.subr.bf16.mxu0 %v6763
    %7111 = vmatpush1.bf16.msra.mxu0 %v6762
    %7112 = vmatprep.subr.bf16.mxu0 %v6765
    %7113 = vmatpush1.bf16.msra.mxu0 %v6764
    %7114 = vmatprep.subr.bf16.mxu0 %v6767
    %7115 = vmatpush1.bf16.msra.mxu0 %v6766
    %7116 = vmatprep.subr.bf16.mxu0 %v6769
    %7117 = vmatpush1.bf16.msra.mxu0 %v6768
    %7118 = vmatprep.subr.bf16.mxu0 %v6771
    %7119 = vmatpush1.bf16.msra.mxu0 %v6770
    %7120 = vmatprep.subr.bf16.mxu0 %v6773
    %7121 = vmatpush1.bf16.msra.mxu0 %v6772
    %7122 = vmatprep.subr.bf16.mxu0 %v6775
    %7123 = vmatpush1.bf16.msra.mxu0 %v6774
    %7124 = vmatprep.subr.bf16.mxu0 %v6777
    %7125 = vmatpush1.bf16.msra.mxu0 %v6776
    %7126 = vmatprep.subr.bf16.mxu0 %v6779
    %7127 = vmatpush1.bf16.msra.mxu0 %v6778
    %7128 = vmatprep.subr.bf16.mxu0 %v6781
    %7129 = vmatpush1.bf16.msra.mxu0 %v6780
    %7130 = vmatprep.subr.bf16.mxu0 %v6783
    %7131 = vmatpush1.bf16.msra.mxu0 %v6782
    %7132 = vmatprep.subr.bf16.mxu0 %v6785
    %7133 = vmatpush1.bf16.msra.mxu0 %v6784
    %7134 = vmatprep.subr.bf16.mxu0 %v6787
    %7135 = vmatpush1.bf16.msra.mxu0 %v6786
    %7136 = vmatprep.mubr.bf16.mxu0 %v6021
    %7137 = vmatmul.mubr.bf16.gmra.mrb[0].mxu0 %v6020
    %v7138 = vpop.f32.mrb[0].mxu0
    %v7139 = vadd.f32 0.0, %v7138
    %v7140 = vpop.f32.mrb[0].mxu0
    %v7141 = vadd.f32 0.0, %v7140
    %v7142 = vpop.f32.mrb[0].mxu0
    %v7143 = vadd.f32 0.0, %v7142
    %v7144 = vpop.f32.mrb[0].mxu0
    %v7145 = vadd.f32 0.0, %v7144
    %7146 = vmatprep.mubr.bf16.mxu0 %v6032
    %7147 = vmatmul.mubr.bf16.gmra.mrb[0].mxu0 %v6031
    %v7148 = vpop.f32.mrb[0].mxu0
    %v7149 = vadd.f32 0.0, %v7148
    %v7150 = vpop.f32.mrb[0].mxu0
    %v7151 = vadd.f32 0.0, %v7150
    %v7152 = vpop.f32.mrb[0].mxu0
    %v7153 = vadd.f32 0.0, %v7152
    %v7154 = vpop.f32.mrb[0].mxu0
    %v7155 = vadd.f32 0.0, %v7154
    %7156 = vmatprep.mubr.bf16.mxu0 %v6043
    %7157 = vmatmul.mubr.bf16.gmra.mrb[0].mxu0 %v6042
    %v7158 = vpop.f32.mrb[0].mxu0
    %v7159 = vadd.f32 0.0, %v7158
    %v7160 = vpop.f32.mrb[0].mxu0
    %v7161 = vadd.f32 0.0, %v7160
    %v7162 = vpop.f32.mrb[0].mxu0
    %v7163 = vadd.f32 0.0, %v7162
    %v7164 = vpop.f32.mrb[0].mxu0
    %v7165 = vadd.f32 0.0, %v7164
    %7166 = vmatprep.mubr.bf16.mxu0 %v6054
    %7167 = vmatmul.mubr.bf16.gmra.mrb[0].mxu0 %v6053
    %v7168 = vpop.f32.mrb[0].mxu0
    %v7169 = vadd.f32 0.0, %v7168
    %v7170 = vpop.f32.mrb[0].mxu0
    %v7171 = vadd.f32 0.0, %v7170
    %v7172 = vpop.f32.mrb[0].mxu0
    %v7173 = vadd.f32 0.0, %v7172
    %v7174 = vpop.f32.mrb[0].mxu0
    %v7175 = vadd.f32 0.0, %v7174
    %7176 = vmatprep.mubr.bf16.mxu0 %v6065
    %7177 = vmatmul.mubr.bf16.gmra.mrb[0].mxu0 %v6064
    %v7178 = vpop.f32.mrb[0].mxu0
    %v7179 = vadd.f32 0.0, %v7178
    %v7180 = vpop.f32.mrb[0].mxu0
    %v7181 = vadd.f32 0.0, %v7180
    %v7182 = vpop.f32.mrb[0].mxu0
    %v7183 = vadd.f32 0.0, %v7182
    %v7184 = vpop.f32.mrb[0].mxu0
    %v7185 = vadd.f32 0.0, %v7184
    %7186 = vmatprep.mubr.bf16.mxu0 %v6076
    %7187 = vmatmul.mubr.bf16.gmra.mrb[0].mxu0 %v6075
    %v7188 = vpop.f32.mrb[0].mxu0
    %v7189 = vadd.f32 0.0, %v7188
    %v7190 = vpop.f32.mrb[0].mxu0
    %v7191 = vadd.f32 0.0, %v7190
    %v7192 = vpop.f32.mrb[0].mxu0
    %v7193 = vadd.f32 0.0, %v7192
    %v7194 = vpop.f32.mrb[0].mxu0
    %v7195 = vadd.f32 0.0, %v7194
    %7196 = vmatprep.mubr.bf16.mxu0 %v6087
    %7197 = vmatmul.mubr.bf16.gmra.mrb[0].mxu0 %v6086
    %v7198 = vpop.f32.mrb[0].mxu0
    %v7199 = vadd.f32 0.0, %v7198
    %v7200 = vpop.f32.mrb[0].mxu0
    %v7201 = vadd.f32 0.0, %v7200
    %v7202 = vpop.f32.mrb[0].mxu0
    %v7203 = vadd.f32 0.0, %v7202
    %v7204 = vpop.f32.mrb[0].mxu0
    %v7205 = vadd.f32 0.0, %v7204
    %7206 = vmatprep.mubr.bf16.mxu0 %v6098
    %7207 = vmatmul.mubr.bf16.gmra.mrb[0].mxu0 %v6097
    %v7208 = vpop.f32.mrb[0].mxu0
    %v7209 = vadd.f32 0.0, %v7208
    %v7210 = vpop.f32.mrb[0].mxu0
    %v7211 = vadd.f32 0.0, %v7210
    %v7212 = vpop.f32.mrb[0].mxu0
    %v7213 = vadd.f32 0.0, %v7212
    %v7214 = vpop.f32.mrb[0].mxu0
    %v7215 = vadd.f32 0.0, %v7214
    %7216 = vdwg.mxu0
    %7217 = vmatprep.subr.bf16.mxu0 %v6789
    %7218 = vmatpush1.bf16.msra.mxu0 %v6788
    %7219 = vmatprep.subr.bf16.mxu0 %v6791
    %7220 = vmatpush1.bf16.msra.mxu0 %v6790
    %7221 = vmatprep.subr.bf16.mxu0 %v6793
    %7222 = vmatpush1.bf16.msra.mxu0 %v6792
    %7223 = vmatprep.subr.bf16.mxu0 %v6795
    %7224 = vmatpush1.bf16.msra.mxu0 %v6794
    %7225 = vmatprep.subr.bf16.mxu0 %v6797
    %7226 = vmatpush1.bf16.msra.mxu0 %v6796
    %7227 = vmatprep.subr.bf16.mxu0 %v6799
    %7228 = vmatpush1.bf16.msra.mxu0 %v6798
    %7229 = vmatprep.subr.bf16.mxu0 %v6801
    %7230 = vmatpush1.bf16.msra.mxu0 %v6800
    %7231 = vmatprep.subr.bf16.mxu0 %v6803
    %7232 = vmatpush1.bf16.msra.mxu0 %v6802
    %7233 = vmatprep.subr.bf16.mxu0 %v6805
    %7234 = vmatpush1.bf16.msra.mxu0 %v6804
    %7235 = vmatprep.subr.bf16.mxu0 %v6807
    %7236 = vmatpush1.bf16.msra.mxu0 %v6806
    %7237 = vmatprep.subr.bf16.mxu0 %v6809
    %7238 = vmatpush1.bf16.msra.mxu0 %v6808
    %7239 = vmatprep.subr.bf16.mxu0 %v6811
    %7240 = vmatpush1.bf16.msra.mxu0 %v6810
    %7241 = vmatprep.subr.bf16.mxu0 %v6813
    %7242 = vmatpush1.bf16.msra.mxu0 %v6812
    %7243 = vmatprep.subr.bf16.mxu0 %v6815
    %7244 = vmatpush1.bf16.msra.mxu0 %v6814
    %7245 = vmatprep.subr.bf16.mxu0 %v6817
    %7246 = vmatpush1.bf16.msra.mxu0 %v6816
    %7247 = vmatprep.subr.bf16.mxu0 %v6819
    %7248 = vmatpush1.bf16.msra.mxu0 %v6818
    %7249 = vmatprep.mubr.bf16.mxu0 %v6023
    %7250 = vmatmul.mubr.bf16.gmra.mrb[0].mxu0 %v6022
    %v7251 = vpop.f32.mrb[0].mxu0
    %v7252 = vadd.f32 %v7139, %v7251
    %v7253 = vpop.f32.mrb[0].mxu0
    %v7254 = vadd.f32 %v7141, %v7253
    %v7255 = vpop.f32.mrb[0].mxu0
    %v7256 = vadd.f32 %v7143, %v7255
    %v7257 = vpop.f32.mrb[0].mxu0
    %v7258 = vadd.f32 %v7145, %v7257
    %7259 = vmatprep.mubr.bf16.mxu0 %v6034
    %7260 = vmatmul.mubr.bf16.gmra.mrb[0].mxu0 %v6033
    %v7261 = vpop.f32.mrb[0].mxu0
    %v7262 = vadd.f32 %v7149, %v7261
    %v7263 = vpop.f32.mrb[0].mxu0
    %v7264 = vadd.f32 %v7151, %v7263
    %v7265 = vpop.f32.mrb[0].mxu0
    %v7266 = vadd.f32 %v7153, %v7265
    %v7267 = vpop.f32.mrb[0].mxu0
    %v7268 = vadd.f32 %v7155, %v7267
    %7269 = vmatprep.mubr.bf16.mxu0 %v6045
    %7270 = vmatmul.mubr.bf16.gmra.mrb[0].mxu0 %v6044
    %v7271 = vpop.f32.mrb[0].mxu0
    %v7272 = vadd.f32 %v7159, %v7271
    %v7273 = vpop.f32.mrb[0].mxu0
    %v7274 = vadd.f32 %v7161, %v7273
    %v7275 = vpop.f32.mrb[0].mxu0
    %v7276 = vadd.f32 %v7163, %v7275
    %v7277 = vpop.f32.mrb[0].mxu0
    %v7278 = vadd.f32 %v7165, %v7277
    %7279 = vmatprep.mubr.bf16.mxu0 %v6056
    %7280 = vmatmul.mubr.bf16.gmra.mrb[0].mxu0 %v6055
    %v7281 = vpop.f32.mrb[0].mxu0
    %v7282 = vadd.f32 %v7169, %v7281
    %v7283 = vpop.f32.mrb[0].mxu0
    %v7284 = vadd.f32 %v7171, %v7283
    %v7285 = vpop.f32.mrb[0].mxu0
    %v7286 = vadd.f32 %v7173, %v7285
    %v7287 = vpop.f32.mrb[0].mxu0
    %v7288 = vadd.f32 %v7175, %v7287
    %7289 = vmatprep.mubr.bf16.mxu0 %v6067
    %7290 = vmatmul.mubr.bf16.gmra.mrb[0].mxu0 %v6066
    %v7291 = vpop.f32.mrb[0].mxu0
    %v7292 = vadd.f32 %v7179, %v7291
    %v7293 = vpop.f32.mrb[0].mxu0
    %v7294 = vadd.f32 %v7181, %v7293
    %v7295 = vpop.f32.mrb[0].mxu0
    %v7296 = vadd.f32 %v7183, %v7295
    %v7297 = vpop.f32.mrb[0].mxu0
    %v7298 = vadd.f32 %v7185, %v7297
    %7299 = vmatprep.mubr.bf16.mxu0 %v6078
    %7300 = vmatmul.mubr.bf16.gmra.mrb[0].mxu0 %v6077
    %v7301 = vpop.f32.mrb[0].mxu0
    %v7302 = vadd.f32 %v7189, %v7301
    %v7303 = vpop.f32.mrb[0].mxu0
    %v7304 = vadd.f32 %v7191, %v7303
    %v7305 = vpop.f32.mrb[0].mxu0
    %v7306 = vadd.f32 %v7193, %v7305
    %v7307 = vpop.f32.mrb[0].mxu0
    %v7308 = vadd.f32 %v7195, %v7307
    %7309 = vmatprep.mubr.bf16.mxu0 %v6089
    %7310 = vmatmul.mubr.bf16.gmra.mrb[0].mxu0 %v6088
    %v7311 = vpop.f32.mrb[0].mxu0
    %v7312 = vadd.f32 %v7199, %v7311
    %v7313 = vpop.f32.mrb[0].mxu0
    %v7314 = vadd.f32 %v7201, %v7313
    %v7315 = vpop.f32.mrb[0].mxu0
    %v7316 = vadd.f32 %v7203, %v7315
    %v7317 = vpop.f32.mrb[0].mxu0
    %v7318 = vadd.f32 %v7205, %v7317
    %7319 = vmatprep.mubr.bf16.mxu0 %v6100
    %7320 = vmatmul.mubr.bf16.gmra.mrb[0].mxu0 %v6099
    %v7321 = vpop.f32.mrb[0].mxu0
    %v7322 = vadd.f32 %v7209, %v7321
    %v7323 = vpop.f32.mrb[0].mxu0
    %v7324 = vadd.f32 %v7211, %v7323
    %v7325 = vpop.f32.mrb[0].mxu0
    %v7326 = vadd.f32 %v7213, %v7325
    %v7327 = vpop.f32.mrb[0].mxu0
    %v7328 = vadd.f32 %v7215, %v7327
    %7329 = vdwg.mxu0
    %7330 = vmatprep.subr.bf16.mxu0 %v6821
    %7331 = vmatpush1.bf16.msra.mxu0 %v6820
    %7332 = vmatprep.subr.bf16.mxu0 %v6823
    %7333 = vmatpush1.bf16.msra.mxu0 %v6822
    %7334 = vmatprep.subr.bf16.mxu0 %v6825
    %7335 = vmatpush1.bf16.msra.mxu0 %v6824
    %7336 = vmatprep.subr.bf16.mxu0 %v6827
    %7337 = vmatpush1.bf16.msra.mxu0 %v6826
    %7338 = vmatprep.subr.bf16.mxu0 %v6829
    %7339 = vmatpush1.bf16.msra.mxu0 %v6828
    %7340 = vmatprep.subr.bf16.mxu0 %v6831
    %7341 = vmatpush1.bf16.msra.mxu0 %v6830
    %7342 = vmatprep.subr.bf16.mxu0 %v6833
    %7343 = vmatpush1.bf16.msra.mxu0 %v6832
    %7344 = vmatprep.subr.bf16.mxu0 %v6835
    %7345 = vmatpush1.bf16.msra.mxu0 %v6834
    %7346 = vmatprep.subr.bf16.mxu0 %v6837
    %7347 = vmatpush1.bf16.msra.mxu0 %v6836
    %7348 = vmatprep.subr.bf16.mxu0 %v6839
    %7349 = vmatpush1.bf16.msra.mxu0 %v6838
    %7350 = vmatprep.subr.bf16.mxu0 %v6841
    %7351 = vmatpush1.bf16.msra.mxu0 %v6840
    %7352 = vmatprep.subr.bf16.mxu0 %v6843
    %7353 = vmatpush1.bf16.msra.mxu0 %v6842
    %7354 = vmatprep.subr.bf16.mxu0 %v6845
    %7355 = vmatpush1.bf16.msra.mxu0 %v6844
    %7356 = vmatprep.subr.bf16.mxu0 %v6847
    %7357 = vmatpush1.bf16.msra.mxu0 %v6846
    %7358 = vmatprep.subr.bf16.mxu0 %v6849
    %7359 = vmatpush1.bf16.msra.mxu0 %v6848
    %7360 = vmatprep.subr.bf16.mxu0 %v6851
    %7361 = vmatpush1.bf16.msra.mxu0 %v6850
    %7362 = vmatprep.mubr.bf16.mxu0 %v6025
    %7363 = vmatmul.mubr.bf16.gmra.mrb[0].mxu0 %v6024
    %v7364 = vpop.f32.mrb[0].mxu0
    %v7365 = vadd.f32 %v7252, %v7364
    %v7366 = vpop.f32.mrb[0].mxu0
    %v7367 = vadd.f32 %v7254, %v7366
    %v7368 = vpop.f32.mrb[0].mxu0
    %v7369 = vadd.f32 %v7256, %v7368
    %v7370 = vpop.f32.mrb[0].mxu0
    %v7371 = vadd.f32 %v7258, %v7370
    %7372 = vmatprep.mubr.bf16.mxu0 %v6036
    %7373 = vmatmul.mubr.bf16.gmra.mrb[0].mxu0 %v6035
    %v7374 = vpop.f32.mrb[0].mxu0
    %v7375 = vadd.f32 %v7262, %v7374
    %v7376 = vpop.f32.mrb[0].mxu0
    %v7377 = vadd.f32 %v7264, %v7376
    %v7378 = vpop.f32.mrb[0].mxu0
    %v7379 = vadd.f32 %v7266, %v7378
    %v7380 = vpop.f32.mrb[0].mxu0
    %v7381 = vadd.f32 %v7268, %v7380
    %7382 = vmatprep.mubr.bf16.mxu0 %v6047
    %7383 = vmatmul.mubr.bf16.gmra.mrb[0].mxu0 %v6046
    %v7384 = vpop.f32.mrb[0].mxu0
    %v7385 = vadd.f32 %v7272, %v7384
    %v7386 = vpop.f32.mrb[0].mxu0
    %v7387 = vadd.f32 %v7274, %v7386
    %v7388 = vpop.f32.mrb[0].mxu0
    %v7389 = vadd.f32 %v7276, %v7388
    %v7390 = vpop.f32.mrb[0].mxu0
    %v7391 = vadd.f32 %v7278, %v7390
    %7392 = vmatprep.mubr.bf16.mxu0 %v6058
    %7393 = vmatmul.mubr.bf16.gmra.mrb[0].mxu0 %v6057
    %v7394 = vpop.f32.mrb[0].mxu0
    %v7395 = vadd.f32 %v7282, %v7394
    %v7396 = vpop.f32.mrb[0].mxu0
    %v7397 = vadd.f32 %v7284, %v7396
    %v7398 = vpop.f32.mrb[0].mxu0
    %v7399 = vadd.f32 %v7286, %v7398
    %v7400 = vpop.f32.mrb[0].mxu0
    %v7401 = vadd.f32 %v7288, %v7400
    %7402 = vmatprep.mubr.bf16.mxu0 %v6069
    %7403 = vmatmul.mubr.bf16.gmra.mrb[0].mxu0 %v6068
    %v7404 = vpop.f32.mrb[0].mxu0
    %v7405 = vadd.f32 %v7292, %v7404
    %v7406 = vpop.f32.mrb[0].mxu0
    %v7407 = vadd.f32 %v7294, %v7406
    %v7408 = vpop.f32.mrb[0].mxu0
    %v7409 = vadd.f32 %v7296, %v7408
    %v7410 = vpop.f32.mrb[0].mxu0
    %v7411 = vadd.f32 %v7298, %v7410
    %7412 = vmatprep.mubr.bf16.mxu0 %v6080
    %7413 = vmatmul.mubr.bf16.gmra.mrb[0].mxu0 %v6079
    %v7414 = vpop.f32.mrb[0].mxu0
    %v7415 = vadd.f32 %v7302, %v7414
    %v7416 = vpop.f32.mrb[0].mxu0
    %v7417 = vadd.f32 %v7304, %v7416
    %v7418 = vpop.f32.mrb[0].mxu0
    %v7419 = vadd.f32 %v7306, %v7418
    %v7420 = vpop.f32.mrb[0].mxu0
    %v7421 = vadd.f32 %v7308, %v7420
    %7422 = vmatprep.mubr.bf16.mxu0 %v6091
    %7423 = vmatmul.mubr.bf16.gmra.mrb[0].mxu0 %v6090
    %v7424 = vpop.f32.mrb[0].mxu0
    %v7425 = vadd.f32 %v7312, %v7424
    %v7426 = vpop.f32.mrb[0].mxu0
    %v7427 = vadd.f32 %v7314, %v7426
    %v7428 = vpop.f32.mrb[0].mxu0
    %v7429 = vadd.f32 %v7316, %v7428
    %v7430 = vpop.f32.mrb[0].mxu0
    %v7431 = vadd.f32 %v7318, %v7430
    %7432 = vmatprep.mubr.bf16.mxu0 %v6102
    %7433 = vmatmul.mubr.bf16.gmra.mrb[0].mxu0 %v6101
    %v7434 = vpop.f32.mrb[0].mxu0
    %v7435 = vadd.f32 %v7322, %v7434
    %v7436 = vpop.f32.mrb[0].mxu0
    %v7437 = vadd.f32 %v7324, %v7436
    %v7438 = vpop.f32.mrb[0].mxu0
    %v7439 = vadd.f32 %v7326, %v7438
    %v7440 = vpop.f32.mrb[0].mxu0
    %v7441 = vadd.f32 %v7328, %v7440
    %7442 = vdwg.mxu0
    %7443 = vmatprep.subr.bf16.mxu0 %v6853
    %7444 = vmatpush1.bf16.msra.mxu0 %v6852
    %7445 = vmatprep.subr.bf16.mxu0 %v6855
    %7446 = vmatpush1.bf16.msra.mxu0 %v6854
    %7447 = vmatprep.subr.bf16.mxu0 %v6857
    %7448 = vmatpush1.bf16.msra.mxu0 %v6856
    %7449 = vmatprep.subr.bf16.mxu0 %v6859
    %7450 = vmatpush1.bf16.msra.mxu0 %v6858
    %7451 = vmatprep.subr.bf16.mxu0 %v6861
    %7452 = vmatpush1.bf16.msra.mxu0 %v6860
    %7453 = vmatprep.subr.bf16.mxu0 %v6863
    %7454 = vmatpush1.bf16.msra.mxu0 %v6862
    %7455 = vmatprep.subr.bf16.mxu0 %v6865
    %7456 = vmatpush1.bf16.msra.mxu0 %v6864
    %7457 = vmatprep.subr.bf16.mxu0 %v6867
    %7458 = vmatpush1.bf16.msra.mxu0 %v6866
    %7459 = vmatprep.subr.bf16.mxu0 %v6869
    %7460 = vmatpush1.bf16.msra.mxu0 %v6868
    %7461 = vmatprep.subr.bf16.mxu0 %v6871
    %7462 = vmatpush1.bf16.msra.mxu0 %v6870
    %7463 = vmatprep.subr.bf16.mxu0 %v6873
    %7464 = vmatpush1.bf16.msra.mxu0 %v6872
    %7465 = vmatprep.subr.bf16.mxu0 %v6875
    %7466 = vmatpush1.bf16.msra.mxu0 %v6874
    %7467 = vmatprep.subr.bf16.mxu0 %v6877
    %7468 = vmatpush1.bf16.msra.mxu0 %v6876
    %7469 = vmatprep.subr.bf16.mxu0 %v6879
    %7470 = vmatpush1.bf16.msra.mxu0 %v6878
    %7471 = vmatprep.subr.bf16.mxu0 %v6881
    %7472 = vmatpush1.bf16.msra.mxu0 %v6880
    %7473 = vmatprep.subr.bf16.mxu0 %v6883
    %7474 = vmatpush1.bf16.msra.mxu0 %v6882
    %7475 = vmatprep.mubr.bf16.mxu0 %v6027
    %7476 = vmatmul.mubr.bf16.gmra.mrb[0].mxu0 %v6026
    %v7477 = vpop.f32.mrb[0].mxu0
    %v7478 = vadd.f32 %v7365, %v7477
    %v7479 = vpop.f32.mrb[0].mxu0
    %v7480 = vadd.f32 %v7367, %v7479
    %v7481 = vpop.f32.mrb[0].mxu0
    %v7482 = vadd.f32 %v7369, %v7481
    %v7483 = vpop.f32.mrb[0].mxu0
    %v7484 = vadd.f32 %v7371, %v7483
    %7485 = vmatprep.mubr.bf16.mxu0 %v6038
    %7486 = vmatmul.mubr.bf16.gmra.mrb[0].mxu0 %v6037
    %v7487 = vpop.f32.mrb[0].mxu0
    %v7488 = vadd.f32 %v7375, %v7487
    %v7489 = vpop.f32.mrb[0].mxu0
    %v7490 = vadd.f32 %v7377, %v7489
    %v7491 = vpop.f32.mrb[0].mxu0
    %v7492 = vadd.f32 %v7379, %v7491
    %v7493 = vpop.f32.mrb[0].mxu0
    %v7494 = vadd.f32 %v7381, %v7493
    %7495 = vmatprep.mubr.bf16.mxu0 %v6049
    %7496 = vmatmul.mubr.bf16.gmra.mrb[0].mxu0 %v6048
    %v7497 = vpop.f32.mrb[0].mxu0
    %v7498 = vadd.f32 %v7385, %v7497
    %v7499 = vpop.f32.mrb[0].mxu0
    %v7500 = vadd.f32 %v7387, %v7499
    %v7501 = vpop.f32.mrb[0].mxu0
    %v7502 = vadd.f32 %v7389, %v7501
    %v7503 = vpop.f32.mrb[0].mxu0
    %v7504 = vadd.f32 %v7391, %v7503
    %7505 = vmatprep.mubr.bf16.mxu0 %v6060
    %7506 = vmatmul.mubr.bf16.gmra.mrb[0].mxu0 %v6059
    %v7507 = vpop.f32.mrb[0].mxu0
    %v7508 = vadd.f32 %v7395, %v7507
    %v7509 = vpop.f32.mrb[0].mxu0
    %v7510 = vadd.f32 %v7397, %v7509
    %v7511 = vpop.f32.mrb[0].mxu0
    %v7512 = vadd.f32 %v7399, %v7511
    %v7513 = vpop.f32.mrb[0].mxu0
    %v7514 = vadd.f32 %v7401, %v7513
    %7515 = vmatprep.mubr.bf16.mxu0 %v6071
    %7516 = vmatmul.mubr.bf16.gmra.mrb[0].mxu0 %v6070
    %v7517 = vpop.f32.mrb[0].mxu0
    %v7518 = vadd.f32 %v7405, %v7517
    %v7519 = vpop.f32.mrb[0].mxu0
    %v7520 = vadd.f32 %v7407, %v7519
    %v7521 = vpop.f32.mrb[0].mxu0
    %v7522 = vadd.f32 %v7409, %v7521
    %v7523 = vpop.f32.mrb[0].mxu0
    %v7524 = vadd.f32 %v7411, %v7523
    %7525 = vmatprep.mubr.bf16.mxu0 %v6082
    %7526 = vmatmul.mubr.bf16.gmra.mrb[0].mxu0 %v6081
    %v7527 = vpop.f32.mrb[0].mxu0
    %v7528 = vadd.f32 %v7415, %v7527
    %v7529 = vpop.f32.mrb[0].mxu0
    %v7530 = vadd.f32 %v7417, %v7529
    %v7531 = vpop.f32.mrb[0].mxu0
    %v7532 = vadd.f32 %v7419, %v7531
    %v7533 = vpop.f32.mrb[0].mxu0
    %v7534 = vadd.f32 %v7421, %v7533
    %7535 = vmatprep.mubr.bf16.mxu0 %v6093
    %7536 = vmatmul.mubr.bf16.gmra.mrb[0].mxu0 %v6092
    %v7537 = vpop.f32.mrb[0].mxu0
    %v7538 = vadd.f32 %v7425, %v7537
    %v7539 = vpop.f32.mrb[0].mxu0
    %v7540 = vadd.f32 %v7427, %v7539
    %v7541 = vpop.f32.mrb[0].mxu0
    %v7542 = vadd.f32 %v7429, %v7541
    %v7543 = vpop.f32.mrb[0].mxu0
    %v7544 = vadd.f32 %v7431, %v7543
    %7545 = vmatprep.mubr.bf16.mxu0 %v6104
    %7546 = vmatmul.mubr.bf16.gmra.mrb[0].mxu0 %v6103
    %v7547 = vpop.f32.mrb[0].mxu0
    %v7548 = vadd.f32 %v7435, %v7547
    %v7549 = vpop.f32.mrb[0].mxu0
    %v7550 = vadd.f32 %v7437, %v7549
    %v7551 = vpop.f32.mrb[0].mxu0
    %v7552 = vadd.f32 %v7439, %v7551
    %v7553 = vpop.f32.mrb[0].mxu0
    %v7554 = vadd.f32 %v7441, %v7553
    %7555 = vdwg.mxu0
    %7556 = vmatprep.subr.bf16.mxu0 %v6885
    %7557 = vmatpush1.bf16.msra.mxu0 %v6884
    %7558 = vmatprep.subr.bf16.mxu0 %v6887
    %7559 = vmatpush1.bf16.msra.mxu0 %v6886
    %7560 = vmatprep.subr.bf16.mxu0 %v6889
    %7561 = vmatpush1.bf16.msra.mxu0 %v6888
    %7562 = vmatprep.subr.bf16.mxu0 %v6891
    %7563 = vmatpush1.bf16.msra.mxu0 %v6890
    %7564 = vmatprep.subr.bf16.mxu0 %v6893
    %7565 = vmatpush1.bf16.msra.mxu0 %v6892
    %7566 = vmatprep.subr.bf16.mxu0 %v6895
    %7567 = vmatpush1.bf16.msra.mxu0 %v6894
    %7568 = vmatprep.subr.bf16.mxu0 %v6897
    %7569 = vmatpush1.bf16.msra.mxu0 %v6896
    %7570 = vmatprep.subr.bf16.mxu0 %v6899
    %7571 = vmatpush1.bf16.msra.mxu0 %v6898
    %7572 = vmatprep.subr.bf16.mxu0 %v6901
    %7573 = vmatpush1.bf16.msra.mxu0 %v6900
    %7574 = vmatprep.subr.bf16.mxu0 %v6903
    %7575 = vmatpush1.bf16.msra.mxu0 %v6902
    %7576 = vmatprep.subr.bf16.mxu0 %v6905
    %7577 = vmatpush1.bf16.msra.mxu0 %v6904
    %7578 = vmatprep.subr.bf16.mxu0 %v6907
    %7579 = vmatpush1.bf16.msra.mxu0 %v6906
    %7580 = vmatprep.subr.bf16.mxu0 %v6909
    %7581 = vmatpush1.bf16.msra.mxu0 %v6908
    %7582 = vmatprep.subr.bf16.mxu0 %v6911
    %7583 = vmatpush1.bf16.msra.mxu0 %v6910
    %7584 = vmatprep.subr.bf16.mxu0 %v6913
    %7585 = vmatpush1.bf16.msra.mxu0 %v6912
    %7586 = vmatprep.subr.bf16.mxu0 %v6915
    %7587 = vmatpush1.bf16.msra.mxu0 %v6914
    %7588 = vmatprep.mubr.bf16.mxu0 %v6029
    %7589 = vmatmul.mubr.bf16.gmra.mrb[0].mxu0 %v6028
    %v7590 = vpop.f32.mrb[0].mxu0
    %v7591 = vadd.f32 %v7478, %v7590
    %v7592 = vpop.f32.mrb[0].mxu0
    %v7593 = vadd.f32 %v7480, %v7592
    %v7594 = vpop.f32.mrb[0].mxu0
    %v7595 = vadd.f32 %v7482, %v7594
    %v7596 = vpop.f32.mrb[0].mxu0
    %v7597 = vadd.f32 %v7484, %v7596
    %7598 = vmatprep.mubr.bf16.mxu0 %v6040
    %7599 = vmatmul.mubr.bf16.gmra.mrb[0].mxu0 %v6039
    %v7600 = vpop.f32.mrb[0].mxu0
    %v7601 = vadd.f32 %v7488, %v7600
    %v7602 = vpop.f32.mrb[0].mxu0
    %v7603 = vadd.f32 %v7490, %v7602
    %v7604 = vpop.f32.mrb[0].mxu0
    %v7605 = vadd.f32 %v7492, %v7604
    %v7606 = vpop.f32.mrb[0].mxu0
    %v7607 = vadd.f32 %v7494, %v7606
    %7608 = vmatprep.mubr.bf16.mxu0 %v6051
    %7609 = vmatmul.mubr.bf16.gmra.mrb[0].mxu0 %v6050
    %v7610 = vpop.f32.mrb[0].mxu0
    %v7611 = vadd.f32 %v7498, %v7610
    %v7612 = vpop.f32.mrb[0].mxu0
    %v7613 = vadd.f32 %v7500, %v7612
    %v7614 = vpop.f32.mrb[0].mxu0
    %v7615 = vadd.f32 %v7502, %v7614
    %v7616 = vpop.f32.mrb[0].mxu0
    %v7617 = vadd.f32 %v7504, %v7616
    %7618 = vmatprep.mubr.bf16.mxu0 %v6062
    %7619 = vmatmul.mubr.bf16.gmra.mrb[0].mxu0 %v6061
    %v7620 = vpop.f32.mrb[0].mxu0
    %v7621 = vadd.f32 %v7508, %v7620
    %v7622 = vpop.f32.mrb[0].mxu0
    %v7623 = vadd.f32 %v7510, %v7622
    %v7624 = vpop.f32.mrb[0].mxu0
    %v7625 = vadd.f32 %v7512, %v7624
    %v7626 = vpop.f32.mrb[0].mxu0
    %v7627 = vadd.f32 %v7514, %v7626
    %7628 = vmatprep.mubr.bf16.mxu0 %v6073
    %7629 = vmatmul.mubr.bf16.gmra.mrb[0].mxu0 %v6072
    %v7630 = vpop.f32.mrb[0].mxu0
    %v7631 = vadd.f32 %v7518, %v7630
    %v7632 = vpop.f32.mrb[0].mxu0
    %v7633 = vadd.f32 %v7520, %v7632
    %v7634 = vpop.f32.mrb[0].mxu0
    %v7635 = vadd.f32 %v7522, %v7634
    %v7636 = vpop.f32.mrb[0].mxu0
    %v7637 = vadd.f32 %v7524, %v7636
    %7638 = vmatprep.mubr.bf16.mxu0 %v6084
    %7639 = vmatmul.mubr.bf16.gmra.mrb[0].mxu0 %v6083
    %v7640 = vpop.f32.mrb[0].mxu0
    %v7641 = vadd.f32 %v7528, %v7640
    %v7642 = vpop.f32.mrb[0].mxu0
    %v7643 = vadd.f32 %v7530, %v7642
    %v7644 = vpop.f32.mrb[0].mxu0
    %v7645 = vadd.f32 %v7532, %v7644
    %v7646 = vpop.f32.mrb[0].mxu0
    %v7647 = vadd.f32 %v7534, %v7646
    %7648 = vmatprep.mubr.bf16.mxu0 %v6095
    %7649 = vmatmul.mubr.bf16.gmra.mrb[0].mxu0 %v6094
    %v7650 = vpop.f32.mrb[0].mxu0
    %v7651 = vadd.f32 %v7538, %v7650
    %v7652 = vpop.f32.mrb[0].mxu0
    %v7653 = vadd.f32 %v7540, %v7652
    %v7654 = vpop.f32.mrb[0].mxu0
    %v7655 = vadd.f32 %v7542, %v7654
    %v7656 = vpop.f32.mrb[0].mxu0
    %v7657 = vadd.f32 %v7544, %v7656
    %7658 = vmatprep.mubr.bf16.mxu0 %v6106
    %7659 = vmatmul.mubr.bf16.gmra.mrb[0].mxu0 %v6105
    %v7660 = vpop.f32.mrb[0].mxu0
    %v7661 = vadd.f32 %v7548, %v7660
    %v7662 = vpop.f32.mrb[0].mxu0
    %v7663 = vadd.f32 %v7550, %v7662
    %v7664 = vpop.f32.mrb[0].mxu0
    %v7665 = vadd.f32 %v7552, %v7664
    %v7666 = vpop.f32.mrb[0].mxu0
    %v7667 = vadd.f32 %v7554, %v7666
    %7668 = vdwg.mxu0
    %7669 = vmatprep.subr.bf16.mxu0 %v6917
    %7670 = vmatpush1.bf16.msra.mxu0 %v6916
    %7671 = vmatprep.subr.bf16.mxu0 0
    %7672 = vmatpush1.bf16.msra.mxu0 0
    %7673 = vmatprep.subr.bf16.mxu0 0
    %7674 = vmatpush1.bf16.msra.mxu0 0
    %7675 = vmatprep.subr.bf16.mxu0 0
    %7676 = vmatpush1.bf16.msra.mxu0 0
    %7677 = vmatprep.subr.bf16.mxu0 0
    %7678 = vmatpush1.bf16.msra.mxu0 0
    %7679 = vmatprep.subr.bf16.mxu0 0
    %7680 = vmatpush1.bf16.msra.mxu0 0
    %7681 = vmatprep.subr.bf16.mxu0 0
    %7682 = vmatpush1.bf16.msra.mxu0 0
    %7683 = vmatprep.subr.bf16.mxu0 0
    %7684 = vmatpush1.bf16.msra.mxu0 0
    %7685 = vmatprep.subr.bf16.mxu0 0
    %7686 = vmatpush1.bf16.msra.mxu0 0
    %7687 = vmatprep.subr.bf16.mxu0 0
    %7688 = vmatpush1.bf16.msra.mxu0 0
    %7689 = vmatprep.subr.bf16.mxu0 0
    %7690 = vmatpush1.bf16.msra.mxu0 0
    %7691 = vmatprep.subr.bf16.mxu0 0
    %7692 = vmatpush1.bf16.msra.mxu0 0
    %7693 = vmatprep.subr.bf16.mxu0 0
    %7694 = vmatpush1.bf16.msra.mxu0 0
    %7695 = vmatprep.subr.bf16.mxu0 0
    %7696 = vmatpush1.bf16.msra.mxu0 0
    %7697 = vmatprep.subr.bf16.mxu0 0
    %7698 = vmatpush1.bf16.msra.mxu0 0
    %7699 = vmatprep.subr.bf16.mxu0 0
    %7700 = vmatpush1.bf16.msra.mxu0 0
    %7701 = vmatprep.mubr.bf16.mxu0 0
    %7702 = vmatmul.mubr.bf16.gmra.mrb[0].mxu0 %v7081
    %v7703 = vpop.f32.mrb[0].mxu0
    %v7704 = vadd.f32 %v7591, %v7703
    %v7705 = vpop.f32.mrb[0].mxu0
    %v7706 = vadd.f32 %v7593, %v7705
    %v7707 = vpop.f32.mrb[0].mxu0
    %v7708 = vadd.f32 %v7595, %v7707
    %v7709 = vpop.f32.mrb[0].mxu0
    %v7710 = vadd.f32 %v7597, %v7709
    %7711 = vmatprep.mubr.bf16.mxu0 0
    %7712 = vmatmul.mubr.bf16.gmra.mrb[0].mxu0 %v7084
    %v7713 = vpop.f32.mrb[0].mxu0
    %v7714 = vadd.f32 %v7601, %v7713
    %v7715 = vpop.f32.mrb[0].mxu0
    %v7716 = vadd.f32 %v7603, %v7715
    %v7717 = vpop.f32.mrb[0].mxu0
    %v7718 = vadd.f32 %v7605, %v7717
    %v7719 = vpop.f32.mrb[0].mxu0
    %v7720 = vadd.f32 %v7607, %v7719
    %7721 = vmatprep.mubr.bf16.mxu0 0
    %7722 = vmatmul.mubr.bf16.gmra.mrb[0].mxu0 %v7087
    %v7723 = vpop.f32.mrb[0].mxu0
    %v7724 = vadd.f32 %v7611, %v7723
    %v7725 = vpop.f32.mrb[0].mxu0
    %v7726 = vadd.f32 %v7613, %v7725
    %v7727 = vpop.f32.mrb[0].mxu0
    %v7728 = vadd.f32 %v7615, %v7727
    %v7729 = vpop.f32.mrb[0].mxu0
    %v7730 = vadd.f32 %v7617, %v7729
    %7731 = vmatprep.mubr.bf16.mxu0 0
    %7732 = vmatmul.mubr.bf16.gmra.mrb[0].mxu0 %v7090
    %v7733 = vpop.f32.mrb[0].mxu0
    %v7734 = vadd.f32 %v7621, %v7733
    %v7735 = vpop.f32.mrb[0].mxu0
    %v7736 = vadd.f32 %v7623, %v7735
    %v7737 = vpop.f32.mrb[0].mxu0
    %v7738 = vadd.f32 %v7625, %v7737
    %v7739 = vpop.f32.mrb[0].mxu0
    %v7740 = vadd.f32 %v7627, %v7739
    %7741 = vmatprep.mubr.bf16.mxu0 0
    %7742 = vmatmul.mubr.bf16.gmra.mrb[0].mxu0 %v7093
    %v7743 = vpop.f32.mrb[0].mxu0
    %v7744 = vadd.f32 %v7631, %v7743
    %v7745 = vpop.f32.mrb[0].mxu0
    %v7746 = vadd.f32 %v7633, %v7745
    %v7747 = vpop.f32.mrb[0].mxu0
    %v7748 = vadd.f32 %v7635, %v7747
    %v7749 = vpop.f32.mrb[0].mxu0
    %v7750 = vadd.f32 %v7637, %v7749
    %7751 = vmatprep.mubr.bf16.mxu0 0
    %7752 = vmatmul.mubr.bf16.gmra.mrb[0].mxu0 %v7096
    %v7753 = vpop.f32.mrb[0].mxu0
    %v7754 = vadd.f32 %v7641, %v7753
    %v7755 = vpop.f32.mrb[0].mxu0
    %v7756 = vadd.f32 %v7643, %v7755
    %v7757 = vpop.f32.mrb[0].mxu0
    %v7758 = vadd.f32 %v7645, %v7757
    %v7759 = vpop.f32.mrb[0].mxu0
    %v7760 = vadd.f32 %v7647, %v7759
    %7761 = vmatprep.mubr.bf16.mxu0 0
    %7762 = vmatmul.mubr.bf16.gmra.mrb[0].mxu0 %v7099
    %v7763 = vpop.f32.mrb[0].mxu0
    %v7764 = vadd.f32 %v7651, %v7763
    %v7765 = vpop.f32.mrb[0].mxu0
    %v7766 = vadd.f32 %v7653, %v7765
    %v7767 = vpop.f32.mrb[0].mxu0
    %v7768 = vadd.f32 %v7655, %v7767
    %v7769 = vpop.f32.mrb[0].mxu0
    %v7770 = vadd.f32 %v7657, %v7769
    %7771 = vmatprep.mubr.bf16.mxu0 0
    %7772 = vmatmul.mubr.bf16.gmra.mrb[0].mxu0 %v7102
    %v7773 = vpop.f32.mrb[0].mxu0
    %v7774 = vadd.f32 %v7661, %v7773
    %v7775 = vpop.f32.mrb[0].mxu0
    %v7776 = vadd.f32 %v7663, %v7775
    %v7777 = vpop.f32.mrb[0].mxu0
    %v7778 = vadd.f32 %v7665, %v7777
    %v7779 = vpop.f32.mrb[0].mxu0
    %v7780 = vadd.f32 %v7667, %v7779
    %7781 = vdwg.mxu0
    %7782 = vst [vmem:[#allocation17] sm:$0xff] %v7704
    %7783 = vst.msk [vmem:[#allocation17 + $0x8] sm:$0xff] %vm247, %v7706
    %7784 = vst [vmem:[#allocation17 + $0x10] sm:$0xff] %v7708
    %7785 = vst.msk [vmem:[#allocation17 + $0x18] sm:$0xff] %vm247, %v7710
    %7786 = vst [vmem:[#allocation17 + $0x20] sm:$0xff] %v7714
    %7787 = vst.msk [vmem:[#allocation17 + $0x28] sm:$0xff] %vm247, %v7716
    %7788 = vst [vmem:[#allocation17 + $0x30] sm:$0xff] %v7718
    %7789 = vst.msk [vmem:[#allocation17 + $0x38] sm:$0xff] %vm247, %v7720
    %7790 = vst [vmem:[#allocation17 + $0x40] sm:$0xff] %v7724
    %7791 = vst.msk [vmem:[#allocation17 + $0x48] sm:$0xff] %vm247, %v7726
    %7792 = vst [vmem:[#allocation17 + $0x50] sm:$0xff] %v7728
    %7793 = vst.msk [vmem:[#allocation17 + $0x58] sm:$0xff] %vm247, %v7730
    %7794 = vst [vmem:[#allocation17 + $0x60] sm:$0xff] %v7734
    %7795 = vst.msk [vmem:[#allocation17 + $0x68] sm:$0xff] %vm247, %v7736
    %7796 = vst [vmem:[#allocation17 + $0x70] sm:$0xff] %v7738
    %7797 = vst.msk [vmem:[#allocation17 + $0x78] sm:$0xff] %vm247, %v7740
    %7798 = vst [vmem:[#allocation17 + $0x80] sm:$0xff] %v7744
    %7799 = vst.msk [vmem:[#allocation17 + $0x88] sm:$0xff] %vm247, %v7746
    %7800 = vst [vmem:[#allocation17 + $0x90] sm:$0xff] %v7748
    %7801 = vst.msk [vmem:[#allocation17 + $0x98] sm:$0xff] %vm247, %v7750
    %7802 = vst [vmem:[#allocation17 + $0xa0] sm:$0xff] %v7754
    %7803 = vst.msk [vmem:[#allocation17 + $0xa8] sm:$0xff] %vm247, %v7756
    %7804 = vst [vmem:[#allocation17 + $0xb0] sm:$0xff] %v7758
    %7805 = vst.msk [vmem:[#allocation17 + $0xb8] sm:$0xff] %vm247, %v7760
    %7806 = vst [vmem:[#allocation17 + $0xc0] sm:$0xff] %v7764
    %7807 = vst.msk [vmem:[#allocation17 + $0xc8] sm:$0xff] %vm247, %v7766
    %7808 = vst [vmem:[#allocation17 + $0xd0] sm:$0xff] %v7768
    %7809 = vst.msk [vmem:[#allocation17 + $0xd8] sm:$0xff] %vm247, %v7770
    %7810 = vst [vmem:[#allocation17 + $0xe0] sm:$0xff] %v7774
    %7811 = vst.msk [vmem:[#allocation17 + $0xe8] sm:$0xff] %vm247, %v7776
    %7812 = vst [vmem:[#allocation17 + $0xf0] sm:$0xff] %v7778
    %7813 = vst.msk [vmem:[#allocation17 + $0xf8] sm:$0xff] %vm247, %v7780
    // Predicated region
    $region74: #{tpu_custom_call.1} parent=1 // pred_check
      _
    $region75: #{tpu_custom_call.1} parent=1 // pred_check_branch
      %7815 = sbr.rel (0) target = $region77
    $region76: #{tpu_custom_call.1} parent=1 // pred_region
      %s7817 = ssub.s32 4096, 4096
      %7818 = vsyncadd [#allocation4], %s7817
      %s7819 = sshll.u32 [#allocation17], 4
      %s7820 = int_to_ptr.vmem [resolvable:$true] %s7819
      %7825 = dma.vmem_to_hbm [thread:$0]  %s7820, 4096, %s9, [#allocation4], 256, 256, 16
    $region77: #{tpu_custom_call.1} parent=1 // pred_fallthru
      _
    // Predicated region
    $region78: #{tpu_custom_call.1} parent=1 // pred_check
      _
    $region79: #{tpu_custom_call.1} parent=1 // pred_check_branch
      %7827 = sbr.rel (0) target = $region81
    $region80: #{tpu_custom_call.1} parent=1 // pred_region
      %7828 = dma.done [#allocation4], 4096
    $region81: #{tpu_custom_call.1} parent=1 // pred_fallthru
      _
    %7829 = vsyncpa [#allocation3], 1
    %7830 = vsyncpa [#allocation6], 1
    %7831 = vsyncpa [#allocation9], 1
    %7832 = vsyncpa [#allocation12], 1
    %7833 = vsyncpa [#allocation15], 1
    %7834 = vsyncpa [#allocation4], 1

</llo_original>
